<compile_context>
chip_gen: v6e
topology: v6e:2x2x1
jax: 0.10.0
libtpu: 0.0.40
codegen_flags: <defaults>
</compile_context>

<pallas_src>
import jax
import jax.numpy as jnp
from jax.experimental import pallas as pl
from jax.experimental.pallas import tpu as pltpu


# ----------------------------------------------------------------------------- helpers
def bn_fold(gamma, beta, mean, var, eps=1e-5):
    scale = gamma / jnp.sqrt(var + eps)
    shift = beta - mean * scale
    return scale, shift


class KeyGen:
    def __init__(self, key):
        self.key = key

    def __call__(self):
        self.key, sub = jax.random.split(self.key)
        return sub


def _w(key, shape, scale=0.05):
    return jax.random.normal(key, shape, dtype=jnp.float32) * scale


def video_im2col(x_ncdhw, k=3):
    B, C, T, H, W = x_ncdhw.shape
    To, Ho, Wo = T - k + 1, H - k + 1, W - k + 1
    cols = []
    for dt in range(k):
        for dh in range(k):
            for dw in range(k):
                cols.append(x_ncdhw[:, :, dt:dt + To, dh:dh + Ho, dw:dw + Wo])
    cols = jnp.stack(cols, axis=2)                       # [B, C, k^3, To, Ho, Wo]
    cols = cols.reshape(B, C * k ** 3, To * Ho * Wo)
    return jnp.transpose(cols, (0, 2, 1))                # [B, P, C*k^3]


# ----------------------------------------------------------------------------- fused kernel
def fused_kernel(
        # per-batch activations (squeezed batch dim)
        maskw_ref, emb_ref, vpat_ref, xa_ref,
        # text weights
        twp_ref, tbp_ref, twproj_ref,
        # video weights
        vwstem_ref, vwstage_ref, vbstage_ref, vwfc_ref,
        # audio weights
        aw1_ref, aw2_ref, awp_ref,
        # fusion + packed heads
        fwf_ref, fbn_ref, hw1_ref, hw2_ref,
        # packed [10,128] slab of small bias / folded-BN vectors
        vecs_ref,
        # output: [1,128] packed logits (emotions lanes 0:7, sentiments 7:10)
        out_ref,
        # scratch
        apool_ref):
    f32, bf16 = jnp.float32, jnp.bfloat16

    def bdot(a, b):  # bf16 MXU matmul with f32 accumulate
        return jnp.dot(a.astype(bf16), b, preferred_element_type=f32)

    # packed small vectors (f32)
    tbproj = vecs_ref[0:1, :]
    vbstem = vecs_ref[1:2, 0:64]
    vbfc = vecs_ref[2:3, :]
    abn1_s = vecs_ref[3:4, 0:64]
    abn1_h = vecs_ref[4:5, 0:64]
    abn2_s = vecs_ref[5:6, :]
    abn2_h = vecs_ref[6:7, :]
    abp = vecs_ref[7:8, :]
    hb1 = vecs_ref[8:9, :]
    hb2 = vecs_ref[9:10, :]

    # ------------------------- text encoder -------------------------
    # masked mean with f32 coefficients (tiny [1,S]@[S,768] matvec, no block-diag matrix)
    pooled_t = jnp.dot(maskw_ref[...], emb_ref[...].astype(f32),
                       preferred_element_type=f32)                                # [1,768]
    pooler = jnp.tanh(bdot(pooled_t, twp_ref[...]) + tbp_ref[...])                # BERT-style pooler
    tfeat = bdot(pooler, twproj_ref[...]) + tbproj                                # Linear(768,128)

    # ------------------------- video encoder -------------------------
    h = jnp.maximum(bdot(vpat_ref[...], vwstem_ref[...]) + vbstem, 0.0)           # stem conv+ReLU [P,64]
    pooled_v = jnp.mean(h, axis=0, keepdims=True)                                 # global avg pool [1,64]
    feat_v = jnp.maximum(bdot(pooled_v, vwstage_ref[...]) + vbstage_ref[...], 0.0)  # stage stand-in [1,512]
    vfeat = jnp.maximum(bdot(feat_v, vwfc_ref[...]) + vbfc, 0.0)                  # replaced fc + ReLU [1,128]

    # ------------------------- audio encoder -------------------------
    L = xa_ref.shape[0]
    L1 = L - 2                      # Conv1d(k=3) output length
    P1 = L1 // 2                    # MaxPool1d(2)
    L2 = P1 - 2                     # second Conv1d(k=3)

    # Conv1d(64,64,k=3): evaluate directly at even / odd output positions with
    # stride-2 taps from the input ref (no selection matrices, no shifted value copies).
    def conv1_at(parity):
        acc = bdot(xa_ref[pl.ds(parity + 0, P1, stride=2), :], aw1_ref[0])
        acc = acc + bdot(xa_ref[pl.ds(parity + 1, P1, stride=2), :], aw1_ref[1])
        acc = acc + bdot(xa_ref[pl.ds(parity + 2, P1, stride=2), :], aw1_ref[2])
        return jnp.maximum(acc * abn1_s + abn1_h, 0.0)                            # folded BN + ReLU

    pooled_a = jnp.maximum(conv1_at(0), conv1_at(1))                              # MaxPool1d(2) [P1,64]
    apool_ref[...] = pooled_a

    # Conv1d(64,128,k=3): 3 taps as cheap ref loads at sublane offsets 0/1/2.
    acc = bdot(apool_ref[0:L2, :], aw2_ref[0])
    acc = acc + bdot(apool_ref[1:L2 + 1, :], aw2_ref[1])
    acc = acc + bdot(apool_ref[2:L2 + 2, :], aw2_ref[2])
    z = jnp.maximum(acc * abn2_s + abn2_h, 0.0)                                   # folded BN + ReLU [L2,128]
    afeat = jnp.mean(z, axis=0, keepdims=True)                                    # AdaptiveAvgPool1d(1) [1,128]
    afeat = jnp.maximum(bdot(afeat, awp_ref[...]) + abp, 0.0)                     # projection + ReLU

    # ------------------------- fusion + classifier heads -------------------------
    combined = jnp.concatenate([tfeat, vfeat, afeat], axis=-1)                    # [1,384]
    fused = bdot(combined, fwf_ref[...])
    fused = jnp.maximum(fused * fbn_ref[0:1, :] + fbn_ref[1:2, :], 0.0)           # folded BN + ReLU [1,256]
    hh = jnp.maximum(bdot(fused, hw1_ref[...]) + hb1, 0.0)                        # [1,128] = [emo64 | sen64]
    out_ref[...] = bdot(hh, hw2_ref[...]) + hb2                                   # packed logits [1,128]


# ----------------------------------------------------------------------------- forward
@jax.jit
def multimodal_sentiment_forward(params, input_ids, attention_mask, video_frames, audio_features):
    B, S = input_ids.shape

    # ---- text prep: embedding gather + f32 masked-mean coefficients ----
    emb = jnp.take(params["emb_table"], input_ids, axis=0)                        # [B,S,768] bf16
    mask = attention_mask.astype(jnp.float32)
    denom = jnp.maximum(jnp.sum(mask, axis=1, keepdims=True), 1.0)
    maskw = (mask / denom)[:, None, :]                                            # [B,1,S] f32

    # ---- video prep: im2col (bf16, NO 81->128 activation padding) ----
    xv = jnp.transpose(video_frames, (0, 2, 1, 3, 4))                             # B,T,C,H,W -> B,C,T,H,W
    patches = video_im2col(xv, k=3).astype(jnp.bfloat16)                          # [B,P,C*27]
    _, P, F = patches.shape

    # ---- audio prep: channels-last only; taps / pooling happen in-kernel ----
    xa = jnp.transpose(audio_features[:, 0], (0, 2, 1)).astype(jnp.float32)       # [B,L,64]
    L = xa.shape[1]
    P1 = (L - 2) // 2
    L2 = P1 - 2
    assert L2 >= 1

    def wspec(arr):                                                               # grid-invariant weight block
        shp = arr.shape
        return pl.BlockSpec(shp, lambda b, n=len(shp): (0,) * n)

    out = pl.pallas_call(
        fused_kernel,
        out_shape=jax.ShapeDtypeStruct((B, 1, 128), jnp.float32),
        grid=(B,),
        in_specs=[
            pl.BlockSpec((None, 1, S), lambda b: (b, 0, 0)),        # maskw
            pl.BlockSpec((None, S, 768), lambda b: (b, 0, 0)),      # emb
            pl.BlockSpec((None, P, F), lambda b: (b, 0, 0)),        # video patches
            pl.BlockSpec((None, L, 64), lambda b: (b, 0, 0)),       # audio
            wspec(params["text_wp"]), wspec(params["text_bp"]), wspec(params["text_wproj"]),
            wspec(params["vid_wstem"]), wspec(params["vid_wstage"]),
            wspec(params["vid_bstage"]), wspec(params["vid_wfc"]),
            wspec(params["aud_w1"]), wspec(params["aud_w2"]), wspec(params["aud_wp"]),
            wspec(params["fus_wf"]), wspec(params["fus_bn"]),
            wspec(params["head_w1"]), wspec(params["head_w2"]),
            wspec(params["vecs"]),
        ],
        out_specs=pl.BlockSpec((None, 1, 128), lambda b: (b, 0, 0)),
        scratch_shapes=[pltpu.VMEM((P1, 64), jnp.float32)],
        compiler_params=pltpu.CompilerParams(
            dimension_semantics=("parallel",),
            vmem_limit_bytes=32 * 1024 * 1024),
    )(maskw, emb, patches, xa,
      params["text_wp"], params["text_bp"], params["text_wproj"],
      params["vid_wstem"], params["vid_wstage"], params["vid_bstage"], params["vid_wfc"],
      params["aud_w1"], params["aud_w2"], params["aud_wp"],
      params["fus_wf"], params["fus_bn"], params["head_w1"], params["head_w2"],
      params["vecs"])

    logits = out[:, 0, :]
    return {"emotions": logits[:, 0:7], "sentiments": logits[:, 7:10]}


# ----------------------------------------------------------------------------- params
def init_params(kg, vocab=1000, vid_in_feat=81):
    f32, bf16 = jnp.float32, jnp.bfloat16

    def bn(c):
        gamma = 1.0 + 0.1 * jax.random.normal(kg(), (1, c), dtype=f32)
        beta = 0.1 * jax.random.normal(kg(), (1, c), dtype=f32)
        mean = 0.1 * jax.random.normal(kg(), (1, c), dtype=f32)
        var = 1.0 + 0.1 * jnp.abs(jax.random.normal(kg(), (1, c), dtype=f32))
        return bn_fold(gamma, beta, mean, var)

    def pad128(v):
        return jnp.pad(v, ((0, 0), (0, 128 - v.shape[-1])))

    p = {}
    # Text encoder (BERT stand-in pooler + Linear(768,128)); Linear weights stored [in, out], bf16.
    p["emb_table"] = _w(kg(), (vocab, 768)).astype(bf16)
    p["text_wp"] = _w(kg(), (768, 768)).astype(bf16)
    p["text_bp"] = _w(kg(), (1, 768))
    p["text_wproj"] = _w(kg(), (768, 128)).astype(bf16)
    text_bproj = _w(kg(), (1, 128))

    # Video encoder (conv3d stem via im2col K=81 + stage stand-in + replaced fc Linear(512,128)).
    p["vid_wstem"] = _w(kg(), (vid_in_feat, 64)).astype(bf16)          # no 81->128 padding
    vid_bstem = _w(kg(), (1, 64))
    p["vid_wstage"] = _w(kg(), (64, 512)).astype(bf16)
    p["vid_bstage"] = _w(kg(), (1, 512))
    p["vid_wfc"] = _w(kg(), (512, 128)).astype(bf16)
    vid_bfc = _w(kg(), (1, 128))

    # Audio encoder: conv biases folded into the eval-mode BN scale/shift pairs (kept f32).
    w1, b1 = _w(kg(), (3, 64, 64)), _w(kg(), (1, 64))
    s1, h1 = bn(64)
    p["aud_w1"] = w1.astype(bf16)                                      # [3,64,64] per-tap
    w2, b2 = _w(kg(), (3, 64, 128)), _w(kg(), (1, 128))
    s2, h2 = bn(128)
    p["aud_w2"] = w2.astype(bf16)                                      # [3,64,128] per-tap
    p["aud_wp"] = _w(kg(), (128, 128)).astype(bf16)
    aud_bp = _w(kg(), (1, 128))

    # Fusion layer + classifier heads packed into lane-dense 128-wide matrices.
    wf, bf_ = _w(kg(), (384, 256)), _w(kg(), (1, 256))
    sf, hf = bn(256)
    p["fus_wf"] = wf.astype(bf16)
    p["fus_bn"] = jnp.concatenate([sf, bf_ * sf + hf], axis=0)         # [2,256] scale/shift (f32)
    emo_w1, emo_b1 = _w(kg(), (256, 64)), _w(kg(), (1, 64))
    emo_w2, emo_b2 = _w(kg(), (64, 7)), _w(kg(), (1, 7))
    sen_w1, sen_b1 = _w(kg(), (256, 64)), _w(kg(), (1, 64))
    sen_w2, sen_b2 = _w(kg(), (64, 3)), _w(kg(), (1, 3))
    p["head_w1"] = jnp.concatenate([emo_w1, sen_w1], axis=1).astype(bf16)   # [256,128]
    head_b1 = jnp.concatenate([emo_b1, sen_b1], axis=1)
    w2big = jnp.zeros((128, 128), f32)
    p["head_w2"] = w2big.at[0:64, 0:7].set(emo_w2).at[64:128, 7:10].set(sen_w2).astype(bf16)
    head_b2 = jnp.zeros((1, 128), f32).at[:, 0:7].set(emo_b2).at[:, 7:10].set(sen_b2)

    # Packed [10,128] slab of the small f32 vectors: one DMA instead of ten.
    p["vecs"] = jnp.concatenate([
        text_bproj,              # 0
        pad128(vid_bstem),       # 1  (64 valid lanes)
        vid_bfc,                 # 2
        pad128(s1),              # 3  audio BN1 scale (64 valid lanes)
        pad128(b1 * s1 + h1),    # 4  audio BN1 shift (conv bias folded)
        s2,                      # 5  audio BN2 scale
        b2 * s2 + h2,            # 6  audio BN2 shift (conv bias folded)
        aud_bp,                  # 7
        head_b1,                 # 8
        head_b2,                 # 9
    ], axis=0)
    return p


# ----------------------------------------------------------------------------- main
if __name__ == "__main__":
    kg = KeyGen(jax.random.PRNGKey(0))
    B, S = 2, 8                              # batch, text sequence length
    T, C_img, H_img, W_img = 8, 3, 16, 16    # video frames
    L_audio, VOCAB = 16, 1000

    params = init_params(kg, vocab=VOCAB, vid_in_feat=C_img * 27)

    input_ids = jax.random.randint(kg(), (B, S), 0, VOCAB)
    lengths = jnp.array([S, 5], dtype=jnp.int32)
    attention_mask = (jnp.arange(S)[None, :] < lengths[:, None]).astype(jnp.float32)
    video_frames = jax.random.normal(kg(), (B, T, C_img, H_img, W_img), dtype=jnp.float32)
    audio_features = jax.random.normal(kg(), (B, 1, 64, L_audio), dtype=jnp.float32)

    out = multimodal_sentiment_forward(params, input_ids, attention_mask,
                                       video_frames, audio_features)
    out = jax.tree_util.tree_map(jax.block_until_ready, out)

    assert out["emotions"].shape == (B, 7)
    assert out["sentiments"].shape == (B, 3)
    assert bool(jnp.all(jnp.isfinite(out["emotions"])))
    assert bool(jnp.all(jnp.isfinite(out["sentiments"])))
    print("KERNEL_OK")
</pallas_src>

<mosaic_0001>
module attributes {stable_mosaic.version = 11 : i64} {
  func.func @fused_kernel(%arg0: i32, %arg1: memref<1x1x8xf32, #tpu.memory_space<vmem>>, %arg2: memref<1x8x768xbf16, #tpu.memory_space<vmem>>, %arg3: memref<1x1176x81xbf16, #tpu.memory_space<vmem>>, %arg4: memref<1x16x64xf32, #tpu.memory_space<vmem>>, %arg5: memref<768x768xbf16, #tpu.memory_space<vmem>>, %arg6: memref<1x768xf32, #tpu.memory_space<vmem>>, %arg7: memref<768x128xbf16, #tpu.memory_space<vmem>>, %arg8: memref<81x64xbf16, #tpu.memory_space<vmem>>, %arg9: memref<64x512xbf16, #tpu.memory_space<vmem>>, %arg10: memref<1x512xf32, #tpu.memory_space<vmem>>, %arg11: memref<512x128xbf16, #tpu.memory_space<vmem>>, %arg12: memref<3x64x64xbf16, #tpu.memory_space<vmem>>, %arg13: memref<3x64x128xbf16, #tpu.memory_space<vmem>>, %arg14: memref<128x128xbf16, #tpu.memory_space<vmem>>, %arg15: memref<384x256xbf16, #tpu.memory_space<vmem>>, %arg16: memref<2x256xf32, #tpu.memory_space<vmem>>, %arg17: memref<256x128xbf16, #tpu.memory_space<vmem>>, %arg18: memref<128x128xbf16, #tpu.memory_space<vmem>>, %arg19: memref<10x128xf32, #tpu.memory_space<vmem>>, %arg20: memref<1x1x128xf32, #tpu.memory_space<vmem>>, %arg21: memref<7x64xf32, #tpu.memory_space<vmem>>) attributes {dimension_semantics = [#tpu.dimension_semantics<parallel>], iteration_bounds = array<i64: 2>, scalar_prefetch = 0 : i64, scratch_operands = 1 : i64, tpu.core_type = #tpu.core_type<tc>, window_params = [{transform_indices = @transform_0, window_bounds = array<i64: 1, 1, 8>}, {transform_indices = @transform_1, window_bounds = array<i64: 1, 8, 768>}, {transform_indices = @transform_2, window_bounds = array<i64: 1, 1176, 81>}, {transform_indices = @transform_3, window_bounds = array<i64: 1, 16, 64>}, {pipeline_mode = #tpu.pipeline_mode<synchronous>, transform_indices = @transform_4, window_bounds = array<i64: 768, 768>}, {pipeline_mode = #tpu.pipeline_mode<synchronous>, transform_indices = @transform_5, window_bounds = array<i64: 1, 768>}, {pipeline_mode = #tpu.pipeline_mode<synchronous>, transform_indices = @transform_6, window_bounds = array<i64: 768, 128>}, {pipeline_mode = #tpu.pipeline_mode<synchronous>, transform_indices = @transform_7, window_bounds = array<i64: 81, 64>}, {pipeline_mode = #tpu.pipeline_mode<synchronous>, transform_indices = @transform_8, window_bounds = array<i64: 64, 512>}, {pipeline_mode = #tpu.pipeline_mode<synchronous>, transform_indices = @transform_9, window_bounds = array<i64: 1, 512>}, {pipeline_mode = #tpu.pipeline_mode<synchronous>, transform_indices = @transform_10, window_bounds = array<i64: 512, 128>}, {pipeline_mode = #tpu.pipeline_mode<synchronous>, transform_indices = @transform_11, window_bounds = array<i64: 3, 64, 64>}, {pipeline_mode = #tpu.pipeline_mode<synchronous>, transform_indices = @transform_12, window_bounds = array<i64: 3, 64, 128>}, {pipeline_mode = #tpu.pipeline_mode<synchronous>, transform_indices = @transform_13, window_bounds = array<i64: 128, 128>}, {pipeline_mode = #tpu.pipeline_mode<synchronous>, transform_indices = @transform_14, window_bounds = array<i64: 384, 256>}, {pipeline_mode = #tpu.pipeline_mode<synchronous>, transform_indices = @transform_15, window_bounds = array<i64: 2, 256>}, {pipeline_mode = #tpu.pipeline_mode<synchronous>, transform_indices = @transform_16, window_bounds = array<i64: 256, 128>}, {pipeline_mode = #tpu.pipeline_mode<synchronous>, transform_indices = @transform_17, window_bounds = array<i64: 128, 128>}, {pipeline_mode = #tpu.pipeline_mode<synchronous>, transform_indices = @transform_18, window_bounds = array<i64: 10, 128>}, {transform_indices = @transform_19, window_bounds = array<i64: 1, 1, 128>}]} {
    %c0 = arith.constant 0 : index
    %c0_0 = arith.constant 0 : index
    %0 = vector.load %arg19[%c0, %c0_0] : memref<10x128xf32, #tpu.memory_space<vmem>>, vector<1x128xf32>
    %c1 = arith.constant 1 : index
    %c0_1 = arith.constant 0 : index
    %1 = vector.load %arg19[%c1, %c0_1] : memref<10x128xf32, #tpu.memory_space<vmem>>, vector<1x64xf32>
    %c2 = arith.constant 2 : index
    %c0_2 = arith.constant 0 : index
    %2 = vector.load %arg19[%c2, %c0_2] : memref<10x128xf32, #tpu.memory_space<vmem>>, vector<1x128xf32>
    %c3 = arith.constant 3 : index
    %c0_3 = arith.constant 0 : index
    %3 = vector.load %arg19[%c3, %c0_3] : memref<10x128xf32, #tpu.memory_space<vmem>>, vector<1x64xf32>
    %c4 = arith.constant 4 : index
    %c0_4 = arith.constant 0 : index
    %4 = vector.load %arg19[%c4, %c0_4] : memref<10x128xf32, #tpu.memory_space<vmem>>, vector<1x64xf32>
    %c5 = arith.constant 5 : index
    %c0_5 = arith.constant 0 : index
    %5 = vector.load %arg19[%c5, %c0_5] : memref<10x128xf32, #tpu.memory_space<vmem>>, vector<1x128xf32>
    %c6 = arith.constant 6 : index
    %c0_6 = arith.constant 0 : index
    %6 = vector.load %arg19[%c6, %c0_6] : memref<10x128xf32, #tpu.memory_space<vmem>>, vector<1x128xf32>
    %c7 = arith.constant 7 : index
    %c0_7 = arith.constant 0 : index
    %7 = vector.load %arg19[%c7, %c0_7] : memref<10x128xf32, #tpu.memory_space<vmem>>, vector<1x128xf32>
    %c8 = arith.constant 8 : index
    %c0_8 = arith.constant 0 : index
    %8 = vector.load %arg19[%c8, %c0_8] : memref<10x128xf32, #tpu.memory_space<vmem>>, vector<1x128xf32>
    %c9 = arith.constant 9 : index
    %c0_9 = arith.constant 0 : index
    %9 = vector.load %arg19[%c9, %c0_9] : memref<10x128xf32, #tpu.memory_space<vmem>>, vector<1x128xf32>
    %c0_10 = arith.constant 0 : index
    %c0_11 = arith.constant 0 : index
    %c0_12 = arith.constant 0 : index
    %10 = vector.load %arg1[%c0_10, %c0_11, %c0_12] : memref<1x1x8xf32, #tpu.memory_space<vmem>>, vector<1x1x8xf32>
    %11 = vector.shape_cast %10 : vector<1x1x8xf32> to vector<1x8xf32>
    %c0_13 = arith.constant 0 : index
    %c0_14 = arith.constant 0 : index
    %c0_15 = arith.constant 0 : index
    %12 = vector.load %arg2[%c0_13, %c0_14, %c0_15] : memref<1x8x768xbf16, #tpu.memory_space<vmem>>, vector<1x8x768xbf16>
    %13 = vector.shape_cast %12 : vector<1x8x768xbf16> to vector<8x768xbf16>
    %14 = arith.extf %13 : vector<8x768xbf16> to vector<8x768xf32>
    %cst = arith.constant dense<0.000000e+00> : vector<1x768xf32>
    %15 = tpu.matmul %11, %14, %cst {dimension_numbers = #tpu.dot_dimension_numbers<[1], [0], [0], [1], [0, 0, 1, 1], [], []>} : vector<1x8xf32>, vector<8x768xf32>, vector<1x768xf32> -> vector<1x768xf32>
    %c0_16 = arith.constant 0 : index
    %c0_17 = arith.constant 0 : index
    %16 = vector.load %arg5[%c0_16, %c0_17] : memref<768x768xbf16, #tpu.memory_space<vmem>>, vector<768x768xbf16>
    %17 = arith.truncf %15 : vector<1x768xf32> to vector<1x768xbf16>
    %cst_18 = arith.constant dense<0.000000e+00> : vector<1x768xf32>
    %18 = tpu.matmul %17, %16, %cst_18 {dimension_numbers = #tpu.dot_dimension_numbers<[1], [0], [0], [1], [0, 0, 1, 1], [], []>} : vector<1x768xbf16>, vector<768x768xbf16>, vector<1x768xf32> -> vector<1x768xf32>
    %c0_19 = arith.constant 0 : index
    %c0_20 = arith.constant 0 : index
    %19 = vector.load %arg6[%c0_19, %c0_20] : memref<1x768xf32, #tpu.memory_space<vmem>>, vector<1x768xf32>
    %20 = arith.addf %18, %19 : vector<1x768xf32>
    %21 = math.tanh %20 : vector<1x768xf32>
    %c0_21 = arith.constant 0 : index
    %c0_22 = arith.constant 0 : index
    %22 = vector.load %arg7[%c0_21, %c0_22] : memref<768x128xbf16, #tpu.memory_space<vmem>>, vector<768x128xbf16>
    %23 = arith.truncf %21 : vector<1x768xf32> to vector<1x768xbf16>
    %cst_23 = arith.constant dense<0.000000e+00> : vector<1x128xf32>
    %24 = tpu.matmul %23, %22, %cst_23 {dimension_numbers = #tpu.dot_dimension_numbers<[1], [0], [0], [1], [0, 0, 1, 1], [], []>} : vector<1x768xbf16>, vector<768x128xbf16>, vector<1x128xf32> -> vector<1x128xf32>
    %25 = arith.addf %24, %0 : vector<1x128xf32>
    %c0_24 = arith.constant 0 : index
    %c0_25 = arith.constant 0 : index
    %c0_26 = arith.constant 0 : index
    %26 = vector.load %arg3[%c0_24, %c0_25, %c0_26] : memref<1x1176x81xbf16, #tpu.memory_space<vmem>>, vector<1x1176x81xbf16>
    %27 = vector.shape_cast %26 : vector<1x1176x81xbf16> to vector<1176x81xbf16>
    %c0_27 = arith.constant 0 : index
    %c0_28 = arith.constant 0 : index
    %28 = vector.load %arg8[%c0_27, %c0_28] : memref<81x64xbf16, #tpu.memory_space<vmem>>, vector<81x64xbf16>
    %cst_29 = arith.constant dense<0.000000e+00> : vector<1176x64xf32>
    %29 = tpu.matmul %27, %28, %cst_29 {dimension_numbers = #tpu.dot_dimension_numbers<[1], [0], [0], [1], [0, 0, 1, 1], [], []>} : vector<1176x81xbf16>, vector<81x64xbf16>, vector<1176x64xf32> -> vector<1176x64xf32>
    %30 = vector.broadcast %1 : vector<1x64xf32> to vector<1176x64xf32>
    %31 = arith.addf %29, %30 : vector<1176x64xf32>
    %cst_30 = arith.constant 0.000000e+00 : f32
    %32 = vector.broadcast %cst_30 : f32 to vector<1176x64xf32>
    %33 = arith.maximumf %31, %32 : vector<1176x64xf32>
    %cst_31 = arith.constant dense<0.000000e+00> : vector<64xf32>
    %34 = vector.multi_reduction <add>, %33, %cst_31 [0] : vector<1176x64xf32> to vector<64xf32>
    %35 = vector.shape_cast %34 : vector<64xf32> to vector<1x64xf32>
    %cst_32 = arith.constant 1.176000e+03 : f32
    %36 = vector.broadcast %cst_32 : f32 to vector<1x64xf32>
    %37 = arith.divf %35, %36 : vector<1x64xf32>
    %c0_33 = arith.constant 0 : index
    %c0_34 = arith.constant 0 : index
    %38 = vector.load %arg9[%c0_33, %c0_34] : memref<64x512xbf16, #tpu.memory_space<vmem>>, vector<64x512xbf16>
    %39 = arith.truncf %37 : vector<1x64xf32> to vector<1x64xbf16>
    %cst_35 = arith.constant dense<0.000000e+00> : vector<1x512xf32>
    %40 = tpu.matmul %39, %38, %cst_35 {dimension_numbers = #tpu.dot_dimension_numbers<[1], [0], [0], [1], [0, 0, 1, 1], [], []>} : vector<1x64xbf16>, vector<64x512xbf16>, vector<1x512xf32> -> vector<1x512xf32>
    %c0_36 = arith.constant 0 : index
    %c0_37 = arith.constant 0 : index
    %41 = vector.load %arg10[%c0_36, %c0_37] : memref<1x512xf32, #tpu.memory_space<vmem>>, vector<1x512xf32>
    %42 = arith.addf %40, %41 : vector<1x512xf32>
    %cst_38 = arith.constant 0.000000e+00 : f32
    %43 = vector.broadcast %cst_38 : f32 to vector<1x512xf32>
    %44 = arith.maximumf %42, %43 : vector<1x512xf32>
    %c0_39 = arith.constant 0 : index
    %c0_40 = arith.constant 0 : index
    %45 = vector.load %arg11[%c0_39, %c0_40] : memref<512x128xbf16, #tpu.memory_space<vmem>>, vector<512x128xbf16>
    %46 = arith.truncf %44 : vector<1x512xf32> to vector<1x512xbf16>
    %cst_41 = arith.constant dense<0.000000e+00> : vector<1x128xf32>
    %47 = tpu.matmul %46, %45, %cst_41 {dimension_numbers = #tpu.dot_dimension_numbers<[1], [0], [0], [1], [0, 0, 1, 1], [], []>} : vector<1x512xbf16>, vector<512x128xbf16>, vector<1x128xf32> -> vector<1x128xf32>
    %48 = arith.addf %47, %2 : vector<1x128xf32>
    %cst_42 = arith.constant 0.000000e+00 : f32
    %49 = vector.broadcast %cst_42 : f32 to vector<1x128xf32>
    %50 = arith.maximumf %48, %49 : vector<1x128xf32>
    %c0_43 = arith.constant 0 : index
    %c0_44 = arith.constant 0 : index
    %c0_45 = arith.constant 0 : index
    %51 = tpu.strided_load %arg4[%c0_43, %c0_44, %c0_45] {strides = array<i32: 1, 2, 1>} : memref<1x16x64xf32, #tpu.memory_space<vmem>>, vector<1x7x64xf32>
    %52 = vector.shape_cast %51 : vector<1x7x64xf32> to vector<7x64xf32>
    %c0_46 = arith.constant 0 : index
    %c0_47 = arith.constant 0 : index
    %c0_48 = arith.constant 0 : index
    %53 = vector.load %arg12[%c0_46, %c0_47, %c0_48] : memref<3x64x64xbf16, #tpu.memory_space<vmem>>, vector<1x64x64xbf16>
    %54 = vector.shape_cast %53 : vector<1x64x64xbf16> to vector<64x64xbf16>
    %55 = arith.truncf %52 : vector<7x64xf32> to vector<7x64xbf16>
    %cst_49 = arith.constant dense<0.000000e+00> : vector<7x64xf32>
    %56 = tpu.matmul %55, %54, %cst_49 {dimension_numbers = #tpu.dot_dimension_numbers<[1], [0], [0], [1], [0, 0, 1, 1], [], []>} : vector<7x64xbf16>, vector<64x64xbf16>, vector<7x64xf32> -> vector<7x64xf32>
    %c0_50 = arith.constant 0 : index
    %c1_51 = arith.constant 1 : index
    %c0_52 = arith.constant 0 : index
    %57 = tpu.strided_load %arg4[%c0_50, %c1_51, %c0_52] {strides = array<i32: 1, 2, 1>} : memref<1x16x64xf32, #tpu.memory_space<vmem>>, vector<1x7x64xf32>
    %58 = vector.shape_cast %57 : vector<1x7x64xf32> to vector<7x64xf32>
    %c1_53 = arith.constant 1 : index
    %c0_54 = arith.constant 0 : index
    %c0_55 = arith.constant 0 : index
    %59 = vector.load %arg12[%c1_53, %c0_54, %c0_55] : memref<3x64x64xbf16, #tpu.memory_space<vmem>>, vector<1x64x64xbf16>
    %60 = vector.shape_cast %59 : vector<1x64x64xbf16> to vector<64x64xbf16>
    %61 = arith.truncf %58 : vector<7x64xf32> to vector<7x64xbf16>
    %cst_56 = arith.constant dense<0.000000e+00> : vector<7x64xf32>
    %62 = tpu.matmul %61, %60, %cst_56 {dimension_numbers = #tpu.dot_dimension_numbers<[1], [0], [0], [1], [0, 0, 1, 1], [], []>} : vector<7x64xbf16>, vector<64x64xbf16>, vector<7x64xf32> -> vector<7x64xf32>
    %63 = arith.addf %56, %62 : vector<7x64xf32>
    %c0_57 = arith.constant 0 : index
    %c2_58 = arith.constant 2 : index
    %c0_59 = arith.constant 0 : index
    %64 = tpu.strided_load %arg4[%c0_57, %c2_58, %c0_59] {strides = array<i32: 1, 2, 1>} : memref<1x16x64xf32, #tpu.memory_space<vmem>>, vector<1x7x64xf32>
    %65 = vector.shape_cast %64 : vector<1x7x64xf32> to vector<7x64xf32>
    %c2_60 = arith.constant 2 : index
    %c0_61 = arith.constant 0 : index
    %c0_62 = arith.constant 0 : index
    %66 = vector.load %arg12[%c2_60, %c0_61, %c0_62] : memref<3x64x64xbf16, #tpu.memory_space<vmem>>, vector<1x64x64xbf16>
    %67 = vector.shape_cast %66 : vector<1x64x64xbf16> to vector<64x64xbf16>
    %68 = arith.truncf %65 : vector<7x64xf32> to vector<7x64xbf16>
    %cst_63 = arith.constant dense<0.000000e+00> : vector<7x64xf32>
    %69 = tpu.matmul %68, %67, %cst_63 {dimension_numbers = #tpu.dot_dimension_numbers<[1], [0], [0], [1], [0, 0, 1, 1], [], []>} : vector<7x64xbf16>, vector<64x64xbf16>, vector<7x64xf32> -> vector<7x64xf32>
    %70 = arith.addf %63, %69 : vector<7x64xf32>
    %71 = vector.broadcast %3 : vector<1x64xf32> to vector<7x64xf32>
    %72 = arith.mulf %70, %71 : vector<7x64xf32>
    %73 = vector.broadcast %4 : vector<1x64xf32> to vector<7x64xf32>
    %74 = arith.addf %72, %73 : vector<7x64xf32>
    %cst_64 = arith.constant 0.000000e+00 : f32
    %75 = vector.broadcast %cst_64 : f32 to vector<7x64xf32>
    %76 = arith.maximumf %74, %75 : vector<7x64xf32>
    %c0_65 = arith.constant 0 : index
    %c1_66 = arith.constant 1 : index
    %c0_67 = arith.constant 0 : index
    %77 = tpu.strided_load %arg4[%c0_65, %c1_66, %c0_67] {strides = array<i32: 1, 2, 1>} : memref<1x16x64xf32, #tpu.memory_space<vmem>>, vector<1x7x64xf32>
    %78 = vector.shape_cast %77 : vector<1x7x64xf32> to vector<7x64xf32>
    %c0_68 = arith.constant 0 : index
    %c0_69 = arith.constant 0 : index
    %c0_70 = arith.constant 0 : index
    %79 = vector.load %arg12[%c0_68, %c0_69, %c0_70] : memref<3x64x64xbf16, #tpu.memory_space<vmem>>, vector<1x64x64xbf16>
    %80 = vector.shape_cast %79 : vector<1x64x64xbf16> to vector<64x64xbf16>
    %81 = arith.truncf %78 : vector<7x64xf32> to vector<7x64xbf16>
    %cst_71 = arith.constant dense<0.000000e+00> : vector<7x64xf32>
    %82 = tpu.matmul %81, %80, %cst_71 {dimension_numbers = #tpu.dot_dimension_numbers<[1], [0], [0], [1], [0, 0, 1, 1], [], []>} : vector<7x64xbf16>, vector<64x64xbf16>, vector<7x64xf32> -> vector<7x64xf32>
    %c0_72 = arith.constant 0 : index
    %c2_73 = arith.constant 2 : index
    %c0_74 = arith.constant 0 : index
    %83 = tpu.strided_load %arg4[%c0_72, %c2_73, %c0_74] {strides = array<i32: 1, 2, 1>} : memref<1x16x64xf32, #tpu.memory_space<vmem>>, vector<1x7x64xf32>
    %84 = vector.shape_cast %83 : vector<1x7x64xf32> to vector<7x64xf32>
    %c1_75 = arith.constant 1 : index
    %c0_76 = arith.constant 0 : index
    %c0_77 = arith.constant 0 : index
    %85 = vector.load %arg12[%c1_75, %c0_76, %c0_77] : memref<3x64x64xbf16, #tpu.memory_space<vmem>>, vector<1x64x64xbf16>
    %86 = vector.shape_cast %85 : vector<1x64x64xbf16> to vector<64x64xbf16>
    %87 = arith.truncf %84 : vector<7x64xf32> to vector<7x64xbf16>
    %cst_78 = arith.constant dense<0.000000e+00> : vector<7x64xf32>
    %88 = tpu.matmul %87, %86, %cst_78 {dimension_numbers = #tpu.dot_dimension_numbers<[1], [0], [0], [1], [0, 0, 1, 1], [], []>} : vector<7x64xbf16>, vector<64x64xbf16>, vector<7x64xf32> -> vector<7x64xf32>
    %89 = arith.addf %82, %88 : vector<7x64xf32>
    %c0_79 = arith.constant 0 : index
    %c3_80 = arith.constant 3 : index
    %c0_81 = arith.constant 0 : index
    %90 = tpu.strided_load %arg4[%c0_79, %c3_80, %c0_81] {strides = array<i32: 1, 2, 1>} : memref<1x16x64xf32, #tpu.memory_space<vmem>>, vector<1x7x64xf32>
    %91 = vector.shape_cast %90 : vector<1x7x64xf32> to vector<7x64xf32>
    %c2_82 = arith.constant 2 : index
    %c0_83 = arith.constant 0 : index
    %c0_84 = arith.constant 0 : index
    %92 = vector.load %arg12[%c2_82, %c0_83, %c0_84] : memref<3x64x64xbf16, #tpu.memory_space<vmem>>, vector<1x64x64xbf16>
    %93 = vector.shape_cast %92 : vector<1x64x64xbf16> to vector<64x64xbf16>
    %94 = arith.truncf %91 : vector<7x64xf32> to vector<7x64xbf16>
    %cst_85 = arith.constant dense<0.000000e+00> : vector<7x64xf32>
    %95 = tpu.matmul %94, %93, %cst_85 {dimension_numbers = #tpu.dot_dimension_numbers<[1], [0], [0], [1], [0, 0, 1, 1], [], []>} : vector<7x64xbf16>, vector<64x64xbf16>, vector<7x64xf32> -> vector<7x64xf32>
    %96 = arith.addf %89, %95 : vector<7x64xf32>
    %97 = vector.broadcast %3 : vector<1x64xf32> to vector<7x64xf32>
    %98 = arith.mulf %96, %97 : vector<7x64xf32>
    %99 = vector.broadcast %4 : vector<1x64xf32> to vector<7x64xf32>
    %100 = arith.addf %98, %99 : vector<7x64xf32>
    %cst_86 = arith.constant 0.000000e+00 : f32
    %101 = vector.broadcast %cst_86 : f32 to vector<7x64xf32>
    %102 = arith.maximumf %100, %101 : vector<7x64xf32>
    %103 = arith.maximumf %76, %102 : vector<7x64xf32>
    %c0_87 = arith.constant 0 : index
    %c0_88 = arith.constant 0 : index
    %104 = vector.load %arg21[%c0_87, %c0_88] : memref<7x64xf32, #tpu.memory_space<vmem>>, vector<7x64xf32>
    tpu.vector_store %arg21[%c0_87, %c0_88], %103 {strides = array<i32>} : memref<7x64xf32, #tpu.memory_space<vmem>>, vector<7x64xf32>,
    %c0_89 = arith.constant 0 : index
    %c0_90 = arith.constant 0 : index
    %105 = vector.load %arg21[%c0_89, %c0_90] : memref<7x64xf32, #tpu.memory_space<vmem>>, vector<5x64xf32>
    %c0_91 = arith.constant 0 : index
    %c0_92 = arith.constant 0 : index
    %c0_93 = arith.constant 0 : index
    %106 = vector.load %arg13[%c0_91, %c0_92, %c0_93] : memref<3x64x128xbf16, #tpu.memory_space<vmem>>, vector<1x64x128xbf16>
    %107 = vector.shape_cast %106 : vector<1x64x128xbf16> to vector<64x128xbf16>
    %108 = arith.truncf %105 : vector<5x64xf32> to vector<5x64xbf16>
    %cst_94 = arith.constant dense<0.000000e+00> : vector<5x128xf32>
    %109 = tpu.matmul %108, %107, %cst_94 {dimension_numbers = #tpu.dot_dimension_numbers<[1], [0], [0], [1], [0, 0, 1, 1], [], []>} : vector<5x64xbf16>, vector<64x128xbf16>, vector<5x128xf32> -> vector<5x128xf32>
    %c1_95 = arith.constant 1 : index
    %c0_96 = arith.constant 0 : index
    %110 = vector.load %arg21[%c1_95, %c0_96] : memref<7x64xf32, #tpu.memory_space<vmem>>, vector<5x64xf32>
    %c1_97 = arith.constant 1 : index
    %c0_98 = arith.constant 0 : index
    %c0_99 = arith.constant 0 : index
    %111 = vector.load %arg13[%c1_97, %c0_98, %c0_99] : memref<3x64x128xbf16, #tpu.memory_space<vmem>>, vector<1x64x128xbf16>
    %112 = vector.shape_cast %111 : vector<1x64x128xbf16> to vector<64x128xbf16>
    %113 = arith.truncf %110 : vector<5x64xf32> to vector<5x64xbf16>
    %cst_100 = arith.constant dense<0.000000e+00> : vector<5x128xf32>
    %114 = tpu.matmul %113, %112, %cst_100 {dimension_numbers = #tpu.dot_dimension_numbers<[1], [0], [0], [1], [0, 0, 1, 1], [], []>} : vector<5x64xbf16>, vector<64x128xbf16>, vector<5x128xf32> -> vector<5x128xf32>
    %115 = arith.addf %109, %114 : vector<5x128xf32>
    %c2_101 = arith.constant 2 : index
    %c0_102 = arith.constant 0 : index
    %116 = vector.load %arg21[%c2_101, %c0_102] : memref<7x64xf32, #tpu.memory_space<vmem>>, vector<5x64xf32>
    %c2_103 = arith.constant 2 : index
    %c0_104 = arith.constant 0 : index
    %c0_105 = arith.constant 0 : index
    %117 = vector.load %arg13[%c2_103, %c0_104, %c0_105] : memref<3x64x128xbf16, #tpu.memory_space<vmem>>, vector<1x64x128xbf16>
    %118 = vector.shape_cast %117 : vector<1x64x128xbf16> to vector<64x128xbf16>
    %119 = arith.truncf %116 : vector<5x64xf32> to vector<5x64xbf16>
    %cst_106 = arith.constant dense<0.000000e+00> : vector<5x128xf32>
    %120 = tpu.matmul %119, %118, %cst_106 {dimension_numbers = #tpu.dot_dimension_numbers<[1], [0], [0], [1], [0, 0, 1, 1], [], []>} : vector<5x64xbf16>, vector<64x128xbf16>, vector<5x128xf32> -> vector<5x128xf32>
    %121 = arith.addf %115, %120 : vector<5x128xf32>
    %122 = vector.broadcast %5 : vector<1x128xf32> to vector<5x128xf32>
    %123 = arith.mulf %121, %122 : vector<5x128xf32>
    %124 = vector.broadcast %6 : vector<1x128xf32> to vector<5x128xf32>
    %125 = arith.addf %123, %124 : vector<5x128xf32>
    %cst_107 = arith.constant 0.000000e+00 : f32
    %126 = vector.broadcast %cst_107 : f32 to vector<5x128xf32>
    %127 = arith.maximumf %125, %126 : vector<5x128xf32>
    %cst_108 = arith.constant dense<0.000000e+00> : vector<128xf32>
    %128 = vector.multi_reduction <add>, %127, %cst_108 [0] : vector<5x128xf32> to vector<128xf32>
    %129 = vector.shape_cast %128 : vector<128xf32> to vector<1x128xf32>
    %cst_109 = arith.constant 5.000000e+00 : f32
    %130 = vector.broadcast %cst_109 : f32 to vector<1x128xf32>
    %131 = arith.divf %129, %130 : vector<1x128xf32>
    %c0_110 = arith.constant 0 : index
    %c0_111 = arith.constant 0 : index
    %132 = vector.load %arg14[%c0_110, %c0_111] : memref<128x128xbf16, #tpu.memory_space<vmem>>, vector<128x128xbf16>
    %133 = arith.truncf %131 : vector<1x128xf32> to vector<1x128xbf16>
    %cst_112 = arith.constant dense<0.000000e+00> : vector<1x128xf32>
    %134 = tpu.matmul %133, %132, %cst_112 {dimension_numbers = #tpu.dot_dimension_numbers<[1], [0], [0], [1], [0, 0, 1, 1], [], []>} : vector<1x128xbf16>, vector<128x128xbf16>, vector<1x128xf32> -> vector<1x128xf32>
    %135 = arith.addf %134, %7 : vector<1x128xf32>
    %cst_113 = arith.constant 0.000000e+00 : f32
    %136 = vector.broadcast %cst_113 : f32 to vector<1x128xf32>
    %137 = arith.maximumf %135, %136 : vector<1x128xf32>
    %138 = tpu.concatenate %25, %50, %137 in 1 : vector<1x128xf32>, vector<1x128xf32>, vector<1x128xf32> -> vector<1x384xf32>
    %c0_114 = arith.constant 0 : index
    %c0_115 = arith.constant 0 : index
    %139 = vector.load %arg15[%c0_114, %c0_115] : memref<384x256xbf16, #tpu.memory_space<vmem>>, vector<384x256xbf16>
    %140 = arith.truncf %138 : vector<1x384xf32> to vector<1x384xbf16>
    %cst_116 = arith.constant dense<0.000000e+00> : vector<1x256xf32>
    %141 = tpu.matmul %140, %139, %cst_116 {dimension_numbers = #tpu.dot_dimension_numbers<[1], [0], [0], [1], [0, 0, 1, 1], [], []>} : vector<1x384xbf16>, vector<384x256xbf16>, vector<1x256xf32> -> vector<1x256xf32>
    %c0_117 = arith.constant 0 : index
    %c0_118 = arith.constant 0 : index
    %142 = vector.load %arg16[%c0_117, %c0_118] : memref<2x256xf32, #tpu.memory_space<vmem>>, vector<1x256xf32>
    %143 = arith.mulf %141, %142 : vector<1x256xf32>
    %c1_119 = arith.constant 1 : index
    %c0_120 = arith.constant 0 : index
    %144 = vector.load %arg16[%c1_119, %c0_120] : memref<2x256xf32, #tpu.memory_space<vmem>>, vector<1x256xf32>
    %145 = arith.addf %143, %144 : vector<1x256xf32>
    %cst_121 = arith.constant 0.000000e+00 : f32
    %146 = vector.broadcast %cst_121 : f32 to vector<1x256xf32>
    %147 = arith.maximumf %145, %146 : vector<1x256xf32>
    %c0_122 = arith.constant 0 : index
    %c0_123 = arith.constant 0 : index
    %148 = vector.load %arg17[%c0_122, %c0_123] : memref<256x128xbf16, #tpu.memory_space<vmem>>, vector<256x128xbf16>
    %149 = arith.truncf %147 : vector<1x256xf32> to vector<1x256xbf16>
    %cst_124 = arith.constant dense<0.000000e+00> : vector<1x128xf32>
    %150 = tpu.matmul %149, %148, %cst_124 {dimension_numbers = #tpu.dot_dimension_numbers<[1], [0], [0], [1], [0, 0, 1, 1], [], []>} : vector<1x256xbf16>, vector<256x128xbf16>, vector<1x128xf32> -> vector<1x128xf32>
    %151 = arith.addf %150, %8 : vector<1x128xf32>
    %cst_125 = arith.constant 0.000000e+00 : f32
    %152 = vector.broadcast %cst_125 : f32 to vector<1x128xf32>
    %153 = arith.maximumf %151, %152 : vector<1x128xf32>
    %c0_126 = arith.constant 0 : index
    %c0_127 = arith.constant 0 : index
    %154 = vector.load %arg18[%c0_126, %c0_127] : memref<128x128xbf16, #tpu.memory_space<vmem>>, vector<128x128xbf16>
    %155 = arith.truncf %153 : vector<1x128xf32> to vector<1x128xbf16>
    %cst_128 = arith.constant dense<0.000000e+00> : vector<1x128xf32>
    %156 = tpu.matmul %155, %154, %cst_128 {dimension_numbers = #tpu.dot_dimension_numbers<[1], [0], [0], [1], [0, 0, 1, 1], [], []>} : vector<1x128xbf16>, vector<128x128xbf16>, vector<1x128xf32> -> vector<1x128xf32>
    %157 = arith.addf %156, %9 : vector<1x128xf32>
    %c0_129 = arith.constant 0 : index
    %c0_130 = arith.constant 0 : index
    %c0_131 = arith.constant 0 : index
    %158 = vector.load %arg20[%c0_129, %c0_130, %c0_131] : memref<1x1x128xf32, #tpu.memory_space<vmem>>, vector<1x1x128xf32>
    %159 = vector.shape_cast %158 : vector<1x1x128xf32> to vector<1x128xf32>
    %160 = vector.shape_cast %157 : vector<1x128xf32> to vector<1x1x128xf32>
    tpu.vector_store %arg20[%c0_129, %c0_130, %c0_131], %160 {strides = array<i32>} : memref<1x1x128xf32, #tpu.memory_space<vmem>>, vector<1x1x128xf32>,
    return
  }
  func.func @transform_0(%arg0: i32) -> (i32, i32, i32) {
    %c0_i32 = arith.constant 0 : i32
    %c0_i32_0 = arith.constant 0 : i32
    %c0_i32_1 = arith.constant 0 : i32
    return %arg0, %c0_i32, %c0_i32_0 : i32, i32, i32
  }
  func.func @transform_1(%arg0: i32) -> (i32, i32, i32) {
    %c0_i32 = arith.constant 0 : i32
    %c0_i32_0 = arith.constant 0 : i32
    %c0_i32_1 = arith.constant 0 : i32
    return %arg0, %c0_i32, %c0_i32_0 : i32, i32, i32
  }
  func.func @transform_2(%arg0: i32) -> (i32, i32, i32) {
    %c0_i32 = arith.constant 0 : i32
    %c0_i32_0 = arith.constant 0 : i32
    %c0_i32_1 = arith.constant 0 : i32
    return %arg0, %c0_i32, %c0_i32_0 : i32, i32, i32
  }
  func.func @transform_3(%arg0: i32) -> (i32, i32, i32) {
    %c0_i32 = arith.constant 0 : i32
    %c0_i32_0 = arith.constant 0 : i32
    %c0_i32_1 = arith.constant 0 : i32
    return %arg0, %c0_i32, %c0_i32_0 : i32, i32, i32
  }
  func.func @transform_4(%arg0: i32) -> (i32, i32) {
    %c0_i32 = arith.constant 0 : i32
    %c0_i32_0 = arith.constant 0 : i32
    %c0_i32_1 = arith.constant 0 : i32
    return %c0_i32, %c0_i32_0 : i32, i32
  }
  func.func @transform_5(%arg0: i32) -> (i32, i32) {
    %c0_i32 = arith.constant 0 : i32
    %c0_i32_0 = arith.constant 0 : i32
    %c0_i32_1 = arith.constant 0 : i32
    return %c0_i32, %c0_i32_0 : i32, i32
  }
  func.func @transform_6(%arg0: i32) -> (i32, i32) {
    %c0_i32 = arith.constant 0 : i32
    %c0_i32_0 = arith.constant 0 : i32
    %c0_i32_1 = arith.constant 0 : i32
    return %c0_i32, %c0_i32_0 : i32, i32
  }
  func.func @transform_7(%arg0: i32) -> (i32, i32) {
    %c0_i32 = arith.constant 0 : i32
    %c0_i32_0 = arith.constant 0 : i32
    %c0_i32_1 = arith.constant 0 : i32
    return %c0_i32, %c0_i32_0 : i32, i32
  }
  func.func @transform_8(%arg0: i32) -> (i32, i32) {
    %c0_i32 = arith.constant 0 : i32
    %c0_i32_0 = arith.constant 0 : i32
    %c0_i32_1 = arith.constant 0 : i32
    return %c0_i32, %c0_i32_0 : i32, i32
  }
  func.func @transform_9(%arg0: i32) -> (i32, i32) {
    %c0_i32 = arith.constant 0 : i32
    %c0_i32_0 = arith.constant 0 : i32
    %c0_i32_1 = arith.constant 0 : i32
    return %c0_i32, %c0_i32_0 : i32, i32
  }
  func.func @transform_10(%arg0: i32) -> (i32, i32) {
    %c0_i32 = arith.constant 0 : i32
    %c0_i32_0 = arith.constant 0 : i32
    %c0_i32_1 = arith.constant 0 : i32
    return %c0_i32, %c0_i32_0 : i32, i32
  }
  func.func @transform_11(%arg0: i32) -> (i32, i32, i32) {
    %c0_i32 = arith.constant 0 : i32
    %c0_i32_0 = arith.constant 0 : i32
    %c0_i32_1 = arith.constant 0 : i32
    %c0_i32_2 = arith.constant 0 : i32
    return %c0_i32, %c0_i32_0, %c0_i32_1 : i32, i32, i32
  }
  func.func @transform_12(%arg0: i32) -> (i32, i32, i32) {
    %c0_i32 = arith.constant 0 : i32
    %c0_i32_0 = arith.constant 0 : i32
    %c0_i32_1 = arith.constant 0 : i32
    %c0_i32_2 = arith.constant 0 : i32
    return %c0_i32, %c0_i32_0, %c0_i32_1 : i32, i32, i32
  }
  func.func @transform_13(%arg0: i32) -> (i32, i32) {
    %c0_i32 = arith.constant 0 : i32
    %c0_i32_0 = arith.constant 0 : i32
    %c0_i32_1 = arith.constant 0 : i32
    return %c0_i32, %c0_i32_0 : i32, i32
  }
  func.func @transform_14(%arg0: i32) -> (i32, i32) {
    %c0_i32 = arith.constant 0 : i32
    %c0_i32_0 = arith.constant 0 : i32
    %c0_i32_1 = arith.constant 0 : i32
    return %c0_i32, %c0_i32_0 : i32, i32
  }
  func.func @transform_15(%arg0: i32) -> (i32, i32) {
    %c0_i32 = arith.constant 0 : i32
    %c0_i32_0 = arith.constant 0 : i32
    %c0_i32_1 = arith.constant 0 : i32
    return %c0_i32, %c0_i32_0 : i32, i32
  }
  func.func @transform_16(%arg0: i32) -> (i32, i32) {
    %c0_i32 = arith.constant 0 : i32
    %c0_i32_0 = arith.constant 0 : i32
    %c0_i32_1 = arith.constant 0 : i32
    return %c0_i32, %c0_i32_0 : i32, i32
  }
  func.func @transform_17(%arg0: i32) -> (i32, i32) {
    %c0_i32 = arith.constant 0 : i32
    %c0_i32_0 = arith.constant 0 : i32
    %c0_i32_1 = arith.constant 0 : i32
    return %c0_i32, %c0_i32_0 : i32, i32
  }
  func.func @transform_18(%arg0: i32) -> (i32, i32) {
    %c0_i32 = arith.constant 0 : i32
    %c0_i32_0 = arith.constant 0 : i32
    %c0_i32_1 = arith.constant 0 : i32
    return %c0_i32, %c0_i32_0 : i32, i32
  }
  func.func @transform_19(%arg0: i32) -> (i32, i32, i32) {
    %c0_i32 = arith.constant 0 : i32
    %c0_i32_0 = arith.constant 0 : i32
    %c0_i32_1 = arith.constant 0 : i32
    return %arg0, %c0_i32, %c0_i32_0 : i32, i32, i32
  }
}

</mosaic_0001>

<llo_original>
// kernel: multimodal_sentiment_forward.1
$region0: #{multimodal_sentiment_forward.1}
  #allocation0 [shape = 'u32[]', space=smem, size = 0x4, offset = 0x4, fixed_abs, tag = 'smem constant byte address 0x4 - core index']
  #allocation1 [shape = 'u32[144,128]{1,0:T(1,128)}', space=vmem, size = 0x12000, scoped, tag = 'internal scratch']
  #allocation2 [shape = 'f32[7,64]{1,0:T(8,128)}', space=vmem, size = 0x1000, scoped, tag = 'scratch operand']
  %s0 = inlined_call_operand.vmem [shape: f32[2,1,8], index: 0, kind: input, shape index: {}]
  %s1 = inlined_call_operand.vmem [shape: bf16[2,8,768], index: 1, kind: input, shape index: {}]
  %s2 = inlined_call_operand.vmem [shape: bf16[2,1176,81], index: 2, kind: input, shape index: {}]
  %s3 = inlined_call_operand.vmem [shape: f32[2,16,64], index: 3, kind: input, shape index: {}]
  %s4 = inlined_call_operand.vmem [shape: bf16[768,768], index: 4, kind: input, shape index: {}]
  %s5 = inlined_call_operand.vmem [shape: f32[1,768], index: 5, kind: input, shape index: {}]
  %s6 = inlined_call_operand.vmem [shape: bf16[768,128], index: 6, kind: input, shape index: {}]
  %s7 = inlined_call_operand.vmem [shape: bf16[81,64], index: 7, kind: input, shape index: {}]
  %s8 = inlined_call_operand.vmem [shape: bf16[64,512], index: 8, kind: input, shape index: {}]
  %s9 = inlined_call_operand.vmem [shape: f32[1,512], index: 9, kind: input, shape index: {}]
  %s10 = inlined_call_operand.vmem [shape: bf16[512,128], index: 10, kind: input, shape index: {}]
  %s11 = inlined_call_operand.vmem [shape: bf16[3,64,64], index: 11, kind: input, shape index: {}]
  %s12 = inlined_call_operand.vmem [shape: bf16[3,64,128], index: 12, kind: input, shape index: {}]
  %s13 = inlined_call_operand.vmem [shape: bf16[128,128], index: 13, kind: input, shape index: {}]
  %s14 = inlined_call_operand.vmem [shape: bf16[384,256], index: 14, kind: input, shape index: {}]
  %s15 = inlined_call_operand.vmem [shape: f32[2,256], index: 15, kind: input, shape index: {}]
  %s16 = inlined_call_operand.vmem [shape: bf16[256,128], index: 16, kind: input, shape index: {}]
  %s17 = inlined_call_operand.vmem [shape: bf16[128,128], index: 17, kind: input, shape index: {}]
  %s18 = inlined_call_operand.vmem [shape: f32[10,128], index: 18, kind: input, shape index: {}]
  %s19 = inlined_call_operand.vmem [shape: f32[2,1,128], index: 19, kind: output, shape index: {}]
  %s20 = sld [smem:[#allocation0]]
  $region109: #{multimodal_sentiment_forward.1} parent=0
    _
  %s22 = ssub.s32 1, %s20
  %s23 = scalar_select 0, %s22, %s20
  loop: start=0, step=1, limit=4
  $region2: #{multimodal_sentiment_forward.1} parent=0 // loop_pre_header
    _
  $region3: #{multimodal_sentiment_forward.1} parent=0 // loop_header
    %s25 = sphi 0, %s29
    %p26 = scmp.ge.s32.totalorder %s25, 4
    %s35 = sphi 0, %s37
    %s38 = sphi 0, %s35
    %s39 = sphi 0, %s38
    %s55 = sphi 0, %s39
    %s61 = sphi 0, %s63
    %s64 = sphi 0, %s61
    %s65 = sphi 0, %s64
    %s81 = sphi 0, %s65
    %s87 = sphi 0, %s89
    %s90 = sphi 0, %s87
    %s91 = sphi 0, %s90
    %s107 = sphi 0, %s91
    %s113 = sphi 0, %s115
    %s116 = sphi 0, %s113
    %s117 = sphi 0, %s116
    %s133 = sphi 0, %s117
    %s137 = sphi 0, %s137
    %s139 = sphi 0, %s137
    %s140 = sphi 0, %s139
    %s154 = sphi 0, %s140
    %s158 = sphi 0, %s158
    %s160 = sphi 0, %s158
    %s161 = sphi 0, %s160
    %s175 = sphi 0, %s161
    %s179 = sphi 0, %s179
    %s181 = sphi 0, %s179
    %s182 = sphi 0, %s181
    %s196 = sphi 0, %s182
    %s200 = sphi 0, %s200
    %s202 = sphi 0, %s200
    %s203 = sphi 0, %s202
    %s217 = sphi 0, %s203
    %s221 = sphi 0, %s221
    %s223 = sphi 0, %s221
    %s224 = sphi 0, %s223
    %s238 = sphi 0, %s224
    %s242 = sphi 0, %s242
    %s244 = sphi 0, %s242
    %s245 = sphi 0, %s244
    %s259 = sphi 0, %s245
    %s263 = sphi 0, %s263
    %s265 = sphi 0, %s263
    %s266 = sphi 0, %s265
    %s280 = sphi 0, %s266
    %s284 = sphi 0, %s284
    %s286 = sphi 0, %s284
    %s287 = sphi 0, %s286
    %s301 = sphi 0, %s287
    %s305 = sphi 0, %s305
    %s307 = sphi 0, %s305
    %s308 = sphi 0, %s307
    %s322 = sphi 0, %s308
    %s326 = sphi 0, %s326
    %s328 = sphi 0, %s326
    %s329 = sphi 0, %s328
    %s343 = sphi 0, %s329
    %s347 = sphi 0, %s347
    %s349 = sphi 0, %s347
    %s350 = sphi 0, %s349
    %s364 = sphi 0, %s350
    %s368 = sphi 0, %s368
    %s370 = sphi 0, %s368
    %s371 = sphi 0, %s370
    %s385 = sphi 0, %s371
    %s389 = sphi 0, %s389
    %s391 = sphi 0, %s389
    %s392 = sphi 0, %s391
    %s406 = sphi 0, %s392
    %s410 = sphi 0, %s410
    %s412 = sphi 0, %s410
    %s413 = sphi 0, %s412
    %s427 = sphi 0, %s413
    %s431 = sphi 0, %s431
    %s433 = sphi 0, %s431
    %s434 = sphi 0, %s433
    %s448 = sphi 0, %s434
    %s454 = sphi 0, %s456
    %s457 = sphi 0, %s454
    %s458 = sphi 0, %s457
    %s474 = sphi 0, %s458
  $region4: #{multimodal_sentiment_forward.1} parent=0 // loop_header_branch
    %28 = sbr.rel (%p26) target = $region8
  $region5: #{multimodal_sentiment_forward.1} parent=0 // loop_body
    %s30 = ssub.s32 %s25, 1
    %s31 = ssub.s32 %s25, 2
    %s32 = sadd.s32 %s25, 1
    %s33 = ssub.s32 %s25, %s32
    %p34 = scmp.eq.s32.totalorder %s33, 0
    %s36 = sadd.s32 %s35, 1
    %s37 = scalar_select %p34, %s35, %s36
    %p40 = pneg %p34
    %p41 = scmp.eq.s32.totalorder %s25, 1
    %p42 = por %p40, %p41
    %p43 = scmp.ne.s32.totalorder %s35, %s38
    %p44 = scmp.eq.s32.totalorder %s25, 0
    %p45 = por %p43, %p44
    %p46 = scmp.ne.s32.totalorder %s35, %s38
    %p47 = scmp.eq.s32.totalorder %s30, 1
    %p48 = por %p46, %p47
    %p49 = scmp.ne.s32.totalorder %s38, %s39
    %p50 = scmp.eq.s32.totalorder %s30, 0
    %p51 = por %p49, %p50
    %p52 = scmp.ne.s32.totalorder %s38, %s39
    %p53 = scmp.eq.s32.totalorder %s31, 1
    %p54 = por %p52, %p53
    %p56 = scmp.ne.s32.totalorder %s39, %s55
    %p57 = scmp.eq.s32.totalorder %s31, 0
    %p58 = por %p56, %p57
    %s59 = ssub.s32 %s25, %s32
    %p60 = scmp.eq.s32.totalorder %s59, 0
    %s62 = sadd.s32 %s61, 1
    %s63 = scalar_select %p60, %s61, %s62
    %p66 = pneg %p60
    %p67 = scmp.eq.s32.totalorder %s25, 1
    %p68 = por %p66, %p67
    %p69 = scmp.ne.s32.totalorder %s61, %s64
    %p70 = scmp.eq.s32.totalorder %s25, 0
    %p71 = por %p69, %p70
    %p72 = scmp.ne.s32.totalorder %s61, %s64
    %p73 = scmp.eq.s32.totalorder %s30, 1
    %p74 = por %p72, %p73
    %p75 = scmp.ne.s32.totalorder %s64, %s65
    %p76 = scmp.eq.s32.totalorder %s30, 0
    %p77 = por %p75, %p76
    %p78 = scmp.ne.s32.totalorder %s64, %s65
    %p79 = scmp.eq.s32.totalorder %s31, 1
    %p80 = por %p78, %p79
    %p82 = scmp.ne.s32.totalorder %s65, %s81
    %p83 = scmp.eq.s32.totalorder %s31, 0
    %p84 = por %p82, %p83
    %s85 = ssub.s32 %s25, %s32
    %p86 = scmp.eq.s32.totalorder %s85, 0
    %s88 = sadd.s32 %s87, 1
    %s89 = scalar_select %p86, %s87, %s88
    %p92 = pneg %p86
    %p93 = scmp.eq.s32.totalorder %s25, 1
    %p94 = por %p92, %p93
    %p95 = scmp.ne.s32.totalorder %s87, %s90
    %p96 = scmp.eq.s32.totalorder %s25, 0
    %p97 = por %p95, %p96
    %p98 = scmp.ne.s32.totalorder %s87, %s90
    %p99 = scmp.eq.s32.totalorder %s30, 1
    %p100 = por %p98, %p99
    %p101 = scmp.ne.s32.totalorder %s90, %s91
    %p102 = scmp.eq.s32.totalorder %s30, 0
    %p103 = por %p101, %p102
    %p104 = scmp.ne.s32.totalorder %s90, %s91
    %p105 = scmp.eq.s32.totalorder %s31, 1
    %p106 = por %p104, %p105
    %p108 = scmp.ne.s32.totalorder %s91, %s107
    %p109 = scmp.eq.s32.totalorder %s31, 0
    %p110 = por %p108, %p109
    %s111 = ssub.s32 %s25, %s32
    %p112 = scmp.eq.s32.totalorder %s111, 0
    %s114 = sadd.s32 %s113, 1
    %s115 = scalar_select %p112, %s113, %s114
    %p118 = pneg %p112
    %p119 = scmp.eq.s32.totalorder %s25, 1
    %p120 = por %p118, %p119
    %p121 = scmp.ne.s32.totalorder %s113, %s116
    %p122 = scmp.eq.s32.totalorder %s25, 0
    %p123 = por %p121, %p122
    %p124 = scmp.ne.s32.totalorder %s113, %s116
    %p125 = scmp.eq.s32.totalorder %s30, 1
    %p126 = por %p124, %p125
    %p127 = scmp.ne.s32.totalorder %s116, %s117
    %p128 = scmp.eq.s32.totalorder %s30, 0
    %p129 = por %p127, %p128
    %p130 = scmp.ne.s32.totalorder %s116, %s117
    %p131 = scmp.eq.s32.totalorder %s31, 1
    %p132 = por %p130, %p131
    %p134 = scmp.ne.s32.totalorder %s117, %s133
    %p135 = scmp.eq.s32.totalorder %s31, 0
    %p136 = por %p134, %p135
    %s138 = sadd.s32 %s137, 1
    %p141 = scmp.eq.s32.totalorder %s25, 1
    %p142 = scmp.ne.s32.totalorder %s137, %s139
    %p143 = scmp.eq.s32.totalorder %s25, 0
    %p144 = por %p142, %p143
    %p145 = scmp.ne.s32.totalorder %s137, %s139
    %p146 = scmp.eq.s32.totalorder %s30, 1
    %p147 = por %p145, %p146
    %p148 = scmp.ne.s32.totalorder %s139, %s140
    %p149 = scmp.eq.s32.totalorder %s30, 0
    %p150 = por %p148, %p149
    %p151 = scmp.ne.s32.totalorder %s139, %s140
    %p152 = scmp.eq.s32.totalorder %s31, 1
    %p153 = por %p151, %p152
    %p155 = scmp.ne.s32.totalorder %s140, %s154
    %p156 = scmp.eq.s32.totalorder %s31, 0
    %p157 = por %p155, %p156
    %s159 = sadd.s32 %s158, 1
    %p162 = scmp.eq.s32.totalorder %s25, 1
    %p163 = scmp.ne.s32.totalorder %s158, %s160
    %p164 = scmp.eq.s32.totalorder %s25, 0
    %p165 = por %p163, %p164
    %p166 = scmp.ne.s32.totalorder %s158, %s160
    %p167 = scmp.eq.s32.totalorder %s30, 1
    %p168 = por %p166, %p167
    %p169 = scmp.ne.s32.totalorder %s160, %s161
    %p170 = scmp.eq.s32.totalorder %s30, 0
    %p171 = por %p169, %p170
    %p172 = scmp.ne.s32.totalorder %s160, %s161
    %p173 = scmp.eq.s32.totalorder %s31, 1
    %p174 = por %p172, %p173
    %p176 = scmp.ne.s32.totalorder %s161, %s175
    %p177 = scmp.eq.s32.totalorder %s31, 0
    %p178 = por %p176, %p177
    %s180 = sadd.s32 %s179, 1
    %p183 = scmp.eq.s32.totalorder %s25, 1
    %p184 = scmp.ne.s32.totalorder %s179, %s181
    %p185 = scmp.eq.s32.totalorder %s25, 0
    %p186 = por %p184, %p185
    %p187 = scmp.ne.s32.totalorder %s179, %s181
    %p188 = scmp.eq.s32.totalorder %s30, 1
    %p189 = por %p187, %p188
    %p190 = scmp.ne.s32.totalorder %s181, %s182
    %p191 = scmp.eq.s32.totalorder %s30, 0
    %p192 = por %p190, %p191
    %p193 = scmp.ne.s32.totalorder %s181, %s182
    %p194 = scmp.eq.s32.totalorder %s31, 1
    %p195 = por %p193, %p194
    %p197 = scmp.ne.s32.totalorder %s182, %s196
    %p198 = scmp.eq.s32.totalorder %s31, 0
    %p199 = por %p197, %p198
    %s201 = sadd.s32 %s200, 1
    %p204 = scmp.eq.s32.totalorder %s25, 1
    %p205 = scmp.ne.s32.totalorder %s200, %s202
    %p206 = scmp.eq.s32.totalorder %s25, 0
    %p207 = por %p205, %p206
    %p208 = scmp.ne.s32.totalorder %s200, %s202
    %p209 = scmp.eq.s32.totalorder %s30, 1
    %p210 = por %p208, %p209
    %p211 = scmp.ne.s32.totalorder %s202, %s203
    %p212 = scmp.eq.s32.totalorder %s30, 0
    %p213 = por %p211, %p212
    %p214 = scmp.ne.s32.totalorder %s202, %s203
    %p215 = scmp.eq.s32.totalorder %s31, 1
    %p216 = por %p214, %p215
    %p218 = scmp.ne.s32.totalorder %s203, %s217
    %p219 = scmp.eq.s32.totalorder %s31, 0
    %p220 = por %p218, %p219
    %s222 = sadd.s32 %s221, 1
    %p225 = scmp.eq.s32.totalorder %s25, 1
    %p226 = scmp.ne.s32.totalorder %s221, %s223
    %p227 = scmp.eq.s32.totalorder %s25, 0
    %p228 = por %p226, %p227
    %p229 = scmp.ne.s32.totalorder %s221, %s223
    %p230 = scmp.eq.s32.totalorder %s30, 1
    %p231 = por %p229, %p230
    %p232 = scmp.ne.s32.totalorder %s223, %s224
    %p233 = scmp.eq.s32.totalorder %s30, 0
    %p234 = por %p232, %p233
    %p235 = scmp.ne.s32.totalorder %s223, %s224
    %p236 = scmp.eq.s32.totalorder %s31, 1
    %p237 = por %p235, %p236
    %p239 = scmp.ne.s32.totalorder %s224, %s238
    %p240 = scmp.eq.s32.totalorder %s31, 0
    %p241 = por %p239, %p240
    %s243 = sadd.s32 %s242, 1
    %p246 = scmp.eq.s32.totalorder %s25, 1
    %p247 = scmp.ne.s32.totalorder %s242, %s244
    %p248 = scmp.eq.s32.totalorder %s25, 0
    %p249 = por %p247, %p248
    %p250 = scmp.ne.s32.totalorder %s242, %s244
    %p251 = scmp.eq.s32.totalorder %s30, 1
    %p252 = por %p250, %p251
    %p253 = scmp.ne.s32.totalorder %s244, %s245
    %p254 = scmp.eq.s32.totalorder %s30, 0
    %p255 = por %p253, %p254
    %p256 = scmp.ne.s32.totalorder %s244, %s245
    %p257 = scmp.eq.s32.totalorder %s31, 1
    %p258 = por %p256, %p257
    %p260 = scmp.ne.s32.totalorder %s245, %s259
    %p261 = scmp.eq.s32.totalorder %s31, 0
    %p262 = por %p260, %p261
    %s264 = sadd.s32 %s263, 1
    %p267 = scmp.eq.s32.totalorder %s25, 1
    %p268 = scmp.ne.s32.totalorder %s263, %s265
    %p269 = scmp.eq.s32.totalorder %s25, 0
    %p270 = por %p268, %p269
    %p271 = scmp.ne.s32.totalorder %s263, %s265
    %p272 = scmp.eq.s32.totalorder %s30, 1
    %p273 = por %p271, %p272
    %p274 = scmp.ne.s32.totalorder %s265, %s266
    %p275 = scmp.eq.s32.totalorder %s30, 0
    %p276 = por %p274, %p275
    %p277 = scmp.ne.s32.totalorder %s265, %s266
    %p278 = scmp.eq.s32.totalorder %s31, 1
    %p279 = por %p277, %p278
    %p281 = scmp.ne.s32.totalorder %s266, %s280
    %p282 = scmp.eq.s32.totalorder %s31, 0
    %p283 = por %p281, %p282
    %s285 = sadd.s32 %s284, 1
    %p288 = scmp.eq.s32.totalorder %s25, 1
    %p289 = scmp.ne.s32.totalorder %s284, %s286
    %p290 = scmp.eq.s32.totalorder %s25, 0
    %p291 = por %p289, %p290
    %p292 = scmp.ne.s32.totalorder %s284, %s286
    %p293 = scmp.eq.s32.totalorder %s30, 1
    %p294 = por %p292, %p293
    %p295 = scmp.ne.s32.totalorder %s286, %s287
    %p296 = scmp.eq.s32.totalorder %s30, 0
    %p297 = por %p295, %p296
    %p298 = scmp.ne.s32.totalorder %s286, %s287
    %p299 = scmp.eq.s32.totalorder %s31, 1
    %p300 = por %p298, %p299
    %p302 = scmp.ne.s32.totalorder %s287, %s301
    %p303 = scmp.eq.s32.totalorder %s31, 0
    %p304 = por %p302, %p303
    %s306 = sadd.s32 %s305, 1
    %p309 = scmp.eq.s32.totalorder %s25, 1
    %p310 = scmp.ne.s32.totalorder %s305, %s307
    %p311 = scmp.eq.s32.totalorder %s25, 0
    %p312 = por %p310, %p311
    %p313 = scmp.ne.s32.totalorder %s305, %s307
    %p314 = scmp.eq.s32.totalorder %s30, 1
    %p315 = por %p313, %p314
    %p316 = scmp.ne.s32.totalorder %s307, %s308
    %p317 = scmp.eq.s32.totalorder %s30, 0
    %p318 = por %p316, %p317
    %p319 = scmp.ne.s32.totalorder %s307, %s308
    %p320 = scmp.eq.s32.totalorder %s31, 1
    %p321 = por %p319, %p320
    %p323 = scmp.ne.s32.totalorder %s308, %s322
    %p324 = scmp.eq.s32.totalorder %s31, 0
    %p325 = por %p323, %p324
    %s327 = sadd.s32 %s326, 1
    %p330 = scmp.eq.s32.totalorder %s25, 1
    %p331 = scmp.ne.s32.totalorder %s326, %s328
    %p332 = scmp.eq.s32.totalorder %s25, 0
    %p333 = por %p331, %p332
    %p334 = scmp.ne.s32.totalorder %s326, %s328
    %p335 = scmp.eq.s32.totalorder %s30, 1
    %p336 = por %p334, %p335
    %p337 = scmp.ne.s32.totalorder %s328, %s329
    %p338 = scmp.eq.s32.totalorder %s30, 0
    %p339 = por %p337, %p338
    %p340 = scmp.ne.s32.totalorder %s328, %s329
    %p341 = scmp.eq.s32.totalorder %s31, 1
    %p342 = por %p340, %p341
    %p344 = scmp.ne.s32.totalorder %s329, %s343
    %p345 = scmp.eq.s32.totalorder %s31, 0
    %p346 = por %p344, %p345
    %s348 = sadd.s32 %s347, 1
    %p351 = scmp.eq.s32.totalorder %s25, 1
    %p352 = scmp.ne.s32.totalorder %s347, %s349
    %p353 = scmp.eq.s32.totalorder %s25, 0
    %p354 = por %p352, %p353
    %p355 = scmp.ne.s32.totalorder %s347, %s349
    %p356 = scmp.eq.s32.totalorder %s30, 1
    %p357 = por %p355, %p356
    %p358 = scmp.ne.s32.totalorder %s349, %s350
    %p359 = scmp.eq.s32.totalorder %s30, 0
    %p360 = por %p358, %p359
    %p361 = scmp.ne.s32.totalorder %s349, %s350
    %p362 = scmp.eq.s32.totalorder %s31, 1
    %p363 = por %p361, %p362
    %p365 = scmp.ne.s32.totalorder %s350, %s364
    %p366 = scmp.eq.s32.totalorder %s31, 0
    %p367 = por %p365, %p366
    %s369 = sadd.s32 %s368, 1
    %p372 = scmp.eq.s32.totalorder %s25, 1
    %p373 = scmp.ne.s32.totalorder %s368, %s370
    %p374 = scmp.eq.s32.totalorder %s25, 0
    %p375 = por %p373, %p374
    %p376 = scmp.ne.s32.totalorder %s368, %s370
    %p377 = scmp.eq.s32.totalorder %s30, 1
    %p378 = por %p376, %p377
    %p379 = scmp.ne.s32.totalorder %s370, %s371
    %p380 = scmp.eq.s32.totalorder %s30, 0
    %p381 = por %p379, %p380
    %p382 = scmp.ne.s32.totalorder %s370, %s371
    %p383 = scmp.eq.s32.totalorder %s31, 1
    %p384 = por %p382, %p383
    %p386 = scmp.ne.s32.totalorder %s371, %s385
    %p387 = scmp.eq.s32.totalorder %s31, 0
    %p388 = por %p386, %p387
    %s390 = sadd.s32 %s389, 1
    %p393 = scmp.eq.s32.totalorder %s25, 1
    %p394 = scmp.ne.s32.totalorder %s389, %s391
    %p395 = scmp.eq.s32.totalorder %s25, 0
    %p396 = por %p394, %p395
    %p397 = scmp.ne.s32.totalorder %s389, %s391
    %p398 = scmp.eq.s32.totalorder %s30, 1
    %p399 = por %p397, %p398
    %p400 = scmp.ne.s32.totalorder %s391, %s392
    %p401 = scmp.eq.s32.totalorder %s30, 0
    %p402 = por %p400, %p401
    %p403 = scmp.ne.s32.totalorder %s391, %s392
    %p404 = scmp.eq.s32.totalorder %s31, 1
    %p405 = por %p403, %p404
    %p407 = scmp.ne.s32.totalorder %s392, %s406
    %p408 = scmp.eq.s32.totalorder %s31, 0
    %p409 = por %p407, %p408
    %s411 = sadd.s32 %s410, 1
    %p414 = scmp.eq.s32.totalorder %s25, 1
    %p415 = scmp.ne.s32.totalorder %s410, %s412
    %p416 = scmp.eq.s32.totalorder %s25, 0
    %p417 = por %p415, %p416
    %p418 = scmp.ne.s32.totalorder %s410, %s412
    %p419 = scmp.eq.s32.totalorder %s30, 1
    %p420 = por %p418, %p419
    %p421 = scmp.ne.s32.totalorder %s412, %s413
    %p422 = scmp.eq.s32.totalorder %s30, 0
    %p423 = por %p421, %p422
    %p424 = scmp.ne.s32.totalorder %s412, %s413
    %p425 = scmp.eq.s32.totalorder %s31, 1
    %p426 = por %p424, %p425
    %p428 = scmp.ne.s32.totalorder %s413, %s427
    %p429 = scmp.eq.s32.totalorder %s31, 0
    %p430 = por %p428, %p429
    %s432 = sadd.s32 %s431, 1
    %p435 = scmp.eq.s32.totalorder %s25, 1
    %p436 = scmp.ne.s32.totalorder %s431, %s433
    %p437 = scmp.eq.s32.totalorder %s25, 0
    %p438 = por %p436, %p437
    %p439 = scmp.ne.s32.totalorder %s431, %s433
    %p440 = scmp.eq.s32.totalorder %s30, 1
    %p441 = por %p439, %p440
    %p442 = scmp.ne.s32.totalorder %s433, %s434
    %p443 = scmp.eq.s32.totalorder %s30, 0
    %p444 = por %p442, %p443
    %p445 = scmp.ne.s32.totalorder %s433, %s434
    %p446 = scmp.eq.s32.totalorder %s31, 1
    %p447 = por %p445, %p446
    %p449 = scmp.ne.s32.totalorder %s434, %s448
    %p450 = scmp.eq.s32.totalorder %s31, 0
    %p451 = por %p449, %p450
    %s452 = ssub.s32 %s25, %s32
    %p453 = scmp.eq.s32.totalorder %s452, 0
    %s455 = sadd.s32 %s454, 1
    %s456 = scalar_select %p453, %s454, %s455
    %p459 = pneg %p453
    %p460 = scmp.eq.s32.totalorder %s25, 1
    %p461 = por %p459, %p460
    %p462 = scmp.ne.s32.totalorder %s454, %s457
    %p463 = scmp.eq.s32.totalorder %s25, 0
    %p464 = por %p462, %p463
    %p465 = scmp.ne.s32.totalorder %s454, %s457
    %p466 = scmp.eq.s32.totalorder %s30, 1
    %p467 = por %p465, %p466
    %p468 = scmp.ne.s32.totalorder %s457, %s458
    %p469 = scmp.eq.s32.totalorder %s30, 0
    %p470 = por %p468, %p469
    %p471 = scmp.ne.s32.totalorder %s457, %s458
    %p472 = scmp.eq.s32.totalorder %s31, 1
    %p473 = por %p471, %p472
    %p475 = scmp.ne.s32.totalorder %s458, %s474
    %p476 = scmp.eq.s32.totalorder %s31, 0
    %p477 = por %p475, %p476
    %p478 = scmp.le.s32.totalorder 1, %s25
    %p479 = scmp.lt.s32.totalorder %s25, 3
    %p480 = pnand %p478, %p479
    %p481 = pneg %p480
    // Predicated region
    $region9: #{multimodal_sentiment_forward.1} parent=5 // pred_check
      _
    $region10: #{multimodal_sentiment_forward.1} parent=5 // pred_check_branch
      %483 = sbr.rel (%p480) target = $region12
    $region11: #{multimodal_sentiment_forward.1} parent=5 // pred_region
      %s484 = ssub.s32 %s25, 1
      // Predicated region
      $region13: #{multimodal_sentiment_forward.1} parent=11 // pred_check
        %p485 = pneg %p150
      $region14: #{multimodal_sentiment_forward.1} parent=11 // pred_check_branch
        %487 = sbr.rel (%p485) target = $region16
      $region15: #{multimodal_sentiment_forward.1} parent=11 // pred_region
        _
      $region16: #{multimodal_sentiment_forward.1} parent=11 // pred_fallthru
        _
      // Predicated region
      $region17: #{multimodal_sentiment_forward.1} parent=11 // pred_check
        %p488 = pneg %p171
      $region18: #{multimodal_sentiment_forward.1} parent=11 // pred_check_branch
        %490 = sbr.rel (%p488) target = $region20
      $region19: #{multimodal_sentiment_forward.1} parent=11 // pred_region
        _
      $region20: #{multimodal_sentiment_forward.1} parent=11 // pred_fallthru
        _
      // Predicated region
      $region21: #{multimodal_sentiment_forward.1} parent=11 // pred_check
        %p491 = pneg %p192
      $region22: #{multimodal_sentiment_forward.1} parent=11 // pred_check_branch
        %493 = sbr.rel (%p491) target = $region24
      $region23: #{multimodal_sentiment_forward.1} parent=11 // pred_region
        _
      $region24: #{multimodal_sentiment_forward.1} parent=11 // pred_fallthru
        _
      // Predicated region
      $region25: #{multimodal_sentiment_forward.1} parent=11 // pred_check
        %p494 = pneg %p213
      $region26: #{multimodal_sentiment_forward.1} parent=11 // pred_check_branch
        %496 = sbr.rel (%p494) target = $region28
      $region27: #{multimodal_sentiment_forward.1} parent=11 // pred_region
        _
      $region28: #{multimodal_sentiment_forward.1} parent=11 // pred_fallthru
        _
      // Predicated region
      $region29: #{multimodal_sentiment_forward.1} parent=11 // pred_check
        %p497 = pneg %p234
      $region30: #{multimodal_sentiment_forward.1} parent=11 // pred_check_branch
        %499 = sbr.rel (%p497) target = $region32
      $region31: #{multimodal_sentiment_forward.1} parent=11 // pred_region
        _
      $region32: #{multimodal_sentiment_forward.1} parent=11 // pred_fallthru
        _
      // Predicated region
      $region33: #{multimodal_sentiment_forward.1} parent=11 // pred_check
        %p500 = pneg %p255
      $region34: #{multimodal_sentiment_forward.1} parent=11 // pred_check_branch
        %502 = sbr.rel (%p500) target = $region36
      $region35: #{multimodal_sentiment_forward.1} parent=11 // pred_region
        _
      $region36: #{multimodal_sentiment_forward.1} parent=11 // pred_fallthru
        _
      // Predicated region
      $region37: #{multimodal_sentiment_forward.1} parent=11 // pred_check
        %p503 = pneg %p276
      $region38: #{multimodal_sentiment_forward.1} parent=11 // pred_check_branch
        %505 = sbr.rel (%p503) target = $region40
      $region39: #{multimodal_sentiment_forward.1} parent=11 // pred_region
        _
      $region40: #{multimodal_sentiment_forward.1} parent=11 // pred_fallthru
        _
      // Predicated region
      $region41: #{multimodal_sentiment_forward.1} parent=11 // pred_check
        %p506 = pneg %p297
      $region42: #{multimodal_sentiment_forward.1} parent=11 // pred_check_branch
        %508 = sbr.rel (%p506) target = $region44
      $region43: #{multimodal_sentiment_forward.1} parent=11 // pred_region
        _
      $region44: #{multimodal_sentiment_forward.1} parent=11 // pred_fallthru
        _
      // Predicated region
      $region45: #{multimodal_sentiment_forward.1} parent=11 // pred_check
        %p509 = pneg %p318
      $region46: #{multimodal_sentiment_forward.1} parent=11 // pred_check_branch
        %511 = sbr.rel (%p509) target = $region48
      $region47: #{multimodal_sentiment_forward.1} parent=11 // pred_region
        _
      $region48: #{multimodal_sentiment_forward.1} parent=11 // pred_fallthru
        _
      // Predicated region
      $region49: #{multimodal_sentiment_forward.1} parent=11 // pred_check
        %p512 = pneg %p339
      $region50: #{multimodal_sentiment_forward.1} parent=11 // pred_check_branch
        %514 = sbr.rel (%p512) target = $region52
      $region51: #{multimodal_sentiment_forward.1} parent=11 // pred_region
        _
      $region52: #{multimodal_sentiment_forward.1} parent=11 // pred_fallthru
        _
      // Predicated region
      $region53: #{multimodal_sentiment_forward.1} parent=11 // pred_check
        %p515 = pneg %p360
      $region54: #{multimodal_sentiment_forward.1} parent=11 // pred_check_branch
        %517 = sbr.rel (%p515) target = $region56
      $region55: #{multimodal_sentiment_forward.1} parent=11 // pred_region
        _
      $region56: #{multimodal_sentiment_forward.1} parent=11 // pred_fallthru
        _
      // Predicated region
      $region57: #{multimodal_sentiment_forward.1} parent=11 // pred_check
        %p518 = pneg %p381
      $region58: #{multimodal_sentiment_forward.1} parent=11 // pred_check_branch
        %520 = sbr.rel (%p518) target = $region60
      $region59: #{multimodal_sentiment_forward.1} parent=11 // pred_region
        _
      $region60: #{multimodal_sentiment_forward.1} parent=11 // pred_fallthru
        _
      // Predicated region
      $region61: #{multimodal_sentiment_forward.1} parent=11 // pred_check
        %p521 = pneg %p402
      $region62: #{multimodal_sentiment_forward.1} parent=11 // pred_check_branch
        %523 = sbr.rel (%p521) target = $region64
      $region63: #{multimodal_sentiment_forward.1} parent=11 // pred_region
        _
      $region64: #{multimodal_sentiment_forward.1} parent=11 // pred_fallthru
        _
      // Predicated region
      $region65: #{multimodal_sentiment_forward.1} parent=11 // pred_check
        %p524 = pneg %p423
      $region66: #{multimodal_sentiment_forward.1} parent=11 // pred_check_branch
        %526 = sbr.rel (%p524) target = $region68
      $region67: #{multimodal_sentiment_forward.1} parent=11 // pred_region
        _
      $region68: #{multimodal_sentiment_forward.1} parent=11 // pred_fallthru
        _
      // Predicated region
      $region69: #{multimodal_sentiment_forward.1} parent=11 // pred_check
        %p527 = pneg %p444
      $region70: #{multimodal_sentiment_forward.1} parent=11 // pred_check_branch
        %529 = sbr.rel (%p527) target = $region72
      $region71: #{multimodal_sentiment_forward.1} parent=11 // pred_region
        _
      $region72: #{multimodal_sentiment_forward.1} parent=11 // pred_fallthru
        _
    $region12: #{multimodal_sentiment_forward.1} parent=5 // pred_fallthru
      _
    %p530 = scmp.lt.s32.totalorder %s25, 2
    // Predicated region
    $region73: #{multimodal_sentiment_forward.1} parent=5 // pred_check
      %p531 = pneg %p530
    $region74: #{multimodal_sentiment_forward.1} parent=5 // pred_check_branch
      %533 = sbr.rel (%p531) target = $region76
    $region75: #{multimodal_sentiment_forward.1} parent=5 // pred_region
      // Predicated region
      $region77: #{multimodal_sentiment_forward.1} parent=75 // pred_check
        %p534 = pneg %p45
      $region78: #{multimodal_sentiment_forward.1} parent=75 // pred_check_branch
        %536 = sbr.rel (%p534) target = $region80
      $region79: #{multimodal_sentiment_forward.1} parent=75 // pred_region
        %p537 = scmp.lt.s32.totalorder %s25, 1
        %s538 = scalar_select %p537, %s25, 1
        %s539 = scalar_lea.vmem %s0, %s538
      $region80: #{multimodal_sentiment_forward.1} parent=75 // pred_fallthru
        _
      // Predicated region
      $region81: #{multimodal_sentiment_forward.1} parent=75 // pred_check
        %p540 = pneg %p71
      $region82: #{multimodal_sentiment_forward.1} parent=75 // pred_check_branch
        %542 = sbr.rel (%p540) target = $region84
      $region83: #{multimodal_sentiment_forward.1} parent=75 // pred_region
        %p543 = scmp.lt.s32.totalorder %s25, 1
        %s544 = scalar_select %p543, %s25, 1
        %s545 = smul.addr %s544, 6
        %s546 = smul.addr %s545, 4
        %s547 = scalar_lea.vmem %s1, %s546
      $region84: #{multimodal_sentiment_forward.1} parent=75 // pred_fallthru
        _
      // Predicated region
      $region85: #{multimodal_sentiment_forward.1} parent=75 // pred_check
        %p548 = pneg %p97
      $region86: #{multimodal_sentiment_forward.1} parent=75 // pred_check_branch
        %550 = sbr.rel (%p548) target = $region88
      $region87: #{multimodal_sentiment_forward.1} parent=75 // pred_region
        %p551 = scmp.lt.s32.totalorder %s25, 1
        %s552 = scalar_select %p551, %s25, 1
        %s553 = smul.addr %s552, 147
        %s554 = smul.addr %s553, 4
        %s555 = scalar_lea.vmem %s2, %s554
      $region88: #{multimodal_sentiment_forward.1} parent=75 // pred_fallthru
        _
      // Predicated region
      $region89: #{multimodal_sentiment_forward.1} parent=75 // pred_check
        %p556 = pneg %p123
      $region90: #{multimodal_sentiment_forward.1} parent=75 // pred_check_branch
        %558 = sbr.rel (%p556) target = $region92
      $region91: #{multimodal_sentiment_forward.1} parent=75 // pred_region
        %p559 = scmp.lt.s32.totalorder %s25, 1
        %s560 = scalar_select %p559, %s25, 1
        %s561 = smul.addr %s560, 2
        %s562 = smul.addr %s561, 8
        %s563 = scalar_lea.vmem %s3, %s562
      $region92: #{multimodal_sentiment_forward.1} parent=75 // pred_fallthru
        _
    $region76: #{multimodal_sentiment_forward.1} parent=5 // pred_fallthru
      _
    %p564 = scmp.le.s32.totalorder 1, %s25
    %p565 = scmp.lt.s32.totalorder %s25, 3
    %p566 = pnand %p564, %p565
    %p567 = pneg %p566
    // Predicated region
    $region93: #{multimodal_sentiment_forward.1} parent=5 // pred_check
      _
    $region94: #{multimodal_sentiment_forward.1} parent=5 // pred_check_branch
      %569 = sbr.rel (%p566) target = $region96
    $region95: #{multimodal_sentiment_forward.1} parent=5 // pred_region
      %s570 = ssub.s32 %s25, 1
      %p571 = scmp.lt.s32.totalorder %s30, 1
      %s572 = scalar_select %p571, %s30, 1
      %s573 = scalar_lea.vmem %s0, %s572
      %p574 = pneg %p51
      %p575 = pneg %p48
      %p576 = scmp.lt.s32.totalorder %s30, 1
      %s577 = scalar_select %p576, %s30, 1
      %s578 = smul.addr %s577, 6
      %s579 = smul.addr %s578, 4
      %s580 = scalar_lea.vmem %s1, %s579
      %p581 = pneg %p77
      %p582 = pneg %p74
      %p583 = scmp.lt.s32.totalorder %s30, 1
      %s584 = scalar_select %p583, %s30, 1
      %s585 = smul.addr %s584, 147
      %s586 = smul.addr %s585, 4
      %s587 = scalar_lea.vmem %s2, %s586
      %p588 = pneg %p103
      %p589 = pneg %p100
      %p590 = scmp.lt.s32.totalorder %s30, 1
      %s591 = scalar_select %p590, %s30, 1
      %s592 = smul.addr %s591, 2
      %s593 = smul.addr %s592, 8
      %s594 = scalar_lea.vmem %s3, %s593
      %p595 = pneg %p129
      %p596 = pneg %p126
      %p597 = pneg %p150
      %p598 = pneg %p147
      %p599 = pneg %p171
      %p600 = pneg %p168
      %p601 = pneg %p192
      %p602 = pneg %p189
      %p603 = pneg %p213
      %p604 = pneg %p210
      %p605 = pneg %p234
      %p606 = pneg %p231
      %p607 = pneg %p255
      %p608 = pneg %p252
      %p609 = pneg %p276
      %p610 = pneg %p273
      %p611 = pneg %p297
      %p612 = pneg %p294
      %p613 = pneg %p318
      %p614 = pneg %p315
      %p615 = pneg %p339
      %p616 = pneg %p336
      %p617 = pneg %p360
      %p618 = pneg %p357
      %p619 = pneg %p381
      %p620 = pneg %p378
      %p621 = pneg %p402
      %p622 = pneg %p399
      %p623 = pneg %p423
      %p624 = pneg %p420
      %p625 = pneg %p444
      %p626 = pneg %p441
      %p627 = pneg %p470
      %p628 = pneg %p467
      %p629 = scmp.lt.s32.totalorder %s30, 1
      %s630 = scalar_select %p629, %s30, 1
      %s631 = scalar_lea.vmem %s19, %s630
      %p632 = scmp.lt.s32.totalorder %s30, 1
      %s633 = scalar_select %p632, %s30, 1
      %s634 = scalar_lea.vmem %s0, %s633
      %p635 = scmp.lt.s32.totalorder %s30, 1
      %s636 = scalar_select %p635, %s30, 1
      %s637 = smul.addr %s636, 6
      %s638 = smul.addr %s637, 4
      %s639 = scalar_lea.vmem %s1, %s638
      %p640 = scmp.lt.s32.totalorder %s30, 1
      %s641 = scalar_select %p640, %s30, 1
      %s642 = smul.addr %s641, 147
      %s643 = smul.addr %s642, 4
      %s644 = scalar_lea.vmem %s2, %s643
      %p645 = scmp.lt.s32.totalorder %s30, 1
      %s646 = scalar_select %p645, %s30, 1
      %s647 = smul.addr %s646, 2
      %s648 = smul.addr %s647, 8
      %s649 = scalar_lea.vmem %s3, %s648
      %p650 = scmp.lt.s32.totalorder %s30, 1
      %s651 = scalar_select %p650, %s30, 1
      %s652 = scalar_lea.vmem %s19, %s651
      %v654 = vld [vmem:[%s18] sm:$0x1]
      %v655 = vld [vmem:[%s18 + $0x1] sm:$0x1]
      %v656 = vld [vmem:[%s18 + $0x2] sm:$0x1]
      %v657 = vld [vmem:[%s18 + $0x3] sm:$0x1]
      %v658 = vld [vmem:[%s18 + $0x4] sm:$0x1]
      %v659 = vld [vmem:[%s18 + $0x5] sm:$0x1]
      %v660 = vld [vmem:[%s18 + $0x6] sm:$0x1]
      %v661 = vld [vmem:[%s18 + $0x7] sm:$0x1]
      %v662 = vld [vmem:[%s18 + $0x8] sm:$0x1]
      %v663 = vld [vmem:[%s18 + $0x9] sm:$0x1]
      %v664 = vld [vmem:[%s634] sm:$0x1]
      %v665 = vld [vmem:[%s639] sm:$0xff]
      %v666 = vld [vmem:[%s639 + $0x8] sm:$0xff]
      %v667 = vld [vmem:[%s639 + $0x10] sm:$0xff]
      %v668 = vunpack.c.l.bf16 %v665
      %v669 = vunpack.c.h.bf16 %v665
      %v670 = vunpack.c.l.bf16 %v666
      %v671 = vunpack.c.h.bf16 %v666
      %v672 = vunpack.c.l.bf16 %v667
      %v673 = vunpack.c.h.bf16 %v667
      %vm674 = vcmask 64512
      %v676 = vsel %vm674, %v664, 0
      %678 = vmatprep.subr.mxu0 0.0
      %679 = vmatpush1.msra.mxu0 0.0
      %680 = vmatprep.subr.mxu0 0.0
      %681 = vmatpush1.msra.mxu0 0.0
      %682 = vmatprep.subr.mxu0 0.0
      %683 = vmatpush1.msra.mxu0 0.0
      %684 = vmatprep.subr.mxu0 0.0
      %685 = vmatpush1.msra.mxu0 0.0
      %686 = vmatprep.subr.mxu0 0.0
      %687 = vmatpush1.msra.mxu0 0.0
      %688 = vmatprep.subr.mxu0 0.0
      %689 = vmatpush1.msra.mxu0 0.0
      %690 = vmatprep.subr.mxu0 0.0
      %691 = vmatpush1.msra.mxu0 0.0
      %692 = vmatprep.subr.mxu0 0.0
      %693 = vmatpush1.msra.mxu0 0.0
      %694 = vmatprep.subr.mxu0 0.0
      %695 = vmatpush1.msra.mxu0 0.0
      %696 = vmatprep.subr.mxu0 0.0
      %697 = vmatpush1.msra.mxu0 0.0
      %698 = vmatprep.subr.mxu0 0.0
      %699 = vmatpush1.msra.mxu0 0.0
      %700 = vmatprep.subr.mxu0 0.0
      %701 = vmatpush1.msra.mxu0 0.0
      %702 = vmatprep.subr.mxu0 0.0
      %703 = vmatpush1.msra.mxu0 0.0
      %704 = vmatprep.subr.mxu0 0.0
      %705 = vmatpush1.msra.mxu0 0.0
      %706 = vmatprep.subr.mxu0 0.0
      %707 = vmatpush1.msra.mxu0 0.0
      %708 = vmatprep.subr.mxu0 %v669
      %709 = vmatpush1.msra.mxu0 %v668
      %710 = vmatprep.subr.mxu0 0.0
      %711 = vmatpush2.msra.mxu0 0.0
      %712 = vmatprep.subr.mxu0 0.0
      %713 = vmatpush2.msra.mxu0 0.0
      %714 = vmatprep.subr.mxu0 0.0
      %715 = vmatpush2.msra.mxu0 0.0
      %716 = vmatprep.subr.mxu0 0.0
      %717 = vmatpush2.msra.mxu0 0.0
      %718 = vmatprep.subr.mxu0 0.0
      %719 = vmatpush2.msra.mxu0 0.0
      %720 = vmatprep.subr.mxu0 0.0
      %721 = vmatpush2.msra.mxu0 0.0
      %722 = vmatprep.subr.mxu0 0.0
      %723 = vmatpush2.msra.mxu0 0.0
      %724 = vmatprep.subr.mxu0 0.0
      %725 = vmatpush2.msra.mxu0 0.0
      %726 = vmatprep.subr.mxu0 0.0
      %727 = vmatpush2.msra.mxu0 0.0
      %728 = vmatprep.subr.mxu0 0.0
      %729 = vmatpush2.msra.mxu0 0.0
      %730 = vmatprep.subr.mxu0 0.0
      %731 = vmatpush2.msra.mxu0 0.0
      %732 = vmatprep.subr.mxu0 0.0
      %733 = vmatpush2.msra.mxu0 0.0
      %734 = vmatprep.subr.mxu0 0.0
      %735 = vmatpush2.msra.mxu0 0.0
      %736 = vmatprep.subr.mxu0 0.0
      %737 = vmatpush2.msra.mxu0 0.0
      %738 = vmatprep.subr.mxu0 0.0
      %739 = vmatpush2.msra.mxu0 0.0
      %740 = vmatprep.subr.mxu0 0.0
      %741 = vmatpush2.msra.mxu0 0.0
      %742 = vmatprep.mubr.f32.mxu0 0.0
      %743 = vmatmul.mubr.f32.gmra.mxu0 %v676
      %v744 = vpop.f32.mrf.mxu0
      %v745 = vadd.f32 0.0, %v744
      %v746 = vpop.f32.mrf.mxu0
      %v747 = vadd.f32 0.0, %v746
      %748 = vdwg.mxu0
      %749 = vmatprep.subr.mxu0 0.0
      %750 = vmatpush1.msra.mxu0 0.0
      %751 = vmatprep.subr.mxu0 0.0
      %752 = vmatpush1.msra.mxu0 0.0
      %753 = vmatprep.subr.mxu0 0.0
      %754 = vmatpush1.msra.mxu0 0.0
      %755 = vmatprep.subr.mxu0 0.0
      %756 = vmatpush1.msra.mxu0 0.0
      %757 = vmatprep.subr.mxu0 0.0
      %758 = vmatpush1.msra.mxu0 0.0
      %759 = vmatprep.subr.mxu0 0.0
      %760 = vmatpush1.msra.mxu0 0.0
      %761 = vmatprep.subr.mxu0 0.0
      %762 = vmatpush1.msra.mxu0 0.0
      %763 = vmatprep.subr.mxu0 0.0
      %764 = vmatpush1.msra.mxu0 0.0
      %765 = vmatprep.subr.mxu0 0.0
      %766 = vmatpush1.msra.mxu0 0.0
      %767 = vmatprep.subr.mxu0 0.0
      %768 = vmatpush1.msra.mxu0 0.0
      %769 = vmatprep.subr.mxu0 0.0
      %770 = vmatpush1.msra.mxu0 0.0
      %771 = vmatprep.subr.mxu0 0.0
      %772 = vmatpush1.msra.mxu0 0.0
      %773 = vmatprep.subr.mxu0 0.0
      %774 = vmatpush1.msra.mxu0 0.0
      %775 = vmatprep.subr.mxu0 0.0
      %776 = vmatpush1.msra.mxu0 0.0
      %777 = vmatprep.subr.mxu0 0.0
      %778 = vmatpush1.msra.mxu0 0.0
      %779 = vmatprep.subr.mxu0 %v671
      %780 = vmatpush1.msra.mxu0 %v670
      %781 = vmatprep.subr.mxu0 0.0
      %782 = vmatpush2.msra.mxu0 0.0
      %783 = vmatprep.subr.mxu0 0.0
      %784 = vmatpush2.msra.mxu0 0.0
      %785 = vmatprep.subr.mxu0 0.0
      %786 = vmatpush2.msra.mxu0 0.0
      %787 = vmatprep.subr.mxu0 0.0
      %788 = vmatpush2.msra.mxu0 0.0
      %789 = vmatprep.subr.mxu0 0.0
      %790 = vmatpush2.msra.mxu0 0.0
      %791 = vmatprep.subr.mxu0 0.0
      %792 = vmatpush2.msra.mxu0 0.0
      %793 = vmatprep.subr.mxu0 0.0
      %794 = vmatpush2.msra.mxu0 0.0
      %795 = vmatprep.subr.mxu0 0.0
      %796 = vmatpush2.msra.mxu0 0.0
      %797 = vmatprep.subr.mxu0 0.0
      %798 = vmatpush2.msra.mxu0 0.0
      %799 = vmatprep.subr.mxu0 0.0
      %800 = vmatpush2.msra.mxu0 0.0
      %801 = vmatprep.subr.mxu0 0.0
      %802 = vmatpush2.msra.mxu0 0.0
      %803 = vmatprep.subr.mxu0 0.0
      %804 = vmatpush2.msra.mxu0 0.0
      %805 = vmatprep.subr.mxu0 0.0
      %806 = vmatpush2.msra.mxu0 0.0
      %807 = vmatprep.subr.mxu0 0.0
      %808 = vmatpush2.msra.mxu0 0.0
      %809 = vmatprep.subr.mxu0 0.0
      %810 = vmatpush2.msra.mxu0 0.0
      %811 = vmatprep.subr.mxu0 0.0
      %812 = vmatpush2.msra.mxu0 0.0
      %813 = vmatprep.mubr.f32.mxu0 0.0
      %814 = vmatmul.mubr.f32.gmra.mxu0 %v676
      %v815 = vpop.f32.mrf.mxu0
      %v816 = vadd.f32 0.0, %v815
      %v817 = vpop.f32.mrf.mxu0
      %v818 = vadd.f32 0.0, %v817
      %819 = vdwg.mxu0
      %820 = vmatprep.subr.mxu0 0.0
      %821 = vmatpush1.msra.mxu0 0.0
      %822 = vmatprep.subr.mxu0 0.0
      %823 = vmatpush1.msra.mxu0 0.0
      %824 = vmatprep.subr.mxu0 0.0
      %825 = vmatpush1.msra.mxu0 0.0
      %826 = vmatprep.subr.mxu0 0.0
      %827 = vmatpush1.msra.mxu0 0.0
      %828 = vmatprep.subr.mxu0 0.0
      %829 = vmatpush1.msra.mxu0 0.0
      %830 = vmatprep.subr.mxu0 0.0
      %831 = vmatpush1.msra.mxu0 0.0
      %832 = vmatprep.subr.mxu0 0.0
      %833 = vmatpush1.msra.mxu0 0.0
      %834 = vmatprep.subr.mxu0 0.0
      %835 = vmatpush1.msra.mxu0 0.0
      %836 = vmatprep.subr.mxu0 0.0
      %837 = vmatpush1.msra.mxu0 0.0
      %838 = vmatprep.subr.mxu0 0.0
      %839 = vmatpush1.msra.mxu0 0.0
      %840 = vmatprep.subr.mxu0 0.0
      %841 = vmatpush1.msra.mxu0 0.0
      %842 = vmatprep.subr.mxu0 0.0
      %843 = vmatpush1.msra.mxu0 0.0
      %844 = vmatprep.subr.mxu0 0.0
      %845 = vmatpush1.msra.mxu0 0.0
      %846 = vmatprep.subr.mxu0 0.0
      %847 = vmatpush1.msra.mxu0 0.0
      %848 = vmatprep.subr.mxu0 0.0
      %849 = vmatpush1.msra.mxu0 0.0
      %850 = vmatprep.subr.mxu0 %v673
      %851 = vmatpush1.msra.mxu0 %v672
      %852 = vmatprep.subr.mxu0 0.0
      %853 = vmatpush2.msra.mxu0 0.0
      %854 = vmatprep.subr.mxu0 0.0
      %855 = vmatpush2.msra.mxu0 0.0
      %856 = vmatprep.subr.mxu0 0.0
      %857 = vmatpush2.msra.mxu0 0.0
      %858 = vmatprep.subr.mxu0 0.0
      %859 = vmatpush2.msra.mxu0 0.0
      %860 = vmatprep.subr.mxu0 0.0
      %861 = vmatpush2.msra.mxu0 0.0
      %862 = vmatprep.subr.mxu0 0.0
      %863 = vmatpush2.msra.mxu0 0.0
      %864 = vmatprep.subr.mxu0 0.0
      %865 = vmatpush2.msra.mxu0 0.0
      %866 = vmatprep.subr.mxu0 0.0
      %867 = vmatpush2.msra.mxu0 0.0
      %868 = vmatprep.subr.mxu0 0.0
      %869 = vmatpush2.msra.mxu0 0.0
      %870 = vmatprep.subr.mxu0 0.0
      %871 = vmatpush2.msra.mxu0 0.0
      %872 = vmatprep.subr.mxu0 0.0
      %873 = vmatpush2.msra.mxu0 0.0
      %874 = vmatprep.subr.mxu0 0.0
      %875 = vmatpush2.msra.mxu0 0.0
      %876 = vmatprep.subr.mxu0 0.0
      %877 = vmatpush2.msra.mxu0 0.0
      %878 = vmatprep.subr.mxu0 0.0
      %879 = vmatpush2.msra.mxu0 0.0
      %880 = vmatprep.subr.mxu0 0.0
      %881 = vmatpush2.msra.mxu0 0.0
      %882 = vmatprep.subr.mxu0 0.0
      %883 = vmatpush2.msra.mxu0 0.0
      %884 = vmatprep.mubr.f32.mxu0 0.0
      %885 = vmatmul.mubr.f32.gmra.mxu0 %v676
      %v886 = vpop.f32.mrf.mxu0
      %v887 = vadd.f32 0.0, %v886
      %v888 = vpop.f32.mrf.mxu0
      %v889 = vadd.f32 0.0, %v888
      %890 = vdwg.mxu0
      %v891 = vld [vmem:[%s4] sm:$0xff]
      %v892 = vld [vmem:[%s4 + $0x8] sm:$0xff]
      %v893 = vld [vmem:[%s4 + $0x10] sm:$0xff]
      %v894 = vld [vmem:[%s4 + $0x18] sm:$0xff]
      %v895 = vld [vmem:[%s4 + $0x20] sm:$0xff]
      %v896 = vld [vmem:[%s4 + $0x28] sm:$0xff]
      %v897 = vld [vmem:[%s4 + $0x30] sm:$0xff]
      %v898 = vld [vmem:[%s4 + $0x38] sm:$0xff]
      %v899 = vld [vmem:[%s4 + $0x40] sm:$0xff]
      %v900 = vld [vmem:[%s4 + $0x48] sm:$0xff]
      %v901 = vld [vmem:[%s4 + $0x50] sm:$0xff]
      %v902 = vld [vmem:[%s4 + $0x58] sm:$0xff]
      %v903 = vld [vmem:[%s4 + $0x60] sm:$0xff]
      %v904 = vld [vmem:[%s4 + $0x68] sm:$0xff]
      %v905 = vld [vmem:[%s4 + $0x70] sm:$0xff]
      %v906 = vld [vmem:[%s4 + $0x78] sm:$0xff]
      %v907 = vld [vmem:[%s4 + $0x80] sm:$0xff]
      %v908 = vld [vmem:[%s4 + $0x88] sm:$0xff]
      %v909 = vld [vmem:[%s4 + $0x90] sm:$0xff]
      %v910 = vld [vmem:[%s4 + $0x98] sm:$0xff]
      %v911 = vld [vmem:[%s4 + $0xa0] sm:$0xff]
      %v912 = vld [vmem:[%s4 + $0xa8] sm:$0xff]
      %v913 = vld [vmem:[%s4 + $0xb0] sm:$0xff]
      %v914 = vld [vmem:[%s4 + $0xb8] sm:$0xff]
      %v915 = vld [vmem:[%s4 + $0xc0] sm:$0xff]
      %v916 = vld [vmem:[%s4 + $0xc8] sm:$0xff]
      %v917 = vld [vmem:[%s4 + $0xd0] sm:$0xff]
      %v918 = vld [vmem:[%s4 + $0xd8] sm:$0xff]
      %v919 = vld [vmem:[%s4 + $0xe0] sm:$0xff]
      %v920 = vld [vmem:[%s4 + $0xe8] sm:$0xff]
      %v921 = vld [vmem:[%s4 + $0xf0] sm:$0xff]
      %v922 = vld [vmem:[%s4 + $0xf8] sm:$0xff]
      %v923 = vld [vmem:[%s4 + $0x100] sm:$0xff]
      %v924 = vld [vmem:[%s4 + $0x108] sm:$0xff]
      %v925 = vld [vmem:[%s4 + $0x110] sm:$0xff]
      %v926 = vld [vmem:[%s4 + $0x118] sm:$0xff]
      %v927 = vld [vmem:[%s4 + $0x120] sm:$0xff]
      %v928 = vld [vmem:[%s4 + $0x128] sm:$0xff]
      %v929 = vld [vmem:[%s4 + $0x130] sm:$0xff]
      %v930 = vld [vmem:[%s4 + $0x138] sm:$0xff]
      %v931 = vld [vmem:[%s4 + $0x140] sm:$0xff]
      %v932 = vld [vmem:[%s4 + $0x148] sm:$0xff]
      %v933 = vld [vmem:[%s4 + $0x150] sm:$0xff]
      %v934 = vld [vmem:[%s4 + $0x158] sm:$0xff]
      %v935 = vld [vmem:[%s4 + $0x160] sm:$0xff]
      %v936 = vld [vmem:[%s4 + $0x168] sm:$0xff]
      %v937 = vld [vmem:[%s4 + $0x170] sm:$0xff]
      %v938 = vld [vmem:[%s4 + $0x178] sm:$0xff]
      %v939 = vld [vmem:[%s4 + $0x180] sm:$0xff]
      %v940 = vld [vmem:[%s4 + $0x188] sm:$0xff]
      %v941 = vld [vmem:[%s4 + $0x190] sm:$0xff]
      %v942 = vld [vmem:[%s4 + $0x198] sm:$0xff]
      %v943 = vld [vmem:[%s4 + $0x1a0] sm:$0xff]
      %v944 = vld [vmem:[%s4 + $0x1a8] sm:$0xff]
      %v945 = vld [vmem:[%s4 + $0x1b0] sm:$0xff]
      %v946 = vld [vmem:[%s4 + $0x1b8] sm:$0xff]
      %v947 = vld [vmem:[%s4 + $0x1c0] sm:$0xff]
      %v948 = vld [vmem:[%s4 + $0x1c8] sm:$0xff]
      %v949 = vld [vmem:[%s4 + $0x1d0] sm:$0xff]
      %v950 = vld [vmem:[%s4 + $0x1d8] sm:$0xff]
      %v951 = vld [vmem:[%s4 + $0x1e0] sm:$0xff]
      %v952 = vld [vmem:[%s4 + $0x1e8] sm:$0xff]
      %v953 = vld [vmem:[%s4 + $0x1f0] sm:$0xff]
      %v954 = vld [vmem:[%s4 + $0x1f8] sm:$0xff]
      %v955 = vld [vmem:[%s4 + $0x200] sm:$0xff]
      %v956 = vld [vmem:[%s4 + $0x208] sm:$0xff]
      %v957 = vld [vmem:[%s4 + $0x210] sm:$0xff]
      %v958 = vld [vmem:[%s4 + $0x218] sm:$0xff]
      %v959 = vld [vmem:[%s4 + $0x220] sm:$0xff]
      %v960 = vld [vmem:[%s4 + $0x228] sm:$0xff]
      %v961 = vld [vmem:[%s4 + $0x230] sm:$0xff]
      %v962 = vld [vmem:[%s4 + $0x238] sm:$0xff]
      %v963 = vld [vmem:[%s4 + $0x240] sm:$0xff]
      %v964 = vld [vmem:[%s4 + $0x248] sm:$0xff]
      %v965 = vld [vmem:[%s4 + $0x250] sm:$0xff]
      %v966 = vld [vmem:[%s4 + $0x258] sm:$0xff]
      %v967 = vld [vmem:[%s4 + $0x260] sm:$0xff]
      %v968 = vld [vmem:[%s4 + $0x268] sm:$0xff]
      %v969 = vld [vmem:[%s4 + $0x270] sm:$0xff]
      %v970 = vld [vmem:[%s4 + $0x278] sm:$0xff]
      %v971 = vld [vmem:[%s4 + $0x280] sm:$0xff]
      %v972 = vld [vmem:[%s4 + $0x288] sm:$0xff]
      %v973 = vld [vmem:[%s4 + $0x290] sm:$0xff]
      %v974 = vld [vmem:[%s4 + $0x298] sm:$0xff]
      %v975 = vld [vmem:[%s4 + $0x2a0] sm:$0xff]
      %v976 = vld [vmem:[%s4 + $0x2a8] sm:$0xff]
      %v977 = vld [vmem:[%s4 + $0x2b0] sm:$0xff]
      %v978 = vld [vmem:[%s4 + $0x2b8] sm:$0xff]
      %v979 = vld [vmem:[%s4 + $0x2c0] sm:$0xff]
      %v980 = vld [vmem:[%s4 + $0x2c8] sm:$0xff]
      %v981 = vld [vmem:[%s4 + $0x2d0] sm:$0xff]
      %v982 = vld [vmem:[%s4 + $0x2d8] sm:$0xff]
      %v983 = vld [vmem:[%s4 + $0x2e0] sm:$0xff]
      %v984 = vld [vmem:[%s4 + $0x2e8] sm:$0xff]
      %v985 = vld [vmem:[%s4 + $0x2f0] sm:$0xff]
      %v986 = vld [vmem:[%s4 + $0x2f8] sm:$0xff]
      %v987 = vld [vmem:[%s4 + $0x300] sm:$0xff]
      %v988 = vld [vmem:[%s4 + $0x308] sm:$0xff]
      %v989 = vld [vmem:[%s4 + $0x310] sm:$0xff]
      %v990 = vld [vmem:[%s4 + $0x318] sm:$0xff]
      %v991 = vld [vmem:[%s4 + $0x320] sm:$0xff]
      %v992 = vld [vmem:[%s4 + $0x328] sm:$0xff]
      %v993 = vld [vmem:[%s4 + $0x330] sm:$0xff]
      %v994 = vld [vmem:[%s4 + $0x338] sm:$0xff]
      %v995 = vld [vmem:[%s4 + $0x340] sm:$0xff]
      %v996 = vld [vmem:[%s4 + $0x348] sm:$0xff]
      %v997 = vld [vmem:[%s4 + $0x350] sm:$0xff]
      %v998 = vld [vmem:[%s4 + $0x358] sm:$0xff]
      %v999 = vld [vmem:[%s4 + $0x360] sm:$0xff]
      %v1000 = vld [vmem:[%s4 + $0x368] sm:$0xff]
      %v1001 = vld [vmem:[%s4 + $0x370] sm:$0xff]
      %v1002 = vld [vmem:[%s4 + $0x378] sm:$0xff]
      %v1003 = vld [vmem:[%s4 + $0x380] sm:$0xff]
      %v1004 = vld [vmem:[%s4 + $0x388] sm:$0xff]
      %v1005 = vld [vmem:[%s4 + $0x390] sm:$0xff]
      %v1006 = vld [vmem:[%s4 + $0x398] sm:$0xff]
      %v1007 = vld [vmem:[%s4 + $0x3a0] sm:$0xff]
      %v1008 = vld [vmem:[%s4 + $0x3a8] sm:$0xff]
      %v1009 = vld [vmem:[%s4 + $0x3b0] sm:$0xff]
      %v1010 = vld [vmem:[%s4 + $0x3b8] sm:$0xff]
      %v1011 = vld [vmem:[%s4 + $0x3c0] sm:$0xff]
      %v1012 = vld [vmem:[%s4 + $0x3c8] sm:$0xff]
      %v1013 = vld [vmem:[%s4 + $0x3d0] sm:$0xff]
      %v1014 = vld [vmem:[%s4 + $0x3d8] sm:$0xff]
      %v1015 = vld [vmem:[%s4 + $0x3e0] sm:$0xff]
      %v1016 = vld [vmem:[%s4 + $0x3e8] sm:$0xff]
      %v1017 = vld [vmem:[%s4 + $0x3f0] sm:$0xff]
      %v1018 = vld [vmem:[%s4 + $0x3f8] sm:$0xff]
      %v1019 = vld [vmem:[%s4 + $0x400] sm:$0xff]
      %v1020 = vld [vmem:[%s4 + $0x408] sm:$0xff]
      %v1021 = vld [vmem:[%s4 + $0x410] sm:$0xff]
      %v1022 = vld [vmem:[%s4 + $0x418] sm:$0xff]
      %v1023 = vld [vmem:[%s4 + $0x420] sm:$0xff]
      %v1024 = vld [vmem:[%s4 + $0x428] sm:$0xff]
      %v1025 = vld [vmem:[%s4 + $0x430] sm:$0xff]
      %v1026 = vld [vmem:[%s4 + $0x438] sm:$0xff]
      %v1027 = vld [vmem:[%s4 + $0x440] sm:$0xff]
      %v1028 = vld [vmem:[%s4 + $0x448] sm:$0xff]
      %v1029 = vld [vmem:[%s4 + $0x450] sm:$0xff]
      %v1030 = vld [vmem:[%s4 + $0x458] sm:$0xff]
      %v1031 = vld [vmem:[%s4 + $0x460] sm:$0xff]
      %v1032 = vld [vmem:[%s4 + $0x468] sm:$0xff]
      %v1033 = vld [vmem:[%s4 + $0x470] sm:$0xff]
      %v1034 = vld [vmem:[%s4 + $0x478] sm:$0xff]
      %v1035 = vld [vmem:[%s4 + $0x480] sm:$0xff]
      %v1036 = vld [vmem:[%s4 + $0x488] sm:$0xff]
      %v1037 = vld [vmem:[%s4 + $0x490] sm:$0xff]
      %v1038 = vld [vmem:[%s4 + $0x498] sm:$0xff]
      %v1039 = vld [vmem:[%s4 + $0x4a0] sm:$0xff]
      %v1040 = vld [vmem:[%s4 + $0x4a8] sm:$0xff]
      %v1041 = vld [vmem:[%s4 + $0x4b0] sm:$0xff]
      %v1042 = vld [vmem:[%s4 + $0x4b8] sm:$0xff]
      %v1043 = vld [vmem:[%s4 + $0x4c0] sm:$0xff]
      %v1044 = vld [vmem:[%s4 + $0x4c8] sm:$0xff]
      %v1045 = vld [vmem:[%s4 + $0x4d0] sm:$0xff]
      %v1046 = vld [vmem:[%s4 + $0x4d8] sm:$0xff]
      %v1047 = vld [vmem:[%s4 + $0x4e0] sm:$0xff]
      %v1048 = vld [vmem:[%s4 + $0x4e8] sm:$0xff]
      %v1049 = vld [vmem:[%s4 + $0x4f0] sm:$0xff]
      %v1050 = vld [vmem:[%s4 + $0x4f8] sm:$0xff]
      %v1051 = vld [vmem:[%s4 + $0x500] sm:$0xff]
      %v1052 = vld [vmem:[%s4 + $0x508] sm:$0xff]
      %v1053 = vld [vmem:[%s4 + $0x510] sm:$0xff]
      %v1054 = vld [vmem:[%s4 + $0x518] sm:$0xff]
      %v1055 = vld [vmem:[%s4 + $0x520] sm:$0xff]
      %v1056 = vld [vmem:[%s4 + $0x528] sm:$0xff]
      %v1057 = vld [vmem:[%s4 + $0x530] sm:$0xff]
      %v1058 = vld [vmem:[%s4 + $0x538] sm:$0xff]
      %v1059 = vld [vmem:[%s4 + $0x540] sm:$0xff]
      %v1060 = vld [vmem:[%s4 + $0x548] sm:$0xff]
      %v1061 = vld [vmem:[%s4 + $0x550] sm:$0xff]
      %v1062 = vld [vmem:[%s4 + $0x558] sm:$0xff]
      %v1063 = vld [vmem:[%s4 + $0x560] sm:$0xff]
      %v1064 = vld [vmem:[%s4 + $0x568] sm:$0xff]
      %v1065 = vld [vmem:[%s4 + $0x570] sm:$0xff]
      %v1066 = vld [vmem:[%s4 + $0x578] sm:$0xff]
      %v1067 = vld [vmem:[%s4 + $0x580] sm:$0xff]
      %v1068 = vld [vmem:[%s4 + $0x588] sm:$0xff]
      %v1069 = vld [vmem:[%s4 + $0x590] sm:$0xff]
      %v1070 = vld [vmem:[%s4 + $0x598] sm:$0xff]
      %v1071 = vld [vmem:[%s4 + $0x5a0] sm:$0xff]
      %v1072 = vld [vmem:[%s4 + $0x5a8] sm:$0xff]
      %v1073 = vld [vmem:[%s4 + $0x5b0] sm:$0xff]
      %v1074 = vld [vmem:[%s4 + $0x5b8] sm:$0xff]
      %v1075 = vld [vmem:[%s4 + $0x5c0] sm:$0xff]
      %v1076 = vld [vmem:[%s4 + $0x5c8] sm:$0xff]
      %v1077 = vld [vmem:[%s4 + $0x5d0] sm:$0xff]
      %v1078 = vld [vmem:[%s4 + $0x5d8] sm:$0xff]
      %v1079 = vld [vmem:[%s4 + $0x5e0] sm:$0xff]
      %v1080 = vld [vmem:[%s4 + $0x5e8] sm:$0xff]
      %v1081 = vld [vmem:[%s4 + $0x5f0] sm:$0xff]
      %v1082 = vld [vmem:[%s4 + $0x5f8] sm:$0xff]
      %v1083 = vld [vmem:[%s4 + $0x600] sm:$0xff]
      %v1084 = vld [vmem:[%s4 + $0x608] sm:$0xff]
      %v1085 = vld [vmem:[%s4 + $0x610] sm:$0xff]
      %v1086 = vld [vmem:[%s4 + $0x618] sm:$0xff]
      %v1087 = vld [vmem:[%s4 + $0x620] sm:$0xff]
      %v1088 = vld [vmem:[%s4 + $0x628] sm:$0xff]
      %v1089 = vld [vmem:[%s4 + $0x630] sm:$0xff]
      %v1090 = vld [vmem:[%s4 + $0x638] sm:$0xff]
      %v1091 = vld [vmem:[%s4 + $0x640] sm:$0xff]
      %v1092 = vld [vmem:[%s4 + $0x648] sm:$0xff]
      %v1093 = vld [vmem:[%s4 + $0x650] sm:$0xff]
      %v1094 = vld [vmem:[%s4 + $0x658] sm:$0xff]
      %v1095 = vld [vmem:[%s4 + $0x660] sm:$0xff]
      %v1096 = vld [vmem:[%s4 + $0x668] sm:$0xff]
      %v1097 = vld [vmem:[%s4 + $0x670] sm:$0xff]
      %v1098 = vld [vmem:[%s4 + $0x678] sm:$0xff]
      %v1099 = vld [vmem:[%s4 + $0x680] sm:$0xff]
      %v1100 = vld [vmem:[%s4 + $0x688] sm:$0xff]
      %v1101 = vld [vmem:[%s4 + $0x690] sm:$0xff]
      %v1102 = vld [vmem:[%s4 + $0x698] sm:$0xff]
      %v1103 = vld [vmem:[%s4 + $0x6a0] sm:$0xff]
      %v1104 = vld [vmem:[%s4 + $0x6a8] sm:$0xff]
      %v1105 = vld [vmem:[%s4 + $0x6b0] sm:$0xff]
      %v1106 = vld [vmem:[%s4 + $0x6b8] sm:$0xff]
      %v1107 = vld [vmem:[%s4 + $0x6c0] sm:$0xff]
      %v1108 = vld [vmem:[%s4 + $0x6c8] sm:$0xff]
      %v1109 = vld [vmem:[%s4 + $0x6d0] sm:$0xff]
      %v1110 = vld [vmem:[%s4 + $0x6d8] sm:$0xff]
      %v1111 = vld [vmem:[%s4 + $0x6e0] sm:$0xff]
      %v1112 = vld [vmem:[%s4 + $0x6e8] sm:$0xff]
      %v1113 = vld [vmem:[%s4 + $0x6f0] sm:$0xff]
      %v1114 = vld [vmem:[%s4 + $0x6f8] sm:$0xff]
      %v1115 = vld [vmem:[%s4 + $0x700] sm:$0xff]
      %v1116 = vld [vmem:[%s4 + $0x708] sm:$0xff]
      %v1117 = vld [vmem:[%s4 + $0x710] sm:$0xff]
      %v1118 = vld [vmem:[%s4 + $0x718] sm:$0xff]
      %v1119 = vld [vmem:[%s4 + $0x720] sm:$0xff]
      %v1120 = vld [vmem:[%s4 + $0x728] sm:$0xff]
      %v1121 = vld [vmem:[%s4 + $0x730] sm:$0xff]
      %v1122 = vld [vmem:[%s4 + $0x738] sm:$0xff]
      %v1123 = vld [vmem:[%s4 + $0x740] sm:$0xff]
      %v1124 = vld [vmem:[%s4 + $0x748] sm:$0xff]
      %v1125 = vld [vmem:[%s4 + $0x750] sm:$0xff]
      %v1126 = vld [vmem:[%s4 + $0x758] sm:$0xff]
      %v1127 = vld [vmem:[%s4 + $0x760] sm:$0xff]
      %v1128 = vld [vmem:[%s4 + $0x768] sm:$0xff]
      %v1129 = vld [vmem:[%s4 + $0x770] sm:$0xff]
      %v1130 = vld [vmem:[%s4 + $0x778] sm:$0xff]
      %v1131 = vld [vmem:[%s4 + $0x780] sm:$0xff]
      %v1132 = vld [vmem:[%s4 + $0x788] sm:$0xff]
      %v1133 = vld [vmem:[%s4 + $0x790] sm:$0xff]
      %v1134 = vld [vmem:[%s4 + $0x798] sm:$0xff]
      %v1135 = vld [vmem:[%s4 + $0x7a0] sm:$0xff]
      %v1136 = vld [vmem:[%s4 + $0x7a8] sm:$0xff]
      %v1137 = vld [vmem:[%s4 + $0x7b0] sm:$0xff]
      %v1138 = vld [vmem:[%s4 + $0x7b8] sm:$0xff]
      %v1139 = vld [vmem:[%s4 + $0x7c0] sm:$0xff]
      %v1140 = vld [vmem:[%s4 + $0x7c8] sm:$0xff]
      %v1141 = vld [vmem:[%s4 + $0x7d0] sm:$0xff]
      %v1142 = vld [vmem:[%s4 + $0x7d8] sm:$0xff]
      %v1143 = vld [vmem:[%s4 + $0x7e0] sm:$0xff]
      %v1144 = vld [vmem:[%s4 + $0x7e8] sm:$0xff]
      %v1145 = vld [vmem:[%s4 + $0x7f0] sm:$0xff]
      %v1146 = vld [vmem:[%s4 + $0x7f8] sm:$0xff]
      %v1147 = vld [vmem:[%s4 + $0x800] sm:$0xff]
      %v1148 = vld [vmem:[%s4 + $0x808] sm:$0xff]
      %v1149 = vld [vmem:[%s4 + $0x810] sm:$0xff]
      %v1150 = vld [vmem:[%s4 + $0x818] sm:$0xff]
      %v1151 = vld [vmem:[%s4 + $0x820] sm:$0xff]
      %v1152 = vld [vmem:[%s4 + $0x828] sm:$0xff]
      %v1153 = vld [vmem:[%s4 + $0x830] sm:$0xff]
      %v1154 = vld [vmem:[%s4 + $0x838] sm:$0xff]
      %v1155 = vld [vmem:[%s4 + $0x840] sm:$0xff]
      %v1156 = vld [vmem:[%s4 + $0x848] sm:$0xff]
      %v1157 = vld [vmem:[%s4 + $0x850] sm:$0xff]
      %v1158 = vld [vmem:[%s4 + $0x858] sm:$0xff]
      %v1159 = vld [vmem:[%s4 + $0x860] sm:$0xff]
      %v1160 = vld [vmem:[%s4 + $0x868] sm:$0xff]
      %v1161 = vld [vmem:[%s4 + $0x870] sm:$0xff]
      %v1162 = vld [vmem:[%s4 + $0x878] sm:$0xff]
      %v1163 = vld [vmem:[%s4 + $0x880] sm:$0xff]
      %v1164 = vld [vmem:[%s4 + $0x888] sm:$0xff]
      %v1165 = vld [vmem:[%s4 + $0x890] sm:$0xff]
      %v1166 = vld [vmem:[%s4 + $0x898] sm:$0xff]
      %v1167 = vld [vmem:[%s4 + $0x8a0] sm:$0xff]
      %v1168 = vld [vmem:[%s4 + $0x8a8] sm:$0xff]
      %v1169 = vld [vmem:[%s4 + $0x8b0] sm:$0xff]
      %v1170 = vld [vmem:[%s4 + $0x8b8] sm:$0xff]
      %v1171 = vld [vmem:[%s4 + $0x8c0] sm:$0xff]
      %v1172 = vld [vmem:[%s4 + $0x8c8] sm:$0xff]
      %v1173 = vld [vmem:[%s4 + $0x8d0] sm:$0xff]
      %v1174 = vld [vmem:[%s4 + $0x8d8] sm:$0xff]
      %v1175 = vld [vmem:[%s4 + $0x8e0] sm:$0xff]
      %v1176 = vld [vmem:[%s4 + $0x8e8] sm:$0xff]
      %v1177 = vld [vmem:[%s4 + $0x8f0] sm:$0xff]
      %v1178 = vld [vmem:[%s4 + $0x8f8] sm:$0xff]
      %v1179 = vpack.c.bf16 %v745, %v745
      %v1180 = vpack.c.bf16 %v747, %v747
      %v1181 = vpack.c.bf16 %v816, %v816
      %v1182 = vpack.c.bf16 %v818, %v818
      %v1183 = vpack.c.bf16 %v887, %v887
      %v1184 = vpack.c.bf16 %v889, %v889
      %v1185 = vld [vmem:[%s5] sm:$0x3f]
      %v1474 = vunpack.c.l.b16 %v891
      %v1475 = vunpack.c.h.b16 %v891
      %v1476 = vunpack.c.l.b16 %v892
      %v1477 = vunpack.c.h.b16 %v892
      %v1478 = vunpack.c.l.b16 %v893
      %v1479 = vunpack.c.h.b16 %v893
      %v1480 = vunpack.c.l.b16 %v894
      %v1481 = vunpack.c.h.b16 %v894
      %v1482 = vunpack.c.l.b16 %v895
      %v1483 = vunpack.c.h.b16 %v895
      %v1484 = vunpack.c.l.b16 %v896
      %v1485 = vunpack.c.h.b16 %v896
      %v1486 = vunpack.c.l.b16 %v897
      %v1487 = vunpack.c.h.b16 %v897
      %v1488 = vunpack.c.l.b16 %v898
      %v1489 = vunpack.c.h.b16 %v898
      %v1490 = vunpack.c.l.b16 %v899
      %v1491 = vunpack.c.h.b16 %v899
      %v1492 = vunpack.c.l.b16 %v900
      %v1493 = vunpack.c.h.b16 %v900
      %v1494 = vunpack.c.l.b16 %v901
      %v1495 = vunpack.c.h.b16 %v901
      %v1496 = vunpack.c.l.b16 %v902
      %v1497 = vunpack.c.h.b16 %v902
      %v1498 = vunpack.c.l.b16 %v903
      %v1499 = vunpack.c.h.b16 %v903
      %v1500 = vunpack.c.l.b16 %v904
      %v1501 = vunpack.c.h.b16 %v904
      %v1502 = vunpack.c.l.b16 %v905
      %v1503 = vunpack.c.h.b16 %v905
      %v1504 = vunpack.c.l.b16 %v906
      %v1505 = vunpack.c.h.b16 %v906
      %v1506 = vunpack.c.l.b16 %v907
      %v1507 = vunpack.c.h.b16 %v907
      %v1508 = vunpack.c.l.b16 %v908
      %v1509 = vunpack.c.h.b16 %v908
      %v1510 = vunpack.c.l.b16 %v909
      %v1511 = vunpack.c.h.b16 %v909
      %v1512 = vunpack.c.l.b16 %v910
      %v1513 = vunpack.c.h.b16 %v910
      %v1514 = vunpack.c.l.b16 %v911
      %v1515 = vunpack.c.h.b16 %v911
      %v1516 = vunpack.c.l.b16 %v912
      %v1517 = vunpack.c.h.b16 %v912
      %v1518 = vunpack.c.l.b16 %v913
      %v1519 = vunpack.c.h.b16 %v913
      %v1520 = vunpack.c.l.b16 %v914
      %v1521 = vunpack.c.h.b16 %v914
      %v1522 = vunpack.c.l.b16 %v915
      %v1523 = vunpack.c.h.b16 %v915
      %v1524 = vunpack.c.l.b16 %v916
      %v1525 = vunpack.c.h.b16 %v916
      %v1526 = vunpack.c.l.b16 %v917
      %v1527 = vunpack.c.h.b16 %v917
      %v1528 = vunpack.c.l.b16 %v918
      %v1529 = vunpack.c.h.b16 %v918
      %v1530 = vunpack.c.l.b16 %v919
      %v1531 = vunpack.c.h.b16 %v919
      %v1532 = vunpack.c.l.b16 %v920
      %v1533 = vunpack.c.h.b16 %v920
      %v1534 = vunpack.c.l.b16 %v921
      %v1535 = vunpack.c.h.b16 %v921
      %v1536 = vunpack.c.l.b16 %v922
      %v1537 = vunpack.c.h.b16 %v922
      %v1538 = vunpack.c.l.b16 %v923
      %v1539 = vunpack.c.h.b16 %v923
      %v1540 = vunpack.c.l.b16 %v924
      %v1541 = vunpack.c.h.b16 %v924
      %v1542 = vunpack.c.l.b16 %v925
      %v1543 = vunpack.c.h.b16 %v925
      %v1544 = vunpack.c.l.b16 %v926
      %v1545 = vunpack.c.h.b16 %v926
      %v1546 = vunpack.c.l.b16 %v927
      %v1547 = vunpack.c.h.b16 %v927
      %v1548 = vunpack.c.l.b16 %v928
      %v1549 = vunpack.c.h.b16 %v928
      %v1550 = vunpack.c.l.b16 %v929
      %v1551 = vunpack.c.h.b16 %v929
      %v1552 = vunpack.c.l.b16 %v930
      %v1553 = vunpack.c.h.b16 %v930
      %v1554 = vunpack.c.l.b16 %v931
      %v1555 = vunpack.c.h.b16 %v931
      %v1556 = vunpack.c.l.b16 %v932
      %v1557 = vunpack.c.h.b16 %v932
      %v1558 = vunpack.c.l.b16 %v933
      %v1559 = vunpack.c.h.b16 %v933
      %v1560 = vunpack.c.l.b16 %v934
      %v1561 = vunpack.c.h.b16 %v934
      %v1562 = vunpack.c.l.b16 %v935
      %v1563 = vunpack.c.h.b16 %v935
      %v1564 = vunpack.c.l.b16 %v936
      %v1565 = vunpack.c.h.b16 %v936
      %v1566 = vunpack.c.l.b16 %v937
      %v1567 = vunpack.c.h.b16 %v937
      %v1568 = vunpack.c.l.b16 %v938
      %v1569 = vunpack.c.h.b16 %v938
      %v1570 = vunpack.c.l.b16 %v939
      %v1571 = vunpack.c.h.b16 %v939
      %v1572 = vunpack.c.l.b16 %v940
      %v1573 = vunpack.c.h.b16 %v940
      %v1574 = vunpack.c.l.b16 %v941
      %v1575 = vunpack.c.h.b16 %v941
      %v1576 = vunpack.c.l.b16 %v942
      %v1577 = vunpack.c.h.b16 %v942
      %v1578 = vunpack.c.l.b16 %v943
      %v1579 = vunpack.c.h.b16 %v943
      %v1580 = vunpack.c.l.b16 %v944
      %v1581 = vunpack.c.h.b16 %v944
      %v1582 = vunpack.c.l.b16 %v945
      %v1583 = vunpack.c.h.b16 %v945
      %v1584 = vunpack.c.l.b16 %v946
      %v1585 = vunpack.c.h.b16 %v946
      %v1586 = vunpack.c.l.b16 %v947
      %v1587 = vunpack.c.h.b16 %v947
      %v1588 = vunpack.c.l.b16 %v948
      %v1589 = vunpack.c.h.b16 %v948
      %v1590 = vunpack.c.l.b16 %v949
      %v1591 = vunpack.c.h.b16 %v949
      %v1592 = vunpack.c.l.b16 %v950
      %v1593 = vunpack.c.h.b16 %v950
      %v1594 = vunpack.c.l.b16 %v951
      %v1595 = vunpack.c.h.b16 %v951
      %v1596 = vunpack.c.l.b16 %v952
      %v1597 = vunpack.c.h.b16 %v952
      %v1598 = vunpack.c.l.b16 %v953
      %v1599 = vunpack.c.h.b16 %v953
      %v1600 = vunpack.c.l.b16 %v954
      %v1601 = vunpack.c.h.b16 %v954
      %v1602 = vunpack.c.l.b16 %v955
      %v1603 = vunpack.c.h.b16 %v955
      %v1604 = vunpack.c.l.b16 %v956
      %v1605 = vunpack.c.h.b16 %v956
      %v1606 = vunpack.c.l.b16 %v957
      %v1607 = vunpack.c.h.b16 %v957
      %v1608 = vunpack.c.l.b16 %v958
      %v1609 = vunpack.c.h.b16 %v958
      %v1610 = vunpack.c.l.b16 %v959
      %v1611 = vunpack.c.h.b16 %v959
      %v1612 = vunpack.c.l.b16 %v960
      %v1613 = vunpack.c.h.b16 %v960
      %v1614 = vunpack.c.l.b16 %v961
      %v1615 = vunpack.c.h.b16 %v961
      %v1616 = vunpack.c.l.b16 %v962
      %v1617 = vunpack.c.h.b16 %v962
      %v1618 = vunpack.c.l.b16 %v963
      %v1619 = vunpack.c.h.b16 %v963
      %v1620 = vunpack.c.l.b16 %v964
      %v1621 = vunpack.c.h.b16 %v964
      %v1622 = vunpack.c.l.b16 %v965
      %v1623 = vunpack.c.h.b16 %v965
      %v1624 = vunpack.c.l.b16 %v966
      %v1625 = vunpack.c.h.b16 %v966
      %v1626 = vunpack.c.l.b16 %v967
      %v1627 = vunpack.c.h.b16 %v967
      %v1628 = vunpack.c.l.b16 %v968
      %v1629 = vunpack.c.h.b16 %v968
      %v1630 = vunpack.c.l.b16 %v969
      %v1631 = vunpack.c.h.b16 %v969
      %v1632 = vunpack.c.l.b16 %v970
      %v1633 = vunpack.c.h.b16 %v970
      %v1634 = vunpack.c.l.b16 %v971
      %v1635 = vunpack.c.h.b16 %v971
      %v1636 = vunpack.c.l.b16 %v972
      %v1637 = vunpack.c.h.b16 %v972
      %v1638 = vunpack.c.l.b16 %v973
      %v1639 = vunpack.c.h.b16 %v973
      %v1640 = vunpack.c.l.b16 %v974
      %v1641 = vunpack.c.h.b16 %v974
      %v1642 = vunpack.c.l.b16 %v975
      %v1643 = vunpack.c.h.b16 %v975
      %v1644 = vunpack.c.l.b16 %v976
      %v1645 = vunpack.c.h.b16 %v976
      %v1646 = vunpack.c.l.b16 %v977
      %v1647 = vunpack.c.h.b16 %v977
      %v1648 = vunpack.c.l.b16 %v978
      %v1649 = vunpack.c.h.b16 %v978
      %v1650 = vunpack.c.l.b16 %v979
      %v1651 = vunpack.c.h.b16 %v979
      %v1652 = vunpack.c.l.b16 %v980
      %v1653 = vunpack.c.h.b16 %v980
      %v1654 = vunpack.c.l.b16 %v981
      %v1655 = vunpack.c.h.b16 %v981
      %v1656 = vunpack.c.l.b16 %v982
      %v1657 = vunpack.c.h.b16 %v982
      %v1658 = vunpack.c.l.b16 %v983
      %v1659 = vunpack.c.h.b16 %v983
      %v1660 = vunpack.c.l.b16 %v984
      %v1661 = vunpack.c.h.b16 %v984
      %v1662 = vunpack.c.l.b16 %v985
      %v1663 = vunpack.c.h.b16 %v985
      %v1664 = vunpack.c.l.b16 %v986
      %v1665 = vunpack.c.h.b16 %v986
      %v1666 = vunpack.c.l.b16 %v987
      %v1667 = vunpack.c.h.b16 %v987
      %v1668 = vunpack.c.l.b16 %v988
      %v1669 = vunpack.c.h.b16 %v988
      %v1670 = vunpack.c.l.b16 %v989
      %v1671 = vunpack.c.h.b16 %v989
      %v1672 = vunpack.c.l.b16 %v990
      %v1673 = vunpack.c.h.b16 %v990
      %v1674 = vunpack.c.l.b16 %v991
      %v1675 = vunpack.c.h.b16 %v991
      %v1676 = vunpack.c.l.b16 %v992
      %v1677 = vunpack.c.h.b16 %v992
      %v1678 = vunpack.c.l.b16 %v993
      %v1679 = vunpack.c.h.b16 %v993
      %v1680 = vunpack.c.l.b16 %v994
      %v1681 = vunpack.c.h.b16 %v994
      %v1682 = vunpack.c.l.b16 %v995
      %v1683 = vunpack.c.h.b16 %v995
      %v1684 = vunpack.c.l.b16 %v996
      %v1685 = vunpack.c.h.b16 %v996
      %v1686 = vunpack.c.l.b16 %v997
      %v1687 = vunpack.c.h.b16 %v997
      %v1688 = vunpack.c.l.b16 %v998
      %v1689 = vunpack.c.h.b16 %v998
      %v1690 = vunpack.c.l.b16 %v999
      %v1691 = vunpack.c.h.b16 %v999
      %v1692 = vunpack.c.l.b16 %v1000
      %v1693 = vunpack.c.h.b16 %v1000
      %v1694 = vunpack.c.l.b16 %v1001
      %v1695 = vunpack.c.h.b16 %v1001
      %v1696 = vunpack.c.l.b16 %v1002
      %v1697 = vunpack.c.h.b16 %v1002
      %v1698 = vunpack.c.l.b16 %v1003
      %v1699 = vunpack.c.h.b16 %v1003
      %v1700 = vunpack.c.l.b16 %v1004
      %v1701 = vunpack.c.h.b16 %v1004
      %v1702 = vunpack.c.l.b16 %v1005
      %v1703 = vunpack.c.h.b16 %v1005
      %v1704 = vunpack.c.l.b16 %v1006
      %v1705 = vunpack.c.h.b16 %v1006
      %v1706 = vunpack.c.l.b16 %v1007
      %v1707 = vunpack.c.h.b16 %v1007
      %v1708 = vunpack.c.l.b16 %v1008
      %v1709 = vunpack.c.h.b16 %v1008
      %v1710 = vunpack.c.l.b16 %v1009
      %v1711 = vunpack.c.h.b16 %v1009
      %v1712 = vunpack.c.l.b16 %v1010
      %v1713 = vunpack.c.h.b16 %v1010
      %v1714 = vunpack.c.l.b16 %v1011
      %v1715 = vunpack.c.h.b16 %v1011
      %v1716 = vunpack.c.l.b16 %v1012
      %v1717 = vunpack.c.h.b16 %v1012
      %v1718 = vunpack.c.l.b16 %v1013
      %v1719 = vunpack.c.h.b16 %v1013
      %v1720 = vunpack.c.l.b16 %v1014
      %v1721 = vunpack.c.h.b16 %v1014
      %v1722 = vunpack.c.l.b16 %v1015
      %v1723 = vunpack.c.h.b16 %v1015
      %v1724 = vunpack.c.l.b16 %v1016
      %v1725 = vunpack.c.h.b16 %v1016
      %v1726 = vunpack.c.l.b16 %v1017
      %v1727 = vunpack.c.h.b16 %v1017
      %v1728 = vunpack.c.l.b16 %v1018
      %v1729 = vunpack.c.h.b16 %v1018
      %v1730 = vunpack.c.l.b16 %v1019
      %v1731 = vunpack.c.h.b16 %v1019
      %v1732 = vunpack.c.l.b16 %v1020
      %v1733 = vunpack.c.h.b16 %v1020
      %v1734 = vunpack.c.l.b16 %v1021
      %v1735 = vunpack.c.h.b16 %v1021
      %v1736 = vunpack.c.l.b16 %v1022
      %v1737 = vunpack.c.h.b16 %v1022
      %v1738 = vunpack.c.l.b16 %v1023
      %v1739 = vunpack.c.h.b16 %v1023
      %v1740 = vunpack.c.l.b16 %v1024
      %v1741 = vunpack.c.h.b16 %v1024
      %v1742 = vunpack.c.l.b16 %v1025
      %v1743 = vunpack.c.h.b16 %v1025
      %v1744 = vunpack.c.l.b16 %v1026
      %v1745 = vunpack.c.h.b16 %v1026
      %v1746 = vunpack.c.l.b16 %v1027
      %v1747 = vunpack.c.h.b16 %v1027
      %v1748 = vunpack.c.l.b16 %v1028
      %v1749 = vunpack.c.h.b16 %v1028
      %v1750 = vunpack.c.l.b16 %v1029
      %v1751 = vunpack.c.h.b16 %v1029
      %v1752 = vunpack.c.l.b16 %v1030
      %v1753 = vunpack.c.h.b16 %v1030
      %v1754 = vunpack.c.l.b16 %v1031
      %v1755 = vunpack.c.h.b16 %v1031
      %v1756 = vunpack.c.l.b16 %v1032
      %v1757 = vunpack.c.h.b16 %v1032
      %v1758 = vunpack.c.l.b16 %v1033
      %v1759 = vunpack.c.h.b16 %v1033
      %v1760 = vunpack.c.l.b16 %v1034
      %v1761 = vunpack.c.h.b16 %v1034
      %v1762 = vunpack.c.l.b16 %v1035
      %v1763 = vunpack.c.h.b16 %v1035
      %v1764 = vunpack.c.l.b16 %v1036
      %v1765 = vunpack.c.h.b16 %v1036
      %v1766 = vunpack.c.l.b16 %v1037
      %v1767 = vunpack.c.h.b16 %v1037
      %v1768 = vunpack.c.l.b16 %v1038
      %v1769 = vunpack.c.h.b16 %v1038
      %v1770 = vunpack.c.l.b16 %v1039
      %v1771 = vunpack.c.h.b16 %v1039
      %v1772 = vunpack.c.l.b16 %v1040
      %v1773 = vunpack.c.h.b16 %v1040
      %v1774 = vunpack.c.l.b16 %v1041
      %v1775 = vunpack.c.h.b16 %v1041
      %v1776 = vunpack.c.l.b16 %v1042
      %v1777 = vunpack.c.h.b16 %v1042
      %v1778 = vunpack.c.l.b16 %v1043
      %v1779 = vunpack.c.h.b16 %v1043
      %v1780 = vunpack.c.l.b16 %v1044
      %v1781 = vunpack.c.h.b16 %v1044
      %v1782 = vunpack.c.l.b16 %v1045
      %v1783 = vunpack.c.h.b16 %v1045
      %v1784 = vunpack.c.l.b16 %v1046
      %v1785 = vunpack.c.h.b16 %v1046
      %v1786 = vunpack.c.l.b16 %v1047
      %v1787 = vunpack.c.h.b16 %v1047
      %v1788 = vunpack.c.l.b16 %v1048
      %v1789 = vunpack.c.h.b16 %v1048
      %v1790 = vunpack.c.l.b16 %v1049
      %v1791 = vunpack.c.h.b16 %v1049
      %v1792 = vunpack.c.l.b16 %v1050
      %v1793 = vunpack.c.h.b16 %v1050
      %v1794 = vunpack.c.l.b16 %v1051
      %v1795 = vunpack.c.h.b16 %v1051
      %v1796 = vunpack.c.l.b16 %v1052
      %v1797 = vunpack.c.h.b16 %v1052
      %v1798 = vunpack.c.l.b16 %v1053
      %v1799 = vunpack.c.h.b16 %v1053
      %v1800 = vunpack.c.l.b16 %v1054
      %v1801 = vunpack.c.h.b16 %v1054
      %v1802 = vunpack.c.l.b16 %v1055
      %v1803 = vunpack.c.h.b16 %v1055
      %v1804 = vunpack.c.l.b16 %v1056
      %v1805 = vunpack.c.h.b16 %v1056
      %v1806 = vunpack.c.l.b16 %v1057
      %v1807 = vunpack.c.h.b16 %v1057
      %v1808 = vunpack.c.l.b16 %v1058
      %v1809 = vunpack.c.h.b16 %v1058
      %v1810 = vunpack.c.l.b16 %v1059
      %v1811 = vunpack.c.h.b16 %v1059
      %v1812 = vunpack.c.l.b16 %v1060
      %v1813 = vunpack.c.h.b16 %v1060
      %v1814 = vunpack.c.l.b16 %v1061
      %v1815 = vunpack.c.h.b16 %v1061
      %v1816 = vunpack.c.l.b16 %v1062
      %v1817 = vunpack.c.h.b16 %v1062
      %v1818 = vunpack.c.l.b16 %v1063
      %v1819 = vunpack.c.h.b16 %v1063
      %v1820 = vunpack.c.l.b16 %v1064
      %v1821 = vunpack.c.h.b16 %v1064
      %v1822 = vunpack.c.l.b16 %v1065
      %v1823 = vunpack.c.h.b16 %v1065
      %v1824 = vunpack.c.l.b16 %v1066
      %v1825 = vunpack.c.h.b16 %v1066
      %v1826 = vunpack.c.l.b16 %v1067
      %v1827 = vunpack.c.h.b16 %v1067
      %v1828 = vunpack.c.l.b16 %v1068
      %v1829 = vunpack.c.h.b16 %v1068
      %v1830 = vunpack.c.l.b16 %v1069
      %v1831 = vunpack.c.h.b16 %v1069
      %v1832 = vunpack.c.l.b16 %v1070
      %v1833 = vunpack.c.h.b16 %v1070
      %v1834 = vunpack.c.l.b16 %v1071
      %v1835 = vunpack.c.h.b16 %v1071
      %v1836 = vunpack.c.l.b16 %v1072
      %v1837 = vunpack.c.h.b16 %v1072
      %v1838 = vunpack.c.l.b16 %v1073
      %v1839 = vunpack.c.h.b16 %v1073
      %v1840 = vunpack.c.l.b16 %v1074
      %v1841 = vunpack.c.h.b16 %v1074
      %v1842 = vunpack.c.l.b16 %v1075
      %v1843 = vunpack.c.h.b16 %v1075
      %v1844 = vunpack.c.l.b16 %v1076
      %v1845 = vunpack.c.h.b16 %v1076
      %v1846 = vunpack.c.l.b16 %v1077
      %v1847 = vunpack.c.h.b16 %v1077
      %v1848 = vunpack.c.l.b16 %v1078
      %v1849 = vunpack.c.h.b16 %v1078
      %v1850 = vunpack.c.l.b16 %v1079
      %v1851 = vunpack.c.h.b16 %v1079
      %v1852 = vunpack.c.l.b16 %v1080
      %v1853 = vunpack.c.h.b16 %v1080
      %v1854 = vunpack.c.l.b16 %v1081
      %v1855 = vunpack.c.h.b16 %v1081
      %v1856 = vunpack.c.l.b16 %v1082
      %v1857 = vunpack.c.h.b16 %v1082
      %v1858 = vunpack.c.l.b16 %v1083
      %v1859 = vunpack.c.h.b16 %v1083
      %v1860 = vunpack.c.l.b16 %v1084
      %v1861 = vunpack.c.h.b16 %v1084
      %v1862 = vunpack.c.l.b16 %v1085
      %v1863 = vunpack.c.h.b16 %v1085
      %v1864 = vunpack.c.l.b16 %v1086
      %v1865 = vunpack.c.h.b16 %v1086
      %v1866 = vunpack.c.l.b16 %v1087
      %v1867 = vunpack.c.h.b16 %v1087
      %v1868 = vunpack.c.l.b16 %v1088
      %v1869 = vunpack.c.h.b16 %v1088
      %v1870 = vunpack.c.l.b16 %v1089
      %v1871 = vunpack.c.h.b16 %v1089
      %v1872 = vunpack.c.l.b16 %v1090
      %v1873 = vunpack.c.h.b16 %v1090
      %v1874 = vunpack.c.l.b16 %v1091
      %v1875 = vunpack.c.h.b16 %v1091
      %v1876 = vunpack.c.l.b16 %v1092
      %v1877 = vunpack.c.h.b16 %v1092
      %v1878 = vunpack.c.l.b16 %v1093
      %v1879 = vunpack.c.h.b16 %v1093
      %v1880 = vunpack.c.l.b16 %v1094
      %v1881 = vunpack.c.h.b16 %v1094
      %v1882 = vunpack.c.l.b16 %v1095
      %v1883 = vunpack.c.h.b16 %v1095
      %v1884 = vunpack.c.l.b16 %v1096
      %v1885 = vunpack.c.h.b16 %v1096
      %v1886 = vunpack.c.l.b16 %v1097
      %v1887 = vunpack.c.h.b16 %v1097
      %v1888 = vunpack.c.l.b16 %v1098
      %v1889 = vunpack.c.h.b16 %v1098
      %v1890 = vunpack.c.l.b16 %v1099
      %v1891 = vunpack.c.h.b16 %v1099
      %v1892 = vunpack.c.l.b16 %v1100
      %v1893 = vunpack.c.h.b16 %v1100
      %v1894 = vunpack.c.l.b16 %v1101
      %v1895 = vunpack.c.h.b16 %v1101
      %v1896 = vunpack.c.l.b16 %v1102
      %v1897 = vunpack.c.h.b16 %v1102
      %v1898 = vunpack.c.l.b16 %v1103
      %v1899 = vunpack.c.h.b16 %v1103
      %v1900 = vunpack.c.l.b16 %v1104
      %v1901 = vunpack.c.h.b16 %v1104
      %v1902 = vunpack.c.l.b16 %v1105
      %v1903 = vunpack.c.h.b16 %v1105
      %v1904 = vunpack.c.l.b16 %v1106
      %v1905 = vunpack.c.h.b16 %v1106
      %v1906 = vunpack.c.l.b16 %v1107
      %v1907 = vunpack.c.h.b16 %v1107
      %v1908 = vunpack.c.l.b16 %v1108
      %v1909 = vunpack.c.h.b16 %v1108
      %v1910 = vunpack.c.l.b16 %v1109
      %v1911 = vunpack.c.h.b16 %v1109
      %v1912 = vunpack.c.l.b16 %v1110
      %v1913 = vunpack.c.h.b16 %v1110
      %v1914 = vunpack.c.l.b16 %v1111
      %v1915 = vunpack.c.h.b16 %v1111
      %v1916 = vunpack.c.l.b16 %v1112
      %v1917 = vunpack.c.h.b16 %v1112
      %v1918 = vunpack.c.l.b16 %v1113
      %v1919 = vunpack.c.h.b16 %v1113
      %v1920 = vunpack.c.l.b16 %v1114
      %v1921 = vunpack.c.h.b16 %v1114
      %v1922 = vunpack.c.l.b16 %v1115
      %v1923 = vunpack.c.h.b16 %v1115
      %v1924 = vunpack.c.l.b16 %v1116
      %v1925 = vunpack.c.h.b16 %v1116
      %v1926 = vunpack.c.l.b16 %v1117
      %v1927 = vunpack.c.h.b16 %v1117
      %v1928 = vunpack.c.l.b16 %v1118
      %v1929 = vunpack.c.h.b16 %v1118
      %v1930 = vunpack.c.l.b16 %v1119
      %v1931 = vunpack.c.h.b16 %v1119
      %v1932 = vunpack.c.l.b16 %v1120
      %v1933 = vunpack.c.h.b16 %v1120
      %v1934 = vunpack.c.l.b16 %v1121
      %v1935 = vunpack.c.h.b16 %v1121
      %v1936 = vunpack.c.l.b16 %v1122
      %v1937 = vunpack.c.h.b16 %v1122
      %v1938 = vunpack.c.l.b16 %v1123
      %v1939 = vunpack.c.h.b16 %v1123
      %v1940 = vunpack.c.l.b16 %v1124
      %v1941 = vunpack.c.h.b16 %v1124
      %v1942 = vunpack.c.l.b16 %v1125
      %v1943 = vunpack.c.h.b16 %v1125
      %v1944 = vunpack.c.l.b16 %v1126
      %v1945 = vunpack.c.h.b16 %v1126
      %v1946 = vunpack.c.l.b16 %v1127
      %v1947 = vunpack.c.h.b16 %v1127
      %v1948 = vunpack.c.l.b16 %v1128
      %v1949 = vunpack.c.h.b16 %v1128
      %v1950 = vunpack.c.l.b16 %v1129
      %v1951 = vunpack.c.h.b16 %v1129
      %v1952 = vunpack.c.l.b16 %v1130
      %v1953 = vunpack.c.h.b16 %v1130
      %v1954 = vunpack.c.l.b16 %v1131
      %v1955 = vunpack.c.h.b16 %v1131
      %v1956 = vunpack.c.l.b16 %v1132
      %v1957 = vunpack.c.h.b16 %v1132
      %v1958 = vunpack.c.l.b16 %v1133
      %v1959 = vunpack.c.h.b16 %v1133
      %v1960 = vunpack.c.l.b16 %v1134
      %v1961 = vunpack.c.h.b16 %v1134
      %v1962 = vunpack.c.l.b16 %v1135
      %v1963 = vunpack.c.h.b16 %v1135
      %v1964 = vunpack.c.l.b16 %v1136
      %v1965 = vunpack.c.h.b16 %v1136
      %v1966 = vunpack.c.l.b16 %v1137
      %v1967 = vunpack.c.h.b16 %v1137
      %v1968 = vunpack.c.l.b16 %v1138
      %v1969 = vunpack.c.h.b16 %v1138
      %v1970 = vunpack.c.l.b16 %v1139
      %v1971 = vunpack.c.h.b16 %v1139
      %v1972 = vunpack.c.l.b16 %v1140
      %v1973 = vunpack.c.h.b16 %v1140
      %v1974 = vunpack.c.l.b16 %v1141
      %v1975 = vunpack.c.h.b16 %v1141
      %v1976 = vunpack.c.l.b16 %v1142
      %v1977 = vunpack.c.h.b16 %v1142
      %v1978 = vunpack.c.l.b16 %v1143
      %v1979 = vunpack.c.h.b16 %v1143
      %v1980 = vunpack.c.l.b16 %v1144
      %v1981 = vunpack.c.h.b16 %v1144
      %v1982 = vunpack.c.l.b16 %v1145
      %v1983 = vunpack.c.h.b16 %v1145
      %v1984 = vunpack.c.l.b16 %v1146
      %v1985 = vunpack.c.h.b16 %v1146
      %v1986 = vunpack.c.l.b16 %v1147
      %v1987 = vunpack.c.h.b16 %v1147
      %v1988 = vunpack.c.l.b16 %v1148
      %v1989 = vunpack.c.h.b16 %v1148
      %v1990 = vunpack.c.l.b16 %v1149
      %v1991 = vunpack.c.h.b16 %v1149
      %v1992 = vunpack.c.l.b16 %v1150
      %v1993 = vunpack.c.h.b16 %v1150
      %v1994 = vunpack.c.l.b16 %v1151
      %v1995 = vunpack.c.h.b16 %v1151
      %v1996 = vunpack.c.l.b16 %v1152
      %v1997 = vunpack.c.h.b16 %v1152
      %v1998 = vunpack.c.l.b16 %v1153
      %v1999 = vunpack.c.h.b16 %v1153
      %v2000 = vunpack.c.l.b16 %v1154
      %v2001 = vunpack.c.h.b16 %v1154
      %v2002 = vunpack.c.l.b16 %v1155
      %v2003 = vunpack.c.h.b16 %v1155
      %v2004 = vunpack.c.l.b16 %v1156
      %v2005 = vunpack.c.h.b16 %v1156
      %v2006 = vunpack.c.l.b16 %v1157
      %v2007 = vunpack.c.h.b16 %v1157
      %v2008 = vunpack.c.l.b16 %v1158
      %v2009 = vunpack.c.h.b16 %v1158
      %v2010 = vunpack.c.l.b16 %v1159
      %v2011 = vunpack.c.h.b16 %v1159
      %v2012 = vunpack.c.l.b16 %v1160
      %v2013 = vunpack.c.h.b16 %v1160
      %v2014 = vunpack.c.l.b16 %v1161
      %v2015 = vunpack.c.h.b16 %v1161
      %v2016 = vunpack.c.l.b16 %v1162
      %v2017 = vunpack.c.h.b16 %v1162
      %v2018 = vunpack.c.l.b16 %v1163
      %v2019 = vunpack.c.h.b16 %v1163
      %v2020 = vunpack.c.l.b16 %v1164
      %v2021 = vunpack.c.h.b16 %v1164
      %v2022 = vunpack.c.l.b16 %v1165
      %v2023 = vunpack.c.h.b16 %v1165
      %v2024 = vunpack.c.l.b16 %v1166
      %v2025 = vunpack.c.h.b16 %v1166
      %v2026 = vunpack.c.l.b16 %v1167
      %v2027 = vunpack.c.h.b16 %v1167
      %v2028 = vunpack.c.l.b16 %v1168
      %v2029 = vunpack.c.h.b16 %v1168
      %v2030 = vunpack.c.l.b16 %v1169
      %v2031 = vunpack.c.h.b16 %v1169
      %v2032 = vunpack.c.l.b16 %v1170
      %v2033 = vunpack.c.h.b16 %v1170
      %v2034 = vunpack.c.l.b16 %v1171
      %v2035 = vunpack.c.h.b16 %v1171
      %v2036 = vunpack.c.l.b16 %v1172
      %v2037 = vunpack.c.h.b16 %v1172
      %v2038 = vunpack.c.l.b16 %v1173
      %v2039 = vunpack.c.h.b16 %v1173
      %v2040 = vunpack.c.l.b16 %v1174
      %v2041 = vunpack.c.h.b16 %v1174
      %v2042 = vunpack.c.l.b16 %v1175
      %v2043 = vunpack.c.h.b16 %v1175
      %v2044 = vunpack.c.l.b16 %v1176
      %v2045 = vunpack.c.h.b16 %v1176
      %v2046 = vunpack.c.l.b16 %v1177
      %v2047 = vunpack.c.h.b16 %v1177
      %v2048 = vunpack.c.l.b16 %v1178
      %v2049 = vunpack.c.h.b16 %v1178
      %v2050 = vpack.c.b16 %v1480, %v1474
      %v2051 = vpack.c.b16 %v1481, %v1475
      %v2052 = vpack.c.b16 %v1482, %v1476
      %v2053 = vpack.c.b16 %v1483, %v1477
      %v2054 = vpack.c.b16 %v1484, %v1478
      %v2055 = vpack.c.b16 %v1485, %v1479
      %v2056 = vpack.c.b16 %v1492, %v1486
      %v2057 = vpack.c.b16 %v1493, %v1487
      %v2058 = vpack.c.b16 %v1494, %v1488
      %v2059 = vpack.c.b16 %v1495, %v1489
      %v2060 = vpack.c.b16 %v1496, %v1490
      %v2061 = vpack.c.b16 %v1497, %v1491
      %v2062 = vpack.c.b16 %v1504, %v1498
      %v2063 = vpack.c.b16 %v1505, %v1499
      %v2064 = vpack.c.b16 %v1506, %v1500
      %v2065 = vpack.c.b16 %v1507, %v1501
      %v2066 = vpack.c.b16 %v1508, %v1502
      %v2067 = vpack.c.b16 %v1509, %v1503
      %v2068 = vpack.c.b16 %v1516, %v1510
      %v2069 = vpack.c.b16 %v1517, %v1511
      %v2070 = vpack.c.b16 %v1518, %v1512
      %v2071 = vpack.c.b16 %v1519, %v1513
      %v2072 = vpack.c.b16 %v1520, %v1514
      %v2073 = vpack.c.b16 %v1521, %v1515
      %v2074 = vpack.c.b16 %v1528, %v1522
      %v2075 = vpack.c.b16 %v1529, %v1523
      %v2076 = vpack.c.b16 %v1530, %v1524
      %v2077 = vpack.c.b16 %v1531, %v1525
      %v2078 = vpack.c.b16 %v1532, %v1526
      %v2079 = vpack.c.b16 %v1533, %v1527
      %v2080 = vpack.c.b16 %v1540, %v1534
      %v2081 = vpack.c.b16 %v1541, %v1535
      %v2082 = vpack.c.b16 %v1542, %v1536
      %v2083 = vpack.c.b16 %v1543, %v1537
      %v2084 = vpack.c.b16 %v1544, %v1538
      %v2085 = vpack.c.b16 %v1545, %v1539
      %v2086 = vpack.c.b16 %v1552, %v1546
      %v2087 = vpack.c.b16 %v1553, %v1547
      %v2088 = vpack.c.b16 %v1554, %v1548
      %v2089 = vpack.c.b16 %v1555, %v1549
      %v2090 = vpack.c.b16 %v1556, %v1550
      %v2091 = vpack.c.b16 %v1557, %v1551
      %v2092 = vpack.c.b16 %v1564, %v1558
      %v2093 = vpack.c.b16 %v1565, %v1559
      %v2094 = vpack.c.b16 %v1566, %v1560
      %v2095 = vpack.c.b16 %v1567, %v1561
      %v2096 = vpack.c.b16 %v1568, %v1562
      %v2097 = vpack.c.b16 %v1569, %v1563
      %v2098 = vpack.c.b16 %v1576, %v1570
      %v2099 = vpack.c.b16 %v1577, %v1571
      %v2100 = vpack.c.b16 %v1578, %v1572
      %v2101 = vpack.c.b16 %v1579, %v1573
      %v2102 = vpack.c.b16 %v1580, %v1574
      %v2103 = vpack.c.b16 %v1581, %v1575
      %v2104 = vpack.c.b16 %v1588, %v1582
      %v2105 = vpack.c.b16 %v1589, %v1583
      %v2106 = vpack.c.b16 %v1590, %v1584
      %v2107 = vpack.c.b16 %v1591, %v1585
      %v2108 = vpack.c.b16 %v1592, %v1586
      %v2109 = vpack.c.b16 %v1593, %v1587
      %v2110 = vpack.c.b16 %v1600, %v1594
      %v2111 = vpack.c.b16 %v1601, %v1595
      %v2112 = vpack.c.b16 %v1602, %v1596
      %v2113 = vpack.c.b16 %v1603, %v1597
      %v2114 = vpack.c.b16 %v1604, %v1598
      %v2115 = vpack.c.b16 %v1605, %v1599
      %v2116 = vpack.c.b16 %v1612, %v1606
      %v2117 = vpack.c.b16 %v1613, %v1607
      %v2118 = vpack.c.b16 %v1614, %v1608
      %v2119 = vpack.c.b16 %v1615, %v1609
      %v2120 = vpack.c.b16 %v1616, %v1610
      %v2121 = vpack.c.b16 %v1617, %v1611
      %v2122 = vpack.c.b16 %v1624, %v1618
      %v2123 = vpack.c.b16 %v1625, %v1619
      %v2124 = vpack.c.b16 %v1626, %v1620
      %v2125 = vpack.c.b16 %v1627, %v1621
      %v2126 = vpack.c.b16 %v1628, %v1622
      %v2127 = vpack.c.b16 %v1629, %v1623
      %v2128 = vpack.c.b16 %v1636, %v1630
      %v2129 = vpack.c.b16 %v1637, %v1631
      %v2130 = vpack.c.b16 %v1638, %v1632
      %v2131 = vpack.c.b16 %v1639, %v1633
      %v2132 = vpack.c.b16 %v1640, %v1634
      %v2133 = vpack.c.b16 %v1641, %v1635
      %v2134 = vpack.c.b16 %v1648, %v1642
      %v2135 = vpack.c.b16 %v1649, %v1643
      %v2136 = vpack.c.b16 %v1650, %v1644
      %v2137 = vpack.c.b16 %v1651, %v1645
      %v2138 = vpack.c.b16 %v1652, %v1646
      %v2139 = vpack.c.b16 %v1653, %v1647
      %v2140 = vpack.c.b16 %v1660, %v1654
      %v2141 = vpack.c.b16 %v1661, %v1655
      %v2142 = vpack.c.b16 %v1662, %v1656
      %v2143 = vpack.c.b16 %v1663, %v1657
      %v2144 = vpack.c.b16 %v1664, %v1658
      %v2145 = vpack.c.b16 %v1665, %v1659
      %v2146 = vpack.c.b16 %v1672, %v1666
      %v2147 = vpack.c.b16 %v1673, %v1667
      %v2148 = vpack.c.b16 %v1674, %v1668
      %v2149 = vpack.c.b16 %v1675, %v1669
      %v2150 = vpack.c.b16 %v1676, %v1670
      %v2151 = vpack.c.b16 %v1677, %v1671
      %v2152 = vpack.c.b16 %v1684, %v1678
      %v2153 = vpack.c.b16 %v1685, %v1679
      %v2154 = vpack.c.b16 %v1686, %v1680
      %v2155 = vpack.c.b16 %v1687, %v1681
      %v2156 = vpack.c.b16 %v1688, %v1682
      %v2157 = vpack.c.b16 %v1689, %v1683
      %v2158 = vpack.c.b16 %v1696, %v1690
      %v2159 = vpack.c.b16 %v1697, %v1691
      %v2160 = vpack.c.b16 %v1698, %v1692
      %v2161 = vpack.c.b16 %v1699, %v1693
      %v2162 = vpack.c.b16 %v1700, %v1694
      %v2163 = vpack.c.b16 %v1701, %v1695
      %v2164 = vpack.c.b16 %v1708, %v1702
      %v2165 = vpack.c.b16 %v1709, %v1703
      %v2166 = vpack.c.b16 %v1710, %v1704
      %v2167 = vpack.c.b16 %v1711, %v1705
      %v2168 = vpack.c.b16 %v1712, %v1706
      %v2169 = vpack.c.b16 %v1713, %v1707
      %v2170 = vpack.c.b16 %v1720, %v1714
      %v2171 = vpack.c.b16 %v1721, %v1715
      %v2172 = vpack.c.b16 %v1722, %v1716
      %v2173 = vpack.c.b16 %v1723, %v1717
      %v2174 = vpack.c.b16 %v1724, %v1718
      %v2175 = vpack.c.b16 %v1725, %v1719
      %v2176 = vpack.c.b16 %v1732, %v1726
      %v2177 = vpack.c.b16 %v1733, %v1727
      %v2178 = vpack.c.b16 %v1734, %v1728
      %v2179 = vpack.c.b16 %v1735, %v1729
      %v2180 = vpack.c.b16 %v1736, %v1730
      %v2181 = vpack.c.b16 %v1737, %v1731
      %v2182 = vpack.c.b16 %v1744, %v1738
      %v2183 = vpack.c.b16 %v1745, %v1739
      %v2184 = vpack.c.b16 %v1746, %v1740
      %v2185 = vpack.c.b16 %v1747, %v1741
      %v2186 = vpack.c.b16 %v1748, %v1742
      %v2187 = vpack.c.b16 %v1749, %v1743
      %v2188 = vpack.c.b16 %v1756, %v1750
      %v2189 = vpack.c.b16 %v1757, %v1751
      %v2190 = vpack.c.b16 %v1758, %v1752
      %v2191 = vpack.c.b16 %v1759, %v1753
      %v2192 = vpack.c.b16 %v1760, %v1754
      %v2193 = vpack.c.b16 %v1761, %v1755
      %v2194 = vpack.c.b16 %v1768, %v1762
      %v2195 = vpack.c.b16 %v1769, %v1763
      %v2196 = vpack.c.b16 %v1770, %v1764
      %v2197 = vpack.c.b16 %v1771, %v1765
      %v2198 = vpack.c.b16 %v1772, %v1766
      %v2199 = vpack.c.b16 %v1773, %v1767
      %v2200 = vpack.c.b16 %v1780, %v1774
      %v2201 = vpack.c.b16 %v1781, %v1775
      %v2202 = vpack.c.b16 %v1782, %v1776
      %v2203 = vpack.c.b16 %v1783, %v1777
      %v2204 = vpack.c.b16 %v1784, %v1778
      %v2205 = vpack.c.b16 %v1785, %v1779
      %v2206 = vpack.c.b16 %v1792, %v1786
      %v2207 = vpack.c.b16 %v1793, %v1787
      %v2208 = vpack.c.b16 %v1794, %v1788
      %v2209 = vpack.c.b16 %v1795, %v1789
      %v2210 = vpack.c.b16 %v1796, %v1790
      %v2211 = vpack.c.b16 %v1797, %v1791
      %v2212 = vpack.c.b16 %v1804, %v1798
      %v2213 = vpack.c.b16 %v1805, %v1799
      %v2214 = vpack.c.b16 %v1806, %v1800
      %v2215 = vpack.c.b16 %v1807, %v1801
      %v2216 = vpack.c.b16 %v1808, %v1802
      %v2217 = vpack.c.b16 %v1809, %v1803
      %v2218 = vpack.c.b16 %v1816, %v1810
      %v2219 = vpack.c.b16 %v1817, %v1811
      %v2220 = vpack.c.b16 %v1818, %v1812
      %v2221 = vpack.c.b16 %v1819, %v1813
      %v2222 = vpack.c.b16 %v1820, %v1814
      %v2223 = vpack.c.b16 %v1821, %v1815
      %v2224 = vpack.c.b16 %v1828, %v1822
      %v2225 = vpack.c.b16 %v1829, %v1823
      %v2226 = vpack.c.b16 %v1830, %v1824
      %v2227 = vpack.c.b16 %v1831, %v1825
      %v2228 = vpack.c.b16 %v1832, %v1826
      %v2229 = vpack.c.b16 %v1833, %v1827
      %v2230 = vpack.c.b16 %v1840, %v1834
      %v2231 = vpack.c.b16 %v1841, %v1835
      %v2232 = vpack.c.b16 %v1842, %v1836
      %v2233 = vpack.c.b16 %v1843, %v1837
      %v2234 = vpack.c.b16 %v1844, %v1838
      %v2235 = vpack.c.b16 %v1845, %v1839
      %v2236 = vpack.c.b16 %v1852, %v1846
      %v2237 = vpack.c.b16 %v1853, %v1847
      %v2238 = vpack.c.b16 %v1854, %v1848
      %v2239 = vpack.c.b16 %v1855, %v1849
      %v2240 = vpack.c.b16 %v1856, %v1850
      %v2241 = vpack.c.b16 %v1857, %v1851
      %v2242 = vpack.c.b16 %v1864, %v1858
      %v2243 = vpack.c.b16 %v1865, %v1859
      %v2244 = vpack.c.b16 %v1866, %v1860
      %v2245 = vpack.c.b16 %v1867, %v1861
      %v2246 = vpack.c.b16 %v1868, %v1862
      %v2247 = vpack.c.b16 %v1869, %v1863
      %v2248 = vpack.c.b16 %v1876, %v1870
      %v2249 = vpack.c.b16 %v1877, %v1871
      %v2250 = vpack.c.b16 %v1878, %v1872
      %v2251 = vpack.c.b16 %v1879, %v1873
      %v2252 = vpack.c.b16 %v1880, %v1874
      %v2253 = vpack.c.b16 %v1881, %v1875
      %v2254 = vpack.c.b16 %v1888, %v1882
      %v2255 = vpack.c.b16 %v1889, %v1883
      %v2256 = vpack.c.b16 %v1890, %v1884
      %v2257 = vpack.c.b16 %v1891, %v1885
      %v2258 = vpack.c.b16 %v1892, %v1886
      %v2259 = vpack.c.b16 %v1893, %v1887
      %v2260 = vpack.c.b16 %v1900, %v1894
      %v2261 = vpack.c.b16 %v1901, %v1895
      %v2262 = vpack.c.b16 %v1902, %v1896
      %v2263 = vpack.c.b16 %v1903, %v1897
      %v2264 = vpack.c.b16 %v1904, %v1898
      %v2265 = vpack.c.b16 %v1905, %v1899
      %v2266 = vpack.c.b16 %v1912, %v1906
      %v2267 = vpack.c.b16 %v1913, %v1907
      %v2268 = vpack.c.b16 %v1914, %v1908
      %v2269 = vpack.c.b16 %v1915, %v1909
      %v2270 = vpack.c.b16 %v1916, %v1910
      %v2271 = vpack.c.b16 %v1917, %v1911
      %v2272 = vpack.c.b16 %v1924, %v1918
      %v2273 = vpack.c.b16 %v1925, %v1919
      %v2274 = vpack.c.b16 %v1926, %v1920
      %v2275 = vpack.c.b16 %v1927, %v1921
      %v2276 = vpack.c.b16 %v1928, %v1922
      %v2277 = vpack.c.b16 %v1929, %v1923
      %v2278 = vpack.c.b16 %v1936, %v1930
      %v2279 = vpack.c.b16 %v1937, %v1931
      %v2280 = vpack.c.b16 %v1938, %v1932
      %v2281 = vpack.c.b16 %v1939, %v1933
      %v2282 = vpack.c.b16 %v1940, %v1934
      %v2283 = vpack.c.b16 %v1941, %v1935
      %v2284 = vpack.c.b16 %v1948, %v1942
      %v2285 = vpack.c.b16 %v1949, %v1943
      %v2286 = vpack.c.b16 %v1950, %v1944
      %v2287 = vpack.c.b16 %v1951, %v1945
      %v2288 = vpack.c.b16 %v1952, %v1946
      %v2289 = vpack.c.b16 %v1953, %v1947
      %v2290 = vpack.c.b16 %v1960, %v1954
      %v2291 = vpack.c.b16 %v1961, %v1955
      %v2292 = vpack.c.b16 %v1962, %v1956
      %v2293 = vpack.c.b16 %v1963, %v1957
      %v2294 = vpack.c.b16 %v1964, %v1958
      %v2295 = vpack.c.b16 %v1965, %v1959
      %v2296 = vpack.c.b16 %v1972, %v1966
      %v2297 = vpack.c.b16 %v1973, %v1967
      %v2298 = vpack.c.b16 %v1974, %v1968
      %v2299 = vpack.c.b16 %v1975, %v1969
      %v2300 = vpack.c.b16 %v1976, %v1970
      %v2301 = vpack.c.b16 %v1977, %v1971
      %v2302 = vpack.c.b16 %v1984, %v1978
      %v2303 = vpack.c.b16 %v1985, %v1979
      %v2304 = vpack.c.b16 %v1986, %v1980
      %v2305 = vpack.c.b16 %v1987, %v1981
      %v2306 = vpack.c.b16 %v1988, %v1982
      %v2307 = vpack.c.b16 %v1989, %v1983
      %v2308 = vpack.c.b16 %v1996, %v1990
      %v2309 = vpack.c.b16 %v1997, %v1991
      %v2310 = vpack.c.b16 %v1998, %v1992
      %v2311 = vpack.c.b16 %v1999, %v1993
      %v2312 = vpack.c.b16 %v2000, %v1994
      %v2313 = vpack.c.b16 %v2001, %v1995
      %v2314 = vpack.c.b16 %v2008, %v2002
      %v2315 = vpack.c.b16 %v2009, %v2003
      %v2316 = vpack.c.b16 %v2010, %v2004
      %v2317 = vpack.c.b16 %v2011, %v2005
      %v2318 = vpack.c.b16 %v2012, %v2006
      %v2319 = vpack.c.b16 %v2013, %v2007
      %v2320 = vpack.c.b16 %v2020, %v2014
      %v2321 = vpack.c.b16 %v2021, %v2015
      %v2322 = vpack.c.b16 %v2022, %v2016
      %v2323 = vpack.c.b16 %v2023, %v2017
      %v2324 = vpack.c.b16 %v2024, %v2018
      %v2325 = vpack.c.b16 %v2025, %v2019
      %v2326 = vpack.c.b16 %v2032, %v2026
      %v2327 = vpack.c.b16 %v2033, %v2027
      %v2328 = vpack.c.b16 %v2034, %v2028
      %v2329 = vpack.c.b16 %v2035, %v2029
      %v2330 = vpack.c.b16 %v2036, %v2030
      %v2331 = vpack.c.b16 %v2037, %v2031
      %v2332 = vpack.c.b16 %v2044, %v2038
      %v2333 = vpack.c.b16 %v2045, %v2039
      %v2334 = vpack.c.b16 %v2046, %v2040
      %v2335 = vpack.c.b16 %v2047, %v2041
      %v2336 = vpack.c.b16 %v2048, %v2042
      %v2337 = vpack.c.b16 %v2049, %v2043
      %v2627 = vlaneseq
      %v2628 = vshrl.u32 %v2627, 7
      %v2629 = vsub.s32 0, %v2628
      %v2630 = vrot.slane %v1185, %v2629
      %v2631 = vlaneseq
      %v2632 = vshrl.u32 %v2631, 7
      %v2633 = vsub.s32 1, %v2632
      %v2634 = vrot.slane %v1185, %v2633
      %v2635 = vlaneseq
      %v2636 = vshrl.u32 %v2635, 7
      %v2637 = vsub.s32 2, %v2636
      %v2638 = vrot.slane %v1185, %v2637
      %v2639 = vlaneseq
      %v2640 = vshrl.u32 %v2639, 7
      %v2641 = vsub.s32 3, %v2640
      %v2642 = vrot.slane %v1185, %v2641
      %v2643 = vlaneseq
      %v2644 = vshrl.u32 %v2643, 7
      %v2645 = vsub.s32 4, %v2644
      %v2646 = vrot.slane %v1185, %v2645
      %v2647 = vlaneseq
      %v2648 = vshrl.u32 %v2647, 7
      %v2649 = vsub.s32 5, %v2648
      %v2650 = vrot.slane %v1185, %v2649
      %2657 = vmatprep.subr.bf16.mxu0 %v2093
      %2658 = vmatpush1.bf16.msra.mxu0 %v2092
      %2659 = vmatprep.subr.bf16.mxu0 %v2087
      %2660 = vmatpush1.bf16.msra.mxu0 %v2086
      %2661 = vmatprep.subr.bf16.mxu0 %v2081
      %2662 = vmatpush1.bf16.msra.mxu0 %v2080
      %2663 = vmatprep.subr.bf16.mxu0 %v2075
      %2664 = vmatpush1.bf16.msra.mxu0 %v2074
      %2665 = vmatprep.subr.bf16.mxu0 %v2069
      %2666 = vmatpush1.bf16.msra.mxu0 %v2068
      %2667 = vmatprep.subr.bf16.mxu0 %v2063
      %2668 = vmatpush1.bf16.msra.mxu0 %v2062
      %2669 = vmatprep.subr.bf16.mxu0 %v2057
      %2670 = vmatpush1.bf16.msra.mxu0 %v2056
      %2671 = vmatprep.subr.bf16.mxu0 %v2051
      %2672 = vmatpush1.bf16.msra.mxu0 %v2050
      %2673 = vmatprep.subr.bf16.mxu0 %v2141
      %2674 = vmatpush2.bf16.msra.mxu0 %v2140
      %2675 = vmatprep.subr.bf16.mxu0 %v2135
      %2676 = vmatpush2.bf16.msra.mxu0 %v2134
      %2677 = vmatprep.subr.bf16.mxu0 %v2129
      %2678 = vmatpush2.bf16.msra.mxu0 %v2128
      %2679 = vmatprep.subr.bf16.mxu0 %v2123
      %2680 = vmatpush2.bf16.msra.mxu0 %v2122
      %2681 = vmatprep.subr.bf16.mxu0 %v2117
      %2682 = vmatpush2.bf16.msra.mxu0 %v2116
      %2683 = vmatprep.subr.bf16.mxu0 %v2111
      %2684 = vmatpush2.bf16.msra.mxu0 %v2110
      %2685 = vmatprep.subr.bf16.mxu0 %v2105
      %2686 = vmatpush2.bf16.msra.mxu0 %v2104
      %2687 = vmatprep.subr.bf16.mxu0 %v2099
      %2688 = vmatpush2.bf16.msra.mxu0 %v2098
      %2689 = vmatprep.mubr.bf16.mxu0 %v1180
      %2690 = vmatmul.mubr.bf16.gmra.mxu0 %v1179
      %v2691 = vpop.f32.mrf.mxu0
      %v2692 = vadd.f32 %v2630, %v2691
      %v2693 = vpop.f32.mrf.mxu0
      %v2694 = vadd.f32 %v2634, %v2693
      %v2695 = vpop.f32.mrf.mxu0
      %v2696 = vpop.f32.mrf.mxu0
      %2697 = vdwg.mxu0
      %2698 = vmatprep.subr.bf16.mxu0 %v2189
      %2699 = vmatpush1.bf16.msra.mxu0 %v2188
      %2700 = vmatprep.subr.bf16.mxu0 %v2183
      %2701 = vmatpush1.bf16.msra.mxu0 %v2182
      %2702 = vmatprep.subr.bf16.mxu0 %v2177
      %2703 = vmatpush1.bf16.msra.mxu0 %v2176
      %2704 = vmatprep.subr.bf16.mxu0 %v2171
      %2705 = vmatpush1.bf16.msra.mxu0 %v2170
      %2706 = vmatprep.subr.bf16.mxu0 %v2165
      %2707 = vmatpush1.bf16.msra.mxu0 %v2164
      %2708 = vmatprep.subr.bf16.mxu0 %v2159
      %2709 = vmatpush1.bf16.msra.mxu0 %v2158
      %2710 = vmatprep.subr.bf16.mxu0 %v2153
      %2711 = vmatpush1.bf16.msra.mxu0 %v2152
      %2712 = vmatprep.subr.bf16.mxu0 %v2147
      %2713 = vmatpush1.bf16.msra.mxu0 %v2146
      %2714 = vmatprep.subr.bf16.mxu0 %v2237
      %2715 = vmatpush2.bf16.msra.mxu0 %v2236
      %2716 = vmatprep.subr.bf16.mxu0 %v2231
      %2717 = vmatpush2.bf16.msra.mxu0 %v2230
      %2718 = vmatprep.subr.bf16.mxu0 %v2225
      %2719 = vmatpush2.bf16.msra.mxu0 %v2224
      %2720 = vmatprep.subr.bf16.mxu0 %v2219
      %2721 = vmatpush2.bf16.msra.mxu0 %v2218
      %2722 = vmatprep.subr.bf16.mxu0 %v2213
      %2723 = vmatpush2.bf16.msra.mxu0 %v2212
      %2724 = vmatprep.subr.bf16.mxu0 %v2207
      %2725 = vmatpush2.bf16.msra.mxu0 %v2206
      %2726 = vmatprep.subr.bf16.mxu0 %v2201
      %2727 = vmatpush2.bf16.msra.mxu0 %v2200
      %2728 = vmatprep.subr.bf16.mxu0 %v2195
      %2729 = vmatpush2.bf16.msra.mxu0 %v2194
      %2730 = vmatprep.mubr.bf16.mxu0 %v1182
      %2731 = vmatmul.mubr.bf16.gmra.mxu0 %v1181
      %v2732 = vpop.f32.mrf.mxu0
      %v2733 = vadd.f32 %v2692, %v2732
      %v2734 = vpop.f32.mrf.mxu0
      %v2735 = vadd.f32 %v2694, %v2734
      %v2736 = vpop.f32.mrf.mxu0
      %v2737 = vpop.f32.mrf.mxu0
      %2738 = vdwg.mxu0
      %2739 = vmatprep.subr.bf16.mxu0 %v2285
      %2740 = vmatpush1.bf16.msra.mxu0 %v2284
      %2741 = vmatprep.subr.bf16.mxu0 %v2279
      %2742 = vmatpush1.bf16.msra.mxu0 %v2278
      %2743 = vmatprep.subr.bf16.mxu0 %v2273
      %2744 = vmatpush1.bf16.msra.mxu0 %v2272
      %2745 = vmatprep.subr.bf16.mxu0 %v2267
      %2746 = vmatpush1.bf16.msra.mxu0 %v2266
      %2747 = vmatprep.subr.bf16.mxu0 %v2261
      %2748 = vmatpush1.bf16.msra.mxu0 %v2260
      %2749 = vmatprep.subr.bf16.mxu0 %v2255
      %2750 = vmatpush1.bf16.msra.mxu0 %v2254
      %2751 = vmatprep.subr.bf16.mxu0 %v2249
      %2752 = vmatpush1.bf16.msra.mxu0 %v2248
      %2753 = vmatprep.subr.bf16.mxu0 %v2243
      %2754 = vmatpush1.bf16.msra.mxu0 %v2242
      %2755 = vmatprep.subr.bf16.mxu0 %v2333
      %2756 = vmatpush2.bf16.msra.mxu0 %v2332
      %2757 = vmatprep.subr.bf16.mxu0 %v2327
      %2758 = vmatpush2.bf16.msra.mxu0 %v2326
      %2759 = vmatprep.subr.bf16.mxu0 %v2321
      %2760 = vmatpush2.bf16.msra.mxu0 %v2320
      %2761 = vmatprep.subr.bf16.mxu0 %v2315
      %2762 = vmatpush2.bf16.msra.mxu0 %v2314
      %2763 = vmatprep.subr.bf16.mxu0 %v2309
      %2764 = vmatpush2.bf16.msra.mxu0 %v2308
      %2765 = vmatprep.subr.bf16.mxu0 %v2303
      %2766 = vmatpush2.bf16.msra.mxu0 %v2302
      %2767 = vmatprep.subr.bf16.mxu0 %v2297
      %2768 = vmatpush2.bf16.msra.mxu0 %v2296
      %2769 = vmatprep.subr.bf16.mxu0 %v2291
      %2770 = vmatpush2.bf16.msra.mxu0 %v2290
      %2771 = vmatprep.mubr.bf16.mxu0 %v1184
      %2772 = vmatmul.mubr.bf16.gmra.mxu0 %v1183
      %v2773 = vpop.f32.mrf.mxu0
      %v2774 = vadd.f32 %v2733, %v2773
      %v2775 = vpop.f32.mrf.mxu0
      %v2776 = vadd.f32 %v2735, %v2775
      %v2777 = vpop.f32.mrf.mxu0
      %v2778 = vpop.f32.mrf.mxu0
      %2779 = vdwg.mxu0
      %2780 = vmatprep.subr.bf16.mxu0 %v2095
      %2781 = vmatpush1.bf16.msra.mxu0 %v2094
      %2782 = vmatprep.subr.bf16.mxu0 %v2089
      %2783 = vmatpush1.bf16.msra.mxu0 %v2088
      %2784 = vmatprep.subr.bf16.mxu0 %v2083
      %2785 = vmatpush1.bf16.msra.mxu0 %v2082
      %2786 = vmatprep.subr.bf16.mxu0 %v2077
      %2787 = vmatpush1.bf16.msra.mxu0 %v2076
      %2788 = vmatprep.subr.bf16.mxu0 %v2071
      %2789 = vmatpush1.bf16.msra.mxu0 %v2070
      %2790 = vmatprep.subr.bf16.mxu0 %v2065
      %2791 = vmatpush1.bf16.msra.mxu0 %v2064
      %2792 = vmatprep.subr.bf16.mxu0 %v2059
      %2793 = vmatpush1.bf16.msra.mxu0 %v2058
      %2794 = vmatprep.subr.bf16.mxu0 %v2053
      %2795 = vmatpush1.bf16.msra.mxu0 %v2052
      %2796 = vmatprep.subr.bf16.mxu0 %v2143
      %2797 = vmatpush2.bf16.msra.mxu0 %v2142
      %2798 = vmatprep.subr.bf16.mxu0 %v2137
      %2799 = vmatpush2.bf16.msra.mxu0 %v2136
      %2800 = vmatprep.subr.bf16.mxu0 %v2131
      %2801 = vmatpush2.bf16.msra.mxu0 %v2130
      %2802 = vmatprep.subr.bf16.mxu0 %v2125
      %2803 = vmatpush2.bf16.msra.mxu0 %v2124
      %2804 = vmatprep.subr.bf16.mxu0 %v2119
      %2805 = vmatpush2.bf16.msra.mxu0 %v2118
      %2806 = vmatprep.subr.bf16.mxu0 %v2113
      %2807 = vmatpush2.bf16.msra.mxu0 %v2112
      %2808 = vmatprep.subr.bf16.mxu0 %v2107
      %2809 = vmatpush2.bf16.msra.mxu0 %v2106
      %2810 = vmatprep.subr.bf16.mxu0 %v2101
      %2811 = vmatpush2.bf16.msra.mxu0 %v2100
      %2812 = vmatprep.mubr.bf16.mxu0 %v1180
      %2813 = vmatmul.mubr.bf16.gmra.mxu0 %v1179
      %v2814 = vpop.f32.mrf.mxu0
      %v2815 = vadd.f32 %v2638, %v2814
      %v2816 = vpop.f32.mrf.mxu0
      %v2817 = vadd.f32 %v2642, %v2816
      %v2818 = vpop.f32.mrf.mxu0
      %v2819 = vpop.f32.mrf.mxu0
      %2820 = vdwg.mxu0
      %2821 = vmatprep.subr.bf16.mxu0 %v2191
      %2822 = vmatpush1.bf16.msra.mxu0 %v2190
      %2823 = vmatprep.subr.bf16.mxu0 %v2185
      %2824 = vmatpush1.bf16.msra.mxu0 %v2184
      %2825 = vmatprep.subr.bf16.mxu0 %v2179
      %2826 = vmatpush1.bf16.msra.mxu0 %v2178
      %2827 = vmatprep.subr.bf16.mxu0 %v2173
      %2828 = vmatpush1.bf16.msra.mxu0 %v2172
      %2829 = vmatprep.subr.bf16.mxu0 %v2167
      %2830 = vmatpush1.bf16.msra.mxu0 %v2166
      %2831 = vmatprep.subr.bf16.mxu0 %v2161
      %2832 = vmatpush1.bf16.msra.mxu0 %v2160
      %2833 = vmatprep.subr.bf16.mxu0 %v2155
      %2834 = vmatpush1.bf16.msra.mxu0 %v2154
      %2835 = vmatprep.subr.bf16.mxu0 %v2149
      %2836 = vmatpush1.bf16.msra.mxu0 %v2148
      %2837 = vmatprep.subr.bf16.mxu0 %v2239
      %2838 = vmatpush2.bf16.msra.mxu0 %v2238
      %2839 = vmatprep.subr.bf16.mxu0 %v2233
      %2840 = vmatpush2.bf16.msra.mxu0 %v2232
      %2841 = vmatprep.subr.bf16.mxu0 %v2227
      %2842 = vmatpush2.bf16.msra.mxu0 %v2226
      %2843 = vmatprep.subr.bf16.mxu0 %v2221
      %2844 = vmatpush2.bf16.msra.mxu0 %v2220
      %2845 = vmatprep.subr.bf16.mxu0 %v2215
      %2846 = vmatpush2.bf16.msra.mxu0 %v2214
      %2847 = vmatprep.subr.bf16.mxu0 %v2209
      %2848 = vmatpush2.bf16.msra.mxu0 %v2208
      %2849 = vmatprep.subr.bf16.mxu0 %v2203
      %2850 = vmatpush2.bf16.msra.mxu0 %v2202
      %2851 = vmatprep.subr.bf16.mxu0 %v2197
      %2852 = vmatpush2.bf16.msra.mxu0 %v2196
      %2853 = vmatprep.mubr.bf16.mxu0 %v1182
      %2854 = vmatmul.mubr.bf16.gmra.mxu0 %v1181
      %v2855 = vpop.f32.mrf.mxu0
      %v2856 = vadd.f32 %v2815, %v2855
      %v2857 = vpop.f32.mrf.mxu0
      %v2858 = vadd.f32 %v2817, %v2857
      %v2859 = vpop.f32.mrf.mxu0
      %v2860 = vpop.f32.mrf.mxu0
      %2861 = vdwg.mxu0
      %2862 = vmatprep.subr.bf16.mxu0 %v2287
      %2863 = vmatpush1.bf16.msra.mxu0 %v2286
      %2864 = vmatprep.subr.bf16.mxu0 %v2281
      %2865 = vmatpush1.bf16.msra.mxu0 %v2280
      %2866 = vmatprep.subr.bf16.mxu0 %v2275
      %2867 = vmatpush1.bf16.msra.mxu0 %v2274
      %2868 = vmatprep.subr.bf16.mxu0 %v2269
      %2869 = vmatpush1.bf16.msra.mxu0 %v2268
      %2870 = vmatprep.subr.bf16.mxu0 %v2263
      %2871 = vmatpush1.bf16.msra.mxu0 %v2262
      %2872 = vmatprep.subr.bf16.mxu0 %v2257
      %2873 = vmatpush1.bf16.msra.mxu0 %v2256
      %2874 = vmatprep.subr.bf16.mxu0 %v2251
      %2875 = vmatpush1.bf16.msra.mxu0 %v2250
      %2876 = vmatprep.subr.bf16.mxu0 %v2245
      %2877 = vmatpush1.bf16.msra.mxu0 %v2244
      %2878 = vmatprep.subr.bf16.mxu0 %v2335
      %2879 = vmatpush2.bf16.msra.mxu0 %v2334
      %2880 = vmatprep.subr.bf16.mxu0 %v2329
      %2881 = vmatpush2.bf16.msra.mxu0 %v2328
      %2882 = vmatprep.subr.bf16.mxu0 %v2323
      %2883 = vmatpush2.bf16.msra.mxu0 %v2322
      %2884 = vmatprep.subr.bf16.mxu0 %v2317
      %2885 = vmatpush2.bf16.msra.mxu0 %v2316
      %2886 = vmatprep.subr.bf16.mxu0 %v2311
      %2887 = vmatpush2.bf16.msra.mxu0 %v2310
      %2888 = vmatprep.subr.bf16.mxu0 %v2305
      %2889 = vmatpush2.bf16.msra.mxu0 %v2304
      %2890 = vmatprep.subr.bf16.mxu0 %v2299
      %2891 = vmatpush2.bf16.msra.mxu0 %v2298
      %2892 = vmatprep.subr.bf16.mxu0 %v2293
      %2893 = vmatpush2.bf16.msra.mxu0 %v2292
      %2894 = vmatprep.mubr.bf16.mxu0 %v1184
      %2895 = vmatmul.mubr.bf16.gmra.mxu0 %v1183
      %v2896 = vpop.f32.mrf.mxu0
      %v2897 = vadd.f32 %v2856, %v2896
      %v2898 = vpop.f32.mrf.mxu0
      %v2899 = vadd.f32 %v2858, %v2898
      %v2900 = vpop.f32.mrf.mxu0
      %v2901 = vpop.f32.mrf.mxu0
      %2902 = vdwg.mxu0
      %2903 = vmatprep.subr.bf16.mxu0 %v2097
      %2904 = vmatpush1.bf16.msra.mxu0 %v2096
      %2905 = vmatprep.subr.bf16.mxu0 %v2091
      %2906 = vmatpush1.bf16.msra.mxu0 %v2090
      %2907 = vmatprep.subr.bf16.mxu0 %v2085
      %2908 = vmatpush1.bf16.msra.mxu0 %v2084
      %2909 = vmatprep.subr.bf16.mxu0 %v2079
      %2910 = vmatpush1.bf16.msra.mxu0 %v2078
      %2911 = vmatprep.subr.bf16.mxu0 %v2073
      %2912 = vmatpush1.bf16.msra.mxu0 %v2072
      %2913 = vmatprep.subr.bf16.mxu0 %v2067
      %2914 = vmatpush1.bf16.msra.mxu0 %v2066
      %2915 = vmatprep.subr.bf16.mxu0 %v2061
      %2916 = vmatpush1.bf16.msra.mxu0 %v2060
      %2917 = vmatprep.subr.bf16.mxu0 %v2055
      %2918 = vmatpush1.bf16.msra.mxu0 %v2054
      %2919 = vmatprep.subr.bf16.mxu0 %v2145
      %2920 = vmatpush2.bf16.msra.mxu0 %v2144
      %2921 = vmatprep.subr.bf16.mxu0 %v2139
      %2922 = vmatpush2.bf16.msra.mxu0 %v2138
      %2923 = vmatprep.subr.bf16.mxu0 %v2133
      %2924 = vmatpush2.bf16.msra.mxu0 %v2132
      %2925 = vmatprep.subr.bf16.mxu0 %v2127
      %2926 = vmatpush2.bf16.msra.mxu0 %v2126
      %2927 = vmatprep.subr.bf16.mxu0 %v2121
      %2928 = vmatpush2.bf16.msra.mxu0 %v2120
      %2929 = vmatprep.subr.bf16.mxu0 %v2115
      %2930 = vmatpush2.bf16.msra.mxu0 %v2114
      %2931 = vmatprep.subr.bf16.mxu0 %v2109
      %2932 = vmatpush2.bf16.msra.mxu0 %v2108
      %2933 = vmatprep.subr.bf16.mxu0 %v2103
      %2934 = vmatpush2.bf16.msra.mxu0 %v2102
      %2935 = vmatprep.mubr.bf16.mxu0 %v1180
      %2936 = vmatmul.mubr.bf16.gmra.mxu0 %v1179
      %v2937 = vpop.f32.mrf.mxu0
      %v2938 = vadd.f32 %v2646, %v2937
      %v2939 = vpop.f32.mrf.mxu0
      %v2940 = vadd.f32 %v2650, %v2939
      %v2941 = vpop.f32.mrf.mxu0
      %v2942 = vpop.f32.mrf.mxu0
      %2943 = vdwg.mxu0
      %2944 = vmatprep.subr.bf16.mxu0 %v2193
      %2945 = vmatpush1.bf16.msra.mxu0 %v2192
      %2946 = vmatprep.subr.bf16.mxu0 %v2187
      %2947 = vmatpush1.bf16.msra.mxu0 %v2186
      %2948 = vmatprep.subr.bf16.mxu0 %v2181
      %2949 = vmatpush1.bf16.msra.mxu0 %v2180
      %2950 = vmatprep.subr.bf16.mxu0 %v2175
      %2951 = vmatpush1.bf16.msra.mxu0 %v2174
      %2952 = vmatprep.subr.bf16.mxu0 %v2169
      %2953 = vmatpush1.bf16.msra.mxu0 %v2168
      %2954 = vmatprep.subr.bf16.mxu0 %v2163
      %2955 = vmatpush1.bf16.msra.mxu0 %v2162
      %2956 = vmatprep.subr.bf16.mxu0 %v2157
      %2957 = vmatpush1.bf16.msra.mxu0 %v2156
      %2958 = vmatprep.subr.bf16.mxu0 %v2151
      %2959 = vmatpush1.bf16.msra.mxu0 %v2150
      %2960 = vmatprep.subr.bf16.mxu0 %v2241
      %2961 = vmatpush2.bf16.msra.mxu0 %v2240
      %2962 = vmatprep.subr.bf16.mxu0 %v2235
      %2963 = vmatpush2.bf16.msra.mxu0 %v2234
      %2964 = vmatprep.subr.bf16.mxu0 %v2229
      %2965 = vmatpush2.bf16.msra.mxu0 %v2228
      %2966 = vmatprep.subr.bf16.mxu0 %v2223
      %2967 = vmatpush2.bf16.msra.mxu0 %v2222
      %2968 = vmatprep.subr.bf16.mxu0 %v2217
      %2969 = vmatpush2.bf16.msra.mxu0 %v2216
      %2970 = vmatprep.subr.bf16.mxu0 %v2211
      %2971 = vmatpush2.bf16.msra.mxu0 %v2210
      %2972 = vmatprep.subr.bf16.mxu0 %v2205
      %2973 = vmatpush2.bf16.msra.mxu0 %v2204
      %2974 = vmatprep.subr.bf16.mxu0 %v2199
      %2975 = vmatpush2.bf16.msra.mxu0 %v2198
      %2976 = vmatprep.mubr.bf16.mxu0 %v1182
      %2977 = vmatmul.mubr.bf16.gmra.mxu0 %v1181
      %v2978 = vpop.f32.mrf.mxu0
      %v2979 = vadd.f32 %v2938, %v2978
      %v2980 = vpop.f32.mrf.mxu0
      %v2981 = vadd.f32 %v2940, %v2980
      %v2982 = vpop.f32.mrf.mxu0
      %v2983 = vpop.f32.mrf.mxu0
      %2984 = vdwg.mxu0
      %2985 = vmatprep.subr.bf16.mxu0 %v2289
      %2986 = vmatpush1.bf16.msra.mxu0 %v2288
      %2987 = vmatprep.subr.bf16.mxu0 %v2283
      %2988 = vmatpush1.bf16.msra.mxu0 %v2282
      %2989 = vmatprep.subr.bf16.mxu0 %v2277
      %2990 = vmatpush1.bf16.msra.mxu0 %v2276
      %2991 = vmatprep.subr.bf16.mxu0 %v2271
      %2992 = vmatpush1.bf16.msra.mxu0 %v2270
      %2993 = vmatprep.subr.bf16.mxu0 %v2265
      %2994 = vmatpush1.bf16.msra.mxu0 %v2264
      %2995 = vmatprep.subr.bf16.mxu0 %v2259
      %2996 = vmatpush1.bf16.msra.mxu0 %v2258
      %2997 = vmatprep.subr.bf16.mxu0 %v2253
      %2998 = vmatpush1.bf16.msra.mxu0 %v2252
      %2999 = vmatprep.subr.bf16.mxu0 %v2247
      %3000 = vmatpush1.bf16.msra.mxu0 %v2246
      %3001 = vmatprep.subr.bf16.mxu0 %v2337
      %3002 = vmatpush2.bf16.msra.mxu0 %v2336
      %3003 = vmatprep.subr.bf16.mxu0 %v2331
      %3004 = vmatpush2.bf16.msra.mxu0 %v2330
      %3005 = vmatprep.subr.bf16.mxu0 %v2325
      %3006 = vmatpush2.bf16.msra.mxu0 %v2324
      %3007 = vmatprep.subr.bf16.mxu0 %v2319
      %3008 = vmatpush2.bf16.msra.mxu0 %v2318
      %3009 = vmatprep.subr.bf16.mxu0 %v2313
      %3010 = vmatpush2.bf16.msra.mxu0 %v2312
      %3011 = vmatprep.subr.bf16.mxu0 %v2307
      %3012 = vmatpush2.bf16.msra.mxu0 %v2306
      %3013 = vmatprep.subr.bf16.mxu0 %v2301
      %3014 = vmatpush2.bf16.msra.mxu0 %v2300
      %3015 = vmatprep.subr.bf16.mxu0 %v2295
      %3016 = vmatpush2.bf16.msra.mxu0 %v2294
      %3017 = vmatprep.mubr.bf16.mxu0 %v1184
      %3018 = vmatmul.mubr.bf16.gmra.mxu0 %v1183
      %v3019 = vpop.f32.mrf.mxu0
      %v3020 = vadd.f32 %v2979, %v3019
      %v3021 = vpop.f32.mrf.mxu0
      %v3022 = vadd.f32 %v2981, %v3021
      %v3023 = vpop.f32.mrf.mxu0
      %v3024 = vpop.f32.mrf.mxu0
      %3025 = vdwg.mxu0
      %v3026 = vtanh.pop %v2774
      %v3027 = vtanh.pop %v2776
      %v3028 = vtanh.pop %v2897
      %v3029 = vtanh.pop %v2899
      %v3030 = vtanh.pop %v3020
      %v3031 = vtanh.pop %v3022
      %v3032 = vld [vmem:[%s6] sm:$0xf]
      %v3033 = vld [vmem:[%s6 + $0x4] sm:$0xf]
      %v3034 = vld [vmem:[%s6 + $0x8] sm:$0xf]
      %v3035 = vld [vmem:[%s6 + $0xc] sm:$0xf]
      %v3036 = vld [vmem:[%s6 + $0x10] sm:$0xf]
      %v3037 = vld [vmem:[%s6 + $0x14] sm:$0xf]
      %v3038 = vld [vmem:[%s6 + $0x18] sm:$0xf]
      %v3039 = vld [vmem:[%s6 + $0x1c] sm:$0xf]
      %v3040 = vld [vmem:[%s6 + $0x20] sm:$0xf]
      %v3041 = vld [vmem:[%s6 + $0x24] sm:$0xf]
      %v3042 = vld [vmem:[%s6 + $0x28] sm:$0xf]
      %v3043 = vld [vmem:[%s6 + $0x2c] sm:$0xf]
      %v3044 = vld [vmem:[%s6 + $0x30] sm:$0xf]
      %v3045 = vld [vmem:[%s6 + $0x34] sm:$0xf]
      %v3046 = vld [vmem:[%s6 + $0x38] sm:$0xf]
      %v3047 = vld [vmem:[%s6 + $0x3c] sm:$0xf]
      %v3048 = vld [vmem:[%s6 + $0x40] sm:$0xf]
      %v3049 = vld [vmem:[%s6 + $0x44] sm:$0xf]
      %v3050 = vld [vmem:[%s6 + $0x48] sm:$0xf]
      %v3051 = vld [vmem:[%s6 + $0x4c] sm:$0xf]
      %v3052 = vld [vmem:[%s6 + $0x50] sm:$0xf]
      %v3053 = vld [vmem:[%s6 + $0x54] sm:$0xf]
      %v3054 = vld [vmem:[%s6 + $0x58] sm:$0xf]
      %v3055 = vld [vmem:[%s6 + $0x5c] sm:$0xf]
      %v3056 = vld [vmem:[%s6 + $0x60] sm:$0xf]
      %v3057 = vld [vmem:[%s6 + $0x64] sm:$0xf]
      %v3058 = vld [vmem:[%s6 + $0x68] sm:$0xf]
      %v3059 = vld [vmem:[%s6 + $0x6c] sm:$0xf]
      %v3060 = vld [vmem:[%s6 + $0x70] sm:$0xf]
      %v3061 = vld [vmem:[%s6 + $0x74] sm:$0xf]
      %v3062 = vld [vmem:[%s6 + $0x78] sm:$0xf]
      %v3063 = vld [vmem:[%s6 + $0x7c] sm:$0xf]
      %v3064 = vld [vmem:[%s6 + $0x80] sm:$0xf]
      %v3065 = vld [vmem:[%s6 + $0x84] sm:$0xf]
      %v3066 = vld [vmem:[%s6 + $0x88] sm:$0xf]
      %v3067 = vld [vmem:[%s6 + $0x8c] sm:$0xf]
      %v3068 = vld [vmem:[%s6 + $0x90] sm:$0xf]
      %v3069 = vld [vmem:[%s6 + $0x94] sm:$0xf]
      %v3070 = vld [vmem:[%s6 + $0x98] sm:$0xf]
      %v3071 = vld [vmem:[%s6 + $0x9c] sm:$0xf]
      %v3072 = vld [vmem:[%s6 + $0xa0] sm:$0xf]
      %v3073 = vld [vmem:[%s6 + $0xa4] sm:$0xf]
      %v3074 = vld [vmem:[%s6 + $0xa8] sm:$0xf]
      %v3075 = vld [vmem:[%s6 + $0xac] sm:$0xf]
      %v3076 = vld [vmem:[%s6 + $0xb0] sm:$0xf]
      %v3077 = vld [vmem:[%s6 + $0xb4] sm:$0xf]
      %v3078 = vld [vmem:[%s6 + $0xb8] sm:$0xf]
      %v3079 = vld [vmem:[%s6 + $0xbc] sm:$0xf]
      %v3080 = vld [vmem:[%s6 + $0xc0] sm:$0xf]
      %v3081 = vld [vmem:[%s6 + $0xc4] sm:$0xf]
      %v3082 = vld [vmem:[%s6 + $0xc8] sm:$0xf]
      %v3083 = vld [vmem:[%s6 + $0xcc] sm:$0xf]
      %v3084 = vld [vmem:[%s6 + $0xd0] sm:$0xf]
      %v3085 = vld [vmem:[%s6 + $0xd4] sm:$0xf]
      %v3086 = vld [vmem:[%s6 + $0xd8] sm:$0xf]
      %v3087 = vld [vmem:[%s6 + $0xdc] sm:$0xf]
      %v3088 = vld [vmem:[%s6 + $0xe0] sm:$0xf]
      %v3089 = vld [vmem:[%s6 + $0xe4] sm:$0xf]
      %v3090 = vld [vmem:[%s6 + $0xe8] sm:$0xf]
      %v3091 = vld [vmem:[%s6 + $0xec] sm:$0xf]
      %v3092 = vld [vmem:[%s6 + $0xf0] sm:$0xf]
      %v3093 = vld [vmem:[%s6 + $0xf4] sm:$0xf]
      %v3094 = vld [vmem:[%s6 + $0xf8] sm:$0xf]
      %v3095 = vld [vmem:[%s6 + $0xfc] sm:$0xf]
      %v3096 = vld [vmem:[%s6 + $0x100] sm:$0xf]
      %v3097 = vld [vmem:[%s6 + $0x104] sm:$0xf]
      %v3098 = vld [vmem:[%s6 + $0x108] sm:$0xf]
      %v3099 = vld [vmem:[%s6 + $0x10c] sm:$0xf]
      %v3100 = vld [vmem:[%s6 + $0x110] sm:$0xf]
      %v3101 = vld [vmem:[%s6 + $0x114] sm:$0xf]
      %v3102 = vld [vmem:[%s6 + $0x118] sm:$0xf]
      %v3103 = vld [vmem:[%s6 + $0x11c] sm:$0xf]
      %v3104 = vld [vmem:[%s6 + $0x120] sm:$0xf]
      %v3105 = vld [vmem:[%s6 + $0x124] sm:$0xf]
      %v3106 = vld [vmem:[%s6 + $0x128] sm:$0xf]
      %v3107 = vld [vmem:[%s6 + $0x12c] sm:$0xf]
      %v3108 = vld [vmem:[%s6 + $0x130] sm:$0xf]
      %v3109 = vld [vmem:[%s6 + $0x134] sm:$0xf]
      %v3110 = vld [vmem:[%s6 + $0x138] sm:$0xf]
      %v3111 = vld [vmem:[%s6 + $0x13c] sm:$0xf]
      %v3112 = vld [vmem:[%s6 + $0x140] sm:$0xf]
      %v3113 = vld [vmem:[%s6 + $0x144] sm:$0xf]
      %v3114 = vld [vmem:[%s6 + $0x148] sm:$0xf]
      %v3115 = vld [vmem:[%s6 + $0x14c] sm:$0xf]
      %v3116 = vld [vmem:[%s6 + $0x150] sm:$0xf]
      %v3117 = vld [vmem:[%s6 + $0x154] sm:$0xf]
      %v3118 = vld [vmem:[%s6 + $0x158] sm:$0xf]
      %v3119 = vld [vmem:[%s6 + $0x15c] sm:$0xf]
      %v3120 = vld [vmem:[%s6 + $0x160] sm:$0xf]
      %v3121 = vld [vmem:[%s6 + $0x164] sm:$0xf]
      %v3122 = vld [vmem:[%s6 + $0x168] sm:$0xf]
      %v3123 = vld [vmem:[%s6 + $0x16c] sm:$0xf]
      %v3124 = vld [vmem:[%s6 + $0x170] sm:$0xf]
      %v3125 = vld [vmem:[%s6 + $0x174] sm:$0xf]
      %v3126 = vld [vmem:[%s6 + $0x178] sm:$0xf]
      %v3127 = vld [vmem:[%s6 + $0x17c] sm:$0xf]
      %v3128 = vpack.c.bf16 %v3026, %v3026
      %v3129 = vpack.c.bf16 %v3027, %v3027
      %v3130 = vpack.c.bf16 %v3028, %v3028
      %v3131 = vpack.c.bf16 %v3029, %v3029
      %v3132 = vpack.c.bf16 %v3030, %v3030
      %v3133 = vpack.c.bf16 %v3031, %v3031
      %v3230 = vunpack.c.l.b16 %v3032
      %v3231 = vunpack.c.l.b16 %v3033
      %v3232 = vunpack.c.l.b16 %v3034
      %v3233 = vunpack.c.l.b16 %v3035
      %v3234 = vunpack.c.l.b16 %v3036
      %v3235 = vunpack.c.l.b16 %v3037
      %v3236 = vunpack.c.l.b16 %v3038
      %v3237 = vunpack.c.l.b16 %v3039
      %v3238 = vunpack.c.l.b16 %v3040
      %v3239 = vunpack.c.l.b16 %v3041
      %v3240 = vunpack.c.l.b16 %v3042
      %v3241 = vunpack.c.l.b16 %v3043
      %v3242 = vunpack.c.l.b16 %v3044
      %v3243 = vunpack.c.l.b16 %v3045
      %v3244 = vunpack.c.l.b16 %v3046
      %v3245 = vunpack.c.l.b16 %v3047
      %v3246 = vunpack.c.l.b16 %v3048
      %v3247 = vunpack.c.l.b16 %v3049
      %v3248 = vunpack.c.l.b16 %v3050
      %v3249 = vunpack.c.l.b16 %v3051
      %v3250 = vunpack.c.l.b16 %v3052
      %v3251 = vunpack.c.l.b16 %v3053
      %v3252 = vunpack.c.l.b16 %v3054
      %v3253 = vunpack.c.l.b16 %v3055
      %v3254 = vunpack.c.l.b16 %v3056
      %v3255 = vunpack.c.l.b16 %v3057
      %v3256 = vunpack.c.l.b16 %v3058
      %v3257 = vunpack.c.l.b16 %v3059
      %v3258 = vunpack.c.l.b16 %v3060
      %v3259 = vunpack.c.l.b16 %v3061
      %v3260 = vunpack.c.l.b16 %v3062
      %v3261 = vunpack.c.l.b16 %v3063
      %v3262 = vunpack.c.l.b16 %v3064
      %v3263 = vunpack.c.l.b16 %v3065
      %v3264 = vunpack.c.l.b16 %v3066
      %v3265 = vunpack.c.l.b16 %v3067
      %v3266 = vunpack.c.l.b16 %v3068
      %v3267 = vunpack.c.l.b16 %v3069
      %v3268 = vunpack.c.l.b16 %v3070
      %v3269 = vunpack.c.l.b16 %v3071
      %v3270 = vunpack.c.l.b16 %v3072
      %v3271 = vunpack.c.l.b16 %v3073
      %v3272 = vunpack.c.l.b16 %v3074
      %v3273 = vunpack.c.l.b16 %v3075
      %v3274 = vunpack.c.l.b16 %v3076
      %v3275 = vunpack.c.l.b16 %v3077
      %v3276 = vunpack.c.l.b16 %v3078
      %v3277 = vunpack.c.l.b16 %v3079
      %v3278 = vunpack.c.l.b16 %v3080
      %v3279 = vunpack.c.l.b16 %v3081
      %v3280 = vunpack.c.l.b16 %v3082
      %v3281 = vunpack.c.l.b16 %v3083
      %v3282 = vunpack.c.l.b16 %v3084
      %v3283 = vunpack.c.l.b16 %v3085
      %v3284 = vunpack.c.l.b16 %v3086
      %v3285 = vunpack.c.l.b16 %v3087
      %v3286 = vunpack.c.l.b16 %v3088
      %v3287 = vunpack.c.l.b16 %v3089
      %v3288 = vunpack.c.l.b16 %v3090
      %v3289 = vunpack.c.l.b16 %v3091
      %v3290 = vunpack.c.l.b16 %v3092
      %v3291 = vunpack.c.l.b16 %v3093
      %v3292 = vunpack.c.l.b16 %v3094
      %v3293 = vunpack.c.l.b16 %v3095
      %v3294 = vunpack.c.l.b16 %v3096
      %v3295 = vunpack.c.l.b16 %v3097
      %v3296 = vunpack.c.l.b16 %v3098
      %v3297 = vunpack.c.l.b16 %v3099
      %v3298 = vunpack.c.l.b16 %v3100
      %v3299 = vunpack.c.l.b16 %v3101
      %v3300 = vunpack.c.l.b16 %v3102
      %v3301 = vunpack.c.l.b16 %v3103
      %v3302 = vunpack.c.l.b16 %v3104
      %v3303 = vunpack.c.l.b16 %v3105
      %v3304 = vunpack.c.l.b16 %v3106
      %v3305 = vunpack.c.l.b16 %v3107
      %v3306 = vunpack.c.l.b16 %v3108
      %v3307 = vunpack.c.l.b16 %v3109
      %v3308 = vunpack.c.l.b16 %v3110
      %v3309 = vunpack.c.l.b16 %v3111
      %v3310 = vunpack.c.l.b16 %v3112
      %v3311 = vunpack.c.l.b16 %v3113
      %v3312 = vunpack.c.l.b16 %v3114
      %v3313 = vunpack.c.l.b16 %v3115
      %v3314 = vunpack.c.l.b16 %v3116
      %v3315 = vunpack.c.l.b16 %v3117
      %v3316 = vunpack.c.l.b16 %v3118
      %v3317 = vunpack.c.l.b16 %v3119
      %v3318 = vunpack.c.l.b16 %v3120
      %v3319 = vunpack.c.l.b16 %v3121
      %v3320 = vunpack.c.l.b16 %v3122
      %v3321 = vunpack.c.l.b16 %v3123
      %v3322 = vunpack.c.l.b16 %v3124
      %v3323 = vunpack.c.l.b16 %v3125
      %v3324 = vunpack.c.l.b16 %v3126
      %v3325 = vunpack.c.l.b16 %v3127
      %v3326 = vpack.c.b16 %v3231, %v3230
      %v3327 = vpack.c.b16 %v3233, %v3232
      %v3328 = vpack.c.b16 %v3235, %v3234
      %v3329 = vpack.c.b16 %v3237, %v3236
      %v3330 = vpack.c.b16 %v3239, %v3238
      %v3331 = vpack.c.b16 %v3241, %v3240
      %v3332 = vpack.c.b16 %v3243, %v3242
      %v3333 = vpack.c.b16 %v3245, %v3244
      %v3334 = vpack.c.b16 %v3247, %v3246
      %v3335 = vpack.c.b16 %v3249, %v3248
      %v3336 = vpack.c.b16 %v3251, %v3250
      %v3337 = vpack.c.b16 %v3253, %v3252
      %v3338 = vpack.c.b16 %v3255, %v3254
      %v3339 = vpack.c.b16 %v3257, %v3256
      %v3340 = vpack.c.b16 %v3259, %v3258
      %v3341 = vpack.c.b16 %v3261, %v3260
      %v3342 = vpack.c.b16 %v3263, %v3262
      %v3343 = vpack.c.b16 %v3265, %v3264
      %v3344 = vpack.c.b16 %v3267, %v3266
      %v3345 = vpack.c.b16 %v3269, %v3268
      %v3346 = vpack.c.b16 %v3271, %v3270
      %v3347 = vpack.c.b16 %v3273, %v3272
      %v3348 = vpack.c.b16 %v3275, %v3274
      %v3349 = vpack.c.b16 %v3277, %v3276
      %v3350 = vpack.c.b16 %v3279, %v3278
      %v3351 = vpack.c.b16 %v3281, %v3280
      %v3352 = vpack.c.b16 %v3283, %v3282
      %v3353 = vpack.c.b16 %v3285, %v3284
      %v3354 = vpack.c.b16 %v3287, %v3286
      %v3355 = vpack.c.b16 %v3289, %v3288
      %v3356 = vpack.c.b16 %v3291, %v3290
      %v3357 = vpack.c.b16 %v3293, %v3292
      %v3358 = vpack.c.b16 %v3295, %v3294
      %v3359 = vpack.c.b16 %v3297, %v3296
      %v3360 = vpack.c.b16 %v3299, %v3298
      %v3361 = vpack.c.b16 %v3301, %v3300
      %v3362 = vpack.c.b16 %v3303, %v3302
      %v3363 = vpack.c.b16 %v3305, %v3304
      %v3364 = vpack.c.b16 %v3307, %v3306
      %v3365 = vpack.c.b16 %v3309, %v3308
      %v3366 = vpack.c.b16 %v3311, %v3310
      %v3367 = vpack.c.b16 %v3313, %v3312
      %v3368 = vpack.c.b16 %v3315, %v3314
      %v3369 = vpack.c.b16 %v3317, %v3316
      %v3370 = vpack.c.b16 %v3319, %v3318
      %v3371 = vpack.c.b16 %v3321, %v3320
      %v3372 = vpack.c.b16 %v3323, %v3322
      %v3373 = vpack.c.b16 %v3325, %v3324
      %3422 = vmatprep.subr.bf16.mxu0 0
      %3423 = vmatpush1.bf16.msra.mxu0 %v3333
      %3424 = vmatprep.subr.bf16.mxu0 0
      %3425 = vmatpush1.bf16.msra.mxu0 %v3332
      %3426 = vmatprep.subr.bf16.mxu0 0
      %3427 = vmatpush1.bf16.msra.mxu0 %v3331
      %3428 = vmatprep.subr.bf16.mxu0 0
      %3429 = vmatpush1.bf16.msra.mxu0 %v3330
      %3430 = vmatprep.subr.bf16.mxu0 0
      %3431 = vmatpush1.bf16.msra.mxu0 %v3329
      %3432 = vmatprep.subr.bf16.mxu0 0
      %3433 = vmatpush1.bf16.msra.mxu0 %v3328
      %3434 = vmatprep.subr.bf16.mxu0 0
      %3435 = vmatpush1.bf16.msra.mxu0 %v3327
      %3436 = vmatprep.subr.bf16.mxu0 0
      %3437 = vmatpush1.bf16.msra.mxu0 %v3326
      %3438 = vmatprep.subr.bf16.mxu0 0
      %3439 = vmatpush2.bf16.msra.mxu0 %v3341
      %3440 = vmatprep.subr.bf16.mxu0 0
      %3441 = vmatpush2.bf16.msra.mxu0 %v3340
      %3442 = vmatprep.subr.bf16.mxu0 0
      %3443 = vmatpush2.bf16.msra.mxu0 %v3339
      %3444 = vmatprep.subr.bf16.mxu0 0
      %3445 = vmatpush2.bf16.msra.mxu0 %v3338
      %3446 = vmatprep.subr.bf16.mxu0 0
      %3447 = vmatpush2.bf16.msra.mxu0 %v3337
      %3448 = vmatprep.subr.bf16.mxu0 0
      %3449 = vmatpush2.bf16.msra.mxu0 %v3336
      %3450 = vmatprep.subr.bf16.mxu0 0
      %3451 = vmatpush2.bf16.msra.mxu0 %v3335
      %3452 = vmatprep.subr.bf16.mxu0 0
      %3453 = vmatpush2.bf16.msra.mxu0 %v3334
      %3454 = vmatprep.mubr.bf16.mxu0 %v3129
      %3455 = vmatmul.mubr.bf16.gmra.mxu0 %v3128
      %v3456 = vpop.f32.mrf.mxu0
      %v3457 = vadd.f32 %v654, %v3456
      %v3458 = vpop.f32.mrf.mxu0
      %v3459 = vpop.f32.mrf.mxu0
      %v3460 = vpop.f32.mrf.mxu0
      %3461 = vdwg.mxu0
      %3462 = vmatprep.subr.bf16.mxu0 0
      %3463 = vmatpush1.bf16.msra.mxu0 %v3349
      %3464 = vmatprep.subr.bf16.mxu0 0
      %3465 = vmatpush1.bf16.msra.mxu0 %v3348
      %3466 = vmatprep.subr.bf16.mxu0 0
      %3467 = vmatpush1.bf16.msra.mxu0 %v3347
      %3468 = vmatprep.subr.bf16.mxu0 0
      %3469 = vmatpush1.bf16.msra.mxu0 %v3346
      %3470 = vmatprep.subr.bf16.mxu0 0
      %3471 = vmatpush1.bf16.msra.mxu0 %v3345
      %3472 = vmatprep.subr.bf16.mxu0 0
      %3473 = vmatpush1.bf16.msra.mxu0 %v3344
      %3474 = vmatprep.subr.bf16.mxu0 0
      %3475 = vmatpush1.bf16.msra.mxu0 %v3343
      %3476 = vmatprep.subr.bf16.mxu0 0
      %3477 = vmatpush1.bf16.msra.mxu0 %v3342
      %3478 = vmatprep.subr.bf16.mxu0 0
      %3479 = vmatpush2.bf16.msra.mxu0 %v3357
      %3480 = vmatprep.subr.bf16.mxu0 0
      %3481 = vmatpush2.bf16.msra.mxu0 %v3356
      %3482 = vmatprep.subr.bf16.mxu0 0
      %3483 = vmatpush2.bf16.msra.mxu0 %v3355
      %3484 = vmatprep.subr.bf16.mxu0 0
      %3485 = vmatpush2.bf16.msra.mxu0 %v3354
      %3486 = vmatprep.subr.bf16.mxu0 0
      %3487 = vmatpush2.bf16.msra.mxu0 %v3353
      %3488 = vmatprep.subr.bf16.mxu0 0
      %3489 = vmatpush2.bf16.msra.mxu0 %v3352
      %3490 = vmatprep.subr.bf16.mxu0 0
      %3491 = vmatpush2.bf16.msra.mxu0 %v3351
      %3492 = vmatprep.subr.bf16.mxu0 0
      %3493 = vmatpush2.bf16.msra.mxu0 %v3350
      %3494 = vmatprep.mubr.bf16.mxu0 %v3131
      %3495 = vmatmul.mubr.bf16.gmra.mxu0 %v3130
      %v3496 = vpop.f32.mrf.mxu0
      %v3497 = vadd.f32 %v3457, %v3496
      %v3498 = vpop.f32.mrf.mxu0
      %v3499 = vpop.f32.mrf.mxu0
      %v3500 = vpop.f32.mrf.mxu0
      %3501 = vdwg.mxu0
      %3502 = vmatprep.subr.bf16.mxu0 0
      %3503 = vmatpush1.bf16.msra.mxu0 %v3365
      %3504 = vmatprep.subr.bf16.mxu0 0
      %3505 = vmatpush1.bf16.msra.mxu0 %v3364
      %3506 = vmatprep.subr.bf16.mxu0 0
      %3507 = vmatpush1.bf16.msra.mxu0 %v3363
      %3508 = vmatprep.subr.bf16.mxu0 0
      %3509 = vmatpush1.bf16.msra.mxu0 %v3362
      %3510 = vmatprep.subr.bf16.mxu0 0
      %3511 = vmatpush1.bf16.msra.mxu0 %v3361
      %3512 = vmatprep.subr.bf16.mxu0 0
      %3513 = vmatpush1.bf16.msra.mxu0 %v3360
      %3514 = vmatprep.subr.bf16.mxu0 0
      %3515 = vmatpush1.bf16.msra.mxu0 %v3359
      %3516 = vmatprep.subr.bf16.mxu0 0
      %3517 = vmatpush1.bf16.msra.mxu0 %v3358
      %3518 = vmatprep.subr.bf16.mxu0 0
      %3519 = vmatpush2.bf16.msra.mxu0 %v3373
      %3520 = vmatprep.subr.bf16.mxu0 0
      %3521 = vmatpush2.bf16.msra.mxu0 %v3372
      %3522 = vmatprep.subr.bf16.mxu0 0
      %3523 = vmatpush2.bf16.msra.mxu0 %v3371
      %3524 = vmatprep.subr.bf16.mxu0 0
      %3525 = vmatpush2.bf16.msra.mxu0 %v3370
      %3526 = vmatprep.subr.bf16.mxu0 0
      %3527 = vmatpush2.bf16.msra.mxu0 %v3369
      %3528 = vmatprep.subr.bf16.mxu0 0
      %3529 = vmatpush2.bf16.msra.mxu0 %v3368
      %3530 = vmatprep.subr.bf16.mxu0 0
      %3531 = vmatpush2.bf16.msra.mxu0 %v3367
      %3532 = vmatprep.subr.bf16.mxu0 0
      %3533 = vmatpush2.bf16.msra.mxu0 %v3366
      %3534 = vmatprep.mubr.bf16.mxu0 %v3133
      %3535 = vmatmul.mubr.bf16.gmra.mxu0 %v3132
      %v3536 = vpop.f32.mrf.mxu0
      %v3537 = vadd.f32 %v3497, %v3536
      %v3538 = vpop.f32.mrf.mxu0
      %v3539 = vpop.f32.mrf.mxu0
      %v3540 = vpop.f32.mrf.mxu0
      %3541 = vdwg.mxu0
      %v3542 = vld [vmem:[%s644] sm:$0xf]
      %v3543 = vld [vmem:[%s644 + $0x4] sm:$0xf]
      %v3544 = vld [vmem:[%s644 + $0x8] sm:$0xf]
      %v3545 = vld [vmem:[%s644 + $0xc] sm:$0xf]
      %v3546 = vld [vmem:[%s644 + $0x10] sm:$0xf]
      %v3547 = vld [vmem:[%s644 + $0x14] sm:$0xf]
      %v3548 = vld [vmem:[%s644 + $0x18] sm:$0xf]
      %v3549 = vld [vmem:[%s644 + $0x1c] sm:$0xf]
      %v3550 = vld [vmem:[%s644 + $0x20] sm:$0xf]
      %v3551 = vld [vmem:[%s644 + $0x24] sm:$0xf]
      %v3552 = vld [vmem:[%s644 + $0x28] sm:$0xf]
      %v3553 = vld [vmem:[%s644 + $0x2c] sm:$0xf]
      %v3554 = vld [vmem:[%s644 + $0x30] sm:$0xf]
      %v3555 = vld [vmem:[%s644 + $0x34] sm:$0xf]
      %v3556 = vld [vmem:[%s644 + $0x38] sm:$0xf]
      %v3557 = vld [vmem:[%s644 + $0x3c] sm:$0xf]
      %v3558 = vld [vmem:[%s644 + $0x40] sm:$0xf]
      %v3559 = vld [vmem:[%s644 + $0x44] sm:$0xf]
      %v3560 = vld [vmem:[%s644 + $0x48] sm:$0xf]
      %v3561 = vld [vmem:[%s644 + $0x4c] sm:$0xf]
      %v3562 = vld [vmem:[%s644 + $0x50] sm:$0xf]
      %v3563 = vld [vmem:[%s644 + $0x54] sm:$0xf]
      %v3564 = vld [vmem:[%s644 + $0x58] sm:$0xf]
      %v3565 = vld [vmem:[%s644 + $0x5c] sm:$0xf]
      %v3566 = vld [vmem:[%s644 + $0x60] sm:$0xf]
      %v3567 = vld [vmem:[%s644 + $0x64] sm:$0xf]
      %v3568 = vld [vmem:[%s644 + $0x68] sm:$0xf]
      %v3569 = vld [vmem:[%s644 + $0x6c] sm:$0xf]
      %v3570 = vld [vmem:[%s644 + $0x70] sm:$0xf]
      %v3571 = vld [vmem:[%s644 + $0x74] sm:$0xf]
      %v3572 = vld [vmem:[%s644 + $0x78] sm:$0xf]
      %v3573 = vld [vmem:[%s644 + $0x7c] sm:$0xf]
      %v3574 = vld [vmem:[%s644 + $0x80] sm:$0xf]
      %v3575 = vld [vmem:[%s644 + $0x84] sm:$0xf]
      %v3576 = vld [vmem:[%s644 + $0x88] sm:$0xf]
      %v3577 = vld [vmem:[%s644 + $0x8c] sm:$0xf]
      %v3578 = vld [vmem:[%s644 + $0x90] sm:$0xf]
      %v3579 = vld [vmem:[%s644 + $0x94] sm:$0xf]
      %v3580 = vld [vmem:[%s644 + $0x98] sm:$0xf]
      %v3581 = vld [vmem:[%s644 + $0x9c] sm:$0xf]
      %v3582 = vld [vmem:[%s644 + $0xa0] sm:$0xf]
      %v3583 = vld [vmem:[%s644 + $0xa4] sm:$0xf]
      %v3584 = vld [vmem:[%s644 + $0xa8] sm:$0xf]
      %v3585 = vld [vmem:[%s644 + $0xac] sm:$0xf]
      %v3586 = vld [vmem:[%s644 + $0xb0] sm:$0xf]
      %v3587 = vld [vmem:[%s644 + $0xb4] sm:$0xf]
      %v3588 = vld [vmem:[%s644 + $0xb8] sm:$0xf]
      %v3589 = vld [vmem:[%s644 + $0xbc] sm:$0xf]
      %v3590 = vld [vmem:[%s644 + $0xc0] sm:$0xf]
      %v3591 = vld [vmem:[%s644 + $0xc4] sm:$0xf]
      %v3592 = vld [vmem:[%s644 + $0xc8] sm:$0xf]
      %v3593 = vld [vmem:[%s644 + $0xcc] sm:$0xf]
      %v3594 = vld [vmem:[%s644 + $0xd0] sm:$0xf]
      %v3595 = vld [vmem:[%s644 + $0xd4] sm:$0xf]
      %v3596 = vld [vmem:[%s644 + $0xd8] sm:$0xf]
      %v3597 = vld [vmem:[%s644 + $0xdc] sm:$0xf]
      %v3598 = vld [vmem:[%s644 + $0xe0] sm:$0xf]
      %v3599 = vld [vmem:[%s644 + $0xe4] sm:$0xf]
      %v3600 = vld [vmem:[%s644 + $0xe8] sm:$0xf]
      %v3601 = vld [vmem:[%s644 + $0xec] sm:$0xf]
      %v3602 = vld [vmem:[%s644 + $0xf0] sm:$0xf]
      %v3603 = vld [vmem:[%s644 + $0xf4] sm:$0xf]
      %v3604 = vld [vmem:[%s644 + $0xf8] sm:$0xf]
      %v3605 = vld [vmem:[%s644 + $0xfc] sm:$0xf]
      %v3606 = vld [vmem:[%s644 + $0x100] sm:$0xf]
      %v3607 = vld [vmem:[%s644 + $0x104] sm:$0xf]
      %v3608 = vld [vmem:[%s644 + $0x108] sm:$0xf]
      %v3609 = vld [vmem:[%s644 + $0x10c] sm:$0xf]
      %v3610 = vld [vmem:[%s644 + $0x110] sm:$0xf]
      %v3611 = vld [vmem:[%s644 + $0x114] sm:$0xf]
      %v3612 = vld [vmem:[%s644 + $0x118] sm:$0xf]
      %v3613 = vld [vmem:[%s644 + $0x11c] sm:$0xf]
      %v3614 = vld [vmem:[%s644 + $0x120] sm:$0xf]
      %v3615 = vld [vmem:[%s644 + $0x124] sm:$0xf]
      %v3616 = vld [vmem:[%s644 + $0x128] sm:$0xf]
      %v3617 = vld [vmem:[%s644 + $0x12c] sm:$0xf]
      %v3618 = vld [vmem:[%s644 + $0x130] sm:$0xf]
      %v3619 = vld [vmem:[%s644 + $0x134] sm:$0xf]
      %v3620 = vld [vmem:[%s644 + $0x138] sm:$0xf]
      %v3621 = vld [vmem:[%s644 + $0x13c] sm:$0xf]
      %v3622 = vld [vmem:[%s644 + $0x140] sm:$0xf]
      %v3623 = vld [vmem:[%s644 + $0x144] sm:$0xf]
      %v3624 = vld [vmem:[%s644 + $0x148] sm:$0xf]
      %v3625 = vld [vmem:[%s644 + $0x14c] sm:$0xf]
      %v3626 = vld [vmem:[%s644 + $0x150] sm:$0xf]
      %v3627 = vld [vmem:[%s644 + $0x154] sm:$0xf]
      %v3628 = vld [vmem:[%s644 + $0x158] sm:$0xf]
      %v3629 = vld [vmem:[%s644 + $0x15c] sm:$0xf]
      %v3630 = vld [vmem:[%s644 + $0x160] sm:$0xf]
      %v3631 = vld [vmem:[%s644 + $0x164] sm:$0xf]
      %v3632 = vld [vmem:[%s644 + $0x168] sm:$0xf]
      %v3633 = vld [vmem:[%s644 + $0x16c] sm:$0xf]
      %v3634 = vld [vmem:[%s644 + $0x170] sm:$0xf]
      %v3635 = vld [vmem:[%s644 + $0x174] sm:$0xf]
      %v3636 = vld [vmem:[%s644 + $0x178] sm:$0xf]
      %v3637 = vld [vmem:[%s644 + $0x17c] sm:$0xf]
      %v3638 = vld [vmem:[%s644 + $0x180] sm:$0xf]
      %v3639 = vld [vmem:[%s644 + $0x184] sm:$0xf]
      %v3640 = vld [vmem:[%s644 + $0x188] sm:$0xf]
      %v3641 = vld [vmem:[%s644 + $0x18c] sm:$0xf]
      %v3642 = vld [vmem:[%s644 + $0x190] sm:$0xf]
      %v3643 = vld [vmem:[%s644 + $0x194] sm:$0xf]
      %v3644 = vld [vmem:[%s644 + $0x198] sm:$0xf]
      %v3645 = vld [vmem:[%s644 + $0x19c] sm:$0xf]
      %v3646 = vld [vmem:[%s644 + $0x1a0] sm:$0xf]
      %v3647 = vld [vmem:[%s644 + $0x1a4] sm:$0xf]
      %v3648 = vld [vmem:[%s644 + $0x1a8] sm:$0xf]
      %v3649 = vld [vmem:[%s644 + $0x1ac] sm:$0xf]
      %v3650 = vld [vmem:[%s644 + $0x1b0] sm:$0xf]
      %v3651 = vld [vmem:[%s644 + $0x1b4] sm:$0xf]
      %v3652 = vld [vmem:[%s644 + $0x1b8] sm:$0xf]
      %v3653 = vld [vmem:[%s644 + $0x1bc] sm:$0xf]
      %v3654 = vld [vmem:[%s644 + $0x1c0] sm:$0xf]
      %v3655 = vld [vmem:[%s644 + $0x1c4] sm:$0xf]
      %v3656 = vld [vmem:[%s644 + $0x1c8] sm:$0xf]
      %v3657 = vld [vmem:[%s644 + $0x1cc] sm:$0xf]
      %v3658 = vld [vmem:[%s644 + $0x1d0] sm:$0xf]
      %v3659 = vld [vmem:[%s644 + $0x1d4] sm:$0xf]
      %v3660 = vld [vmem:[%s644 + $0x1d8] sm:$0xf]
      %v3661 = vld [vmem:[%s644 + $0x1dc] sm:$0xf]
      %v3662 = vld [vmem:[%s644 + $0x1e0] sm:$0xf]
      %v3663 = vld [vmem:[%s644 + $0x1e4] sm:$0xf]
      %v3664 = vld [vmem:[%s644 + $0x1e8] sm:$0xf]
      %v3665 = vld [vmem:[%s644 + $0x1ec] sm:$0xf]
      %v3666 = vld [vmem:[%s644 + $0x1f0] sm:$0xf]
      %v3667 = vld [vmem:[%s644 + $0x1f4] sm:$0xf]
      %v3668 = vld [vmem:[%s644 + $0x1f8] sm:$0xf]
      %v3669 = vld [vmem:[%s644 + $0x1fc] sm:$0xf]
      %v3670 = vld [vmem:[%s644 + $0x200] sm:$0xf]
      %v3671 = vld [vmem:[%s644 + $0x204] sm:$0xf]
      %v3672 = vld [vmem:[%s644 + $0x208] sm:$0xf]
      %v3673 = vld [vmem:[%s644 + $0x20c] sm:$0xf]
      %v3674 = vld [vmem:[%s644 + $0x210] sm:$0xf]
      %v3675 = vld [vmem:[%s644 + $0x214] sm:$0xf]
      %v3676 = vld [vmem:[%s644 + $0x218] sm:$0xf]
      %v3677 = vld [vmem:[%s644 + $0x21c] sm:$0xf]
      %v3678 = vld [vmem:[%s644 + $0x220] sm:$0xf]
      %v3679 = vld [vmem:[%s644 + $0x224] sm:$0xf]
      %v3680 = vld [vmem:[%s644 + $0x228] sm:$0xf]
      %v3681 = vld [vmem:[%s644 + $0x22c] sm:$0xf]
      %v3682 = vld [vmem:[%s644 + $0x230] sm:$0xf]
      %v3683 = vld [vmem:[%s644 + $0x234] sm:$0xf]
      %v3684 = vld [vmem:[%s644 + $0x238] sm:$0xf]
      %v3685 = vld [vmem:[%s644 + $0x23c] sm:$0xf]
      %v3686 = vld [vmem:[%s644 + $0x240] sm:$0xf]
      %v3687 = vld [vmem:[%s644 + $0x244] sm:$0xf]
      %v3688 = vld [vmem:[%s644 + $0x248] sm:$0xf]
      %v3689 = vld [vmem:[%s7] sm:$0xf]
      %v3690 = vld [vmem:[%s7 + $0x4] sm:$0xf]
      %v3691 = vld [vmem:[%s7 + $0x8] sm:$0xf]
      %v3692 = vld [vmem:[%s7 + $0xc] sm:$0xf]
      %v3693 = vld [vmem:[%s7 + $0x10] sm:$0xf]
      %v3694 = vld [vmem:[%s7 + $0x14] sm:$0xf]
      %v3695 = vld [vmem:[%s7 + $0x18] sm:$0xf]
      %v3696 = vld [vmem:[%s7 + $0x1c] sm:$0xf]
      %v3697 = vld [vmem:[%s7 + $0x20] sm:$0xf]
      %v3698 = vld [vmem:[%s7 + $0x24] sm:$0xf]
      %v3699 = vld [vmem:[%s7 + $0x28] sm:$0x1]
      %v3700 = vlaneseq
      %v3701 = vshrl.u32 %v3700, 7
      %v3702 = vsub.s32 0, %v3701
      %v3703 = vrot.slane %v655, %v3702
      %v3851 = vunpack.c.l.b16 %v3542
      %v3852 = vunpack.c.l.b16 %v3543
      %v3853 = vunpack.c.l.b16 %v3544
      %v3854 = vunpack.c.l.b16 %v3545
      %v3855 = vunpack.c.l.b16 %v3546
      %v3856 = vunpack.c.l.b16 %v3547
      %v3857 = vunpack.c.l.b16 %v3548
      %v3858 = vunpack.c.l.b16 %v3549
      %v3859 = vunpack.c.l.b16 %v3550
      %v3860 = vunpack.c.l.b16 %v3551
      %v3861 = vunpack.c.l.b16 %v3552
      %v3862 = vunpack.c.l.b16 %v3553
      %v3863 = vunpack.c.l.b16 %v3554
      %v3864 = vunpack.c.l.b16 %v3555
      %v3865 = vunpack.c.l.b16 %v3556
      %v3866 = vunpack.c.l.b16 %v3557
      %v3867 = vunpack.c.l.b16 %v3558
      %v3868 = vunpack.c.l.b16 %v3559
      %v3869 = vunpack.c.l.b16 %v3560
      %v3870 = vunpack.c.l.b16 %v3561
      %v3871 = vunpack.c.l.b16 %v3562
      %v3872 = vunpack.c.l.b16 %v3563
      %v3873 = vunpack.c.l.b16 %v3564
      %v3874 = vunpack.c.l.b16 %v3565
      %v3875 = vunpack.c.l.b16 %v3566
      %v3876 = vunpack.c.l.b16 %v3567
      %v3877 = vunpack.c.l.b16 %v3568
      %v3878 = vunpack.c.l.b16 %v3569
      %v3879 = vunpack.c.l.b16 %v3570
      %v3880 = vunpack.c.l.b16 %v3571
      %v3881 = vunpack.c.l.b16 %v3572
      %v3882 = vunpack.c.l.b16 %v3573
      %v3883 = vunpack.c.l.b16 %v3574
      %v3884 = vunpack.c.l.b16 %v3575
      %v3885 = vunpack.c.l.b16 %v3576
      %v3886 = vunpack.c.l.b16 %v3577
      %v3887 = vunpack.c.l.b16 %v3578
      %v3888 = vunpack.c.l.b16 %v3579
      %v3889 = vunpack.c.l.b16 %v3580
      %v3890 = vunpack.c.l.b16 %v3581
      %v3891 = vunpack.c.l.b16 %v3582
      %v3892 = vunpack.c.l.b16 %v3583
      %v3893 = vunpack.c.l.b16 %v3584
      %v3894 = vunpack.c.l.b16 %v3585
      %v3895 = vunpack.c.l.b16 %v3586
      %v3896 = vunpack.c.l.b16 %v3587
      %v3897 = vunpack.c.l.b16 %v3588
      %v3898 = vunpack.c.l.b16 %v3589
      %v3899 = vunpack.c.l.b16 %v3590
      %v3900 = vunpack.c.l.b16 %v3591
      %v3901 = vunpack.c.l.b16 %v3592
      %v3902 = vunpack.c.l.b16 %v3593
      %v3903 = vunpack.c.l.b16 %v3594
      %v3904 = vunpack.c.l.b16 %v3595
      %v3905 = vunpack.c.l.b16 %v3596
      %v3906 = vunpack.c.l.b16 %v3597
      %v3907 = vunpack.c.l.b16 %v3598
      %v3908 = vunpack.c.l.b16 %v3599
      %v3909 = vunpack.c.l.b16 %v3600
      %v3910 = vunpack.c.l.b16 %v3601
      %v3911 = vunpack.c.l.b16 %v3602
      %v3912 = vunpack.c.l.b16 %v3603
      %v3913 = vunpack.c.l.b16 %v3604
      %v3914 = vunpack.c.l.b16 %v3605
      %v3915 = vunpack.c.l.b16 %v3606
      %v3916 = vunpack.c.l.b16 %v3607
      %v3917 = vunpack.c.l.b16 %v3608
      %v3918 = vunpack.c.l.b16 %v3609
      %v3919 = vunpack.c.l.b16 %v3610
      %v3920 = vunpack.c.l.b16 %v3611
      %v3921 = vunpack.c.l.b16 %v3612
      %v3922 = vunpack.c.l.b16 %v3613
      %v3923 = vunpack.c.l.b16 %v3614
      %v3924 = vunpack.c.l.b16 %v3615
      %v3925 = vunpack.c.l.b16 %v3616
      %v3926 = vunpack.c.l.b16 %v3617
      %v3927 = vunpack.c.l.b16 %v3618
      %v3928 = vunpack.c.l.b16 %v3619
      %v3929 = vunpack.c.l.b16 %v3620
      %v3930 = vunpack.c.l.b16 %v3621
      %v3931 = vunpack.c.l.b16 %v3622
      %v3932 = vunpack.c.l.b16 %v3623
      %v3933 = vunpack.c.l.b16 %v3624
      %v3934 = vunpack.c.l.b16 %v3625
      %v3935 = vunpack.c.l.b16 %v3626
      %v3936 = vunpack.c.l.b16 %v3627
      %v3937 = vunpack.c.l.b16 %v3628
      %v3938 = vunpack.c.l.b16 %v3629
      %v3939 = vunpack.c.l.b16 %v3630
      %v3940 = vunpack.c.l.b16 %v3631
      %v3941 = vunpack.c.l.b16 %v3632
      %v3942 = vunpack.c.l.b16 %v3633
      %v3943 = vunpack.c.l.b16 %v3634
      %v3944 = vunpack.c.l.b16 %v3635
      %v3945 = vunpack.c.l.b16 %v3636
      %v3946 = vunpack.c.l.b16 %v3637
      %v3947 = vunpack.c.l.b16 %v3638
      %v3948 = vunpack.c.l.b16 %v3639
      %v3949 = vunpack.c.l.b16 %v3640
      %v3950 = vunpack.c.l.b16 %v3641
      %v3951 = vunpack.c.l.b16 %v3642
      %v3952 = vunpack.c.l.b16 %v3643
      %v3953 = vunpack.c.l.b16 %v3644
      %v3954 = vunpack.c.l.b16 %v3645
      %v3955 = vunpack.c.l.b16 %v3646
      %v3956 = vunpack.c.l.b16 %v3647
      %v3957 = vunpack.c.l.b16 %v3648
      %v3958 = vunpack.c.l.b16 %v3649
      %v3959 = vunpack.c.l.b16 %v3650
      %v3960 = vunpack.c.l.b16 %v3651
      %v3961 = vunpack.c.l.b16 %v3652
      %v3962 = vunpack.c.l.b16 %v3653
      %v3963 = vunpack.c.l.b16 %v3654
      %v3964 = vunpack.c.l.b16 %v3655
      %v3965 = vunpack.c.l.b16 %v3656
      %v3966 = vunpack.c.l.b16 %v3657
      %v3967 = vunpack.c.l.b16 %v3658
      %v3968 = vunpack.c.l.b16 %v3659
      %v3969 = vunpack.c.l.b16 %v3660
      %v3970 = vunpack.c.l.b16 %v3661
      %v3971 = vunpack.c.l.b16 %v3662
      %v3972 = vunpack.c.l.b16 %v3663
      %v3973 = vunpack.c.l.b16 %v3664
      %v3974 = vunpack.c.l.b16 %v3665
      %v3975 = vunpack.c.l.b16 %v3666
      %v3976 = vunpack.c.l.b16 %v3667
      %v3977 = vunpack.c.l.b16 %v3668
      %v3978 = vunpack.c.l.b16 %v3669
      %v3979 = vunpack.c.l.b16 %v3670
      %v3980 = vunpack.c.l.b16 %v3671
      %v3981 = vunpack.c.l.b16 %v3672
      %v3982 = vunpack.c.l.b16 %v3673
      %v3983 = vunpack.c.l.b16 %v3674
      %v3984 = vunpack.c.l.b16 %v3675
      %v3985 = vunpack.c.l.b16 %v3676
      %v3986 = vunpack.c.l.b16 %v3677
      %v3987 = vunpack.c.l.b16 %v3678
      %v3988 = vunpack.c.l.b16 %v3679
      %v3989 = vunpack.c.l.b16 %v3680
      %v3990 = vunpack.c.l.b16 %v3681
      %v3991 = vunpack.c.l.b16 %v3682
      %v3992 = vunpack.c.l.b16 %v3683
      %v3993 = vunpack.c.l.b16 %v3684
      %v3994 = vunpack.c.l.b16 %v3685
      %v3995 = vunpack.c.l.b16 %v3686
      %v3996 = vunpack.c.l.b16 %v3687
      %v3997 = vunpack.c.l.b16 %v3688
      %v3998 = vpack.c.b16 %v3852, %v3851
      %v3999 = vpack.c.b16 %v3854, %v3853
      %v4000 = vpack.c.b16 %v3856, %v3855
      %v4001 = vpack.c.b16 %v3858, %v3857
      %v4002 = vpack.c.b16 %v3860, %v3859
      %v4003 = vpack.c.b16 %v3862, %v3861
      %v4004 = vpack.c.b16 %v3864, %v3863
      %v4005 = vpack.c.b16 %v3866, %v3865
      %v4006 = vpack.c.b16 %v3868, %v3867
      %v4007 = vpack.c.b16 %v3870, %v3869
      %v4008 = vpack.c.b16 %v3872, %v3871
      %v4009 = vpack.c.b16 %v3874, %v3873
      %v4010 = vpack.c.b16 %v3876, %v3875
      %v4011 = vpack.c.b16 %v3878, %v3877
      %v4012 = vpack.c.b16 %v3880, %v3879
      %v4013 = vpack.c.b16 %v3882, %v3881
      %v4014 = vpack.c.b16 %v3884, %v3883
      %v4015 = vpack.c.b16 %v3886, %v3885
      %v4016 = vpack.c.b16 %v3888, %v3887
      %v4017 = vpack.c.b16 %v3890, %v3889
      %v4018 = vpack.c.b16 %v3892, %v3891
      %v4019 = vpack.c.b16 %v3894, %v3893
      %v4020 = vpack.c.b16 %v3896, %v3895
      %v4021 = vpack.c.b16 %v3898, %v3897
      %v4022 = vpack.c.b16 %v3900, %v3899
      %v4023 = vpack.c.b16 %v3902, %v3901
      %v4024 = vpack.c.b16 %v3904, %v3903
      %v4025 = vpack.c.b16 %v3906, %v3905
      %v4026 = vpack.c.b16 %v3908, %v3907
      %v4027 = vpack.c.b16 %v3910, %v3909
      %v4028 = vpack.c.b16 %v3912, %v3911
      %v4029 = vpack.c.b16 %v3914, %v3913
      %v4030 = vpack.c.b16 %v3916, %v3915
      %v4031 = vpack.c.b16 %v3918, %v3917
      %v4032 = vpack.c.b16 %v3920, %v3919
      %v4033 = vpack.c.b16 %v3922, %v3921
      %v4034 = vpack.c.b16 %v3924, %v3923
      %v4035 = vpack.c.b16 %v3926, %v3925
      %v4036 = vpack.c.b16 %v3928, %v3927
      %v4037 = vpack.c.b16 %v3930, %v3929
      %v4038 = vpack.c.b16 %v3932, %v3931
      %v4039 = vpack.c.b16 %v3934, %v3933
      %v4040 = vpack.c.b16 %v3936, %v3935
      %v4041 = vpack.c.b16 %v3938, %v3937
      %v4042 = vpack.c.b16 %v3940, %v3939
      %v4043 = vpack.c.b16 %v3942, %v3941
      %v4044 = vpack.c.b16 %v3944, %v3943
      %v4045 = vpack.c.b16 %v3946, %v3945
      %v4046 = vpack.c.b16 %v3948, %v3947
      %v4047 = vpack.c.b16 %v3950, %v3949
      %v4048 = vpack.c.b16 %v3952, %v3951
      %v4049 = vpack.c.b16 %v3954, %v3953
      %v4050 = vpack.c.b16 %v3956, %v3955
      %v4051 = vpack.c.b16 %v3958, %v3957
      %v4052 = vpack.c.b16 %v3960, %v3959
      %v4053 = vpack.c.b16 %v3962, %v3961
      %v4054 = vpack.c.b16 %v3964, %v3963
      %v4055 = vpack.c.b16 %v3966, %v3965
      %v4056 = vpack.c.b16 %v3968, %v3967
      %v4057 = vpack.c.b16 %v3970, %v3969
      %v4058 = vpack.c.b16 %v3972, %v3971
      %v4059 = vpack.c.b16 %v3974, %v3973
      %v4060 = vpack.c.b16 %v3976, %v3975
      %v4061 = vpack.c.b16 %v3978, %v3977
      %v4062 = vpack.c.b16 %v3980, %v3979
      %v4063 = vpack.c.b16 %v3982, %v3981
      %v4064 = vpack.c.b16 %v3984, %v3983
      %v4065 = vpack.c.b16 %v3986, %v3985
      %v4066 = vpack.c.b16 %v3988, %v3987
      %v4067 = vpack.c.b16 %v3990, %v3989
      %v4068 = vpack.c.b16 %v3992, %v3991
      %v4069 = vpack.c.b16 %v3994, %v3993
      %v4070 = vpack.c.b16 %v3996, %v3995
      %v4071 = vpack.c.b16 %v3997, %v3997
      %v4083 = vunpack.c.l.b16 %v3689
      %v4084 = vunpack.c.l.b16 %v3690
      %v4085 = vunpack.c.l.b16 %v3691
      %v4086 = vunpack.c.l.b16 %v3692
      %v4087 = vunpack.c.l.b16 %v3693
      %v4088 = vunpack.c.l.b16 %v3694
      %v4089 = vunpack.c.l.b16 %v3695
      %v4090 = vunpack.c.l.b16 %v3696
      %v4091 = vunpack.c.l.b16 %v3697
      %v4092 = vunpack.c.l.b16 %v3698
      %v4093 = vunpack.c.l.b16 %v3699
      %v4094 = vpack.c.b16 %v4084, %v4083
      %v4095 = vpack.c.b16 %v4086, %v4085
      %v4096 = vpack.c.b16 %v4088, %v4087
      %v4097 = vpack.c.b16 %v4090, %v4089
      %v4098 = vpack.c.b16 %v4092, %v4091
      %v4099 = vpack.c.b16 %v4093, %v4093
      %vm4105 = vcmask 662528
      %v4107 = vsel %vm4105, %v3998, 0
      %v4110 = vsel %vm4105, %v3999, 0
      %v4113 = vsel %vm4105, %v4000, 0
      %v4116 = vsel %vm4105, %v4001, 0
      %v4119 = vsel %vm4105, %v4002, 0
      %v4122 = vsel %vm4105, %v4003, 0
      %v4125 = vsel %vm4105, %v4004, 0
      %v4128 = vsel %vm4105, %v4005, 0
      %v4131 = vsel %vm4105, %v4006, 0
      %v4134 = vsel %vm4105, %v4007, 0
      %v4137 = vsel %vm4105, %v4008, 0
      %v4140 = vsel %vm4105, %v4009, 0
      %v4143 = vsel %vm4105, %v4010, 0
      %v4146 = vsel %vm4105, %v4011, 0
      %v4149 = vsel %vm4105, %v4012, 0
      %v4152 = vsel %vm4105, %v4013, 0
      %v4155 = vsel %vm4105, %v4014, 0
      %v4158 = vsel %vm4105, %v4015, 0
      %v4161 = vsel %vm4105, %v4016, 0
      %v4164 = vsel %vm4105, %v4017, 0
      %v4167 = vsel %vm4105, %v4018, 0
      %v4170 = vsel %vm4105, %v4019, 0
      %v4173 = vsel %vm4105, %v4020, 0
      %v4176 = vsel %vm4105, %v4021, 0
      %v4179 = vsel %vm4105, %v4022, 0
      %v4182 = vsel %vm4105, %v4023, 0
      %v4185 = vsel %vm4105, %v4024, 0
      %v4188 = vsel %vm4105, %v4025, 0
      %v4191 = vsel %vm4105, %v4026, 0
      %v4194 = vsel %vm4105, %v4027, 0
      %v4197 = vsel %vm4105, %v4028, 0
      %v4200 = vsel %vm4105, %v4029, 0
      %v4203 = vsel %vm4105, %v4030, 0
      %v4206 = vsel %vm4105, %v4031, 0
      %v4209 = vsel %vm4105, %v4032, 0
      %v4212 = vsel %vm4105, %v4033, 0
      %v4215 = vsel %vm4105, %v4034, 0
      %v4218 = vsel %vm4105, %v4035, 0
      %v4221 = vsel %vm4105, %v4036, 0
      %v4224 = vsel %vm4105, %v4037, 0
      %v4227 = vsel %vm4105, %v4038, 0
      %v4230 = vsel %vm4105, %v4039, 0
      %v4233 = vsel %vm4105, %v4040, 0
      %v4236 = vsel %vm4105, %v4041, 0
      %v4239 = vsel %vm4105, %v4042, 0
      %v4242 = vsel %vm4105, %v4043, 0
      %v4245 = vsel %vm4105, %v4044, 0
      %v4248 = vsel %vm4105, %v4045, 0
      %v4251 = vsel %vm4105, %v4046, 0
      %v4254 = vsel %vm4105, %v4047, 0
      %v4257 = vsel %vm4105, %v4048, 0
      %v4260 = vsel %vm4105, %v4049, 0
      %v4263 = vsel %vm4105, %v4050, 0
      %v4266 = vsel %vm4105, %v4051, 0
      %v4269 = vsel %vm4105, %v4052, 0
      %v4272 = vsel %vm4105, %v4053, 0
      %v4275 = vsel %vm4105, %v4054, 0
      %v4278 = vsel %vm4105, %v4055, 0
      %v4281 = vsel %vm4105, %v4056, 0
      %v4284 = vsel %vm4105, %v4057, 0
      %v4287 = vsel %vm4105, %v4058, 0
      %v4290 = vsel %vm4105, %v4059, 0
      %v4293 = vsel %vm4105, %v4060, 0
      %v4296 = vsel %vm4105, %v4061, 0
      %v4299 = vsel %vm4105, %v4062, 0
      %v4302 = vsel %vm4105, %v4063, 0
      %v4305 = vsel %vm4105, %v4064, 0
      %v4308 = vsel %vm4105, %v4065, 0
      %v4311 = vsel %vm4105, %v4066, 0
      %v4314 = vsel %vm4105, %v4067, 0
      %v4317 = vsel %vm4105, %v4068, 0
      %v4320 = vsel %vm4105, %v4069, 0
      %v4323 = vsel %vm4105, %v4070, 0
      %v4326 = vsel %vm4105, %v4071, 0
      %vm4328 = vcmask 1040384
      %v4329 = vsel 0, 4294967295, 65535
      %v4330 = vsel %vm4328, %v4329, 0
      %v4332 = vand.u32 %v4099, %v4330
      %4334 = vmatprep.subr.bf16.mxu0 0
      %4335 = vmatpush1.bf16.msra.mxu0 0
      %4336 = vmatprep.subr.bf16.mxu0 0
      %4337 = vmatpush1.bf16.msra.mxu0 0
      %4338 = vmatprep.subr.bf16.mxu0 0
      %4339 = vmatpush1.bf16.msra.mxu0 %v4332
      %4340 = vmatprep.subr.bf16.mxu0 0
      %4341 = vmatpush1.bf16.msra.mxu0 %v4098
      %4342 = vmatprep.subr.bf16.mxu0 0
      %4343 = vmatpush1.bf16.msra.mxu0 %v4097
      %4344 = vmatprep.subr.bf16.mxu0 0
      %4345 = vmatpush1.bf16.msra.mxu0 %v4096
      %4346 = vmatprep.subr.bf16.mxu0 0
      %4347 = vmatpush1.bf16.msra.mxu0 %v4095
      %4348 = vmatprep.subr.bf16.mxu0 0
      %4349 = vmatpush1.bf16.msra.mxu0 %v4094
      %4350 = vmatprep.subr.bf16.mxu0 0
      %4351 = vmatpush2.bf16.msra.mxu0 0
      %4352 = vmatprep.subr.bf16.mxu0 0
      %4353 = vmatpush2.bf16.msra.mxu0 0
      %4354 = vmatprep.subr.bf16.mxu0 0
      %4355 = vmatpush2.bf16.msra.mxu0 0
      %4356 = vmatprep.subr.bf16.mxu0 0
      %4357 = vmatpush2.bf16.msra.mxu0 0
      %4358 = vmatprep.subr.bf16.mxu0 0
      %4359 = vmatpush2.bf16.msra.mxu0 0
      %4360 = vmatprep.subr.bf16.mxu0 0
      %4361 = vmatpush2.bf16.msra.mxu0 0
      %4362 = vmatprep.subr.bf16.mxu0 0
      %4363 = vmatpush2.bf16.msra.mxu0 0
      %4364 = vmatprep.subr.bf16.mxu0 0
      %4365 = vmatpush2.bf16.msra.mxu0 0
      %4366 = vmatprep.mubr.bf16.mxu0 0
      %4367 = vmatmul.mubr.bf16.gmra.mxu0 %v4107
      %v4368 = vpop.f32.mrf.mxu0
      %v4369 = vadd.f32 %v3703, %v4368
      %v4370 = vpop.f32.mrf.mxu0
      %v4371 = vpop.f32.mrf.mxu0
      %v4372 = vadd.f32 %v3703, %v4371
      %v4373 = vpop.f32.mrf.mxu0
      %4374 = vmatprep.mubr.bf16.mxu0 0
      %4375 = vmatmul.mubr.bf16.gmra.mxu0 %v4110
      %v4376 = vpop.f32.mrf.mxu0
      %v4377 = vadd.f32 %v3703, %v4376
      %v4378 = vpop.f32.mrf.mxu0
      %v4379 = vpop.f32.mrf.mxu0
      %v4380 = vadd.f32 %v3703, %v4379
      %v4381 = vpop.f32.mrf.mxu0
      %4382 = vmatprep.mubr.bf16.mxu0 0
      %4383 = vmatmul.mubr.bf16.gmra.mxu0 %v4113
      %v4384 = vpop.f32.mrf.mxu0
      %v4385 = vadd.f32 %v3703, %v4384
      %v4386 = vpop.f32.mrf.mxu0
      %v4387 = vpop.f32.mrf.mxu0
      %v4388 = vadd.f32 %v3703, %v4387
      %v4389 = vpop.f32.mrf.mxu0
      %4390 = vmatprep.mubr.bf16.mxu0 0
      %4391 = vmatmul.mubr.bf16.gmra.mxu0 %v4116
      %v4392 = vpop.f32.mrf.mxu0
      %v4393 = vadd.f32 %v3703, %v4392
      %v4394 = vpop.f32.mrf.mxu0
      %v4395 = vpop.f32.mrf.mxu0
      %v4396 = vadd.f32 %v3703, %v4395
      %v4397 = vpop.f32.mrf.mxu0
      %4398 = vmatprep.mubr.bf16.mxu0 0
      %4399 = vmatmul.mubr.bf16.gmra.mxu0 %v4119
      %v4400 = vpop.f32.mrf.mxu0
      %v4401 = vadd.f32 %v3703, %v4400
      %v4402 = vpop.f32.mrf.mxu0
      %v4403 = vpop.f32.mrf.mxu0
      %v4404 = vadd.f32 %v3703, %v4403
      %v4405 = vpop.f32.mrf.mxu0
      %4406 = vmatprep.mubr.bf16.mxu0 0
      %4407 = vmatmul.mubr.bf16.gmra.mxu0 %v4122
      %v4408 = vpop.f32.mrf.mxu0
      %v4409 = vadd.f32 %v3703, %v4408
      %v4410 = vpop.f32.mrf.mxu0
      %v4411 = vpop.f32.mrf.mxu0
      %v4412 = vadd.f32 %v3703, %v4411
      %v4413 = vpop.f32.mrf.mxu0
      %4414 = vmatprep.mubr.bf16.mxu0 0
      %4415 = vmatmul.mubr.bf16.gmra.mxu0 %v4125
      %v4416 = vpop.f32.mrf.mxu0
      %v4417 = vadd.f32 %v3703, %v4416
      %v4418 = vpop.f32.mrf.mxu0
      %v4419 = vpop.f32.mrf.mxu0
      %v4420 = vadd.f32 %v3703, %v4419
      %v4421 = vpop.f32.mrf.mxu0
      %4422 = vmatprep.mubr.bf16.mxu0 0
      %4423 = vmatmul.mubr.bf16.gmra.mxu0 %v4128
      %v4424 = vpop.f32.mrf.mxu0
      %v4425 = vadd.f32 %v3703, %v4424
      %v4426 = vpop.f32.mrf.mxu0
      %v4427 = vpop.f32.mrf.mxu0
      %v4428 = vadd.f32 %v3703, %v4427
      %v4429 = vpop.f32.mrf.mxu0
      %4430 = vmatprep.mubr.bf16.mxu0 0
      %4431 = vmatmul.mubr.bf16.gmra.mxu0 %v4131
      %v4432 = vpop.f32.mrf.mxu0
      %v4433 = vadd.f32 %v3703, %v4432
      %v4434 = vpop.f32.mrf.mxu0
      %v4435 = vpop.f32.mrf.mxu0
      %v4436 = vadd.f32 %v3703, %v4435
      %v4437 = vpop.f32.mrf.mxu0
      %4438 = vmatprep.mubr.bf16.mxu0 0
      %4439 = vmatmul.mubr.bf16.gmra.mxu0 %v4134
      %v4440 = vpop.f32.mrf.mxu0
      %v4441 = vadd.f32 %v3703, %v4440
      %v4442 = vpop.f32.mrf.mxu0
      %v4443 = vpop.f32.mrf.mxu0
      %v4444 = vadd.f32 %v3703, %v4443
      %v4445 = vpop.f32.mrf.mxu0
      %4446 = vmatprep.mubr.bf16.mxu0 0
      %4447 = vmatmul.mubr.bf16.gmra.mxu0 %v4137
      %v4448 = vpop.f32.mrf.mxu0
      %v4449 = vadd.f32 %v3703, %v4448
      %v4450 = vpop.f32.mrf.mxu0
      %v4451 = vpop.f32.mrf.mxu0
      %v4452 = vadd.f32 %v3703, %v4451
      %v4453 = vpop.f32.mrf.mxu0
      %4454 = vmatprep.mubr.bf16.mxu0 0
      %4455 = vmatmul.mubr.bf16.gmra.mxu0 %v4140
      %v4456 = vpop.f32.mrf.mxu0
      %v4457 = vadd.f32 %v3703, %v4456
      %v4458 = vpop.f32.mrf.mxu0
      %v4459 = vpop.f32.mrf.mxu0
      %v4460 = vadd.f32 %v3703, %v4459
      %v4461 = vpop.f32.mrf.mxu0
      %4462 = vmatprep.mubr.bf16.mxu0 0
      %4463 = vmatmul.mubr.bf16.gmra.mxu0 %v4143
      %v4464 = vpop.f32.mrf.mxu0
      %v4465 = vadd.f32 %v3703, %v4464
      %v4466 = vpop.f32.mrf.mxu0
      %v4467 = vpop.f32.mrf.mxu0
      %v4468 = vadd.f32 %v3703, %v4467
      %v4469 = vpop.f32.mrf.mxu0
      %4470 = vmatprep.mubr.bf16.mxu0 0
      %4471 = vmatmul.mubr.bf16.gmra.mxu0 %v4146
      %v4472 = vpop.f32.mrf.mxu0
      %v4473 = vadd.f32 %v3703, %v4472
      %v4474 = vpop.f32.mrf.mxu0
      %v4475 = vpop.f32.mrf.mxu0
      %v4476 = vadd.f32 %v3703, %v4475
      %v4477 = vpop.f32.mrf.mxu0
      %4478 = vmatprep.mubr.bf16.mxu0 0
      %4479 = vmatmul.mubr.bf16.gmra.mxu0 %v4149
      %v4480 = vpop.f32.mrf.mxu0
      %v4481 = vadd.f32 %v3703, %v4480
      %v4482 = vpop.f32.mrf.mxu0
      %v4483 = vpop.f32.mrf.mxu0
      %v4484 = vadd.f32 %v3703, %v4483
      %v4485 = vpop.f32.mrf.mxu0
      %4486 = vmatprep.mubr.bf16.mxu0 0
      %4487 = vmatmul.mubr.bf16.gmra.mxu0 %v4152
      %v4488 = vpop.f32.mrf.mxu0
      %v4489 = vadd.f32 %v3703, %v4488
      %v4490 = vpop.f32.mrf.mxu0
      %v4491 = vpop.f32.mrf.mxu0
      %v4492 = vadd.f32 %v3703, %v4491
      %v4493 = vpop.f32.mrf.mxu0
      %4494 = vmatprep.mubr.bf16.mxu0 0
      %4495 = vmatmul.mubr.bf16.gmra.mxu0 %v4155
      %v4496 = vpop.f32.mrf.mxu0
      %v4497 = vadd.f32 %v3703, %v4496
      %v4498 = vpop.f32.mrf.mxu0
      %v4499 = vpop.f32.mrf.mxu0
      %v4500 = vadd.f32 %v3703, %v4499
      %v4501 = vpop.f32.mrf.mxu0
      %4502 = vmatprep.mubr.bf16.mxu0 0
      %4503 = vmatmul.mubr.bf16.gmra.mxu0 %v4158
      %v4504 = vpop.f32.mrf.mxu0
      %v4505 = vadd.f32 %v3703, %v4504
      %v4506 = vpop.f32.mrf.mxu0
      %v4507 = vpop.f32.mrf.mxu0
      %v4508 = vadd.f32 %v3703, %v4507
      %v4509 = vpop.f32.mrf.mxu0
      %4510 = vmatprep.mubr.bf16.mxu0 0
      %4511 = vmatmul.mubr.bf16.gmra.mxu0 %v4161
      %v4512 = vpop.f32.mrf.mxu0
      %v4513 = vadd.f32 %v3703, %v4512
      %v4514 = vpop.f32.mrf.mxu0
      %v4515 = vpop.f32.mrf.mxu0
      %v4516 = vadd.f32 %v3703, %v4515
      %v4517 = vpop.f32.mrf.mxu0
      %4518 = vmatprep.mubr.bf16.mxu0 0
      %4519 = vmatmul.mubr.bf16.gmra.mxu0 %v4164
      %v4520 = vpop.f32.mrf.mxu0
      %v4521 = vadd.f32 %v3703, %v4520
      %v4522 = vpop.f32.mrf.mxu0
      %v4523 = vpop.f32.mrf.mxu0
      %v4524 = vadd.f32 %v3703, %v4523
      %v4525 = vpop.f32.mrf.mxu0
      %4526 = vmatprep.mubr.bf16.mxu0 0
      %4527 = vmatmul.mubr.bf16.gmra.mxu0 %v4167
      %v4528 = vpop.f32.mrf.mxu0
      %v4529 = vadd.f32 %v3703, %v4528
      %v4530 = vpop.f32.mrf.mxu0
      %v4531 = vpop.f32.mrf.mxu0
      %v4532 = vadd.f32 %v3703, %v4531
      %v4533 = vpop.f32.mrf.mxu0
      %4534 = vmatprep.mubr.bf16.mxu0 0
      %4535 = vmatmul.mubr.bf16.gmra.mxu0 %v4170
      %v4536 = vpop.f32.mrf.mxu0
      %v4537 = vadd.f32 %v3703, %v4536
      %v4538 = vpop.f32.mrf.mxu0
      %v4539 = vpop.f32.mrf.mxu0
      %v4540 = vadd.f32 %v3703, %v4539
      %v4541 = vpop.f32.mrf.mxu0
      %4542 = vmatprep.mubr.bf16.mxu0 0
      %4543 = vmatmul.mubr.bf16.gmra.mxu0 %v4173
      %v4544 = vpop.f32.mrf.mxu0
      %v4545 = vadd.f32 %v3703, %v4544
      %v4546 = vpop.f32.mrf.mxu0
      %v4547 = vpop.f32.mrf.mxu0
      %v4548 = vadd.f32 %v3703, %v4547
      %v4549 = vpop.f32.mrf.mxu0
      %4550 = vmatprep.mubr.bf16.mxu0 0
      %4551 = vmatmul.mubr.bf16.gmra.mxu0 %v4176
      %v4552 = vpop.f32.mrf.mxu0
      %v4553 = vadd.f32 %v3703, %v4552
      %v4554 = vpop.f32.mrf.mxu0
      %v4555 = vpop.f32.mrf.mxu0
      %v4556 = vadd.f32 %v3703, %v4555
      %v4557 = vpop.f32.mrf.mxu0
      %4558 = vmatprep.mubr.bf16.mxu0 0
      %4559 = vmatmul.mubr.bf16.gmra.mxu0 %v4179
      %v4560 = vpop.f32.mrf.mxu0
      %v4561 = vadd.f32 %v3703, %v4560
      %v4562 = vpop.f32.mrf.mxu0
      %v4563 = vpop.f32.mrf.mxu0
      %v4564 = vadd.f32 %v3703, %v4563
      %v4565 = vpop.f32.mrf.mxu0
      %4566 = vmatprep.mubr.bf16.mxu0 0
      %4567 = vmatmul.mubr.bf16.gmra.mxu0 %v4182
      %v4568 = vpop.f32.mrf.mxu0
      %v4569 = vadd.f32 %v3703, %v4568
      %v4570 = vpop.f32.mrf.mxu0
      %v4571 = vpop.f32.mrf.mxu0
      %v4572 = vadd.f32 %v3703, %v4571
      %v4573 = vpop.f32.mrf.mxu0
      %4574 = vmatprep.mubr.bf16.mxu0 0
      %4575 = vmatmul.mubr.bf16.gmra.mxu0 %v4185
      %v4576 = vpop.f32.mrf.mxu0
      %v4577 = vadd.f32 %v3703, %v4576
      %v4578 = vpop.f32.mrf.mxu0
      %v4579 = vpop.f32.mrf.mxu0
      %v4580 = vadd.f32 %v3703, %v4579
      %v4581 = vpop.f32.mrf.mxu0
      %4582 = vmatprep.mubr.bf16.mxu0 0
      %4583 = vmatmul.mubr.bf16.gmra.mxu0 %v4188
      %v4584 = vpop.f32.mrf.mxu0
      %v4585 = vadd.f32 %v3703, %v4584
      %v4586 = vpop.f32.mrf.mxu0
      %v4587 = vpop.f32.mrf.mxu0
      %v4588 = vadd.f32 %v3703, %v4587
      %v4589 = vpop.f32.mrf.mxu0
      %4590 = vmatprep.mubr.bf16.mxu0 0
      %4591 = vmatmul.mubr.bf16.gmra.mxu0 %v4191
      %v4592 = vpop.f32.mrf.mxu0
      %v4593 = vadd.f32 %v3703, %v4592
      %v4594 = vpop.f32.mrf.mxu0
      %v4595 = vpop.f32.mrf.mxu0
      %v4596 = vadd.f32 %v3703, %v4595
      %v4597 = vpop.f32.mrf.mxu0
      %4598 = vmatprep.mubr.bf16.mxu0 0
      %4599 = vmatmul.mubr.bf16.gmra.mxu0 %v4194
      %v4600 = vpop.f32.mrf.mxu0
      %v4601 = vadd.f32 %v3703, %v4600
      %v4602 = vpop.f32.mrf.mxu0
      %v4603 = vpop.f32.mrf.mxu0
      %v4604 = vadd.f32 %v3703, %v4603
      %v4605 = vpop.f32.mrf.mxu0
      %4606 = vmatprep.mubr.bf16.mxu0 0
      %4607 = vmatmul.mubr.bf16.gmra.mxu0 %v4197
      %v4608 = vpop.f32.mrf.mxu0
      %v4609 = vadd.f32 %v3703, %v4608
      %v4610 = vpop.f32.mrf.mxu0
      %v4611 = vpop.f32.mrf.mxu0
      %v4612 = vadd.f32 %v3703, %v4611
      %v4613 = vpop.f32.mrf.mxu0
      %4614 = vmatprep.mubr.bf16.mxu0 0
      %4615 = vmatmul.mubr.bf16.gmra.mxu0 %v4200
      %v4616 = vpop.f32.mrf.mxu0
      %v4617 = vadd.f32 %v3703, %v4616
      %v4618 = vpop.f32.mrf.mxu0
      %v4619 = vpop.f32.mrf.mxu0
      %v4620 = vadd.f32 %v3703, %v4619
      %v4621 = vpop.f32.mrf.mxu0
      %4622 = vmatprep.mubr.bf16.mxu0 0
      %4623 = vmatmul.mubr.bf16.gmra.mxu0 %v4203
      %v4624 = vpop.f32.mrf.mxu0
      %v4625 = vadd.f32 %v3703, %v4624
      %v4626 = vpop.f32.mrf.mxu0
      %v4627 = vpop.f32.mrf.mxu0
      %v4628 = vadd.f32 %v3703, %v4627
      %v4629 = vpop.f32.mrf.mxu0
      %4630 = vmatprep.mubr.bf16.mxu0 0
      %4631 = vmatmul.mubr.bf16.gmra.mxu0 %v4206
      %v4632 = vpop.f32.mrf.mxu0
      %v4633 = vadd.f32 %v3703, %v4632
      %v4634 = vpop.f32.mrf.mxu0
      %v4635 = vpop.f32.mrf.mxu0
      %v4636 = vadd.f32 %v3703, %v4635
      %v4637 = vpop.f32.mrf.mxu0
      %4638 = vmatprep.mubr.bf16.mxu0 0
      %4639 = vmatmul.mubr.bf16.gmra.mxu0 %v4209
      %v4640 = vpop.f32.mrf.mxu0
      %v4641 = vadd.f32 %v3703, %v4640
      %v4642 = vpop.f32.mrf.mxu0
      %v4643 = vpop.f32.mrf.mxu0
      %v4644 = vadd.f32 %v3703, %v4643
      %v4645 = vpop.f32.mrf.mxu0
      %4646 = vmatprep.mubr.bf16.mxu0 0
      %4647 = vmatmul.mubr.bf16.gmra.mxu0 %v4212
      %v4648 = vpop.f32.mrf.mxu0
      %v4649 = vadd.f32 %v3703, %v4648
      %v4650 = vpop.f32.mrf.mxu0
      %v4651 = vpop.f32.mrf.mxu0
      %v4652 = vadd.f32 %v3703, %v4651
      %v4653 = vpop.f32.mrf.mxu0
      %4654 = vmatprep.mubr.bf16.mxu0 0
      %4655 = vmatmul.mubr.bf16.gmra.mxu0 %v4215
      %v4656 = vpop.f32.mrf.mxu0
      %v4657 = vadd.f32 %v3703, %v4656
      %v4658 = vpop.f32.mrf.mxu0
      %v4659 = vpop.f32.mrf.mxu0
      %v4660 = vadd.f32 %v3703, %v4659
      %v4661 = vpop.f32.mrf.mxu0
      %4662 = vmatprep.mubr.bf16.mxu0 0
      %4663 = vmatmul.mubr.bf16.gmra.mxu0 %v4218
      %v4664 = vpop.f32.mrf.mxu0
      %v4665 = vadd.f32 %v3703, %v4664
      %v4666 = vpop.f32.mrf.mxu0
      %v4667 = vpop.f32.mrf.mxu0
      %v4668 = vadd.f32 %v3703, %v4667
      %v4669 = vpop.f32.mrf.mxu0
      %4670 = vmatprep.mubr.bf16.mxu0 0
      %4671 = vmatmul.mubr.bf16.gmra.mxu0 %v4221
      %v4672 = vpop.f32.mrf.mxu0
      %v4673 = vadd.f32 %v3703, %v4672
      %v4674 = vpop.f32.mrf.mxu0
      %v4675 = vpop.f32.mrf.mxu0
      %v4676 = vadd.f32 %v3703, %v4675
      %v4677 = vpop.f32.mrf.mxu0
      %4678 = vmatprep.mubr.bf16.mxu0 0
      %4679 = vmatmul.mubr.bf16.gmra.mxu0 %v4224
      %v4680 = vpop.f32.mrf.mxu0
      %v4681 = vadd.f32 %v3703, %v4680
      %v4682 = vpop.f32.mrf.mxu0
      %v4683 = vpop.f32.mrf.mxu0
      %v4684 = vadd.f32 %v3703, %v4683
      %v4685 = vpop.f32.mrf.mxu0
      %4686 = vmatprep.mubr.bf16.mxu0 0
      %4687 = vmatmul.mubr.bf16.gmra.mxu0 %v4227
      %v4688 = vpop.f32.mrf.mxu0
      %v4689 = vadd.f32 %v3703, %v4688
      %v4690 = vpop.f32.mrf.mxu0
      %v4691 = vpop.f32.mrf.mxu0
      %v4692 = vadd.f32 %v3703, %v4691
      %v4693 = vpop.f32.mrf.mxu0
      %4694 = vmatprep.mubr.bf16.mxu0 0
      %4695 = vmatmul.mubr.bf16.gmra.mxu0 %v4230
      %v4696 = vpop.f32.mrf.mxu0
      %v4697 = vadd.f32 %v3703, %v4696
      %v4698 = vpop.f32.mrf.mxu0
      %v4699 = vpop.f32.mrf.mxu0
      %v4700 = vadd.f32 %v3703, %v4699
      %v4701 = vpop.f32.mrf.mxu0
      %4702 = vmatprep.mubr.bf16.mxu0 0
      %4703 = vmatmul.mubr.bf16.gmra.mxu0 %v4233
      %v4704 = vpop.f32.mrf.mxu0
      %v4705 = vadd.f32 %v3703, %v4704
      %v4706 = vpop.f32.mrf.mxu0
      %v4707 = vpop.f32.mrf.mxu0
      %v4708 = vadd.f32 %v3703, %v4707
      %v4709 = vpop.f32.mrf.mxu0
      %4710 = vmatprep.mubr.bf16.mxu0 0
      %4711 = vmatmul.mubr.bf16.gmra.mxu0 %v4236
      %v4712 = vpop.f32.mrf.mxu0
      %v4713 = vadd.f32 %v3703, %v4712
      %v4714 = vpop.f32.mrf.mxu0
      %v4715 = vpop.f32.mrf.mxu0
      %v4716 = vadd.f32 %v3703, %v4715
      %v4717 = vpop.f32.mrf.mxu0
      %4718 = vmatprep.mubr.bf16.mxu0 0
      %4719 = vmatmul.mubr.bf16.gmra.mxu0 %v4239
      %v4720 = vpop.f32.mrf.mxu0
      %v4721 = vadd.f32 %v3703, %v4720
      %v4722 = vpop.f32.mrf.mxu0
      %v4723 = vpop.f32.mrf.mxu0
      %v4724 = vadd.f32 %v3703, %v4723
      %v4725 = vpop.f32.mrf.mxu0
      %4726 = vmatprep.mubr.bf16.mxu0 0
      %4727 = vmatmul.mubr.bf16.gmra.mxu0 %v4242
      %v4728 = vpop.f32.mrf.mxu0
      %v4729 = vadd.f32 %v3703, %v4728
      %v4730 = vpop.f32.mrf.mxu0
      %v4731 = vpop.f32.mrf.mxu0
      %v4732 = vadd.f32 %v3703, %v4731
      %v4733 = vpop.f32.mrf.mxu0
      %4734 = vmatprep.mubr.bf16.mxu0 0
      %4735 = vmatmul.mubr.bf16.gmra.mxu0 %v4245
      %v4736 = vpop.f32.mrf.mxu0
      %v4737 = vadd.f32 %v3703, %v4736
      %v4738 = vpop.f32.mrf.mxu0
      %v4739 = vpop.f32.mrf.mxu0
      %v4740 = vadd.f32 %v3703, %v4739
      %v4741 = vpop.f32.mrf.mxu0
      %4742 = vmatprep.mubr.bf16.mxu0 0
      %4743 = vmatmul.mubr.bf16.gmra.mxu0 %v4248
      %v4744 = vpop.f32.mrf.mxu0
      %v4745 = vadd.f32 %v3703, %v4744
      %v4746 = vpop.f32.mrf.mxu0
      %v4747 = vpop.f32.mrf.mxu0
      %v4748 = vadd.f32 %v3703, %v4747
      %v4749 = vpop.f32.mrf.mxu0
      %4750 = vmatprep.mubr.bf16.mxu0 0
      %4751 = vmatmul.mubr.bf16.gmra.mxu0 %v4251
      %v4752 = vpop.f32.mrf.mxu0
      %v4753 = vadd.f32 %v3703, %v4752
      %v4754 = vpop.f32.mrf.mxu0
      %v4755 = vpop.f32.mrf.mxu0
      %v4756 = vadd.f32 %v3703, %v4755
      %v4757 = vpop.f32.mrf.mxu0
      %4758 = vmatprep.mubr.bf16.mxu0 0
      %4759 = vmatmul.mubr.bf16.gmra.mxu0 %v4254
      %v4760 = vpop.f32.mrf.mxu0
      %v4761 = vadd.f32 %v3703, %v4760
      %v4762 = vpop.f32.mrf.mxu0
      %v4763 = vpop.f32.mrf.mxu0
      %v4764 = vadd.f32 %v3703, %v4763
      %v4765 = vpop.f32.mrf.mxu0
      %4766 = vmatprep.mubr.bf16.mxu0 0
      %4767 = vmatmul.mubr.bf16.gmra.mxu0 %v4257
      %v4768 = vpop.f32.mrf.mxu0
      %v4769 = vadd.f32 %v3703, %v4768
      %v4770 = vpop.f32.mrf.mxu0
      %v4771 = vpop.f32.mrf.mxu0
      %v4772 = vadd.f32 %v3703, %v4771
      %v4773 = vpop.f32.mrf.mxu0
      %4774 = vmatprep.mubr.bf16.mxu0 0
      %4775 = vmatmul.mubr.bf16.gmra.mxu0 %v4260
      %v4776 = vpop.f32.mrf.mxu0
      %v4777 = vadd.f32 %v3703, %v4776
      %v4778 = vpop.f32.mrf.mxu0
      %v4779 = vpop.f32.mrf.mxu0
      %v4780 = vadd.f32 %v3703, %v4779
      %v4781 = vpop.f32.mrf.mxu0
      %4782 = vmatprep.mubr.bf16.mxu0 0
      %4783 = vmatmul.mubr.bf16.gmra.mxu0 %v4263
      %v4784 = vpop.f32.mrf.mxu0
      %v4785 = vadd.f32 %v3703, %v4784
      %v4786 = vpop.f32.mrf.mxu0
      %v4787 = vpop.f32.mrf.mxu0
      %v4788 = vadd.f32 %v3703, %v4787
      %v4789 = vpop.f32.mrf.mxu0
      %4790 = vmatprep.mubr.bf16.mxu0 0
      %4791 = vmatmul.mubr.bf16.gmra.mxu0 %v4266
      %v4792 = vpop.f32.mrf.mxu0
      %v4793 = vadd.f32 %v3703, %v4792
      %v4794 = vpop.f32.mrf.mxu0
      %v4795 = vpop.f32.mrf.mxu0
      %v4796 = vadd.f32 %v3703, %v4795
      %v4797 = vpop.f32.mrf.mxu0
      %4798 = vmatprep.mubr.bf16.mxu0 0
      %4799 = vmatmul.mubr.bf16.gmra.mxu0 %v4269
      %v4800 = vpop.f32.mrf.mxu0
      %v4801 = vadd.f32 %v3703, %v4800
      %v4802 = vpop.f32.mrf.mxu0
      %v4803 = vpop.f32.mrf.mxu0
      %v4804 = vadd.f32 %v3703, %v4803
      %v4805 = vpop.f32.mrf.mxu0
      %4806 = vmatprep.mubr.bf16.mxu0 0
      %4807 = vmatmul.mubr.bf16.gmra.mxu0 %v4272
      %v4808 = vpop.f32.mrf.mxu0
      %v4809 = vadd.f32 %v3703, %v4808
      %v4810 = vpop.f32.mrf.mxu0
      %v4811 = vpop.f32.mrf.mxu0
      %v4812 = vadd.f32 %v3703, %v4811
      %v4813 = vpop.f32.mrf.mxu0
      %4814 = vmatprep.mubr.bf16.mxu0 0
      %4815 = vmatmul.mubr.bf16.gmra.mxu0 %v4275
      %v4816 = vpop.f32.mrf.mxu0
      %v4817 = vadd.f32 %v3703, %v4816
      %v4818 = vpop.f32.mrf.mxu0
      %v4819 = vpop.f32.mrf.mxu0
      %v4820 = vadd.f32 %v3703, %v4819
      %v4821 = vpop.f32.mrf.mxu0
      %4822 = vmatprep.mubr.bf16.mxu0 0
      %4823 = vmatmul.mubr.bf16.gmra.mxu0 %v4278
      %v4824 = vpop.f32.mrf.mxu0
      %v4825 = vadd.f32 %v3703, %v4824
      %v4826 = vpop.f32.mrf.mxu0
      %v4827 = vpop.f32.mrf.mxu0
      %v4828 = vadd.f32 %v3703, %v4827
      %v4829 = vpop.f32.mrf.mxu0
      %4830 = vmatprep.mubr.bf16.mxu0 0
      %4831 = vmatmul.mubr.bf16.gmra.mxu0 %v4281
      %v4832 = vpop.f32.mrf.mxu0
      %v4833 = vadd.f32 %v3703, %v4832
      %v4834 = vpop.f32.mrf.mxu0
      %v4835 = vpop.f32.mrf.mxu0
      %v4836 = vadd.f32 %v3703, %v4835
      %v4837 = vpop.f32.mrf.mxu0
      %4838 = vmatprep.mubr.bf16.mxu0 0
      %4839 = vmatmul.mubr.bf16.gmra.mxu0 %v4284
      %v4840 = vpop.f32.mrf.mxu0
      %v4841 = vadd.f32 %v3703, %v4840
      %v4842 = vpop.f32.mrf.mxu0
      %v4843 = vpop.f32.mrf.mxu0
      %v4844 = vadd.f32 %v3703, %v4843
      %v4845 = vpop.f32.mrf.mxu0
      %4846 = vmatprep.mubr.bf16.mxu0 0
      %4847 = vmatmul.mubr.bf16.gmra.mxu0 %v4287
      %v4848 = vpop.f32.mrf.mxu0
      %v4849 = vadd.f32 %v3703, %v4848
      %v4850 = vpop.f32.mrf.mxu0
      %v4851 = vpop.f32.mrf.mxu0
      %v4852 = vadd.f32 %v3703, %v4851
      %v4853 = vpop.f32.mrf.mxu0
      %4854 = vmatprep.mubr.bf16.mxu0 0
      %4855 = vmatmul.mubr.bf16.gmra.mxu0 %v4290
      %v4856 = vpop.f32.mrf.mxu0
      %v4857 = vadd.f32 %v3703, %v4856
      %v4858 = vpop.f32.mrf.mxu0
      %v4859 = vpop.f32.mrf.mxu0
      %v4860 = vadd.f32 %v3703, %v4859
      %v4861 = vpop.f32.mrf.mxu0
      %4862 = vmatprep.mubr.bf16.mxu0 0
      %4863 = vmatmul.mubr.bf16.gmra.mxu0 %v4293
      %v4864 = vpop.f32.mrf.mxu0
      %v4865 = vadd.f32 %v3703, %v4864
      %v4866 = vpop.f32.mrf.mxu0
      %v4867 = vpop.f32.mrf.mxu0
      %v4868 = vadd.f32 %v3703, %v4867
      %v4869 = vpop.f32.mrf.mxu0
      %4870 = vmatprep.mubr.bf16.mxu0 0
      %4871 = vmatmul.mubr.bf16.gmra.mxu0 %v4296
      %v4872 = vpop.f32.mrf.mxu0
      %v4873 = vadd.f32 %v3703, %v4872
      %v4874 = vpop.f32.mrf.mxu0
      %v4875 = vpop.f32.mrf.mxu0
      %v4876 = vadd.f32 %v3703, %v4875
      %v4877 = vpop.f32.mrf.mxu0
      %4878 = vmatprep.mubr.bf16.mxu0 0
      %4879 = vmatmul.mubr.bf16.gmra.mxu0 %v4299
      %v4880 = vpop.f32.mrf.mxu0
      %v4881 = vadd.f32 %v3703, %v4880
      %v4882 = vpop.f32.mrf.mxu0
      %v4883 = vpop.f32.mrf.mxu0
      %v4884 = vadd.f32 %v3703, %v4883
      %v4885 = vpop.f32.mrf.mxu0
      %4886 = vmatprep.mubr.bf16.mxu0 0
      %4887 = vmatmul.mubr.bf16.gmra.mxu0 %v4302
      %v4888 = vpop.f32.mrf.mxu0
      %v4889 = vadd.f32 %v3703, %v4888
      %v4890 = vpop.f32.mrf.mxu0
      %v4891 = vpop.f32.mrf.mxu0
      %v4892 = vadd.f32 %v3703, %v4891
      %v4893 = vpop.f32.mrf.mxu0
      %4894 = vmatprep.mubr.bf16.mxu0 0
      %4895 = vmatmul.mubr.bf16.gmra.mxu0 %v4305
      %v4896 = vpop.f32.mrf.mxu0
      %v4897 = vadd.f32 %v3703, %v4896
      %v4898 = vpop.f32.mrf.mxu0
      %v4899 = vpop.f32.mrf.mxu0
      %v4900 = vadd.f32 %v3703, %v4899
      %v4901 = vpop.f32.mrf.mxu0
      %4902 = vmatprep.mubr.bf16.mxu0 0
      %4903 = vmatmul.mubr.bf16.gmra.mxu0 %v4308
      %v4904 = vpop.f32.mrf.mxu0
      %v4905 = vadd.f32 %v3703, %v4904
      %v4906 = vpop.f32.mrf.mxu0
      %v4907 = vpop.f32.mrf.mxu0
      %v4908 = vadd.f32 %v3703, %v4907
      %v4909 = vpop.f32.mrf.mxu0
      %4910 = vmatprep.mubr.bf16.mxu0 0
      %4911 = vmatmul.mubr.bf16.gmra.mxu0 %v4311
      %v4912 = vpop.f32.mrf.mxu0
      %v4913 = vadd.f32 %v3703, %v4912
      %v4914 = vpop.f32.mrf.mxu0
      %v4915 = vpop.f32.mrf.mxu0
      %v4916 = vadd.f32 %v3703, %v4915
      %v4917 = vpop.f32.mrf.mxu0
      %4918 = vmatprep.mubr.bf16.mxu0 0
      %4919 = vmatmul.mubr.bf16.gmra.mxu0 %v4314
      %v4920 = vpop.f32.mrf.mxu0
      %v4921 = vadd.f32 %v3703, %v4920
      %v4922 = vpop.f32.mrf.mxu0
      %v4923 = vpop.f32.mrf.mxu0
      %v4924 = vadd.f32 %v3703, %v4923
      %v4925 = vpop.f32.mrf.mxu0
      %4926 = vmatprep.mubr.bf16.mxu0 0
      %4927 = vmatmul.mubr.bf16.gmra.mxu0 %v4317
      %v4928 = vpop.f32.mrf.mxu0
      %v4929 = vadd.f32 %v3703, %v4928
      %v4930 = vpop.f32.mrf.mxu0
      %v4931 = vpop.f32.mrf.mxu0
      %v4932 = vadd.f32 %v3703, %v4931
      %v4933 = vpop.f32.mrf.mxu0
      %4934 = vmatprep.mubr.bf16.mxu0 0
      %4935 = vmatmul.mubr.bf16.gmra.mxu0 %v4320
      %v4936 = vpop.f32.mrf.mxu0
      %v4937 = vadd.f32 %v3703, %v4936
      %v4938 = vpop.f32.mrf.mxu0
      %v4939 = vpop.f32.mrf.mxu0
      %v4940 = vadd.f32 %v3703, %v4939
      %v4941 = vpop.f32.mrf.mxu0
      %4942 = vmatprep.mubr.bf16.mxu0 0
      %4943 = vmatmul.mubr.bf16.gmra.mxu0 %v4323
      %v4944 = vpop.f32.mrf.mxu0
      %v4945 = vadd.f32 %v3703, %v4944
      %v4946 = vpop.f32.mrf.mxu0
      %v4947 = vpop.f32.mrf.mxu0
      %v4948 = vadd.f32 %v3703, %v4947
      %v4949 = vpop.f32.mrf.mxu0
      %4950 = vmatprep.mubr.bf16.mxu0 0
      %4951 = vmatmul.mubr.bf16.gmra.mxu0 %v4326
      %v4952 = vpop.f32.mrf.mxu0
      %v4953 = vadd.f32 %v3703, %v4952
      %v4954 = vpop.f32.mrf.mxu0
      %v4955 = vpop.f32.mrf.mxu0
      %v4956 = vpop.f32.mrf.mxu0
      %4957 = vdwg.mxu0
      %v4958 = vmax.f32 %v4369, 0.0
      %v4959 = vmax.f32 %v4372, 0.0
      %v4960 = vmax.f32 %v4377, 0.0
      %v4961 = vmax.f32 %v4380, 0.0
      %v4962 = vmax.f32 %v4385, 0.0
      %v4963 = vmax.f32 %v4388, 0.0
      %v4964 = vmax.f32 %v4393, 0.0
      %v4965 = vmax.f32 %v4396, 0.0
      %v4966 = vmax.f32 %v4401, 0.0
      %v4967 = vmax.f32 %v4404, 0.0
      %v4968 = vmax.f32 %v4409, 0.0
      %v4969 = vmax.f32 %v4412, 0.0
      %v4970 = vmax.f32 %v4417, 0.0
      %v4971 = vmax.f32 %v4420, 0.0
      %v4972 = vmax.f32 %v4425, 0.0
      %v4973 = vmax.f32 %v4428, 0.0
      %v4974 = vmax.f32 %v4433, 0.0
      %v4975 = vmax.f32 %v4436, 0.0
      %v4976 = vmax.f32 %v4441, 0.0
      %v4977 = vmax.f32 %v4444, 0.0
      %v4978 = vmax.f32 %v4449, 0.0
      %v4979 = vmax.f32 %v4452, 0.0
      %v4980 = vmax.f32 %v4457, 0.0
      %v4981 = vmax.f32 %v4460, 0.0
      %v4982 = vmax.f32 %v4465, 0.0
      %v4983 = vmax.f32 %v4468, 0.0
      %v4984 = vmax.f32 %v4473, 0.0
      %v4985 = vmax.f32 %v4476, 0.0
      %v4986 = vmax.f32 %v4481, 0.0
      %v4987 = vmax.f32 %v4484, 0.0
      %v4988 = vmax.f32 %v4489, 0.0
      %v4989 = vmax.f32 %v4492, 0.0
      %v4990 = vmax.f32 %v4497, 0.0
      %v4991 = vmax.f32 %v4500, 0.0
      %v4992 = vmax.f32 %v4505, 0.0
      %v4993 = vmax.f32 %v4508, 0.0
      %v4994 = vmax.f32 %v4513, 0.0
      %v4995 = vmax.f32 %v4516, 0.0
      %v4996 = vmax.f32 %v4521, 0.0
      %v4997 = vmax.f32 %v4524, 0.0
      %v4998 = vmax.f32 %v4529, 0.0
      %v4999 = vmax.f32 %v4532, 0.0
      %v5000 = vmax.f32 %v4537, 0.0
      %v5001 = vmax.f32 %v4540, 0.0
      %v5002 = vmax.f32 %v4545, 0.0
      %v5003 = vmax.f32 %v4548, 0.0
      %v5004 = vmax.f32 %v4553, 0.0
      %v5005 = vmax.f32 %v4556, 0.0
      %v5006 = vmax.f32 %v4561, 0.0
      %v5007 = vmax.f32 %v4564, 0.0
      %v5008 = vmax.f32 %v4569, 0.0
      %v5009 = vmax.f32 %v4572, 0.0
      %v5010 = vmax.f32 %v4577, 0.0
      %v5011 = vmax.f32 %v4580, 0.0
      %v5012 = vmax.f32 %v4585, 0.0
      %v5013 = vmax.f32 %v4588, 0.0
      %v5014 = vmax.f32 %v4593, 0.0
      %v5015 = vmax.f32 %v4596, 0.0
      %v5016 = vmax.f32 %v4601, 0.0
      %v5017 = vmax.f32 %v4604, 0.0
      %v5018 = vmax.f32 %v4609, 0.0
      %v5019 = vmax.f32 %v4612, 0.0
      %v5020 = vmax.f32 %v4617, 0.0
      %v5021 = vmax.f32 %v4620, 0.0
      %v5022 = vmax.f32 %v4625, 0.0
      %v5023 = vmax.f32 %v4628, 0.0
      %v5024 = vmax.f32 %v4633, 0.0
      %v5025 = vmax.f32 %v4636, 0.0
      %v5026 = vmax.f32 %v4641, 0.0
      %v5027 = vmax.f32 %v4644, 0.0
      %v5028 = vmax.f32 %v4649, 0.0
      %v5029 = vmax.f32 %v4652, 0.0
      %v5030 = vmax.f32 %v4657, 0.0
      %v5031 = vmax.f32 %v4660, 0.0
      %v5032 = vmax.f32 %v4665, 0.0
      %v5033 = vmax.f32 %v4668, 0.0
      %v5034 = vmax.f32 %v4673, 0.0
      %v5035 = vmax.f32 %v4676, 0.0
      %v5036 = vmax.f32 %v4681, 0.0
      %v5037 = vmax.f32 %v4684, 0.0
      %v5038 = vmax.f32 %v4689, 0.0
      %v5039 = vmax.f32 %v4692, 0.0
      %v5040 = vmax.f32 %v4697, 0.0
      %v5041 = vmax.f32 %v4700, 0.0
      %v5042 = vmax.f32 %v4705, 0.0
      %v5043 = vmax.f32 %v4708, 0.0
      %v5044 = vmax.f32 %v4713, 0.0
      %v5045 = vmax.f32 %v4716, 0.0
      %v5046 = vmax.f32 %v4721, 0.0
      %v5047 = vmax.f32 %v4724, 0.0
      %v5048 = vmax.f32 %v4729, 0.0
      %v5049 = vmax.f32 %v4732, 0.0
      %v5050 = vmax.f32 %v4737, 0.0
      %v5051 = vmax.f32 %v4740, 0.0
      %v5052 = vmax.f32 %v4745, 0.0
      %v5053 = vmax.f32 %v4748, 0.0
      %v5054 = vmax.f32 %v4753, 0.0
      %v5055 = vmax.f32 %v4756, 0.0
      %v5056 = vmax.f32 %v4761, 0.0
      %v5057 = vmax.f32 %v4764, 0.0
      %v5058 = vmax.f32 %v4769, 0.0
      %v5059 = vmax.f32 %v4772, 0.0
      %v5060 = vmax.f32 %v4777, 0.0
      %v5061 = vmax.f32 %v4780, 0.0
      %v5062 = vmax.f32 %v4785, 0.0
      %v5063 = vmax.f32 %v4788, 0.0
      %v5064 = vmax.f32 %v4793, 0.0
      %v5065 = vmax.f32 %v4796, 0.0
      %v5066 = vmax.f32 %v4801, 0.0
      %v5067 = vmax.f32 %v4804, 0.0
      %v5068 = vmax.f32 %v4809, 0.0
      %v5069 = vmax.f32 %v4812, 0.0
      %v5070 = vmax.f32 %v4817, 0.0
      %v5071 = vmax.f32 %v4820, 0.0
      %v5072 = vmax.f32 %v4825, 0.0
      %v5073 = vmax.f32 %v4828, 0.0
      %v5074 = vmax.f32 %v4833, 0.0
      %v5075 = vmax.f32 %v4836, 0.0
      %v5076 = vmax.f32 %v4841, 0.0
      %v5077 = vmax.f32 %v4844, 0.0
      %v5078 = vmax.f32 %v4849, 0.0
      %v5079 = vmax.f32 %v4852, 0.0
      %v5080 = vmax.f32 %v4857, 0.0
      %v5081 = vmax.f32 %v4860, 0.0
      %v5082 = vmax.f32 %v4865, 0.0
      %v5083 = vmax.f32 %v4868, 0.0
      %v5084 = vmax.f32 %v4873, 0.0
      %v5085 = vmax.f32 %v4876, 0.0
      %v5086 = vmax.f32 %v4881, 0.0
      %v5087 = vmax.f32 %v4884, 0.0
      %v5088 = vmax.f32 %v4889, 0.0
      %v5089 = vmax.f32 %v4892, 0.0
      %v5090 = vmax.f32 %v4897, 0.0
      %v5091 = vmax.f32 %v4900, 0.0
      %v5092 = vmax.f32 %v4905, 0.0
      %v5093 = vmax.f32 %v4908, 0.0
      %v5094 = vmax.f32 %v4913, 0.0
      %v5095 = vmax.f32 %v4916, 0.0
      %v5096 = vmax.f32 %v4921, 0.0
      %v5097 = vmax.f32 %v4924, 0.0
      %v5098 = vmax.f32 %v4929, 0.0
      %v5099 = vmax.f32 %v4932, 0.0
      %v5100 = vmax.f32 %v4937, 0.0
      %v5101 = vmax.f32 %v4940, 0.0
      %v5102 = vmax.f32 %v4945, 0.0
      %v5103 = vmax.f32 %v4948, 0.0
      %v5104 = vmax.f32 %v4953, 0.0
      %vm5105 = vcmask 523264
      %v5106 = vsel %vm5105, %v4958, 0.0
      %v5107 = vsel %vm5105, %v4959, 0.0
      %v5108 = vadd.f32 %v5106, %v5107
      %v5109 = vsel %vm5105, %v4960, 0.0
      %v5110 = vadd.f32 %v5108, %v5109
      %v5111 = vsel %vm5105, %v4961, 0.0
      %v5112 = vadd.f32 %v5110, %v5111
      %v5113 = vsel %vm5105, %v4962, 0.0
      %v5114 = vadd.f32 %v5112, %v5113
      %v5115 = vsel %vm5105, %v4963, 0.0
      %v5116 = vadd.f32 %v5114, %v5115
      %v5117 = vsel %vm5105, %v4964, 0.0
      %v5118 = vadd.f32 %v5116, %v5117
      %v5119 = vsel %vm5105, %v4965, 0.0
      %v5120 = vadd.f32 %v5118, %v5119
      %v5121 = vsel %vm5105, %v4966, 0.0
      %v5122 = vadd.f32 %v5120, %v5121
      %v5123 = vsel %vm5105, %v4967, 0.0
      %v5124 = vadd.f32 %v5122, %v5123
      %v5125 = vsel %vm5105, %v4968, 0.0
      %v5126 = vadd.f32 %v5124, %v5125
      %v5127 = vsel %vm5105, %v4969, 0.0
      %v5128 = vadd.f32 %v5126, %v5127
      %v5129 = vsel %vm5105, %v4970, 0.0
      %v5130 = vadd.f32 %v5128, %v5129
      %v5131 = vsel %vm5105, %v4971, 0.0
      %v5132 = vadd.f32 %v5130, %v5131
      %v5133 = vsel %vm5105, %v4972, 0.0
      %v5134 = vadd.f32 %v5132, %v5133
      %v5135 = vsel %vm5105, %v4973, 0.0
      %v5136 = vadd.f32 %v5134, %v5135
      %v5137 = vsel %vm5105, %v4974, 0.0
      %v5138 = vadd.f32 %v5136, %v5137
      %v5139 = vsel %vm5105, %v4975, 0.0
      %v5140 = vadd.f32 %v5138, %v5139
      %v5141 = vsel %vm5105, %v4976, 0.0
      %v5142 = vadd.f32 %v5140, %v5141
      %v5143 = vsel %vm5105, %v4977, 0.0
      %v5144 = vadd.f32 %v5142, %v5143
      %v5145 = vsel %vm5105, %v4978, 0.0
      %v5146 = vadd.f32 %v5144, %v5145
      %v5147 = vsel %vm5105, %v4979, 0.0
      %v5148 = vadd.f32 %v5146, %v5147
      %v5149 = vsel %vm5105, %v4980, 0.0
      %v5150 = vadd.f32 %v5148, %v5149
      %v5151 = vsel %vm5105, %v4981, 0.0
      %v5152 = vadd.f32 %v5150, %v5151
      %v5153 = vsel %vm5105, %v4982, 0.0
      %v5154 = vadd.f32 %v5152, %v5153
      %v5155 = vsel %vm5105, %v4983, 0.0
      %v5156 = vadd.f32 %v5154, %v5155
      %v5157 = vsel %vm5105, %v4984, 0.0
      %v5158 = vadd.f32 %v5156, %v5157
      %v5159 = vsel %vm5105, %v4985, 0.0
      %v5160 = vadd.f32 %v5158, %v5159
      %v5161 = vsel %vm5105, %v4986, 0.0
      %v5162 = vadd.f32 %v5160, %v5161
      %v5163 = vsel %vm5105, %v4987, 0.0
      %v5164 = vadd.f32 %v5162, %v5163
      %v5165 = vsel %vm5105, %v4988, 0.0
      %v5166 = vadd.f32 %v5164, %v5165
      %v5167 = vsel %vm5105, %v4989, 0.0
      %v5168 = vadd.f32 %v5166, %v5167
      %v5169 = vsel %vm5105, %v4990, 0.0
      %v5170 = vadd.f32 %v5168, %v5169
      %v5171 = vsel %vm5105, %v4991, 0.0
      %v5172 = vadd.f32 %v5170, %v5171
      %v5173 = vsel %vm5105, %v4992, 0.0
      %v5174 = vadd.f32 %v5172, %v5173
      %v5175 = vsel %vm5105, %v4993, 0.0
      %v5176 = vadd.f32 %v5174, %v5175
      %v5177 = vsel %vm5105, %v4994, 0.0
      %v5178 = vadd.f32 %v5176, %v5177
      %v5179 = vsel %vm5105, %v4995, 0.0
      %v5180 = vadd.f32 %v5178, %v5179
      %v5181 = vsel %vm5105, %v4996, 0.0
      %v5182 = vadd.f32 %v5180, %v5181
      %v5183 = vsel %vm5105, %v4997, 0.0
      %v5184 = vadd.f32 %v5182, %v5183
      %v5185 = vsel %vm5105, %v4998, 0.0
      %v5186 = vadd.f32 %v5184, %v5185
      %v5187 = vsel %vm5105, %v4999, 0.0
      %v5188 = vadd.f32 %v5186, %v5187
      %v5189 = vsel %vm5105, %v5000, 0.0
      %v5190 = vadd.f32 %v5188, %v5189
      %v5191 = vsel %vm5105, %v5001, 0.0
      %v5192 = vadd.f32 %v5190, %v5191
      %v5193 = vsel %vm5105, %v5002, 0.0
      %v5194 = vadd.f32 %v5192, %v5193
      %v5195 = vsel %vm5105, %v5003, 0.0
      %v5196 = vadd.f32 %v5194, %v5195
      %v5197 = vsel %vm5105, %v5004, 0.0
      %v5198 = vadd.f32 %v5196, %v5197
      %v5199 = vsel %vm5105, %v5005, 0.0
      %v5200 = vadd.f32 %v5198, %v5199
      %v5201 = vsel %vm5105, %v5006, 0.0
      %v5202 = vadd.f32 %v5200, %v5201
      %v5203 = vsel %vm5105, %v5007, 0.0
      %v5204 = vadd.f32 %v5202, %v5203
      %v5205 = vsel %vm5105, %v5008, 0.0
      %v5206 = vadd.f32 %v5204, %v5205
      %v5207 = vsel %vm5105, %v5009, 0.0
      %v5208 = vadd.f32 %v5206, %v5207
      %v5209 = vsel %vm5105, %v5010, 0.0
      %v5210 = vadd.f32 %v5208, %v5209
      %v5211 = vsel %vm5105, %v5011, 0.0
      %v5212 = vadd.f32 %v5210, %v5211
      %v5213 = vsel %vm5105, %v5012, 0.0
      %v5214 = vadd.f32 %v5212, %v5213
      %v5215 = vsel %vm5105, %v5013, 0.0
      %v5216 = vadd.f32 %v5214, %v5215
      %v5217 = vsel %vm5105, %v5014, 0.0
      %v5218 = vadd.f32 %v5216, %v5217
      %v5219 = vsel %vm5105, %v5015, 0.0
      %v5220 = vadd.f32 %v5218, %v5219
      %v5221 = vsel %vm5105, %v5016, 0.0
      %v5222 = vadd.f32 %v5220, %v5221
      %v5223 = vsel %vm5105, %v5017, 0.0
      %v5224 = vadd.f32 %v5222, %v5223
      %v5225 = vsel %vm5105, %v5018, 0.0
      %v5226 = vadd.f32 %v5224, %v5225
      %v5227 = vsel %vm5105, %v5019, 0.0
      %v5228 = vadd.f32 %v5226, %v5227
      %v5229 = vsel %vm5105, %v5020, 0.0
      %v5230 = vadd.f32 %v5228, %v5229
      %v5231 = vsel %vm5105, %v5021, 0.0
      %v5232 = vadd.f32 %v5230, %v5231
      %v5233 = vsel %vm5105, %v5022, 0.0
      %v5234 = vadd.f32 %v5232, %v5233
      %v5235 = vsel %vm5105, %v5023, 0.0
      %v5236 = vadd.f32 %v5234, %v5235
      %v5237 = vsel %vm5105, %v5024, 0.0
      %v5238 = vadd.f32 %v5236, %v5237
      %v5239 = vsel %vm5105, %v5025, 0.0
      %v5240 = vadd.f32 %v5238, %v5239
      %v5241 = vsel %vm5105, %v5026, 0.0
      %v5242 = vadd.f32 %v5240, %v5241
      %v5243 = vsel %vm5105, %v5027, 0.0
      %v5244 = vadd.f32 %v5242, %v5243
      %v5245 = vsel %vm5105, %v5028, 0.0
      %v5246 = vadd.f32 %v5244, %v5245
      %v5247 = vsel %vm5105, %v5029, 0.0
      %v5248 = vadd.f32 %v5246, %v5247
      %v5249 = vsel %vm5105, %v5030, 0.0
      %v5250 = vadd.f32 %v5248, %v5249
      %v5251 = vsel %vm5105, %v5031, 0.0
      %v5252 = vadd.f32 %v5250, %v5251
      %v5253 = vsel %vm5105, %v5032, 0.0
      %v5254 = vadd.f32 %v5252, %v5253
      %v5255 = vsel %vm5105, %v5033, 0.0
      %v5256 = vadd.f32 %v5254, %v5255
      %v5257 = vsel %vm5105, %v5034, 0.0
      %v5258 = vadd.f32 %v5256, %v5257
      %v5259 = vsel %vm5105, %v5035, 0.0
      %v5260 = vadd.f32 %v5258, %v5259
      %v5261 = vsel %vm5105, %v5036, 0.0
      %v5262 = vadd.f32 %v5260, %v5261
      %v5263 = vsel %vm5105, %v5037, 0.0
      %v5264 = vadd.f32 %v5262, %v5263
      %v5265 = vsel %vm5105, %v5038, 0.0
      %v5266 = vadd.f32 %v5264, %v5265
      %v5267 = vsel %vm5105, %v5039, 0.0
      %v5268 = vadd.f32 %v5266, %v5267
      %v5269 = vsel %vm5105, %v5040, 0.0
      %v5270 = vadd.f32 %v5268, %v5269
      %v5271 = vsel %vm5105, %v5041, 0.0
      %v5272 = vadd.f32 %v5270, %v5271
      %v5273 = vsel %vm5105, %v5042, 0.0
      %v5274 = vadd.f32 %v5272, %v5273
      %v5275 = vsel %vm5105, %v5043, 0.0
      %v5276 = vadd.f32 %v5274, %v5275
      %v5277 = vsel %vm5105, %v5044, 0.0
      %v5278 = vadd.f32 %v5276, %v5277
      %v5279 = vsel %vm5105, %v5045, 0.0
      %v5280 = vadd.f32 %v5278, %v5279
      %v5281 = vsel %vm5105, %v5046, 0.0
      %v5282 = vadd.f32 %v5280, %v5281
      %v5283 = vsel %vm5105, %v5047, 0.0
      %v5284 = vadd.f32 %v5282, %v5283
      %v5285 = vsel %vm5105, %v5048, 0.0
      %v5286 = vadd.f32 %v5284, %v5285
      %v5287 = vsel %vm5105, %v5049, 0.0
      %v5288 = vadd.f32 %v5286, %v5287
      %v5289 = vsel %vm5105, %v5050, 0.0
      %v5290 = vadd.f32 %v5288, %v5289
      %v5291 = vsel %vm5105, %v5051, 0.0
      %v5292 = vadd.f32 %v5290, %v5291
      %v5293 = vsel %vm5105, %v5052, 0.0
      %v5294 = vadd.f32 %v5292, %v5293
      %v5295 = vsel %vm5105, %v5053, 0.0
      %v5296 = vadd.f32 %v5294, %v5295
      %v5297 = vsel %vm5105, %v5054, 0.0
      %v5298 = vadd.f32 %v5296, %v5297
      %v5299 = vsel %vm5105, %v5055, 0.0
      %v5300 = vadd.f32 %v5298, %v5299
      %v5301 = vsel %vm5105, %v5056, 0.0
      %v5302 = vadd.f32 %v5300, %v5301
      %v5303 = vsel %vm5105, %v5057, 0.0
      %v5304 = vadd.f32 %v5302, %v5303
      %v5305 = vsel %vm5105, %v5058, 0.0
      %v5306 = vadd.f32 %v5304, %v5305
      %v5307 = vsel %vm5105, %v5059, 0.0
      %v5308 = vadd.f32 %v5306, %v5307
      %v5309 = vsel %vm5105, %v5060, 0.0
      %v5310 = vadd.f32 %v5308, %v5309
      %v5311 = vsel %vm5105, %v5061, 0.0
      %v5312 = vadd.f32 %v5310, %v5311
      %v5313 = vsel %vm5105, %v5062, 0.0
      %v5314 = vadd.f32 %v5312, %v5313
      %v5315 = vsel %vm5105, %v5063, 0.0
      %v5316 = vadd.f32 %v5314, %v5315
      %v5317 = vsel %vm5105, %v5064, 0.0
      %v5318 = vadd.f32 %v5316, %v5317
      %v5319 = vsel %vm5105, %v5065, 0.0
      %v5320 = vadd.f32 %v5318, %v5319
      %v5321 = vsel %vm5105, %v5066, 0.0
      %v5322 = vadd.f32 %v5320, %v5321
      %v5323 = vsel %vm5105, %v5067, 0.0
      %v5324 = vadd.f32 %v5322, %v5323
      %v5325 = vsel %vm5105, %v5068, 0.0
      %v5326 = vadd.f32 %v5324, %v5325
      %v5327 = vsel %vm5105, %v5069, 0.0
      %v5328 = vadd.f32 %v5326, %v5327
      %v5329 = vsel %vm5105, %v5070, 0.0
      %v5330 = vadd.f32 %v5328, %v5329
      %v5331 = vsel %vm5105, %v5071, 0.0
      %v5332 = vadd.f32 %v5330, %v5331
      %v5333 = vsel %vm5105, %v5072, 0.0
      %v5334 = vadd.f32 %v5332, %v5333
      %v5335 = vsel %vm5105, %v5073, 0.0
      %v5336 = vadd.f32 %v5334, %v5335
      %v5337 = vsel %vm5105, %v5074, 0.0
      %v5338 = vadd.f32 %v5336, %v5337
      %v5339 = vsel %vm5105, %v5075, 0.0
      %v5340 = vadd.f32 %v5338, %v5339
      %v5341 = vsel %vm5105, %v5076, 0.0
      %v5342 = vadd.f32 %v5340, %v5341
      %v5343 = vsel %vm5105, %v5077, 0.0
      %v5344 = vadd.f32 %v5342, %v5343
      %v5345 = vsel %vm5105, %v5078, 0.0
      %v5346 = vadd.f32 %v5344, %v5345
      %v5347 = vsel %vm5105, %v5079, 0.0
      %v5348 = vadd.f32 %v5346, %v5347
      %v5349 = vsel %vm5105, %v5080, 0.0
      %v5350 = vadd.f32 %v5348, %v5349
      %v5351 = vsel %vm5105, %v5081, 0.0
      %v5352 = vadd.f32 %v5350, %v5351
      %v5353 = vsel %vm5105, %v5082, 0.0
      %v5354 = vadd.f32 %v5352, %v5353
      %v5355 = vsel %vm5105, %v5083, 0.0
      %v5356 = vadd.f32 %v5354, %v5355
      %v5357 = vsel %vm5105, %v5084, 0.0
      %v5358 = vadd.f32 %v5356, %v5357
      %v5359 = vsel %vm5105, %v5085, 0.0
      %v5360 = vadd.f32 %v5358, %v5359
      %v5361 = vsel %vm5105, %v5086, 0.0
      %v5362 = vadd.f32 %v5360, %v5361
      %v5363 = vsel %vm5105, %v5087, 0.0
      %v5364 = vadd.f32 %v5362, %v5363
      %v5365 = vsel %vm5105, %v5088, 0.0
      %v5366 = vadd.f32 %v5364, %v5365
      %v5367 = vsel %vm5105, %v5089, 0.0
      %v5368 = vadd.f32 %v5366, %v5367
      %v5369 = vsel %vm5105, %v5090, 0.0
      %v5370 = vadd.f32 %v5368, %v5369
      %v5371 = vsel %vm5105, %v5091, 0.0
      %v5372 = vadd.f32 %v5370, %v5371
      %v5373 = vsel %vm5105, %v5092, 0.0
      %v5374 = vadd.f32 %v5372, %v5373
      %v5375 = vsel %vm5105, %v5093, 0.0
      %v5376 = vadd.f32 %v5374, %v5375
      %v5377 = vsel %vm5105, %v5094, 0.0
      %v5378 = vadd.f32 %v5376, %v5377
      %v5379 = vsel %vm5105, %v5095, 0.0
      %v5380 = vadd.f32 %v5378, %v5379
      %v5381 = vsel %vm5105, %v5096, 0.0
      %v5382 = vadd.f32 %v5380, %v5381
      %v5383 = vsel %vm5105, %v5097, 0.0
      %v5384 = vadd.f32 %v5382, %v5383
      %v5385 = vsel %vm5105, %v5098, 0.0
      %v5386 = vadd.f32 %v5384, %v5385
      %v5387 = vsel %vm5105, %v5099, 0.0
      %v5388 = vadd.f32 %v5386, %v5387
      %v5389 = vsel %vm5105, %v5100, 0.0
      %v5390 = vadd.f32 %v5388, %v5389
      %v5391 = vsel %vm5105, %v5101, 0.0
      %v5392 = vadd.f32 %v5390, %v5391
      %v5393 = vsel %vm5105, %v5102, 0.0
      %v5394 = vadd.f32 %v5392, %v5393
      %v5395 = vsel %vm5105, %v5103, 0.0
      %v5396 = vadd.f32 %v5394, %v5395
      %v5397 = vsel %vm5105, %v5104, 0.0
      %v5398 = vadd.f32 %v5396, %v5397
      %v5399 = vrot.slane %v5398, 4
      %v5400 = vadd.f32 %v5398, %v5399
      %v5401 = vrot.slane %v5400, 2
      %v5402 = vadd.f32 %v5400, %v5401
      %v5403 = vrot.slane %v5402, 1
      %v5404 = vadd.f32 %v5402, %v5403
      %v5405 = vrcp.pop 1176.0
      %v5406 = vmul.f32 %v5404, %v5405
      %v5407 = vld [vmem:[%s8] sm:$0xff]
      %v5408 = vld [vmem:[%s8 + $0x8] sm:$0xff]
      %v5409 = vld [vmem:[%s8 + $0x10] sm:$0xff]
      %v5410 = vld [vmem:[%s8 + $0x18] sm:$0xff]
      %v5411 = vld [vmem:[%s8 + $0x20] sm:$0xff]
      %v5412 = vld [vmem:[%s8 + $0x28] sm:$0xff]
      %v5413 = vld [vmem:[%s8 + $0x30] sm:$0xff]
      %v5414 = vld [vmem:[%s8 + $0x38] sm:$0xff]
      %v5415 = vld [vmem:[%s8 + $0x40] sm:$0xff]
      %v5416 = vld [vmem:[%s8 + $0x48] sm:$0xff]
      %v5417 = vld [vmem:[%s8 + $0x50] sm:$0xff]
      %v5418 = vld [vmem:[%s8 + $0x58] sm:$0xff]
      %v5419 = vld [vmem:[%s8 + $0x60] sm:$0xff]
      %v5420 = vld [vmem:[%s8 + $0x68] sm:$0xff]
      %v5421 = vld [vmem:[%s8 + $0x70] sm:$0xff]
      %v5422 = vld [vmem:[%s8 + $0x78] sm:$0xff]
      %v5423 = vpack.c.bf16 %v5406, %v5406
      %v5424 = vld [vmem:[%s9] sm:$0xf]
      %v5441 = vunpack.c.l.b16 %v5407
      %v5442 = vunpack.c.h.b16 %v5407
      %v5443 = vunpack.c.l.b16 %v5408
      %v5444 = vunpack.c.h.b16 %v5408
      %v5445 = vunpack.c.l.b16 %v5409
      %v5446 = vunpack.c.h.b16 %v5409
      %v5447 = vunpack.c.l.b16 %v5410
      %v5448 = vunpack.c.h.b16 %v5410
      %v5449 = vunpack.c.l.b16 %v5411
      %v5450 = vunpack.c.h.b16 %v5411
      %v5451 = vunpack.c.l.b16 %v5412
      %v5452 = vunpack.c.h.b16 %v5412
      %v5453 = vunpack.c.l.b16 %v5413
      %v5454 = vunpack.c.h.b16 %v5413
      %v5455 = vunpack.c.l.b16 %v5414
      %v5456 = vunpack.c.h.b16 %v5414
      %v5457 = vunpack.c.l.b16 %v5415
      %v5458 = vunpack.c.h.b16 %v5415
      %v5459 = vunpack.c.l.b16 %v5416
      %v5460 = vunpack.c.h.b16 %v5416
      %v5461 = vunpack.c.l.b16 %v5417
      %v5462 = vunpack.c.h.b16 %v5417
      %v5463 = vunpack.c.l.b16 %v5418
      %v5464 = vunpack.c.h.b16 %v5418
      %v5465 = vunpack.c.l.b16 %v5419
      %v5466 = vunpack.c.h.b16 %v5419
      %v5467 = vunpack.c.l.b16 %v5420
      %v5468 = vunpack.c.h.b16 %v5420
      %v5469 = vunpack.c.l.b16 %v5421
      %v5470 = vunpack.c.h.b16 %v5421
      %v5471 = vunpack.c.l.b16 %v5422
      %v5472 = vunpack.c.h.b16 %v5422
      %v5473 = vpack.c.b16 %v5445, %v5441
      %v5474 = vpack.c.b16 %v5446, %v5442
      %v5475 = vpack.c.b16 %v5447, %v5443
      %v5476 = vpack.c.b16 %v5448, %v5444
      %v5477 = vpack.c.b16 %v5453, %v5449
      %v5478 = vpack.c.b16 %v5454, %v5450
      %v5479 = vpack.c.b16 %v5455, %v5451
      %v5480 = vpack.c.b16 %v5456, %v5452
      %v5481 = vpack.c.b16 %v5461, %v5457
      %v5482 = vpack.c.b16 %v5462, %v5458
      %v5483 = vpack.c.b16 %v5463, %v5459
      %v5484 = vpack.c.b16 %v5464, %v5460
      %v5485 = vpack.c.b16 %v5469, %v5465
      %v5486 = vpack.c.b16 %v5470, %v5466
      %v5487 = vpack.c.b16 %v5471, %v5467
      %v5488 = vpack.c.b16 %v5472, %v5468
      %v5506 = vlaneseq
      %v5507 = vshrl.u32 %v5506, 7
      %v5508 = vsub.s32 0, %v5507
      %v5509 = vrot.slane %v5424, %v5508
      %v5510 = vlaneseq
      %v5511 = vshrl.u32 %v5510, 7
      %v5512 = vsub.s32 1, %v5511
      %v5513 = vrot.slane %v5424, %v5512
      %v5514 = vlaneseq
      %v5515 = vshrl.u32 %v5514, 7
      %v5516 = vsub.s32 2, %v5515
      %v5517 = vrot.slane %v5424, %v5516
      %v5518 = vlaneseq
      %v5519 = vshrl.u32 %v5518, 7
      %v5520 = vsub.s32 3, %v5519
      %v5521 = vrot.slane %v5424, %v5520
      %v5527 = vsel %vm5105, %v5423, 0
      %5529 = vmatprep.subr.bf16.mxu0 0
      %5530 = vmatpush1.bf16.msra.mxu0 0
      %5531 = vmatprep.subr.bf16.mxu0 0
      %5532 = vmatpush1.bf16.msra.mxu0 0
      %5533 = vmatprep.subr.bf16.mxu0 0
      %5534 = vmatpush1.bf16.msra.mxu0 0
      %5535 = vmatprep.subr.bf16.mxu0 0
      %5536 = vmatpush1.bf16.msra.mxu0 0
      %5537 = vmatprep.subr.bf16.mxu0 %v5486
      %5538 = vmatpush1.bf16.msra.mxu0 %v5485
      %5539 = vmatprep.subr.bf16.mxu0 %v5482
      %5540 = vmatpush1.bf16.msra.mxu0 %v5481
      %5541 = vmatprep.subr.bf16.mxu0 %v5478
      %5542 = vmatpush1.bf16.msra.mxu0 %v5477
      %5543 = vmatprep.subr.bf16.mxu0 %v5474
      %5544 = vmatpush1.bf16.msra.mxu0 %v5473
      %5545 = vmatprep.subr.bf16.mxu0 0
      %5546 = vmatpush2.bf16.msra.mxu0 0
      %5547 = vmatprep.subr.bf16.mxu0 0
      %5548 = vmatpush2.bf16.msra.mxu0 0
      %5549 = vmatprep.subr.bf16.mxu0 0
      %5550 = vmatpush2.bf16.msra.mxu0 0
      %5551 = vmatprep.subr.bf16.mxu0 0
      %5552 = vmatpush2.bf16.msra.mxu0 0
      %5553 = vmatprep.subr.bf16.mxu0 0
      %5554 = vmatpush2.bf16.msra.mxu0 0
      %5555 = vmatprep.subr.bf16.mxu0 0
      %5556 = vmatpush2.bf16.msra.mxu0 0
      %5557 = vmatprep.subr.bf16.mxu0 0
      %5558 = vmatpush2.bf16.msra.mxu0 0
      %5559 = vmatprep.subr.bf16.mxu0 0
      %5560 = vmatpush2.bf16.msra.mxu0 0
      %5561 = vmatprep.mubr.bf16.mxu0 0
      %5562 = vmatmul.mubr.bf16.gmra.mxu0 %v5527
      %v5563 = vpop.f32.mrf.mxu0
      %v5564 = vadd.f32 %v5509, %v5563
      %v5565 = vpop.f32.mrf.mxu0
      %v5566 = vadd.f32 %v5513, %v5565
      %v5567 = vpop.f32.mrf.mxu0
      %v5568 = vpop.f32.mrf.mxu0
      %5569 = vdwg.mxu0
      %5570 = vmatprep.subr.bf16.mxu0 0
      %5571 = vmatpush1.bf16.msra.mxu0 0
      %5572 = vmatprep.subr.bf16.mxu0 0
      %5573 = vmatpush1.bf16.msra.mxu0 0
      %5574 = vmatprep.subr.bf16.mxu0 0
      %5575 = vmatpush1.bf16.msra.mxu0 0
      %5576 = vmatprep.subr.bf16.mxu0 0
      %5577 = vmatpush1.bf16.msra.mxu0 0
      %5578 = vmatprep.subr.bf16.mxu0 %v5488
      %5579 = vmatpush1.bf16.msra.mxu0 %v5487
      %5580 = vmatprep.subr.bf16.mxu0 %v5484
      %5581 = vmatpush1.bf16.msra.mxu0 %v5483
      %5582 = vmatprep.subr.bf16.mxu0 %v5480
      %5583 = vmatpush1.bf16.msra.mxu0 %v5479
      %5584 = vmatprep.subr.bf16.mxu0 %v5476
      %5585 = vmatpush1.bf16.msra.mxu0 %v5475
      %5586 = vmatprep.subr.bf16.mxu0 0
      %5587 = vmatpush2.bf16.msra.mxu0 0
      %5588 = vmatprep.subr.bf16.mxu0 0
      %5589 = vmatpush2.bf16.msra.mxu0 0
      %5590 = vmatprep.subr.bf16.mxu0 0
      %5591 = vmatpush2.bf16.msra.mxu0 0
      %5592 = vmatprep.subr.bf16.mxu0 0
      %5593 = vmatpush2.bf16.msra.mxu0 0
      %5594 = vmatprep.subr.bf16.mxu0 0
      %5595 = vmatpush2.bf16.msra.mxu0 0
      %5596 = vmatprep.subr.bf16.mxu0 0
      %5597 = vmatpush2.bf16.msra.mxu0 0
      %5598 = vmatprep.subr.bf16.mxu0 0
      %5599 = vmatpush2.bf16.msra.mxu0 0
      %5600 = vmatprep.subr.bf16.mxu0 0
      %5601 = vmatpush2.bf16.msra.mxu0 0
      %5602 = vmatprep.mubr.bf16.mxu0 0
      %5603 = vmatmul.mubr.bf16.gmra.mxu0 %v5527
      %v5604 = vpop.f32.mrf.mxu0
      %v5605 = vadd.f32 %v5517, %v5604
      %v5606 = vpop.f32.mrf.mxu0
      %v5607 = vadd.f32 %v5521, %v5606
      %v5608 = vpop.f32.mrf.mxu0
      %v5609 = vpop.f32.mrf.mxu0
      %5610 = vdwg.mxu0
      %v5611 = vmax.f32 %v5564, 0.0
      %v5612 = vmax.f32 %v5566, 0.0
      %v5613 = vmax.f32 %v5605, 0.0
      %v5614 = vmax.f32 %v5607, 0.0
      %v5615 = vld [vmem:[%s10] sm:$0xf]
      %v5616 = vld [vmem:[%s10 + $0x4] sm:$0xf]
      %v5617 = vld [vmem:[%s10 + $0x8] sm:$0xf]
      %v5618 = vld [vmem:[%s10 + $0xc] sm:$0xf]
      %v5619 = vld [vmem:[%s10 + $0x10] sm:$0xf]
      %v5620 = vld [vmem:[%s10 + $0x14] sm:$0xf]
      %v5621 = vld [vmem:[%s10 + $0x18] sm:$0xf]
      %v5622 = vld [vmem:[%s10 + $0x1c] sm:$0xf]
      %v5623 = vld [vmem:[%s10 + $0x20] sm:$0xf]
      %v5624 = vld [vmem:[%s10 + $0x24] sm:$0xf]
      %v5625 = vld [vmem:[%s10 + $0x28] sm:$0xf]
      %v5626 = vld [vmem:[%s10 + $0x2c] sm:$0xf]
      %v5627 = vld [vmem:[%s10 + $0x30] sm:$0xf]
      %v5628 = vld [vmem:[%s10 + $0x34] sm:$0xf]
      %v5629 = vld [vmem:[%s10 + $0x38] sm:$0xf]
      %v5630 = vld [vmem:[%s10 + $0x3c] sm:$0xf]
      %v5631 = vld [vmem:[%s10 + $0x40] sm:$0xf]
      %v5632 = vld [vmem:[%s10 + $0x44] sm:$0xf]
      %v5633 = vld [vmem:[%s10 + $0x48] sm:$0xf]
      %v5634 = vld [vmem:[%s10 + $0x4c] sm:$0xf]
      %v5635 = vld [vmem:[%s10 + $0x50] sm:$0xf]
      %v5636 = vld [vmem:[%s10 + $0x54] sm:$0xf]
      %v5637 = vld [vmem:[%s10 + $0x58] sm:$0xf]
      %v5638 = vld [vmem:[%s10 + $0x5c] sm:$0xf]
      %v5639 = vld [vmem:[%s10 + $0x60] sm:$0xf]
      %v5640 = vld [vmem:[%s10 + $0x64] sm:$0xf]
      %v5641 = vld [vmem:[%s10 + $0x68] sm:$0xf]
      %v5642 = vld [vmem:[%s10 + $0x6c] sm:$0xf]
      %v5643 = vld [vmem:[%s10 + $0x70] sm:$0xf]
      %v5644 = vld [vmem:[%s10 + $0x74] sm:$0xf]
      %v5645 = vld [vmem:[%s10 + $0x78] sm:$0xf]
      %v5646 = vld [vmem:[%s10 + $0x7c] sm:$0xf]
      %v5647 = vld [vmem:[%s10 + $0x80] sm:$0xf]
      %v5648 = vld [vmem:[%s10 + $0x84] sm:$0xf]
      %v5649 = vld [vmem:[%s10 + $0x88] sm:$0xf]
      %v5650 = vld [vmem:[%s10 + $0x8c] sm:$0xf]
      %v5651 = vld [vmem:[%s10 + $0x90] sm:$0xf]
      %v5652 = vld [vmem:[%s10 + $0x94] sm:$0xf]
      %v5653 = vld [vmem:[%s10 + $0x98] sm:$0xf]
      %v5654 = vld [vmem:[%s10 + $0x9c] sm:$0xf]
      %v5655 = vld [vmem:[%s10 + $0xa0] sm:$0xf]
      %v5656 = vld [vmem:[%s10 + $0xa4] sm:$0xf]
      %v5657 = vld [vmem:[%s10 + $0xa8] sm:$0xf]
      %v5658 = vld [vmem:[%s10 + $0xac] sm:$0xf]
      %v5659 = vld [vmem:[%s10 + $0xb0] sm:$0xf]
      %v5660 = vld [vmem:[%s10 + $0xb4] sm:$0xf]
      %v5661 = vld [vmem:[%s10 + $0xb8] sm:$0xf]
      %v5662 = vld [vmem:[%s10 + $0xbc] sm:$0xf]
      %v5663 = vld [vmem:[%s10 + $0xc0] sm:$0xf]
      %v5664 = vld [vmem:[%s10 + $0xc4] sm:$0xf]
      %v5665 = vld [vmem:[%s10 + $0xc8] sm:$0xf]
      %v5666 = vld [vmem:[%s10 + $0xcc] sm:$0xf]
      %v5667 = vld [vmem:[%s10 + $0xd0] sm:$0xf]
      %v5668 = vld [vmem:[%s10 + $0xd4] sm:$0xf]
      %v5669 = vld [vmem:[%s10 + $0xd8] sm:$0xf]
      %v5670 = vld [vmem:[%s10 + $0xdc] sm:$0xf]
      %v5671 = vld [vmem:[%s10 + $0xe0] sm:$0xf]
      %v5672 = vld [vmem:[%s10 + $0xe4] sm:$0xf]
      %v5673 = vld [vmem:[%s10 + $0xe8] sm:$0xf]
      %v5674 = vld [vmem:[%s10 + $0xec] sm:$0xf]
      %v5675 = vld [vmem:[%s10 + $0xf0] sm:$0xf]
      %v5676 = vld [vmem:[%s10 + $0xf4] sm:$0xf]
      %v5677 = vld [vmem:[%s10 + $0xf8] sm:$0xf]
      %v5678 = vld [vmem:[%s10 + $0xfc] sm:$0xf]
      %v5679 = vpack.c.bf16 %v5611, %v5611
      %v5680 = vpack.c.bf16 %v5612, %v5612
      %v5681 = vpack.c.bf16 %v5613, %v5613
      %v5682 = vpack.c.bf16 %v5614, %v5614
      %v5747 = vunpack.c.l.b16 %v5615
      %v5748 = vunpack.c.l.b16 %v5616
      %v5749 = vunpack.c.l.b16 %v5617
      %v5750 = vunpack.c.l.b16 %v5618
      %v5751 = vunpack.c.l.b16 %v5619
      %v5752 = vunpack.c.l.b16 %v5620
      %v5753 = vunpack.c.l.b16 %v5621
      %v5754 = vunpack.c.l.b16 %v5622
      %v5755 = vunpack.c.l.b16 %v5623
      %v5756 = vunpack.c.l.b16 %v5624
      %v5757 = vunpack.c.l.b16 %v5625
      %v5758 = vunpack.c.l.b16 %v5626
      %v5759 = vunpack.c.l.b16 %v5627
      %v5760 = vunpack.c.l.b16 %v5628
      %v5761 = vunpack.c.l.b16 %v5629
      %v5762 = vunpack.c.l.b16 %v5630
      %v5763 = vunpack.c.l.b16 %v5631
      %v5764 = vunpack.c.l.b16 %v5632
      %v5765 = vunpack.c.l.b16 %v5633
      %v5766 = vunpack.c.l.b16 %v5634
      %v5767 = vunpack.c.l.b16 %v5635
      %v5768 = vunpack.c.l.b16 %v5636
      %v5769 = vunpack.c.l.b16 %v5637
      %v5770 = vunpack.c.l.b16 %v5638
      %v5771 = vunpack.c.l.b16 %v5639
      %v5772 = vunpack.c.l.b16 %v5640
      %v5773 = vunpack.c.l.b16 %v5641
      %v5774 = vunpack.c.l.b16 %v5642
      %v5775 = vunpack.c.l.b16 %v5643
      %v5776 = vunpack.c.l.b16 %v5644
      %v5777 = vunpack.c.l.b16 %v5645
      %v5778 = vunpack.c.l.b16 %v5646
      %v5779 = vunpack.c.l.b16 %v5647
      %v5780 = vunpack.c.l.b16 %v5648
      %v5781 = vunpack.c.l.b16 %v5649
      %v5782 = vunpack.c.l.b16 %v5650
      %v5783 = vunpack.c.l.b16 %v5651
      %v5784 = vunpack.c.l.b16 %v5652
      %v5785 = vunpack.c.l.b16 %v5653
      %v5786 = vunpack.c.l.b16 %v5654
      %v5787 = vunpack.c.l.b16 %v5655
      %v5788 = vunpack.c.l.b16 %v5656
      %v5789 = vunpack.c.l.b16 %v5657
      %v5790 = vunpack.c.l.b16 %v5658
      %v5791 = vunpack.c.l.b16 %v5659
      %v5792 = vunpack.c.l.b16 %v5660
      %v5793 = vunpack.c.l.b16 %v5661
      %v5794 = vunpack.c.l.b16 %v5662
      %v5795 = vunpack.c.l.b16 %v5663
      %v5796 = vunpack.c.l.b16 %v5664
      %v5797 = vunpack.c.l.b16 %v5665
      %v5798 = vunpack.c.l.b16 %v5666
      %v5799 = vunpack.c.l.b16 %v5667
      %v5800 = vunpack.c.l.b16 %v5668
      %v5801 = vunpack.c.l.b16 %v5669
      %v5802 = vunpack.c.l.b16 %v5670
      %v5803 = vunpack.c.l.b16 %v5671
      %v5804 = vunpack.c.l.b16 %v5672
      %v5805 = vunpack.c.l.b16 %v5673
      %v5806 = vunpack.c.l.b16 %v5674
      %v5807 = vunpack.c.l.b16 %v5675
      %v5808 = vunpack.c.l.b16 %v5676
      %v5809 = vunpack.c.l.b16 %v5677
      %v5810 = vunpack.c.l.b16 %v5678
      %v5811 = vpack.c.b16 %v5748, %v5747
      %v5812 = vpack.c.b16 %v5750, %v5749
      %v5813 = vpack.c.b16 %v5752, %v5751
      %v5814 = vpack.c.b16 %v5754, %v5753
      %v5815 = vpack.c.b16 %v5756, %v5755
      %v5816 = vpack.c.b16 %v5758, %v5757
      %v5817 = vpack.c.b16 %v5760, %v5759
      %v5818 = vpack.c.b16 %v5762, %v5761
      %v5819 = vpack.c.b16 %v5764, %v5763
      %v5820 = vpack.c.b16 %v5766, %v5765
      %v5821 = vpack.c.b16 %v5768, %v5767
      %v5822 = vpack.c.b16 %v5770, %v5769
      %v5823 = vpack.c.b16 %v5772, %v5771
      %v5824 = vpack.c.b16 %v5774, %v5773
      %v5825 = vpack.c.b16 %v5776, %v5775
      %v5826 = vpack.c.b16 %v5778, %v5777
      %v5827 = vpack.c.b16 %v5780, %v5779
      %v5828 = vpack.c.b16 %v5782, %v5781
      %v5829 = vpack.c.b16 %v5784, %v5783
      %v5830 = vpack.c.b16 %v5786, %v5785
      %v5831 = vpack.c.b16 %v5788, %v5787
      %v5832 = vpack.c.b16 %v5790, %v5789
      %v5833 = vpack.c.b16 %v5792, %v5791
      %v5834 = vpack.c.b16 %v5794, %v5793
      %v5835 = vpack.c.b16 %v5796, %v5795
      %v5836 = vpack.c.b16 %v5798, %v5797
      %v5837 = vpack.c.b16 %v5800, %v5799
      %v5838 = vpack.c.b16 %v5802, %v5801
      %v5839 = vpack.c.b16 %v5804, %v5803
      %v5840 = vpack.c.b16 %v5806, %v5805
      %v5841 = vpack.c.b16 %v5808, %v5807
      %v5842 = vpack.c.b16 %v5810, %v5809
      %5875 = vmatprep.subr.bf16.mxu0 0
      %5876 = vmatpush1.bf16.msra.mxu0 %v5818
      %5877 = vmatprep.subr.bf16.mxu0 0
      %5878 = vmatpush1.bf16.msra.mxu0 %v5817
      %5879 = vmatprep.subr.bf16.mxu0 0
      %5880 = vmatpush1.bf16.msra.mxu0 %v5816
      %5881 = vmatprep.subr.bf16.mxu0 0
      %5882 = vmatpush1.bf16.msra.mxu0 %v5815
      %5883 = vmatprep.subr.bf16.mxu0 0
      %5884 = vmatpush1.bf16.msra.mxu0 %v5814
      %5885 = vmatprep.subr.bf16.mxu0 0
      %5886 = vmatpush1.bf16.msra.mxu0 %v5813
      %5887 = vmatprep.subr.bf16.mxu0 0
      %5888 = vmatpush1.bf16.msra.mxu0 %v5812
      %5889 = vmatprep.subr.bf16.mxu0 0
      %5890 = vmatpush1.bf16.msra.mxu0 %v5811
      %5891 = vmatprep.subr.bf16.mxu0 0
      %5892 = vmatpush2.bf16.msra.mxu0 %v5826
      %5893 = vmatprep.subr.bf16.mxu0 0
      %5894 = vmatpush2.bf16.msra.mxu0 %v5825
      %5895 = vmatprep.subr.bf16.mxu0 0
      %5896 = vmatpush2.bf16.msra.mxu0 %v5824
      %5897 = vmatprep.subr.bf16.mxu0 0
      %5898 = vmatpush2.bf16.msra.mxu0 %v5823
      %5899 = vmatprep.subr.bf16.mxu0 0
      %5900 = vmatpush2.bf16.msra.mxu0 %v5822
      %5901 = vmatprep.subr.bf16.mxu0 0
      %5902 = vmatpush2.bf16.msra.mxu0 %v5821
      %5903 = vmatprep.subr.bf16.mxu0 0
      %5904 = vmatpush2.bf16.msra.mxu0 %v5820
      %5905 = vmatprep.subr.bf16.mxu0 0
      %5906 = vmatpush2.bf16.msra.mxu0 %v5819
      %5907 = vmatprep.mubr.bf16.mxu0 %v5680
      %5908 = vmatmul.mubr.bf16.gmra.mxu0 %v5679
      %v5909 = vpop.f32.mrf.mxu0
      %v5910 = vadd.f32 %v656, %v5909
      %v5911 = vpop.f32.mrf.mxu0
      %v5912 = vpop.f32.mrf.mxu0
      %v5913 = vpop.f32.mrf.mxu0
      %5914 = vdwg.mxu0
      %5915 = vmatprep.subr.bf16.mxu0 0
      %5916 = vmatpush1.bf16.msra.mxu0 %v5834
      %5917 = vmatprep.subr.bf16.mxu0 0
      %5918 = vmatpush1.bf16.msra.mxu0 %v5833
      %5919 = vmatprep.subr.bf16.mxu0 0
      %5920 = vmatpush1.bf16.msra.mxu0 %v5832
      %5921 = vmatprep.subr.bf16.mxu0 0
      %5922 = vmatpush1.bf16.msra.mxu0 %v5831
      %5923 = vmatprep.subr.bf16.mxu0 0
      %5924 = vmatpush1.bf16.msra.mxu0 %v5830
      %5925 = vmatprep.subr.bf16.mxu0 0
      %5926 = vmatpush1.bf16.msra.mxu0 %v5829
      %5927 = vmatprep.subr.bf16.mxu0 0
      %5928 = vmatpush1.bf16.msra.mxu0 %v5828
      %5929 = vmatprep.subr.bf16.mxu0 0
      %5930 = vmatpush1.bf16.msra.mxu0 %v5827
      %5931 = vmatprep.subr.bf16.mxu0 0
      %5932 = vmatpush2.bf16.msra.mxu0 %v5842
      %5933 = vmatprep.subr.bf16.mxu0 0
      %5934 = vmatpush2.bf16.msra.mxu0 %v5841
      %5935 = vmatprep.subr.bf16.mxu0 0
      %5936 = vmatpush2.bf16.msra.mxu0 %v5840
      %5937 = vmatprep.subr.bf16.mxu0 0
      %5938 = vmatpush2.bf16.msra.mxu0 %v5839
      %5939 = vmatprep.subr.bf16.mxu0 0
      %5940 = vmatpush2.bf16.msra.mxu0 %v5838
      %5941 = vmatprep.subr.bf16.mxu0 0
      %5942 = vmatpush2.bf16.msra.mxu0 %v5837
      %5943 = vmatprep.subr.bf16.mxu0 0
      %5944 = vmatpush2.bf16.msra.mxu0 %v5836
      %5945 = vmatprep.subr.bf16.mxu0 0
      %5946 = vmatpush2.bf16.msra.mxu0 %v5835
      %5947 = vmatprep.mubr.bf16.mxu0 %v5682
      %5948 = vmatmul.mubr.bf16.gmra.mxu0 %v5681
      %v5949 = vpop.f32.mrf.mxu0
      %v5950 = vadd.f32 %v5910, %v5949
      %v5951 = vpop.f32.mrf.mxu0
      %v5952 = vpop.f32.mrf.mxu0
      %v5953 = vpop.f32.mrf.mxu0
      %5954 = vdwg.mxu0
      %v5955 = vmax.f32 %v5950, 0.0
      %v5956 = vld [vmem:[%s649] ss:$2 sm:$0x7f]
      %v5957 = vld [vmem:[%s11] sm:$0xf]
      %v5958 = vld [vmem:[%s11 + $0x4] sm:$0xf]
      %v5959 = vld [vmem:[%s11 + $0x8] sm:$0xf]
      %v5960 = vld [vmem:[%s11 + $0xc] sm:$0xf]
      %v5961 = vld [vmem:[%s11 + $0x10] sm:$0xf]
      %v5962 = vld [vmem:[%s11 + $0x14] sm:$0xf]
      %v5963 = vld [vmem:[%s11 + $0x18] sm:$0xf]
      %v5964 = vld [vmem:[%s11 + $0x1c] sm:$0xf]
      %v5965 = vpack.c.bf16 %v5956, %v5956
      %s5966 = scalar_lea.vmem %s649, 1
      %v5967 = vld [vmem:[%s5966] ss:$2 sm:$0x7f]
      %s5968 = scalar_lea.vmem %s11, 32
      %v5969 = vld [vmem:[%s5968] sm:$0xf]
      %v5970 = vld [vmem:[%s5968 + $0x4] sm:$0xf]
      %v5971 = vld [vmem:[%s5968 + $0x8] sm:$0xf]
      %v5972 = vld [vmem:[%s5968 + $0xc] sm:$0xf]
      %v5973 = vld [vmem:[%s5968 + $0x10] sm:$0xf]
      %v5974 = vld [vmem:[%s5968 + $0x14] sm:$0xf]
      %v5975 = vld [vmem:[%s5968 + $0x18] sm:$0xf]
      %v5976 = vld [vmem:[%s5968 + $0x1c] sm:$0xf]
      %v5977 = vpack.c.bf16 %v5967, %v5967
      %v5986 = vunpack.c.l.b16 %v5969
      %v5987 = vunpack.c.l.b16 %v5970
      %v5988 = vunpack.c.l.b16 %v5971
      %v5989 = vunpack.c.l.b16 %v5972
      %v5990 = vunpack.c.l.b16 %v5973
      %v5991 = vunpack.c.l.b16 %v5974
      %v5992 = vunpack.c.l.b16 %v5975
      %v5993 = vunpack.c.l.b16 %v5976
      %v5994 = vpack.c.b16 %v5987, %v5986
      %v5995 = vpack.c.b16 %v5989, %v5988
      %v5996 = vpack.c.b16 %v5991, %v5990
      %v5997 = vpack.c.b16 %v5993, %v5992
      %v6003 = vsel %vm5105, %v5977, 0
      %6005 = vmatprep.subr.bf16.mxu0 0
      %6006 = vmatpush1.bf16.msra.mxu0 0
      %6007 = vmatprep.subr.bf16.mxu0 0
      %6008 = vmatpush1.bf16.msra.mxu0 0
      %6009 = vmatprep.subr.bf16.mxu0 0
      %6010 = vmatpush1.bf16.msra.mxu0 0
      %6011 = vmatprep.subr.bf16.mxu0 0
      %6012 = vmatpush1.bf16.msra.mxu0 0
      %6013 = vmatprep.subr.bf16.mxu0 0
      %6014 = vmatpush1.bf16.msra.mxu0 %v5997
      %6015 = vmatprep.subr.bf16.mxu0 0
      %6016 = vmatpush1.bf16.msra.mxu0 %v5996
      %6017 = vmatprep.subr.bf16.mxu0 0
      %6018 = vmatpush1.bf16.msra.mxu0 %v5995
      %6019 = vmatprep.subr.bf16.mxu0 0
      %6020 = vmatpush1.bf16.msra.mxu0 %v5994
      %6021 = vmatprep.subr.bf16.mxu0 0
      %6022 = vmatpush2.bf16.msra.mxu0 0
      %6023 = vmatprep.subr.bf16.mxu0 0
      %6024 = vmatpush2.bf16.msra.mxu0 0
      %6025 = vmatprep.subr.bf16.mxu0 0
      %6026 = vmatpush2.bf16.msra.mxu0 0
      %6027 = vmatprep.subr.bf16.mxu0 0
      %6028 = vmatpush2.bf16.msra.mxu0 0
      %6029 = vmatprep.subr.bf16.mxu0 0
      %6030 = vmatpush2.bf16.msra.mxu0 0
      %6031 = vmatprep.subr.bf16.mxu0 0
      %6032 = vmatpush2.bf16.msra.mxu0 0
      %6033 = vmatprep.subr.bf16.mxu0 0
      %6034 = vmatpush2.bf16.msra.mxu0 0
      %6035 = vmatprep.subr.bf16.mxu0 0
      %6036 = vmatpush2.bf16.msra.mxu0 0
      %6037 = vmatprep.mubr.bf16.mxu0 0
      %6038 = vmatmul.mubr.bf16.gmra.mxu0 %v6003
      %v6039 = vpop.f32.mrf.mxu0
      %v6040 = vadd.f32 0.0, %v6039
      %v6041 = vpop.f32.mrf.mxu0
      %v6042 = vpop.f32.mrf.mxu0
      %v6043 = vpop.f32.mrf.mxu0
      %6044 = vdwg.mxu0
      %v6053 = vunpack.c.l.b16 %v5957
      %v6054 = vunpack.c.l.b16 %v5958
      %v6055 = vunpack.c.l.b16 %v5959
      %v6056 = vunpack.c.l.b16 %v5960
      %v6057 = vunpack.c.l.b16 %v5961
      %v6058 = vunpack.c.l.b16 %v5962
      %v6059 = vunpack.c.l.b16 %v5963
      %v6060 = vunpack.c.l.b16 %v5964
      %v6061 = vpack.c.b16 %v6054, %v6053
      %v6062 = vpack.c.b16 %v6056, %v6055
      %v6063 = vpack.c.b16 %v6058, %v6057
      %v6064 = vpack.c.b16 %v6060, %v6059
      %v6070 = vsel %vm5105, %v5965, 0
      %6072 = vmatprep.subr.bf16.mxu0 0
      %6073 = vmatpush1.bf16.msra.mxu0 0
      %6074 = vmatprep.subr.bf16.mxu0 0
      %6075 = vmatpush1.bf16.msra.mxu0 0
      %6076 = vmatprep.subr.bf16.mxu0 0
      %6077 = vmatpush1.bf16.msra.mxu0 0
      %6078 = vmatprep.subr.bf16.mxu0 0
      %6079 = vmatpush1.bf16.msra.mxu0 0
      %6080 = vmatprep.subr.bf16.mxu0 0
      %6081 = vmatpush1.bf16.msra.mxu0 %v6064
      %6082 = vmatprep.subr.bf16.mxu0 0
      %6083 = vmatpush1.bf16.msra.mxu0 %v6063
      %6084 = vmatprep.subr.bf16.mxu0 0
      %6085 = vmatpush1.bf16.msra.mxu0 %v6062
      %6086 = vmatprep.subr.bf16.mxu0 0
      %6087 = vmatpush1.bf16.msra.mxu0 %v6061
      %6088 = vmatprep.subr.bf16.mxu0 0
      %6089 = vmatpush2.bf16.msra.mxu0 0
      %6090 = vmatprep.subr.bf16.mxu0 0
      %6091 = vmatpush2.bf16.msra.mxu0 0
      %6092 = vmatprep.subr.bf16.mxu0 0
      %6093 = vmatpush2.bf16.msra.mxu0 0
      %6094 = vmatprep.subr.bf16.mxu0 0
      %6095 = vmatpush2.bf16.msra.mxu0 0
      %6096 = vmatprep.subr.bf16.mxu0 0
      %6097 = vmatpush2.bf16.msra.mxu0 0
      %6098 = vmatprep.subr.bf16.mxu0 0
      %6099 = vmatpush2.bf16.msra.mxu0 0
      %6100 = vmatprep.subr.bf16.mxu0 0
      %6101 = vmatpush2.bf16.msra.mxu0 0
      %6102 = vmatprep.subr.bf16.mxu0 0
      %6103 = vmatpush2.bf16.msra.mxu0 0
      %6104 = vmatprep.mubr.bf16.mxu0 0
      %6105 = vmatmul.mubr.bf16.gmra.mxu0 %v6070
      %v6106 = vpop.f32.mrf.mxu0
      %v6107 = vadd.f32 %v6040, %v6106
      %v6108 = vpop.f32.mrf.mxu0
      %v6109 = vpop.f32.mrf.mxu0
      %v6110 = vpop.f32.mrf.mxu0
      %6111 = vdwg.mxu0
      %s6112 = scalar_lea.vmem %s649, 2
      %v6113 = vld [vmem:[%s6112] ss:$2 sm:$0x7f]
      %s6114 = scalar_lea.vmem %s11, 64
      %v6115 = vld [vmem:[%s6114] sm:$0xf]
      %v6116 = vld [vmem:[%s6114 + $0x4] sm:$0xf]
      %v6117 = vld [vmem:[%s6114 + $0x8] sm:$0xf]
      %v6118 = vld [vmem:[%s6114 + $0xc] sm:$0xf]
      %v6119 = vld [vmem:[%s6114 + $0x10] sm:$0xf]
      %v6120 = vld [vmem:[%s6114 + $0x14] sm:$0xf]
      %v6121 = vld [vmem:[%s6114 + $0x18] sm:$0xf]
      %v6122 = vld [vmem:[%s6114 + $0x1c] sm:$0xf]
      %v6123 = vpack.c.bf16 %v6113, %v6113
      %v6132 = vunpack.c.l.b16 %v6115
      %v6133 = vunpack.c.l.b16 %v6116
      %v6134 = vunpack.c.l.b16 %v6117
      %v6135 = vunpack.c.l.b16 %v6118
      %v6136 = vunpack.c.l.b16 %v6119
      %v6137 = vunpack.c.l.b16 %v6120
      %v6138 = vunpack.c.l.b16 %v6121
      %v6139 = vunpack.c.l.b16 %v6122
      %v6140 = vpack.c.b16 %v6133, %v6132
      %v6141 = vpack.c.b16 %v6135, %v6134
      %v6142 = vpack.c.b16 %v6137, %v6136
      %v6143 = vpack.c.b16 %v6139, %v6138
      %v6149 = vsel %vm5105, %v6123, 0
      %6151 = vmatprep.subr.bf16.mxu0 0
      %6152 = vmatpush1.bf16.msra.mxu0 0
      %6153 = vmatprep.subr.bf16.mxu0 0
      %6154 = vmatpush1.bf16.msra.mxu0 0
      %6155 = vmatprep.subr.bf16.mxu0 0
      %6156 = vmatpush1.bf16.msra.mxu0 0
      %6157 = vmatprep.subr.bf16.mxu0 0
      %6158 = vmatpush1.bf16.msra.mxu0 0
      %6159 = vmatprep.subr.bf16.mxu0 0
      %6160 = vmatpush1.bf16.msra.mxu0 %v6143
      %6161 = vmatprep.subr.bf16.mxu0 0
      %6162 = vmatpush1.bf16.msra.mxu0 %v6142
      %6163 = vmatprep.subr.bf16.mxu0 0
      %6164 = vmatpush1.bf16.msra.mxu0 %v6141
      %6165 = vmatprep.subr.bf16.mxu0 0
      %6166 = vmatpush1.bf16.msra.mxu0 %v6140
      %6167 = vmatprep.subr.bf16.mxu0 0
      %6168 = vmatpush2.bf16.msra.mxu0 0
      %6169 = vmatprep.subr.bf16.mxu0 0
      %6170 = vmatpush2.bf16.msra.mxu0 0
      %6171 = vmatprep.subr.bf16.mxu0 0
      %6172 = vmatpush2.bf16.msra.mxu0 0
      %6173 = vmatprep.subr.bf16.mxu0 0
      %6174 = vmatpush2.bf16.msra.mxu0 0
      %6175 = vmatprep.subr.bf16.mxu0 0
      %6176 = vmatpush2.bf16.msra.mxu0 0
      %6177 = vmatprep.subr.bf16.mxu0 0
      %6178 = vmatpush2.bf16.msra.mxu0 0
      %6179 = vmatprep.subr.bf16.mxu0 0
      %6180 = vmatpush2.bf16.msra.mxu0 0
      %6181 = vmatprep.subr.bf16.mxu0 0
      %6182 = vmatpush2.bf16.msra.mxu0 0
      %6183 = vmatprep.mubr.bf16.mxu0 0
      %6184 = vmatmul.mubr.bf16.gmra.mxu0 %v6149
      %v6185 = vpop.f32.mrf.mxu0
      %v6186 = vadd.f32 0.0, %v6185
      %v6187 = vpop.f32.mrf.mxu0
      %v6188 = vpop.f32.mrf.mxu0
      %v6189 = vpop.f32.mrf.mxu0
      %6190 = vdwg.mxu0
      %v6191 = vadd.f32 %v6107, %v6186
      %v6192 = vlaneseq
      %v6193 = vshrl.u32 %v6192, 7
      %v6194 = vsub.s32 0, %v6193
      %v6195 = vrot.slane %v657, %v6194
      %v6196 = vmul.f32 %v6191, %v6195
      %v6197 = vlaneseq
      %v6198 = vshrl.u32 %v6197, 7
      %v6199 = vsub.s32 0, %v6198
      %v6200 = vrot.slane %v658, %v6199
      %v6201 = vadd.f32 %v6196, %v6200
      %v6202 = vmax.f32 %v6201, 0.0
      %6203 = vmatprep.subr.bf16.mxu0 0
      %6204 = vmatpush1.bf16.msra.mxu0 0
      %6205 = vmatprep.subr.bf16.mxu0 0
      %6206 = vmatpush1.bf16.msra.mxu0 0
      %6207 = vmatprep.subr.bf16.mxu0 0
      %6208 = vmatpush1.bf16.msra.mxu0 0
      %6209 = vmatprep.subr.bf16.mxu0 0
      %6210 = vmatpush1.bf16.msra.mxu0 0
      %6211 = vmatprep.subr.bf16.mxu0 0
      %6212 = vmatpush1.bf16.msra.mxu0 %v5997
      %6213 = vmatprep.subr.bf16.mxu0 0
      %6214 = vmatpush1.bf16.msra.mxu0 %v5996
      %6215 = vmatprep.subr.bf16.mxu0 0
      %6216 = vmatpush1.bf16.msra.mxu0 %v5995
      %6217 = vmatprep.subr.bf16.mxu0 0
      %6218 = vmatpush1.bf16.msra.mxu0 %v5994
      %6219 = vmatprep.subr.bf16.mxu0 0
      %6220 = vmatpush2.bf16.msra.mxu0 0
      %6221 = vmatprep.subr.bf16.mxu0 0
      %6222 = vmatpush2.bf16.msra.mxu0 0
      %6223 = vmatprep.subr.bf16.mxu0 0
      %6224 = vmatpush2.bf16.msra.mxu0 0
      %6225 = vmatprep.subr.bf16.mxu0 0
      %6226 = vmatpush2.bf16.msra.mxu0 0
      %6227 = vmatprep.subr.bf16.mxu0 0
      %6228 = vmatpush2.bf16.msra.mxu0 0
      %6229 = vmatprep.subr.bf16.mxu0 0
      %6230 = vmatpush2.bf16.msra.mxu0 0
      %6231 = vmatprep.subr.bf16.mxu0 0
      %6232 = vmatpush2.bf16.msra.mxu0 0
      %6233 = vmatprep.subr.bf16.mxu0 0
      %6234 = vmatpush2.bf16.msra.mxu0 0
      %6235 = vmatprep.mubr.bf16.mxu0 0
      %6236 = vmatmul.mubr.bf16.gmra.mxu0 %v6149
      %v6237 = vpop.f32.mrf.mxu0
      %v6238 = vadd.f32 0.0, %v6237
      %v6239 = vpop.f32.mrf.mxu0
      %v6240 = vpop.f32.mrf.mxu0
      %v6241 = vpop.f32.mrf.mxu0
      %6242 = vdwg.mxu0
      %6243 = vmatprep.subr.bf16.mxu0 0
      %6244 = vmatpush1.bf16.msra.mxu0 0
      %6245 = vmatprep.subr.bf16.mxu0 0
      %6246 = vmatpush1.bf16.msra.mxu0 0
      %6247 = vmatprep.subr.bf16.mxu0 0
      %6248 = vmatpush1.bf16.msra.mxu0 0
      %6249 = vmatprep.subr.bf16.mxu0 0
      %6250 = vmatpush1.bf16.msra.mxu0 0
      %6251 = vmatprep.subr.bf16.mxu0 0
      %6252 = vmatpush1.bf16.msra.mxu0 %v6064
      %6253 = vmatprep.subr.bf16.mxu0 0
      %6254 = vmatpush1.bf16.msra.mxu0 %v6063
      %6255 = vmatprep.subr.bf16.mxu0 0
      %6256 = vmatpush1.bf16.msra.mxu0 %v6062
      %6257 = vmatprep.subr.bf16.mxu0 0
      %6258 = vmatpush1.bf16.msra.mxu0 %v6061
      %6259 = vmatprep.subr.bf16.mxu0 0
      %6260 = vmatpush2.bf16.msra.mxu0 0
      %6261 = vmatprep.subr.bf16.mxu0 0
      %6262 = vmatpush2.bf16.msra.mxu0 0
      %6263 = vmatprep.subr.bf16.mxu0 0
      %6264 = vmatpush2.bf16.msra.mxu0 0
      %6265 = vmatprep.subr.bf16.mxu0 0
      %6266 = vmatpush2.bf16.msra.mxu0 0
      %6267 = vmatprep.subr.bf16.mxu0 0
      %6268 = vmatpush2.bf16.msra.mxu0 0
      %6269 = vmatprep.subr.bf16.mxu0 0
      %6270 = vmatpush2.bf16.msra.mxu0 0
      %6271 = vmatprep.subr.bf16.mxu0 0
      %6272 = vmatpush2.bf16.msra.mxu0 0
      %6273 = vmatprep.subr.bf16.mxu0 0
      %6274 = vmatpush2.bf16.msra.mxu0 0
      %6275 = vmatprep.mubr.bf16.mxu0 0
      %6276 = vmatmul.mubr.bf16.gmra.mxu0 %v6003
      %v6277 = vpop.f32.mrf.mxu0
      %v6278 = vadd.f32 %v6238, %v6277
      %v6279 = vpop.f32.mrf.mxu0
      %v6280 = vpop.f32.mrf.mxu0
      %v6281 = vpop.f32.mrf.mxu0
      %6282 = vdwg.mxu0
      %s6283 = scalar_lea.vmem %s649, 3
      %v6284 = vld [vmem:[%s6283] ss:$2 sm:$0x7f]
      %v6285 = vpack.c.bf16 %v6284, %v6284
      %v6287 = vsel %vm5105, %v6285, 0
      %6289 = vmatprep.subr.bf16.mxu0 0
      %6290 = vmatpush1.bf16.msra.mxu0 0
      %6291 = vmatprep.subr.bf16.mxu0 0
      %6292 = vmatpush1.bf16.msra.mxu0 0
      %6293 = vmatprep.subr.bf16.mxu0 0
      %6294 = vmatpush1.bf16.msra.mxu0 0
      %6295 = vmatprep.subr.bf16.mxu0 0
      %6296 = vmatpush1.bf16.msra.mxu0 0
      %6297 = vmatprep.subr.bf16.mxu0 0
      %6298 = vmatpush1.bf16.msra.mxu0 %v6143
      %6299 = vmatprep.subr.bf16.mxu0 0
      %6300 = vmatpush1.bf16.msra.mxu0 %v6142
      %6301 = vmatprep.subr.bf16.mxu0 0
      %6302 = vmatpush1.bf16.msra.mxu0 %v6141
      %6303 = vmatprep.subr.bf16.mxu0 0
      %6304 = vmatpush1.bf16.msra.mxu0 %v6140
      %6305 = vmatprep.subr.bf16.mxu0 0
      %6306 = vmatpush2.bf16.msra.mxu0 0
      %6307 = vmatprep.subr.bf16.mxu0 0
      %6308 = vmatpush2.bf16.msra.mxu0 0
      %6309 = vmatprep.subr.bf16.mxu0 0
      %6310 = vmatpush2.bf16.msra.mxu0 0
      %6311 = vmatprep.subr.bf16.mxu0 0
      %6312 = vmatpush2.bf16.msra.mxu0 0
      %6313 = vmatprep.subr.bf16.mxu0 0
      %6314 = vmatpush2.bf16.msra.mxu0 0
      %6315 = vmatprep.subr.bf16.mxu0 0
      %6316 = vmatpush2.bf16.msra.mxu0 0
      %6317 = vmatprep.subr.bf16.mxu0 0
      %6318 = vmatpush2.bf16.msra.mxu0 0
      %6319 = vmatprep.subr.bf16.mxu0 0
      %6320 = vmatpush2.bf16.msra.mxu0 0
      %6321 = vmatprep.mubr.bf16.mxu0 0
      %6322 = vmatmul.mubr.bf16.gmra.mxu0 %v6287
      %v6323 = vpop.f32.mrf.mxu0
      %v6324 = vadd.f32 0.0, %v6323
      %v6325 = vpop.f32.mrf.mxu0
      %v6326 = vpop.f32.mrf.mxu0
      %v6327 = vpop.f32.mrf.mxu0
      %6328 = vdwg.mxu0
      %v6329 = vadd.f32 %v6278, %v6324
      %v6330 = vmul.f32 %v6329, %v6195
      %v6331 = vadd.f32 %v6330, %v6200
      %v6332 = vmax.f32 %v6331, 0.0
      %v6333 = vmax.f32 %v6202, %v6332
      %vm6334 = vcmask 522240
      %6335 = vst.msk [vmem:[#allocation2] sm:$0x7f] %vm6334, %v6333
      %v6336 = vld [vmem:[#allocation2] sm:$0x1f]
      %v6337 = vld [vmem:[%s12] sm:$0xf]
      %v6338 = vld [vmem:[%s12 + $0x4] sm:$0xf]
      %v6339 = vld [vmem:[%s12 + $0x8] sm:$0xf]
      %v6340 = vld [vmem:[%s12 + $0xc] sm:$0xf]
      %v6341 = vld [vmem:[%s12 + $0x10] sm:$0xf]
      %v6342 = vld [vmem:[%s12 + $0x14] sm:$0xf]
      %v6343 = vld [vmem:[%s12 + $0x18] sm:$0xf]
      %v6344 = vld [vmem:[%s12 + $0x1c] sm:$0xf]
      %v6345 = vpack.c.bf16 %v6336, %v6336
      %v6346 = vld [vmem:[#allocation2 + $0x1] sm:$0x1f]
      %s6347 = scalar_lea.vmem %s12, 32
      %v6348 = vld [vmem:[%s6347] sm:$0xf]
      %v6349 = vld [vmem:[%s6347 + $0x4] sm:$0xf]
      %v6350 = vld [vmem:[%s6347 + $0x8] sm:$0xf]
      %v6351 = vld [vmem:[%s6347 + $0xc] sm:$0xf]
      %v6352 = vld [vmem:[%s6347 + $0x10] sm:$0xf]
      %v6353 = vld [vmem:[%s6347 + $0x14] sm:$0xf]
      %v6354 = vld [vmem:[%s6347 + $0x18] sm:$0xf]
      %v6355 = vld [vmem:[%s6347 + $0x1c] sm:$0xf]
      %v6356 = vpack.c.bf16 %v6346, %v6346
      %v6365 = vunpack.c.l.b16 %v6348
      %v6366 = vunpack.c.l.b16 %v6349
      %v6367 = vunpack.c.l.b16 %v6350
      %v6368 = vunpack.c.l.b16 %v6351
      %v6369 = vunpack.c.l.b16 %v6352
      %v6370 = vunpack.c.l.b16 %v6353
      %v6371 = vunpack.c.l.b16 %v6354
      %v6372 = vunpack.c.l.b16 %v6355
      %v6373 = vpack.c.b16 %v6366, %v6365
      %v6374 = vpack.c.b16 %v6368, %v6367
      %v6375 = vpack.c.b16 %v6370, %v6369
      %v6376 = vpack.c.b16 %v6372, %v6371
      %v6382 = vsel %vm5105, %v6356, 0
      %6384 = vmatprep.subr.bf16.mxu0 0
      %6385 = vmatpush1.bf16.msra.mxu0 0
      %6386 = vmatprep.subr.bf16.mxu0 0
      %6387 = vmatpush1.bf16.msra.mxu0 0
      %6388 = vmatprep.subr.bf16.mxu0 0
      %6389 = vmatpush1.bf16.msra.mxu0 0
      %6390 = vmatprep.subr.bf16.mxu0 0
      %6391 = vmatpush1.bf16.msra.mxu0 0
      %6392 = vmatprep.subr.bf16.mxu0 0
      %6393 = vmatpush1.bf16.msra.mxu0 %v6376
      %6394 = vmatprep.subr.bf16.mxu0 0
      %6395 = vmatpush1.bf16.msra.mxu0 %v6375
      %6396 = vmatprep.subr.bf16.mxu0 0
      %6397 = vmatpush1.bf16.msra.mxu0 %v6374
      %6398 = vmatprep.subr.bf16.mxu0 0
      %6399 = vmatpush1.bf16.msra.mxu0 %v6373
      %6400 = vmatprep.subr.bf16.mxu0 0
      %6401 = vmatpush2.bf16.msra.mxu0 0
      %6402 = vmatprep.subr.bf16.mxu0 0
      %6403 = vmatpush2.bf16.msra.mxu0 0
      %6404 = vmatprep.subr.bf16.mxu0 0
      %6405 = vmatpush2.bf16.msra.mxu0 0
      %6406 = vmatprep.subr.bf16.mxu0 0
      %6407 = vmatpush2.bf16.msra.mxu0 0
      %6408 = vmatprep.subr.bf16.mxu0 0
      %6409 = vmatpush2.bf16.msra.mxu0 0
      %6410 = vmatprep.subr.bf16.mxu0 0
      %6411 = vmatpush2.bf16.msra.mxu0 0
      %6412 = vmatprep.subr.bf16.mxu0 0
      %6413 = vmatpush2.bf16.msra.mxu0 0
      %6414 = vmatprep.subr.bf16.mxu0 0
      %6415 = vmatpush2.bf16.msra.mxu0 0
      %6416 = vmatprep.mubr.bf16.mxu0 0
      %6417 = vmatmul.mubr.bf16.gmra.mxu0 %v6382
      %v6418 = vpop.f32.mrf.mxu0
      %v6419 = vadd.f32 0.0, %v6418
      %v6420 = vpop.f32.mrf.mxu0
      %v6421 = vpop.f32.mrf.mxu0
      %v6422 = vpop.f32.mrf.mxu0
      %6423 = vdwg.mxu0
      %v6432 = vunpack.c.l.b16 %v6337
      %v6433 = vunpack.c.l.b16 %v6338
      %v6434 = vunpack.c.l.b16 %v6339
      %v6435 = vunpack.c.l.b16 %v6340
      %v6436 = vunpack.c.l.b16 %v6341
      %v6437 = vunpack.c.l.b16 %v6342
      %v6438 = vunpack.c.l.b16 %v6343
      %v6439 = vunpack.c.l.b16 %v6344
      %v6440 = vpack.c.b16 %v6433, %v6432
      %v6441 = vpack.c.b16 %v6435, %v6434
      %v6442 = vpack.c.b16 %v6437, %v6436
      %v6443 = vpack.c.b16 %v6439, %v6438
      %v6449 = vsel %vm5105, %v6345, 0
      %6451 = vmatprep.subr.bf16.mxu0 0
      %6452 = vmatpush1.bf16.msra.mxu0 0
      %6453 = vmatprep.subr.bf16.mxu0 0
      %6454 = vmatpush1.bf16.msra.mxu0 0
      %6455 = vmatprep.subr.bf16.mxu0 0
      %6456 = vmatpush1.bf16.msra.mxu0 0
      %6457 = vmatprep.subr.bf16.mxu0 0
      %6458 = vmatpush1.bf16.msra.mxu0 0
      %6459 = vmatprep.subr.bf16.mxu0 0
      %6460 = vmatpush1.bf16.msra.mxu0 %v6443
      %6461 = vmatprep.subr.bf16.mxu0 0
      %6462 = vmatpush1.bf16.msra.mxu0 %v6442
      %6463 = vmatprep.subr.bf16.mxu0 0
      %6464 = vmatpush1.bf16.msra.mxu0 %v6441
      %6465 = vmatprep.subr.bf16.mxu0 0
      %6466 = vmatpush1.bf16.msra.mxu0 %v6440
      %6467 = vmatprep.subr.bf16.mxu0 0
      %6468 = vmatpush2.bf16.msra.mxu0 0
      %6469 = vmatprep.subr.bf16.mxu0 0
      %6470 = vmatpush2.bf16.msra.mxu0 0
      %6471 = vmatprep.subr.bf16.mxu0 0
      %6472 = vmatpush2.bf16.msra.mxu0 0
      %6473 = vmatprep.subr.bf16.mxu0 0
      %6474 = vmatpush2.bf16.msra.mxu0 0
      %6475 = vmatprep.subr.bf16.mxu0 0
      %6476 = vmatpush2.bf16.msra.mxu0 0
      %6477 = vmatprep.subr.bf16.mxu0 0
      %6478 = vmatpush2.bf16.msra.mxu0 0
      %6479 = vmatprep.subr.bf16.mxu0 0
      %6480 = vmatpush2.bf16.msra.mxu0 0
      %6481 = vmatprep.subr.bf16.mxu0 0
      %6482 = vmatpush2.bf16.msra.mxu0 0
      %6483 = vmatprep.mubr.bf16.mxu0 0
      %6484 = vmatmul.mubr.bf16.gmra.mxu0 %v6449
      %v6485 = vpop.f32.mrf.mxu0
      %v6486 = vadd.f32 %v6419, %v6485
      %v6487 = vpop.f32.mrf.mxu0
      %v6488 = vpop.f32.mrf.mxu0
      %v6489 = vpop.f32.mrf.mxu0
      %6490 = vdwg.mxu0
      %v6491 = vld [vmem:[#allocation2 + $0x2] sm:$0x1f]
      %s6492 = scalar_lea.vmem %s12, 64
      %v6493 = vld [vmem:[%s6492] sm:$0xf]
      %v6494 = vld [vmem:[%s6492 + $0x4] sm:$0xf]
      %v6495 = vld [vmem:[%s6492 + $0x8] sm:$0xf]
      %v6496 = vld [vmem:[%s6492 + $0xc] sm:$0xf]
      %v6497 = vld [vmem:[%s6492 + $0x10] sm:$0xf]
      %v6498 = vld [vmem:[%s6492 + $0x14] sm:$0xf]
      %v6499 = vld [vmem:[%s6492 + $0x18] sm:$0xf]
      %v6500 = vld [vmem:[%s6492 + $0x1c] sm:$0xf]
      %v6501 = vpack.c.bf16 %v6491, %v6491
      %v6510 = vunpack.c.l.b16 %v6493
      %v6511 = vunpack.c.l.b16 %v6494
      %v6512 = vunpack.c.l.b16 %v6495
      %v6513 = vunpack.c.l.b16 %v6496
      %v6514 = vunpack.c.l.b16 %v6497
      %v6515 = vunpack.c.l.b16 %v6498
      %v6516 = vunpack.c.l.b16 %v6499
      %v6517 = vunpack.c.l.b16 %v6500
      %v6518 = vpack.c.b16 %v6511, %v6510
      %v6519 = vpack.c.b16 %v6513, %v6512
      %v6520 = vpack.c.b16 %v6515, %v6514
      %v6521 = vpack.c.b16 %v6517, %v6516
      %v6527 = vsel %vm5105, %v6501, 0
      %6529 = vmatprep.subr.bf16.mxu0 0
      %6530 = vmatpush1.bf16.msra.mxu0 0
      %6531 = vmatprep.subr.bf16.mxu0 0
      %6532 = vmatpush1.bf16.msra.mxu0 0
      %6533 = vmatprep.subr.bf16.mxu0 0
      %6534 = vmatpush1.bf16.msra.mxu0 0
      %6535 = vmatprep.subr.bf16.mxu0 0
      %6536 = vmatpush1.bf16.msra.mxu0 0
      %6537 = vmatprep.subr.bf16.mxu0 0
      %6538 = vmatpush1.bf16.msra.mxu0 %v6521
      %6539 = vmatprep.subr.bf16.mxu0 0
      %6540 = vmatpush1.bf16.msra.mxu0 %v6520
      %6541 = vmatprep.subr.bf16.mxu0 0
      %6542 = vmatpush1.bf16.msra.mxu0 %v6519
      %6543 = vmatprep.subr.bf16.mxu0 0
      %6544 = vmatpush1.bf16.msra.mxu0 %v6518
      %6545 = vmatprep.subr.bf16.mxu0 0
      %6546 = vmatpush2.bf16.msra.mxu0 0
      %6547 = vmatprep.subr.bf16.mxu0 0
      %6548 = vmatpush2.bf16.msra.mxu0 0
      %6549 = vmatprep.subr.bf16.mxu0 0
      %6550 = vmatpush2.bf16.msra.mxu0 0
      %6551 = vmatprep.subr.bf16.mxu0 0
      %6552 = vmatpush2.bf16.msra.mxu0 0
      %6553 = vmatprep.subr.bf16.mxu0 0
      %6554 = vmatpush2.bf16.msra.mxu0 0
      %6555 = vmatprep.subr.bf16.mxu0 0
      %6556 = vmatpush2.bf16.msra.mxu0 0
      %6557 = vmatprep.subr.bf16.mxu0 0
      %6558 = vmatpush2.bf16.msra.mxu0 0
      %6559 = vmatprep.subr.bf16.mxu0 0
      %6560 = vmatpush2.bf16.msra.mxu0 0
      %6561 = vmatprep.mubr.bf16.mxu0 0
      %6562 = vmatmul.mubr.bf16.gmra.mxu0 %v6527
      %v6563 = vpop.f32.mrf.mxu0
      %v6564 = vadd.f32 0.0, %v6563
      %v6565 = vpop.f32.mrf.mxu0
      %v6566 = vpop.f32.mrf.mxu0
      %v6567 = vpop.f32.mrf.mxu0
      %6568 = vdwg.mxu0
      %v6569 = vadd.f32 %v6486, %v6564
      %v6570 = vlaneseq
      %v6571 = vshrl.u32 %v6570, 7
      %v6572 = vsub.s32 0, %v6571
      %v6573 = vrot.slane %v659, %v6572
      %v6574 = vmul.f32 %v6569, %v6573
      %v6575 = vlaneseq
      %v6576 = vshrl.u32 %v6575, 7
      %v6577 = vsub.s32 0, %v6576
      %v6578 = vrot.slane %v660, %v6577
      %v6579 = vadd.f32 %v6574, %v6578
      %v6580 = vmax.f32 %v6579, 0.0
      %vm6581 = vcmask 1044480
      %v6582 = vsel %vm6581, %v6580, 0.0
      %v6583 = vrot.slane %v6582, 4
      %v6584 = vadd.f32 %v6582, %v6583
      %v6585 = vrot.slane %v6584, 2
      %v6586 = vadd.f32 %v6584, %v6585
      %v6587 = vrot.slane %v6586, 1
      %v6588 = vadd.f32 %v6586, %v6587
      %v6589 = vrcp.pop 5.0
      %v6590 = vmul.f32 %v6588, %v6589
      %v6591 = vld [vmem:[%s13] sm:$0xf]
      %v6592 = vld [vmem:[%s13 + $0x4] sm:$0xf]
      %v6593 = vld [vmem:[%s13 + $0x8] sm:$0xf]
      %v6594 = vld [vmem:[%s13 + $0xc] sm:$0xf]
      %v6595 = vld [vmem:[%s13 + $0x10] sm:$0xf]
      %v6596 = vld [vmem:[%s13 + $0x14] sm:$0xf]
      %v6597 = vld [vmem:[%s13 + $0x18] sm:$0xf]
      %v6598 = vld [vmem:[%s13 + $0x1c] sm:$0xf]
      %v6599 = vld [vmem:[%s13 + $0x20] sm:$0xf]
      %v6600 = vld [vmem:[%s13 + $0x24] sm:$0xf]
      %v6601 = vld [vmem:[%s13 + $0x28] sm:$0xf]
      %v6602 = vld [vmem:[%s13 + $0x2c] sm:$0xf]
      %v6603 = vld [vmem:[%s13 + $0x30] sm:$0xf]
      %v6604 = vld [vmem:[%s13 + $0x34] sm:$0xf]
      %v6605 = vld [vmem:[%s13 + $0x38] sm:$0xf]
      %v6606 = vld [vmem:[%s13 + $0x3c] sm:$0xf]
      %v6607 = vpack.c.bf16 %v6590, %v6590
      %v6624 = vunpack.c.l.b16 %v6591
      %v6625 = vunpack.c.l.b16 %v6592
      %v6626 = vunpack.c.l.b16 %v6593
      %v6627 = vunpack.c.l.b16 %v6594
      %v6628 = vunpack.c.l.b16 %v6595
      %v6629 = vunpack.c.l.b16 %v6596
      %v6630 = vunpack.c.l.b16 %v6597
      %v6631 = vunpack.c.l.b16 %v6598
      %v6632 = vunpack.c.l.b16 %v6599
      %v6633 = vunpack.c.l.b16 %v6600
      %v6634 = vunpack.c.l.b16 %v6601
      %v6635 = vunpack.c.l.b16 %v6602
      %v6636 = vunpack.c.l.b16 %v6603
      %v6637 = vunpack.c.l.b16 %v6604
      %v6638 = vunpack.c.l.b16 %v6605
      %v6639 = vunpack.c.l.b16 %v6606
      %v6640 = vpack.c.b16 %v6625, %v6624
      %v6641 = vpack.c.b16 %v6627, %v6626
      %v6642 = vpack.c.b16 %v6629, %v6628
      %v6643 = vpack.c.b16 %v6631, %v6630
      %v6644 = vpack.c.b16 %v6633, %v6632
      %v6645 = vpack.c.b16 %v6635, %v6634
      %v6646 = vpack.c.b16 %v6637, %v6636
      %v6647 = vpack.c.b16 %v6639, %v6638
      %6656 = vmatprep.subr.bf16.mxu0 0
      %6657 = vmatpush1.bf16.msra.mxu0 %v6647
      %6658 = vmatprep.subr.bf16.mxu0 0
      %6659 = vmatpush1.bf16.msra.mxu0 %v6646
      %6660 = vmatprep.subr.bf16.mxu0 0
      %6661 = vmatpush1.bf16.msra.mxu0 %v6645
      %6662 = vmatprep.subr.bf16.mxu0 0
      %6663 = vmatpush1.bf16.msra.mxu0 %v6644
      %6664 = vmatprep.subr.bf16.mxu0 0
      %6665 = vmatpush1.bf16.msra.mxu0 %v6643
      %6666 = vmatprep.subr.bf16.mxu0 0
      %6667 = vmatpush1.bf16.msra.mxu0 %v6642
      %6668 = vmatprep.subr.bf16.mxu0 0
      %6669 = vmatpush1.bf16.msra.mxu0 %v6641
      %6670 = vmatprep.subr.bf16.mxu0 0
      %6671 = vmatpush1.bf16.msra.mxu0 %v6640
      %6672 = vmatprep.subr.bf16.mxu0 0
      %6673 = vmatpush2.bf16.msra.mxu0 0
      %6674 = vmatprep.subr.bf16.mxu0 0
      %6675 = vmatpush2.bf16.msra.mxu0 0
      %6676 = vmatprep.subr.bf16.mxu0 0
      %6677 = vmatpush2.bf16.msra.mxu0 0
      %6678 = vmatprep.subr.bf16.mxu0 0
      %6679 = vmatpush2.bf16.msra.mxu0 0
      %6680 = vmatprep.subr.bf16.mxu0 0
      %6681 = vmatpush2.bf16.msra.mxu0 0
      %6682 = vmatprep.subr.bf16.mxu0 0
      %6683 = vmatpush2.bf16.msra.mxu0 0
      %6684 = vmatprep.subr.bf16.mxu0 0
      %6685 = vmatpush2.bf16.msra.mxu0 0
      %6686 = vmatprep.subr.bf16.mxu0 0
      %6687 = vmatpush2.bf16.msra.mxu0 0
      %6688 = vmatprep.mubr.bf16.mxu0 0
      %6689 = vmatmul.mubr.bf16.gmra.mxu0 %v6607
      %v6690 = vpop.f32.mrf.mxu0
      %v6691 = vadd.f32 %v661, %v6690
      %v6692 = vpop.f32.mrf.mxu0
      %v6693 = vpop.f32.mrf.mxu0
      %v6694 = vpop.f32.mrf.mxu0
      %6695 = vdwg.mxu0
      %v6696 = vmax.f32 %v6691, 0.0
      %v6697 = vld [vmem:[%s14] sm:$0xff]
      %v6698 = vld [vmem:[%s14 + $0x8] sm:$0xff]
      %v6699 = vld [vmem:[%s14 + $0x10] sm:$0xff]
      %v6700 = vld [vmem:[%s14 + $0x18] sm:$0xff]
      %v6701 = vld [vmem:[%s14 + $0x20] sm:$0xff]
      %v6702 = vld [vmem:[%s14 + $0x28] sm:$0xff]
      %v6703 = vld [vmem:[%s14 + $0x30] sm:$0xff]
      %v6704 = vld [vmem:[%s14 + $0x38] sm:$0xff]
      %v6705 = vld [vmem:[%s14 + $0x40] sm:$0xff]
      %v6706 = vld [vmem:[%s14 + $0x48] sm:$0xff]
      %v6707 = vld [vmem:[%s14 + $0x50] sm:$0xff]
      %v6708 = vld [vmem:[%s14 + $0x58] sm:$0xff]
      %v6709 = vld [vmem:[%s14 + $0x60] sm:$0xff]
      %v6710 = vld [vmem:[%s14 + $0x68] sm:$0xff]
      %v6711 = vld [vmem:[%s14 + $0x70] sm:$0xff]
      %v6712 = vld [vmem:[%s14 + $0x78] sm:$0xff]
      %v6713 = vld [vmem:[%s14 + $0x80] sm:$0xff]
      %v6714 = vld [vmem:[%s14 + $0x88] sm:$0xff]
      %v6715 = vld [vmem:[%s14 + $0x90] sm:$0xff]
      %v6716 = vld [vmem:[%s14 + $0x98] sm:$0xff]
      %v6717 = vld [vmem:[%s14 + $0xa0] sm:$0xff]
      %v6718 = vld [vmem:[%s14 + $0xa8] sm:$0xff]
      %v6719 = vld [vmem:[%s14 + $0xb0] sm:$0xff]
      %v6720 = vld [vmem:[%s14 + $0xb8] sm:$0xff]
      %v6721 = vld [vmem:[%s14 + $0xc0] sm:$0xff]
      %v6722 = vld [vmem:[%s14 + $0xc8] sm:$0xff]
      %v6723 = vld [vmem:[%s14 + $0xd0] sm:$0xff]
      %v6724 = vld [vmem:[%s14 + $0xd8] sm:$0xff]
      %v6725 = vld [vmem:[%s14 + $0xe0] sm:$0xff]
      %v6726 = vld [vmem:[%s14 + $0xe8] sm:$0xff]
      %v6727 = vld [vmem:[%s14 + $0xf0] sm:$0xff]
      %v6728 = vld [vmem:[%s14 + $0xf8] sm:$0xff]
      %v6729 = vld [vmem:[%s14 + $0x100] sm:$0xff]
      %v6730 = vld [vmem:[%s14 + $0x108] sm:$0xff]
      %v6731 = vld [vmem:[%s14 + $0x110] sm:$0xff]
      %v6732 = vld [vmem:[%s14 + $0x118] sm:$0xff]
      %v6733 = vld [vmem:[%s14 + $0x120] sm:$0xff]
      %v6734 = vld [vmem:[%s14 + $0x128] sm:$0xff]
      %v6735 = vld [vmem:[%s14 + $0x130] sm:$0xff]
      %v6736 = vld [vmem:[%s14 + $0x138] sm:$0xff]
      %v6737 = vld [vmem:[%s14 + $0x140] sm:$0xff]
      %v6738 = vld [vmem:[%s14 + $0x148] sm:$0xff]
      %v6739 = vld [vmem:[%s14 + $0x150] sm:$0xff]
      %v6740 = vld [vmem:[%s14 + $0x158] sm:$0xff]
      %v6741 = vld [vmem:[%s14 + $0x160] sm:$0xff]
      %v6742 = vld [vmem:[%s14 + $0x168] sm:$0xff]
      %v6743 = vld [vmem:[%s14 + $0x170] sm:$0xff]
      %v6744 = vld [vmem:[%s14 + $0x178] sm:$0xff]
      %v6745 = vpack.c.bf16 %v3537, %v3537
      %v6746 = vpack.c.bf16 %v5955, %v5955
      %v6747 = vpack.c.bf16 %v6696, %v6696
      %v6796 = vunpack.c.l.b16 %v6697
      %v6797 = vunpack.c.h.b16 %v6697
      %v6798 = vunpack.c.l.b16 %v6698
      %v6799 = vunpack.c.h.b16 %v6698
      %v6800 = vunpack.c.l.b16 %v6699
      %v6801 = vunpack.c.h.b16 %v6699
      %v6802 = vunpack.c.l.b16 %v6700
      %v6803 = vunpack.c.h.b16 %v6700
      %v6804 = vunpack.c.l.b16 %v6701
      %v6805 = vunpack.c.h.b16 %v6701
      %v6806 = vunpack.c.l.b16 %v6702
      %v6807 = vunpack.c.h.b16 %v6702
      %v6808 = vunpack.c.l.b16 %v6703
      %v6809 = vunpack.c.h.b16 %v6703
      %v6810 = vunpack.c.l.b16 %v6704
      %v6811 = vunpack.c.h.b16 %v6704
      %v6812 = vunpack.c.l.b16 %v6705
      %v6813 = vunpack.c.h.b16 %v6705
      %v6814 = vunpack.c.l.b16 %v6706
      %v6815 = vunpack.c.h.b16 %v6706
      %v6816 = vunpack.c.l.b16 %v6707
      %v6817 = vunpack.c.h.b16 %v6707
      %v6818 = vunpack.c.l.b16 %v6708
      %v6819 = vunpack.c.h.b16 %v6708
      %v6820 = vunpack.c.l.b16 %v6709
      %v6821 = vunpack.c.h.b16 %v6709
      %v6822 = vunpack.c.l.b16 %v6710
      %v6823 = vunpack.c.h.b16 %v6710
      %v6824 = vunpack.c.l.b16 %v6711
      %v6825 = vunpack.c.h.b16 %v6711
      %v6826 = vunpack.c.l.b16 %v6712
      %v6827 = vunpack.c.h.b16 %v6712
      %v6828 = vunpack.c.l.b16 %v6713
      %v6829 = vunpack.c.h.b16 %v6713
      %v6830 = vunpack.c.l.b16 %v6714
      %v6831 = vunpack.c.h.b16 %v6714
      %v6832 = vunpack.c.l.b16 %v6715
      %v6833 = vunpack.c.h.b16 %v6715
      %v6834 = vunpack.c.l.b16 %v6716
      %v6835 = vunpack.c.h.b16 %v6716
      %v6836 = vunpack.c.l.b16 %v6717
      %v6837 = vunpack.c.h.b16 %v6717
      %v6838 = vunpack.c.l.b16 %v6718
      %v6839 = vunpack.c.h.b16 %v6718
      %v6840 = vunpack.c.l.b16 %v6719
      %v6841 = vunpack.c.h.b16 %v6719
      %v6842 = vunpack.c.l.b16 %v6720
      %v6843 = vunpack.c.h.b16 %v6720
      %v6844 = vunpack.c.l.b16 %v6721
      %v6845 = vunpack.c.h.b16 %v6721
      %v6846 = vunpack.c.l.b16 %v6722
      %v6847 = vunpack.c.h.b16 %v6722
      %v6848 = vunpack.c.l.b16 %v6723
      %v6849 = vunpack.c.h.b16 %v6723
      %v6850 = vunpack.c.l.b16 %v6724
      %v6851 = vunpack.c.h.b16 %v6724
      %v6852 = vunpack.c.l.b16 %v6725
      %v6853 = vunpack.c.h.b16 %v6725
      %v6854 = vunpack.c.l.b16 %v6726
      %v6855 = vunpack.c.h.b16 %v6726
      %v6856 = vunpack.c.l.b16 %v6727
      %v6857 = vunpack.c.h.b16 %v6727
      %v6858 = vunpack.c.l.b16 %v6728
      %v6859 = vunpack.c.h.b16 %v6728
      %v6860 = vunpack.c.l.b16 %v6729
      %v6861 = vunpack.c.h.b16 %v6729
      %v6862 = vunpack.c.l.b16 %v6730
      %v6863 = vunpack.c.h.b16 %v6730
      %v6864 = vunpack.c.l.b16 %v6731
      %v6865 = vunpack.c.h.b16 %v6731
      %v6866 = vunpack.c.l.b16 %v6732
      %v6867 = vunpack.c.h.b16 %v6732
      %v6868 = vunpack.c.l.b16 %v6733
      %v6869 = vunpack.c.h.b16 %v6733
      %v6870 = vunpack.c.l.b16 %v6734
      %v6871 = vunpack.c.h.b16 %v6734
      %v6872 = vunpack.c.l.b16 %v6735
      %v6873 = vunpack.c.h.b16 %v6735
      %v6874 = vunpack.c.l.b16 %v6736
      %v6875 = vunpack.c.h.b16 %v6736
      %v6876 = vunpack.c.l.b16 %v6737
      %v6877 = vunpack.c.h.b16 %v6737
      %v6878 = vunpack.c.l.b16 %v6738
      %v6879 = vunpack.c.h.b16 %v6738
      %v6880 = vunpack.c.l.b16 %v6739
      %v6881 = vunpack.c.h.b16 %v6739
      %v6882 = vunpack.c.l.b16 %v6740
      %v6883 = vunpack.c.h.b16 %v6740
      %v6884 = vunpack.c.l.b16 %v6741
      %v6885 = vunpack.c.h.b16 %v6741
      %v6886 = vunpack.c.l.b16 %v6742
      %v6887 = vunpack.c.h.b16 %v6742
      %v6888 = vunpack.c.l.b16 %v6743
      %v6889 = vunpack.c.h.b16 %v6743
      %v6890 = vunpack.c.l.b16 %v6744
      %v6891 = vunpack.c.h.b16 %v6744
      %v6892 = vpack.c.b16 %v6798, %v6796
      %v6893 = vpack.c.b16 %v6799, %v6797
      %v6894 = vpack.c.b16 %v6802, %v6800
      %v6895 = vpack.c.b16 %v6803, %v6801
      %v6896 = vpack.c.b16 %v6806, %v6804
      %v6897 = vpack.c.b16 %v6807, %v6805
      %v6898 = vpack.c.b16 %v6810, %v6808
      %v6899 = vpack.c.b16 %v6811, %v6809
      %v6900 = vpack.c.b16 %v6814, %v6812
      %v6901 = vpack.c.b16 %v6815, %v6813
      %v6902 = vpack.c.b16 %v6818, %v6816
      %v6903 = vpack.c.b16 %v6819, %v6817
      %v6904 = vpack.c.b16 %v6822, %v6820
      %v6905 = vpack.c.b16 %v6823, %v6821
      %v6906 = vpack.c.b16 %v6826, %v6824
      %v6907 = vpack.c.b16 %v6827, %v6825
      %v6908 = vpack.c.b16 %v6830, %v6828
      %v6909 = vpack.c.b16 %v6831, %v6829
      %v6910 = vpack.c.b16 %v6834, %v6832
      %v6911 = vpack.c.b16 %v6835, %v6833
      %v6912 = vpack.c.b16 %v6838, %v6836
      %v6913 = vpack.c.b16 %v6839, %v6837
      %v6914 = vpack.c.b16 %v6842, %v6840
      %v6915 = vpack.c.b16 %v6843, %v6841
      %v6916 = vpack.c.b16 %v6846, %v6844
      %v6917 = vpack.c.b16 %v6847, %v6845
      %v6918 = vpack.c.b16 %v6850, %v6848
      %v6919 = vpack.c.b16 %v6851, %v6849
      %v6920 = vpack.c.b16 %v6854, %v6852
      %v6921 = vpack.c.b16 %v6855, %v6853
      %v6922 = vpack.c.b16 %v6858, %v6856
      %v6923 = vpack.c.b16 %v6859, %v6857
      %v6924 = vpack.c.b16 %v6862, %v6860
      %v6925 = vpack.c.b16 %v6863, %v6861
      %v6926 = vpack.c.b16 %v6866, %v6864
      %v6927 = vpack.c.b16 %v6867, %v6865
      %v6928 = vpack.c.b16 %v6870, %v6868
      %v6929 = vpack.c.b16 %v6871, %v6869
      %v6930 = vpack.c.b16 %v6874, %v6872
      %v6931 = vpack.c.b16 %v6875, %v6873
      %v6932 = vpack.c.b16 %v6878, %v6876
      %v6933 = vpack.c.b16 %v6879, %v6877
      %v6934 = vpack.c.b16 %v6882, %v6880
      %v6935 = vpack.c.b16 %v6883, %v6881
      %v6936 = vpack.c.b16 %v6886, %v6884
      %v6937 = vpack.c.b16 %v6887, %v6885
      %v6938 = vpack.c.b16 %v6890, %v6888
      %v6939 = vpack.c.b16 %v6891, %v6889
      %6988 = vmatprep.subr.bf16.mxu0 %v6907
      %6989 = vmatpush1.bf16.msra.mxu0 %v6906
      %6990 = vmatprep.subr.bf16.mxu0 %v6905
      %6991 = vmatpush1.bf16.msra.mxu0 %v6904
      %6992 = vmatprep.subr.bf16.mxu0 %v6903
      %6993 = vmatpush1.bf16.msra.mxu0 %v6902
      %6994 = vmatprep.subr.bf16.mxu0 %v6901
      %6995 = vmatpush1.bf16.msra.mxu0 %v6900
      %6996 = vmatprep.subr.bf16.mxu0 %v6899
      %6997 = vmatpush1.bf16.msra.mxu0 %v6898
      %6998 = vmatprep.subr.bf16.mxu0 %v6897
      %6999 = vmatpush1.bf16.msra.mxu0 %v6896
      %7000 = vmatprep.subr.bf16.mxu0 %v6895
      %7001 = vmatpush1.bf16.msra.mxu0 %v6894
      %7002 = vmatprep.subr.bf16.mxu0 %v6893
      %7003 = vmatpush1.bf16.msra.mxu0 %v6892
      %7004 = vmatprep.subr.bf16.mxu0 %v6923
      %7005 = vmatpush2.bf16.msra.mxu0 %v6922
      %7006 = vmatprep.subr.bf16.mxu0 %v6921
      %7007 = vmatpush2.bf16.msra.mxu0 %v6920
      %7008 = vmatprep.subr.bf16.mxu0 %v6919
      %7009 = vmatpush2.bf16.msra.mxu0 %v6918
      %7010 = vmatprep.subr.bf16.mxu0 %v6917
      %7011 = vmatpush2.bf16.msra.mxu0 %v6916
      %7012 = vmatprep.subr.bf16.mxu0 %v6915
      %7013 = vmatpush2.bf16.msra.mxu0 %v6914
      %7014 = vmatprep.subr.bf16.mxu0 %v6913
      %7015 = vmatpush2.bf16.msra.mxu0 %v6912
      %7016 = vmatprep.subr.bf16.mxu0 %v6911
      %7017 = vmatpush2.bf16.msra.mxu0 %v6910
      %7018 = vmatprep.subr.bf16.mxu0 %v6909
      %7019 = vmatpush2.bf16.msra.mxu0 %v6908
      %7020 = vmatprep.mubr.bf16.mxu0 %v6746
      %7021 = vmatmul.mubr.bf16.gmra.mxu0 %v6745
      %v7022 = vpop.f32.mrf.mxu0
      %v7023 = vadd.f32 0.0, %v7022
      %v7024 = vpop.f32.mrf.mxu0
      %v7025 = vadd.f32 0.0, %v7024
      %v7026 = vpop.f32.mrf.mxu0
      %v7027 = vpop.f32.mrf.mxu0
      %7028 = vdwg.mxu0
      %7029 = vmatprep.subr.bf16.mxu0 %v6939
      %7030 = vmatpush1.bf16.msra.mxu0 %v6938
      %7031 = vmatprep.subr.bf16.mxu0 %v6937
      %7032 = vmatpush1.bf16.msra.mxu0 %v6936
      %7033 = vmatprep.subr.bf16.mxu0 %v6935
      %7034 = vmatpush1.bf16.msra.mxu0 %v6934
      %7035 = vmatprep.subr.bf16.mxu0 %v6933
      %7036 = vmatpush1.bf16.msra.mxu0 %v6932
      %7037 = vmatprep.subr.bf16.mxu0 %v6931
      %7038 = vmatpush1.bf16.msra.mxu0 %v6930
      %7039 = vmatprep.subr.bf16.mxu0 %v6929
      %7040 = vmatpush1.bf16.msra.mxu0 %v6928
      %7041 = vmatprep.subr.bf16.mxu0 %v6927
      %7042 = vmatpush1.bf16.msra.mxu0 %v6926
      %7043 = vmatprep.subr.bf16.mxu0 %v6925
      %7044 = vmatpush1.bf16.msra.mxu0 %v6924
      %7045 = vmatprep.subr.bf16.mxu0 0
      %7046 = vmatpush2.bf16.msra.mxu0 0
      %7047 = vmatprep.subr.bf16.mxu0 0
      %7048 = vmatpush2.bf16.msra.mxu0 0
      %7049 = vmatprep.subr.bf16.mxu0 0
      %7050 = vmatpush2.bf16.msra.mxu0 0
      %7051 = vmatprep.subr.bf16.mxu0 0
      %7052 = vmatpush2.bf16.msra.mxu0 0
      %7053 = vmatprep.subr.bf16.mxu0 0
      %7054 = vmatpush2.bf16.msra.mxu0 0
      %7055 = vmatprep.subr.bf16.mxu0 0
      %7056 = vmatpush2.bf16.msra.mxu0 0
      %7057 = vmatprep.subr.bf16.mxu0 0
      %7058 = vmatpush2.bf16.msra.mxu0 0
      %7059 = vmatprep.subr.bf16.mxu0 0
      %7060 = vmatpush2.bf16.msra.mxu0 0
      %7061 = vmatprep.mubr.bf16.mxu0 0
      %7062 = vmatmul.mubr.bf16.gmra.mxu0 %v6747
      %v7063 = vpop.f32.mrf.mxu0
      %v7064 = vadd.f32 %v7023, %v7063
      %v7065 = vpop.f32.mrf.mxu0
      %v7066 = vadd.f32 %v7025, %v7065
      %v7067 = vpop.f32.mrf.mxu0
      %v7068 = vpop.f32.mrf.mxu0
      %7069 = vdwg.mxu0
      %v7070 = vld [vmem:[%s15] ss:$2 sm:$0x3]
      %v7072 = vlaneseq
      %v7073 = vshrl.u32 %v7072, 7
      %v7074 = vsub.s32 0, %v7073
      %v7075 = vrot.slane %v7070, %v7074
      %v7076 = vlaneseq
      %v7077 = vshrl.u32 %v7076, 7
      %v7078 = vsub.s32 1, %v7077
      %v7079 = vrot.slane %v7070, %v7078
      %v7082 = vmul.f32 %v7064, %v7075
      %v7083 = vmul.f32 %v7066, %v7079
      %s7084 = scalar_lea.vmem %s15, 1
      %v7085 = vld [vmem:[%s7084] ss:$2 sm:$0x3]
      %v7087 = vlaneseq
      %v7088 = vshrl.u32 %v7087, 7
      %v7089 = vsub.s32 0, %v7088
      %v7090 = vrot.slane %v7085, %v7089
      %v7091 = vlaneseq
      %v7092 = vshrl.u32 %v7091, 7
      %v7093 = vsub.s32 1, %v7092
      %v7094 = vrot.slane %v7085, %v7093
      %v7097 = vadd.f32 %v7082, %v7090
      %v7098 = vadd.f32 %v7083, %v7094
      %v7099 = vmax.f32 %v7097, 0.0
      %v7100 = vmax.f32 %v7098, 0.0
      %v7101 = vld [vmem:[%s16] sm:$0xf]
      %v7102 = vld [vmem:[%s16 + $0x4] sm:$0xf]
      %v7103 = vld [vmem:[%s16 + $0x8] sm:$0xf]
      %v7104 = vld [vmem:[%s16 + $0xc] sm:$0xf]
      %v7105 = vld [vmem:[%s16 + $0x10] sm:$0xf]
      %v7106 = vld [vmem:[%s16 + $0x14] sm:$0xf]
      %v7107 = vld [vmem:[%s16 + $0x18] sm:$0xf]
      %v7108 = vld [vmem:[%s16 + $0x1c] sm:$0xf]
      %v7109 = vld [vmem:[%s16 + $0x20] sm:$0xf]
      %v7110 = vld [vmem:[%s16 + $0x24] sm:$0xf]
      %v7111 = vld [vmem:[%s16 + $0x28] sm:$0xf]
      %v7112 = vld [vmem:[%s16 + $0x2c] sm:$0xf]
      %v7113 = vld [vmem:[%s16 + $0x30] sm:$0xf]
      %v7114 = vld [vmem:[%s16 + $0x34] sm:$0xf]
      %v7115 = vld [vmem:[%s16 + $0x38] sm:$0xf]
      %v7116 = vld [vmem:[%s16 + $0x3c] sm:$0xf]
      %v7117 = vld [vmem:[%s16 + $0x40] sm:$0xf]
      %v7118 = vld [vmem:[%s16 + $0x44] sm:$0xf]
      %v7119 = vld [vmem:[%s16 + $0x48] sm:$0xf]
      %v7120 = vld [vmem:[%s16 + $0x4c] sm:$0xf]
      %v7121 = vld [vmem:[%s16 + $0x50] sm:$0xf]
      %v7122 = vld [vmem:[%s16 + $0x54] sm:$0xf]
      %v7123 = vld [vmem:[%s16 + $0x58] sm:$0xf]
      %v7124 = vld [vmem:[%s16 + $0x5c] sm:$0xf]
      %v7125 = vld [vmem:[%s16 + $0x60] sm:$0xf]
      %v7126 = vld [vmem:[%s16 + $0x64] sm:$0xf]
      %v7127 = vld [vmem:[%s16 + $0x68] sm:$0xf]
      %v7128 = vld [vmem:[%s16 + $0x6c] sm:$0xf]
      %v7129 = vld [vmem:[%s16 + $0x70] sm:$0xf]
      %v7130 = vld [vmem:[%s16 + $0x74] sm:$0xf]
      %v7131 = vld [vmem:[%s16 + $0x78] sm:$0xf]
      %v7132 = vld [vmem:[%s16 + $0x7c] sm:$0xf]
      %v7133 = vpack.c.bf16 %v7099, %v7099
      %v7134 = vpack.c.bf16 %v7100, %v7100
      %v7167 = vunpack.c.l.b16 %v7101
      %v7168 = vunpack.c.l.b16 %v7102
      %v7169 = vunpack.c.l.b16 %v7103
      %v7170 = vunpack.c.l.b16 %v7104
      %v7171 = vunpack.c.l.b16 %v7105
      %v7172 = vunpack.c.l.b16 %v7106
      %v7173 = vunpack.c.l.b16 %v7107
      %v7174 = vunpack.c.l.b16 %v7108
      %v7175 = vunpack.c.l.b16 %v7109
      %v7176 = vunpack.c.l.b16 %v7110
      %v7177 = vunpack.c.l.b16 %v7111
      %v7178 = vunpack.c.l.b16 %v7112
      %v7179 = vunpack.c.l.b16 %v7113
      %v7180 = vunpack.c.l.b16 %v7114
      %v7181 = vunpack.c.l.b16 %v7115
      %v7182 = vunpack.c.l.b16 %v7116
      %v7183 = vunpack.c.l.b16 %v7117
      %v7184 = vunpack.c.l.b16 %v7118
      %v7185 = vunpack.c.l.b16 %v7119
      %v7186 = vunpack.c.l.b16 %v7120
      %v7187 = vunpack.c.l.b16 %v7121
      %v7188 = vunpack.c.l.b16 %v7122
      %v7189 = vunpack.c.l.b16 %v7123
      %v7190 = vunpack.c.l.b16 %v7124
      %v7191 = vunpack.c.l.b16 %v7125
      %v7192 = vunpack.c.l.b16 %v7126
      %v7193 = vunpack.c.l.b16 %v7127
      %v7194 = vunpack.c.l.b16 %v7128
      %v7195 = vunpack.c.l.b16 %v7129
      %v7196 = vunpack.c.l.b16 %v7130
      %v7197 = vunpack.c.l.b16 %v7131
      %v7198 = vunpack.c.l.b16 %v7132
      %v7199 = vpack.c.b16 %v7168, %v7167
      %v7200 = vpack.c.b16 %v7170, %v7169
      %v7201 = vpack.c.b16 %v7172, %v7171
      %v7202 = vpack.c.b16 %v7174, %v7173
      %v7203 = vpack.c.b16 %v7176, %v7175
      %v7204 = vpack.c.b16 %v7178, %v7177
      %v7205 = vpack.c.b16 %v7180, %v7179
      %v7206 = vpack.c.b16 %v7182, %v7181
      %v7207 = vpack.c.b16 %v7184, %v7183
      %v7208 = vpack.c.b16 %v7186, %v7185
      %v7209 = vpack.c.b16 %v7188, %v7187
      %v7210 = vpack.c.b16 %v7190, %v7189
      %v7211 = vpack.c.b16 %v7192, %v7191
      %v7212 = vpack.c.b16 %v7194, %v7193
      %v7213 = vpack.c.b16 %v7196, %v7195
      %v7214 = vpack.c.b16 %v7198, %v7197
      %7231 = vmatprep.subr.bf16.mxu0 0
      %7232 = vmatpush1.bf16.msra.mxu0 %v7206
      %7233 = vmatprep.subr.bf16.mxu0 0
      %7234 = vmatpush1.bf16.msra.mxu0 %v7205
      %7235 = vmatprep.subr.bf16.mxu0 0
      %7236 = vmatpush1.bf16.msra.mxu0 %v7204
      %7237 = vmatprep.subr.bf16.mxu0 0
      %7238 = vmatpush1.bf16.msra.mxu0 %v7203
      %7239 = vmatprep.subr.bf16.mxu0 0
      %7240 = vmatpush1.bf16.msra.mxu0 %v7202
      %7241 = vmatprep.subr.bf16.mxu0 0
      %7242 = vmatpush1.bf16.msra.mxu0 %v7201
      %7243 = vmatprep.subr.bf16.mxu0 0
      %7244 = vmatpush1.bf16.msra.mxu0 %v7200
      %7245 = vmatprep.subr.bf16.mxu0 0
      %7246 = vmatpush1.bf16.msra.mxu0 %v7199
      %7247 = vmatprep.subr.bf16.mxu0 0
      %7248 = vmatpush2.bf16.msra.mxu0 %v7214
      %7249 = vmatprep.subr.bf16.mxu0 0
      %7250 = vmatpush2.bf16.msra.mxu0 %v7213
      %7251 = vmatprep.subr.bf16.mxu0 0
      %7252 = vmatpush2.bf16.msra.mxu0 %v7212
      %7253 = vmatprep.subr.bf16.mxu0 0
      %7254 = vmatpush2.bf16.msra.mxu0 %v7211
      %7255 = vmatprep.subr.bf16.mxu0 0
      %7256 = vmatpush2.bf16.msra.mxu0 %v7210
      %7257 = vmatprep.subr.bf16.mxu0 0
      %7258 = vmatpush2.bf16.msra.mxu0 %v7209
      %7259 = vmatprep.subr.bf16.mxu0 0
      %7260 = vmatpush2.bf16.msra.mxu0 %v7208
      %7261 = vmatprep.subr.bf16.mxu0 0
      %7262 = vmatpush2.bf16.msra.mxu0 %v7207
      %7263 = vmatprep.mubr.bf16.mxu0 %v7134
      %7264 = vmatmul.mubr.bf16.gmra.mxu0 %v7133
      %v7265 = vpop.f32.mrf.mxu0
      %v7266 = vadd.f32 %v662, %v7265
      %v7267 = vpop.f32.mrf.mxu0
      %v7268 = vpop.f32.mrf.mxu0
      %v7269 = vpop.f32.mrf.mxu0
      %7270 = vdwg.mxu0
      %v7271 = vmax.f32 %v7266, 0.0
      %v7272 = vld [vmem:[%s17] sm:$0xf]
      %v7273 = vld [vmem:[%s17 + $0x4] sm:$0xf]
      %v7274 = vld [vmem:[%s17 + $0x8] sm:$0xf]
      %v7275 = vld [vmem:[%s17 + $0xc] sm:$0xf]
      %v7276 = vld [vmem:[%s17 + $0x10] sm:$0xf]
      %v7277 = vld [vmem:[%s17 + $0x14] sm:$0xf]
      %v7278 = vld [vmem:[%s17 + $0x18] sm:$0xf]
      %v7279 = vld [vmem:[%s17 + $0x1c] sm:$0xf]
      %v7280 = vld [vmem:[%s17 + $0x20] sm:$0xf]
      %v7281 = vld [vmem:[%s17 + $0x24] sm:$0xf]
      %v7282 = vld [vmem:[%s17 + $0x28] sm:$0xf]
      %v7283 = vld [vmem:[%s17 + $0x2c] sm:$0xf]
      %v7284 = vld [vmem:[%s17 + $0x30] sm:$0xf]
      %v7285 = vld [vmem:[%s17 + $0x34] sm:$0xf]
      %v7286 = vld [vmem:[%s17 + $0x38] sm:$0xf]
      %v7287 = vld [vmem:[%s17 + $0x3c] sm:$0xf]
      %v7288 = vpack.c.bf16 %v7271, %v7271
      %v7305 = vunpack.c.l.b16 %v7272
      %v7306 = vunpack.c.l.b16 %v7273
      %v7307 = vunpack.c.l.b16 %v7274
      %v7308 = vunpack.c.l.b16 %v7275
      %v7309 = vunpack.c.l.b16 %v7276
      %v7310 = vunpack.c.l.b16 %v7277
      %v7311 = vunpack.c.l.b16 %v7278
      %v7312 = vunpack.c.l.b16 %v7279
      %v7313 = vunpack.c.l.b16 %v7280
      %v7314 = vunpack.c.l.b16 %v7281
      %v7315 = vunpack.c.l.b16 %v7282
      %v7316 = vunpack.c.l.b16 %v7283
      %v7317 = vunpack.c.l.b16 %v7284
      %v7318 = vunpack.c.l.b16 %v7285
      %v7319 = vunpack.c.l.b16 %v7286
      %v7320 = vunpack.c.l.b16 %v7287
      %v7321 = vpack.c.b16 %v7306, %v7305
      %v7322 = vpack.c.b16 %v7308, %v7307
      %v7323 = vpack.c.b16 %v7310, %v7309
      %v7324 = vpack.c.b16 %v7312, %v7311
      %v7325 = vpack.c.b16 %v7314, %v7313
      %v7326 = vpack.c.b16 %v7316, %v7315
      %v7327 = vpack.c.b16 %v7318, %v7317
      %v7328 = vpack.c.b16 %v7320, %v7319
      %7337 = vmatprep.subr.bf16.mxu0 0
      %7338 = vmatpush1.bf16.msra.mxu0 %v7328
      %7339 = vmatprep.subr.bf16.mxu0 0
      %7340 = vmatpush1.bf16.msra.mxu0 %v7327
      %7341 = vmatprep.subr.bf16.mxu0 0
      %7342 = vmatpush1.bf16.msra.mxu0 %v7326
      %7343 = vmatprep.subr.bf16.mxu0 0
      %7344 = vmatpush1.bf16.msra.mxu0 %v7325
      %7345 = vmatprep.subr.bf16.mxu0 0
      %7346 = vmatpush1.bf16.msra.mxu0 %v7324
      %7347 = vmatprep.subr.bf16.mxu0 0
      %7348 = vmatpush1.bf16.msra.mxu0 %v7323
      %7349 = vmatprep.subr.bf16.mxu0 0
      %7350 = vmatpush1.bf16.msra.mxu0 %v7322
      %7351 = vmatprep.subr.bf16.mxu0 0
      %7352 = vmatpush1.bf16.msra.mxu0 %v7321
      %7353 = vmatprep.subr.bf16.mxu0 0
      %7354 = vmatpush2.bf16.msra.mxu0 0
      %7355 = vmatprep.subr.bf16.mxu0 0
      %7356 = vmatpush2.bf16.msra.mxu0 0
      %7357 = vmatprep.subr.bf16.mxu0 0
      %7358 = vmatpush2.bf16.msra.mxu0 0
      %7359 = vmatprep.subr.bf16.mxu0 0
      %7360 = vmatpush2.bf16.msra.mxu0 0
      %7361 = vmatprep.subr.bf16.mxu0 0
      %7362 = vmatpush2.bf16.msra.mxu0 0
      %7363 = vmatprep.subr.bf16.mxu0 0
      %7364 = vmatpush2.bf16.msra.mxu0 0
      %7365 = vmatprep.subr.bf16.mxu0 0
      %7366 = vmatpush2.bf16.msra.mxu0 0
      %7367 = vmatprep.subr.bf16.mxu0 0
      %7368 = vmatpush2.bf16.msra.mxu0 0
      %7369 = vmatprep.mubr.bf16.mxu0 0
      %7370 = vmatmul.mubr.bf16.gmra.mxu0 %v7288
      %v7371 = vpop.f32.mrf.mxu0
      %v7372 = vadd.f32 %v663, %v7371
      %v7373 = vpop.f32.mrf.mxu0
      %v7374 = vpop.f32.mrf.mxu0
      %v7375 = vpop.f32.mrf.mxu0
      %7376 = vdwg.mxu0
      %7377 = vst [vmem:[%s652] sm:$0x1] %v7372
      %p7378 = scmp.lt.s32.totalorder %s30, 1
      %s7379 = scalar_select %p7378, %s30, 1
      %s7380 = scalar_lea.vmem %s19, %s7379
      // Predicated region
      $region97: #{multimodal_sentiment_forward.1} parent=95 // pred_check
        %p7381 = pneg %p467
      $region98: #{multimodal_sentiment_forward.1} parent=95 // pred_check_branch
        %7383 = sbr.rel (%p7381) target = $region100
      $region99: #{multimodal_sentiment_forward.1} parent=95 // pred_region
        _
      $region100: #{multimodal_sentiment_forward.1} parent=95 // pred_fallthru
        _
    $region96: #{multimodal_sentiment_forward.1} parent=5 // pred_fallthru
      _
    %p7384 = scmp.le.s32.totalorder 2, %s25
    // Predicated region
    $region101: #{multimodal_sentiment_forward.1} parent=5 // pred_check
      %p7385 = pneg %p7384
    $region102: #{multimodal_sentiment_forward.1} parent=5 // pred_check_branch
      %7387 = sbr.rel (%p7385) target = $region104
    $region103: #{multimodal_sentiment_forward.1} parent=5 // pred_region
      %s7388 = ssub.s32 %s25, 2
      // Predicated region
      $region105: #{multimodal_sentiment_forward.1} parent=103 // pred_check
        %p7389 = pneg %p473
      $region106: #{multimodal_sentiment_forward.1} parent=103 // pred_check_branch
        %7391 = sbr.rel (%p7389) target = $region108
      $region107: #{multimodal_sentiment_forward.1} parent=103 // pred_region
        %p7392 = scmp.lt.s32.totalorder %s31, 1
        %s7393 = scalar_select %p7392, %s31, 1
        %s7394 = scalar_lea.vmem %s19, %s7393
      $region108: #{multimodal_sentiment_forward.1} parent=103 // pred_fallthru
        _
    $region104: #{multimodal_sentiment_forward.1} parent=5 // pred_fallthru
      _
  $region6: #{multimodal_sentiment_forward.1} parent=0 // loop_footer
    %s29 = sadd.s32 1, %s25
  $region7: #{multimodal_sentiment_forward.1} parent=0 // loop_footer_branch
    %24 = sbr.rel target = $region3
  $region8: #{multimodal_sentiment_forward.1} parent=0 // loop_exit
    _

</llo_original>
